<compile_context>
chip_gen: v7x
topology: tpu7x:2x2x1
jax: 0.10.0
libtpu: 0.0.40
codegen_flags: <defaults>
</compile_context>

<pallas_src>
import jax
import jax.numpy as jnp
from jax.experimental import pallas as pl
from jax.experimental.pallas import tpu as pltpu

_BN_EPS = 1e-5
_TILE_BUDGET_BYTES = 2 * 1024 * 1024   # per-tile hot-operand budget
_TILE_MIN_ROWS = 256
_TILE_MAX_ROWS = 8192


def _pick_tile(m, row_bytes):
    """Rows per M-tile: as large as the VMEM budget allows, multiple of 8."""
    if m <= _TILE_MIN_ROWS:
        return m                       # single block (block == full dim is legal)
    t = _TILE_BUDGET_BYTES // max(int(row_bytes), 1)
    t = max(min(t, _TILE_MAX_ROWS), _TILE_MIN_ROWS)
    t -= t % 8
    t = max(t, 8)
    if t >= m:
        return m
    return t


def _pad_rows(a, m_pad):
    m = a.shape[0]
    if m_pad == m:
        return a
    return jnp.pad(a, [(0, m_pad - m)] + [(0, 0)] * (a.ndim - 1))


# ----------------------------------------------------------------------------
# Pallas kernels
# ----------------------------------------------------------------------------
def _conv_matmul_stats_kernel(x_ref, w_ref, out_ref, sum_ref, sq_ref):
    """Pass 1 of conv+BN: K-folded matmul tile + per-tile channel statistics.

    x_ref : (TM, 9*Cin) bf16 im2col tile
    w_ref : (9*Cin, Cout) bf16 (constant index_map -> fetched once)
    out_ref: (TM, Cout) bf16 raw conv tile
    sum_ref/sq_ref: (1, 1, Cout) f32 per-tile sum / sum-of-squares
    """
    acc = jnp.dot(x_ref[...], w_ref[...], preferred_element_type=jnp.float32)
    out_ref[...] = acc.astype(out_ref.dtype)
    sum_ref[...] = jnp.sum(acc, axis=0, keepdims=True)[None]
    sq_ref[...] = jnp.sum(acc * acc, axis=0, keepdims=True)[None]


def _bn_relu_kernel(x_ref, scale_ref, shift_ref, y_ref):
    """Pass 2: y = relu(x * scale + shift), f32 math, bf16 output."""
    x = x_ref[...].astype(jnp.float32)
    y = jnp.maximum(x * scale_ref[...] + shift_ref[...], 0.0)
    y_ref[...] = y.astype(y_ref.dtype)


def _bn_relu_fc_kernel(x_ref, scale_ref, shift_ref, w_ref, b_ref, y_ref, z_ref):
    """Pass 2 fused with the 1x1 fc: y = relu(x*scale+shift); z = y @ W + b."""
    x = x_ref[...].astype(jnp.float32)
    y = jnp.maximum(x * scale_ref[...] + shift_ref[...], 0.0)
    yb = y.astype(jnp.bfloat16)
    y_ref[...] = yb.astype(y_ref.dtype)
    z_ref[...] = (
        jnp.dot(yb, w_ref[...], preferred_element_type=jnp.float32) + b_ref[...]
    )


def _maxpool_fc_kernel(taps_ref, w_ref, b_ref, y_ref, z_ref):
    """3x3/s2 max pool over the tap axis, fused with the 1x1 fc.

    taps_ref: (TM, 9, C) bf16 (spatial padding value = finfo.min)
    """
    p = jnp.max(taps_ref[...].astype(jnp.float32), axis=1)  # (TM, C)
    y_ref[...] = p.astype(y_ref.dtype)
    z_ref[...] = (
        jnp.dot(p.astype(jnp.bfloat16), w_ref[...],
                preferred_element_type=jnp.float32)
        + b_ref[...]
    )


# ----------------------------------------------------------------------------
# Layout glue (plain JAX): padding + strided window extraction
# ----------------------------------------------------------------------------
def _im2col_3x3(x_nhwc, stride):
    """(B,H,W,C) -> (B*Ho*Wo, 9*C) bf16, taps folded into the K dimension."""
    B, H, W, C = x_nhwc.shape
    Ho = (H + 2 - 3) // stride + 1
    Wo = (W + 2 - 3) // stride + 1
    xp = jnp.pad(x_nhwc, ((0, 0), (1, 1), (1, 1), (0, 0)))
    cols = []
    for kh in range(3):
        for kw in range(3):
            t = xp[:,
                   kh: kh + stride * (Ho - 1) + 1: stride,
                   kw: kw + stride * (Wo - 1) + 1: stride,
                   :]
            cols.append(t.reshape(B * Ho * Wo, C))
    return jnp.concatenate(cols, axis=1), (B, Ho, Wo)


def _pool_taps_3x3_s2(x_nhwc):
    """(B,H,W,C) -> (B*Ho*Wo, 9, C) with very-negative padding (post-ReLU input)."""
    B, H, W, C = x_nhwc.shape
    Ho = (H + 2 - 3) // 2 + 1
    Wo = (W + 2 - 3) // 2 + 1
    neg = jnp.asarray(jnp.finfo(x_nhwc.dtype).min, x_nhwc.dtype)
    xp = jnp.pad(x_nhwc, ((0, 0), (1, 1), (1, 1), (0, 0)), constant_values=neg)
    taps = []
    for kh in range(3):
        for kw in range(3):
            t = xp[:,
                   kh: kh + 2 * (Ho - 1) + 1: 2,
                   kw: kw + 2 * (Wo - 1) + 1: 2,
                   :]
            taps.append(t.reshape(B * Ho * Wo, C))
    return jnp.stack(taps, axis=1), (B, Ho, Wo)


# ----------------------------------------------------------------------------
# Wrappers around pallas_call
# ----------------------------------------------------------------------------
def _conv3x3_raw(x_nhwc, w_hwio, *, stride):
    """Pass 1: raw conv (bf16) + per-tile channel sums / sums-of-squares."""
    cols, (B, Ho, Wo) = _im2col_3x3(x_nhwc.astype(jnp.bfloat16), stride)
    M = B * Ho * Wo
    Cin = x_nhwc.shape[-1]
    Cout = w_hwio.shape[-1]
    K = 9 * Cin
    w = w_hwio.reshape(K, Cout).astype(jnp.bfloat16)

    tm = _pick_tile(M, 2 * K + 2 * Cout)      # bf16 im2col in + bf16 raw out
    nt = -(-M // tm)
    Mp = nt * tm
    cols = _pad_rows(cols, Mp)                # zero rows: no effect on stats

    raw, sums, sqs = pl.pallas_call(
        _conv_matmul_stats_kernel,
        out_shape=(
            jax.ShapeDtypeStruct((Mp, Cout), jnp.bfloat16),
            jax.ShapeDtypeStruct((nt, 1, Cout), jnp.float32),
            jax.ShapeDtypeStruct((nt, 1, Cout), jnp.float32),
        ),
        grid_spec=pltpu.PrefetchScalarGridSpec(
            num_scalar_prefetch=0,
            grid=(nt,),
            in_specs=[
                pl.BlockSpec((tm, K), lambda i: (i, 0)),
                pl.BlockSpec((K, Cout), lambda i: (0, 0)),   # fetched once
            ],
            out_specs=(
                pl.BlockSpec((tm, Cout), lambda i: (i, 0)),
                pl.BlockSpec((1, 1, Cout), lambda i: (i, 0, 0)),
                pl.BlockSpec((1, 1, Cout), lambda i: (i, 0, 0)),
            ),
        ),
        compiler_params=pltpu.CompilerParams(
            dimension_semantics=("parallel",)),
    )(cols, w)
    return raw, sums.reshape(nt, Cout), sqs.reshape(nt, Cout), M, tm, (B, Ho, Wo)


def _bn_scale_shift(sums, sqs, count, gamma, beta):
    """Finish global (SyncBatchNorm training-mode) statistics -> scale/shift."""
    mean = jnp.sum(sums, axis=0) / count
    var = jnp.maximum(jnp.sum(sqs, axis=0) / count - mean * mean, 0.0)
    scale = gamma * jax.lax.rsqrt(var + _BN_EPS)
    shift = beta - mean * scale
    C = scale.shape[0]
    return scale.reshape(1, C), shift.reshape(1, C)


def conv3x3_bn_relu(x_nhwc, w_hwio, gamma, beta, *, stride):
    raw, sums, sqs, M, tm, (B, Ho, Wo) = _conv3x3_raw(x_nhwc, w_hwio, stride=stride)
    Mp, Cout = raw.shape
    nt = Mp // tm
    scale, shift = _bn_scale_shift(sums, sqs, M, gamma, beta)

    y = pl.pallas_call(
        _bn_relu_kernel,
        out_shape=jax.ShapeDtypeStruct((Mp, Cout), jnp.bfloat16),
        grid_spec=pltpu.PrefetchScalarGridSpec(
            num_scalar_prefetch=0,
            grid=(nt,),
            in_specs=[
                pl.BlockSpec((tm, Cout), lambda i: (i, 0)),
                pl.BlockSpec((1, Cout), lambda i: (0, 0)),
                pl.BlockSpec((1, Cout), lambda i: (0, 0)),
            ],
            out_specs=pl.BlockSpec((tm, Cout), lambda i: (i, 0)),
        ),
        compiler_params=pltpu.CompilerParams(
            dimension_semantics=("parallel",)),
    )(raw, scale, shift)
    return y[:M].reshape(B, Ho, Wo, Cout)


def conv3x3_bn_relu_fc(x_nhwc, w_hwio, gamma, beta, fc_w, fc_b, *, stride):
    """conv3x3 -> BN -> ReLU, with the 1x1 fc fused into the epilogue."""
    raw, sums, sqs, M, tm, (B, Ho, Wo) = _conv3x3_raw(x_nhwc, w_hwio, stride=stride)
    Mp, Cout = raw.shape
    nt = Mp // tm
    E = fc_w.shape[-1]
    scale, shift = _bn_scale_shift(sums, sqs, M, gamma, beta)

    y, z = pl.pallas_call(
        _bn_relu_fc_kernel,
        out_shape=(
            jax.ShapeDtypeStruct((Mp, Cout), jnp.bfloat16),
            jax.ShapeDtypeStruct((Mp, E), jnp.float32),
        ),
        grid_spec=pltpu.PrefetchScalarGridSpec(
            num_scalar_prefetch=0,
            grid=(nt,),
            in_specs=[
                pl.BlockSpec((tm, Cout), lambda i: (i, 0)),
                pl.BlockSpec((1, Cout), lambda i: (0, 0)),
                pl.BlockSpec((1, Cout), lambda i: (0, 0)),
                pl.BlockSpec((Cout, E), lambda i: (0, 0)),
                pl.BlockSpec((1, E), lambda i: (0, 0)),
            ],
            out_specs=(
                pl.BlockSpec((tm, Cout), lambda i: (i, 0)),
                pl.BlockSpec((tm, E), lambda i: (i, 0)),
            ),
        ),
        compiler_params=pltpu.CompilerParams(
            dimension_semantics=("parallel",)),
    )(raw, scale, shift, fc_w.astype(jnp.bfloat16), fc_b.reshape(1, E))
    return (y[:M].reshape(B, Ho, Wo, Cout),
            z[:M].reshape(B, Ho, Wo, E))


def maxpool3x3_s2_fc(x_nhwc, fc_w, fc_b):
    """3x3/s2/pad1 max pool with the 1x1 fc fused into the same kernel."""
    C = x_nhwc.shape[-1]
    E = fc_w.shape[-1]
    taps, (B, Ho, Wo) = _pool_taps_3x3_s2(x_nhwc.astype(jnp.bfloat16))
    M = B * Ho * Wo
    tm = _pick_tile(M, 2 * 9 * C + 2 * C + 4 * E)
    nt = -(-M // tm)
    Mp = nt * tm
    taps = _pad_rows(taps, Mp)                 # padded rows discarded below

    y, z = pl.pallas_call(
        _maxpool_fc_kernel,
        out_shape=(
            jax.ShapeDtypeStruct((Mp, C), jnp.bfloat16),
            jax.ShapeDtypeStruct((Mp, E), jnp.float32),
        ),
        grid_spec=pltpu.PrefetchScalarGridSpec(
            num_scalar_prefetch=0,
            grid=(nt,),
            in_specs=[
                pl.BlockSpec((tm, 9, C), lambda i: (i, 0, 0)),
                pl.BlockSpec((C, E), lambda i: (0, 0)),
                pl.BlockSpec((1, E), lambda i: (0, 0)),
            ],
            out_specs=(
                pl.BlockSpec((tm, C), lambda i: (i, 0)),
                pl.BlockSpec((tm, E), lambda i: (i, 0)),
            ),
        ),
        compiler_params=pltpu.CompilerParams(
            dimension_semantics=("parallel",)),
    )(taps, fc_w.astype(jnp.bfloat16), fc_b.reshape(1, E))
    return (y[:M].reshape(B, Ho, Wo, C),
            z[:M].reshape(B, Ho, Wo, E))


# ----------------------------------------------------------------------------
# Parameters (deterministic synthetic init; conv weights stored HWIO, f32)
# ----------------------------------------------------------------------------
def init_params(key, in_chans, inplanes, embed_dim):
    keys = iter(jax.random.split(key, 32))

    def conv_w(cin, cout):
        return jax.random.normal(next(keys), (3, 3, cin, cout), jnp.float32) * 0.1

    def bn(c):
        g = 1.0 + 0.1 * jax.random.normal(next(keys), (c,), jnp.float32)
        b = 0.1 * jax.random.normal(next(keys), (c,), jnp.float32)
        return g, b

    def fc(cin):
        w = jax.random.normal(next(keys), (cin, embed_dim), jnp.float32) * 0.1
        b = 0.1 * jax.random.normal(next(keys), (embed_dim,), jnp.float32)
        return w, b

    p = {}
    p["stem1_w"], p["stem1_bn"] = conv_w(in_chans, inplanes), bn(inplanes)
    p["stem2_w"], p["stem2_bn"] = conv_w(inplanes, inplanes), bn(inplanes)
    p["stem3_w"], p["stem3_bn"] = conv_w(inplanes, inplanes), bn(inplanes)
    p["conv2_w"], p["conv2_bn"] = conv_w(inplanes, 2 * inplanes), bn(2 * inplanes)
    p["conv3_w"], p["conv3_bn"] = conv_w(2 * inplanes, 4 * inplanes), bn(4 * inplanes)
    p["conv4_w"], p["conv4_bn"] = conv_w(4 * inplanes, 4 * inplanes), bn(4 * inplanes)
    p["fc1"] = fc(inplanes)
    p["fc2"] = fc(2 * inplanes)
    p["fc3"] = fc(4 * inplanes)
    p["fc4"] = fc(4 * inplanes)
    return p


# ----------------------------------------------------------------------------
# Module forward (matches SpatialPriorModule.forward)
# ----------------------------------------------------------------------------
def spatial_prior_module_forward(x_nchw, params):
    x = jnp.transpose(x_nchw, (0, 2, 3, 1)).astype(jnp.bfloat16)  # NCHW -> NHWC

    # stem: 3x (conv3x3 -> BN -> ReLU), strides 2/1/1, then maxpool 3x3/s2 + fc1
    h = conv3x3_bn_relu(x, params["stem1_w"], *params["stem1_bn"], stride=2)
    h = conv3x3_bn_relu(h, params["stem2_w"], *params["stem2_bn"], stride=1)
    h = conv3x3_bn_relu(h, params["stem3_w"], *params["stem3_bn"], stride=1)
    c1, f1 = maxpool3x3_s2_fc(h, *params["fc1"])        # c1 feeds conv2; f1 = fc1(c1)

    c2, f2 = conv3x3_bn_relu_fc(c1, params["conv2_w"], *params["conv2_bn"],
                                *params["fc2"], stride=2)
    c3, f3 = conv3x3_bn_relu_fc(c2, params["conv3_w"], *params["conv3_bn"],
                                *params["fc3"], stride=2)
    _c4, f4 = conv3x3_bn_relu_fc(c3, params["conv4_w"], *params["conv4_bn"],
                                 *params["fc4"], stride=2)

    B = f1.shape[0]
    E = f1.shape[-1]                                    # embed_dim
    c1_out = jnp.transpose(f1, (0, 3, 1, 2))            # (B, embed_dim, H/4, W/4)
    c2_out = f2.reshape(B, -1, E)                       # (B, HW, embed_dim)
    c3_out = f3.reshape(B, -1, E)
    c4_out = f4.reshape(B, -1, E)
    return c1_out, c2_out, c3_out, c4_out


if __name__ == "__main__":
    B, in_chans, H, W = 2, 3, 32, 32
    inplanes, embed_dim = 16, 32

    key = jax.random.PRNGKey(0)
    k_x, k_p = jax.random.split(key)
    x = jax.random.normal(k_x, (B, in_chans, H, W), jnp.float32)  # NCHW like torch
    params = init_params(k_p, in_chans, inplanes, embed_dim)

    fwd = jax.jit(spatial_prior_module_forward)
    c1, c2, c3, c4 = fwd(x, params)
    jax.block_until_ready((c1, c2, c3, c4))

    # H=W=32: c1 at H/4=8, c2 at H/8=4 (16 tokens), c3 at 2x2 (4), c4 at 1x1 (1)
    assert c1.shape == (B, embed_dim, 8, 8), c1.shape
    assert c2.shape == (B, 16, embed_dim), c2.shape
    assert c3.shape == (B, 4, embed_dim), c3.shape
    assert c4.shape == (B, 1, embed_dim), c4.shape
    assert all(
        bool(jnp.all(jnp.isfinite(t.astype(jnp.float32)))) for t in (c1, c2, c3, c4)
    )

    print("KERNEL_OK")
</pallas_src>

<mosaic_0001>
module attributes {stable_mosaic.version = 11 : i64} {
  func.func @_conv_matmul_stats_kernel(%arg0: i32, %arg1: memref<512x27xbf16, #tpu.memory_space<vmem>>, %arg2: memref<27x16xbf16, #tpu.memory_space<vmem>>, %arg3: memref<512x16xbf16, #tpu.memory_space<vmem>>, %arg4: memref<1x1x16xf32, #tpu.memory_space<vmem>>, %arg5: memref<1x1x16xf32, #tpu.memory_space<vmem>>) attributes {dimension_semantics = [#tpu.dimension_semantics<parallel>], iteration_bounds = array<i64: 1>, scalar_prefetch = 0 : i64, scratch_operands = 0 : i64, tpu.core_type = #tpu.core_type<tc>, window_params = [{transform_indices = @transform_0, window_bounds = array<i64: 512, 27>}, {pipeline_mode = #tpu.pipeline_mode<synchronous>, transform_indices = @transform_1, window_bounds = array<i64: 27, 16>}, {transform_indices = @transform_2, window_bounds = array<i64: 512, 16>}, {transform_indices = @transform_3, window_bounds = array<i64: 1, 1, 16>}, {transform_indices = @transform_4, window_bounds = array<i64: 1, 1, 16>}]} {
    %c0 = arith.constant 0 : index
    %c0_0 = arith.constant 0 : index
    %0 = vector.load %arg1[%c0, %c0_0] : memref<512x27xbf16, #tpu.memory_space<vmem>>, vector<512x27xbf16>
    %c0_1 = arith.constant 0 : index
    %c0_2 = arith.constant 0 : index
    %1 = vector.load %arg2[%c0_1, %c0_2] : memref<27x16xbf16, #tpu.memory_space<vmem>>, vector<27x16xbf16>
    %cst = arith.constant dense<0.000000e+00> : vector<512x16xf32>
    %2 = tpu.matmul %0, %1, %cst {dimension_numbers = #tpu.dot_dimension_numbers<[1], [0], [0], [1], [0, 0, 1, 1], [], []>} : vector<512x27xbf16>, vector<27x16xbf16>, vector<512x16xf32> -> vector<512x16xf32>
    %3 = arith.truncf %2 : vector<512x16xf32> to vector<512x16xbf16>
    %c0_3 = arith.constant 0 : index
    %c0_4 = arith.constant 0 : index
    %4 = vector.load %arg3[%c0_3, %c0_4] : memref<512x16xbf16, #tpu.memory_space<vmem>>, vector<512x16xbf16>
    tpu.vector_store %arg3[%c0_3, %c0_4], %3 {strides = array<i32>} : memref<512x16xbf16, #tpu.memory_space<vmem>>, vector<512x16xbf16>,
    %cst_5 = arith.constant dense<0.000000e+00> : vector<16xf32>
    %5 = vector.multi_reduction <add>, %2, %cst_5 [0] : vector<512x16xf32> to vector<16xf32>
    %6 = vector.shape_cast %5 : vector<16xf32> to vector<1x16xf32>
    %7 = vector.shape_cast %6 : vector<1x16xf32> to vector<1x1x16xf32>
    %c0_6 = arith.constant 0 : index
    %c0_7 = arith.constant 0 : index
    %c0_8 = arith.constant 0 : index
    %8 = vector.load %arg4[%c0_6, %c0_7, %c0_8] : memref<1x1x16xf32, #tpu.memory_space<vmem>>, vector<1x1x16xf32>
    tpu.vector_store %arg4[%c0_6, %c0_7, %c0_8], %7 {strides = array<i32>} : memref<1x1x16xf32, #tpu.memory_space<vmem>>, vector<1x1x16xf32>,
    %9 = arith.mulf %2, %2 : vector<512x16xf32>
    %cst_9 = arith.constant dense<0.000000e+00> : vector<16xf32>
    %10 = vector.multi_reduction <add>, %9, %cst_9 [0] : vector<512x16xf32> to vector<16xf32>
    %11 = vector.shape_cast %10 : vector<16xf32> to vector<1x16xf32>
    %12 = vector.shape_cast %11 : vector<1x16xf32> to vector<1x1x16xf32>
    %c0_10 = arith.constant 0 : index
    %c0_11 = arith.constant 0 : index
    %c0_12 = arith.constant 0 : index
    %13 = vector.load %arg5[%c0_10, %c0_11, %c0_12] : memref<1x1x16xf32, #tpu.memory_space<vmem>>, vector<1x1x16xf32>
    tpu.vector_store %arg5[%c0_10, %c0_11, %c0_12], %12 {strides = array<i32>} : memref<1x1x16xf32, #tpu.memory_space<vmem>>, vector<1x1x16xf32>,
    return
  }
  func.func @transform_0(%arg0: i32) -> (i32, i32) {
    %c0_i32 = arith.constant 0 : i32
    %c0_i32_0 = arith.constant 0 : i32
    return %arg0, %c0_i32 : i32, i32
  }
  func.func @transform_1(%arg0: i32) -> (i32, i32) {
    %c0_i32 = arith.constant 0 : i32
    %c0_i32_0 = arith.constant 0 : i32
    %c0_i32_1 = arith.constant 0 : i32
    return %c0_i32, %c0_i32_0 : i32, i32
  }
  func.func @transform_2(%arg0: i32) -> (i32, i32) {
    %c0_i32 = arith.constant 0 : i32
    %c0_i32_0 = arith.constant 0 : i32
    return %arg0, %c0_i32 : i32, i32
  }
  func.func @transform_3(%arg0: i32) -> (i32, i32, i32) {
    %c0_i32 = arith.constant 0 : i32
    %c0_i32_0 = arith.constant 0 : i32
    %c0_i32_1 = arith.constant 0 : i32
    return %arg0, %c0_i32, %c0_i32_0 : i32, i32, i32
  }
  func.func @transform_4(%arg0: i32) -> (i32, i32, i32) {
    %c0_i32 = arith.constant 0 : i32
    %c0_i32_0 = arith.constant 0 : i32
    %c0_i32_1 = arith.constant 0 : i32
    return %arg0, %c0_i32, %c0_i32_0 : i32, i32, i32
  }
}

module attributes {stable_mosaic.version = 11 : i64} {
  func.func @_bn_relu_kernel(%arg0: i32, %arg1: memref<512x16xbf16, #tpu.memory_space<vmem>>, %arg2: memref<1x16xf32, #tpu.memory_space<vmem>>, %arg3: memref<1x16xf32, #tpu.memory_space<vmem>>, %arg4: memref<512x16xbf16, #tpu.memory_space<vmem>>) attributes {dimension_semantics = [#tpu.dimension_semantics<parallel>], iteration_bounds = array<i64: 1>, scalar_prefetch = 0 : i64, scratch_operands = 0 : i64, tpu.core_type = #tpu.core_type<tc>, window_params = [{transform_indices = @transform_0, window_bounds = array<i64: 512, 16>}, {pipeline_mode = #tpu.pipeline_mode<synchronous>, transform_indices = @transform_1, window_bounds = array<i64: 1, 16>}, {pipeline_mode = #tpu.pipeline_mode<synchronous>, transform_indices = @transform_2, window_bounds = array<i64: 1, 16>}, {transform_indices = @transform_3, window_bounds = array<i64: 512, 16>}]} {
    %c0 = arith.constant 0 : index
    %c0_0 = arith.constant 0 : index
    %0 = vector.load %arg1[%c0, %c0_0] : memref<512x16xbf16, #tpu.memory_space<vmem>>, vector<512x16xbf16>
    %1 = arith.extf %0 : vector<512x16xbf16> to vector<512x16xf32>
    %c0_1 = arith.constant 0 : index
    %c0_2 = arith.constant 0 : index
    %2 = vector.load %arg2[%c0_1, %c0_2] : memref<1x16xf32, #tpu.memory_space<vmem>>, vector<1x16xf32>
    %3 = vector.broadcast %2 : vector<1x16xf32> to vector<512x16xf32>
    %4 = arith.mulf %1, %3 : vector<512x16xf32>
    %c0_3 = arith.constant 0 : index
    %c0_4 = arith.constant 0 : index
    %5 = vector.load %arg3[%c0_3, %c0_4] : memref<1x16xf32, #tpu.memory_space<vmem>>, vector<1x16xf32>
    %6 = vector.broadcast %5 : vector<1x16xf32> to vector<512x16xf32>
    %7 = arith.addf %4, %6 : vector<512x16xf32>
    %cst = arith.constant 0.000000e+00 : f32
    %8 = vector.broadcast %cst : f32 to vector<512x16xf32>
    %9 = arith.maximumf %7, %8 : vector<512x16xf32>
    %10 = arith.truncf %9 : vector<512x16xf32> to vector<512x16xbf16>
    %c0_5 = arith.constant 0 : index
    %c0_6 = arith.constant 0 : index
    %11 = vector.load %arg4[%c0_5, %c0_6] : memref<512x16xbf16, #tpu.memory_space<vmem>>, vector<512x16xbf16>
    tpu.vector_store %arg4[%c0_5, %c0_6], %10 {strides = array<i32>} : memref<512x16xbf16, #tpu.memory_space<vmem>>, vector<512x16xbf16>,
    return
  }
  func.func @transform_0(%arg0: i32) -> (i32, i32) {
    %c0_i32 = arith.constant 0 : i32
    %c0_i32_0 = arith.constant 0 : i32
    return %arg0, %c0_i32 : i32, i32
  }
  func.func @transform_1(%arg0: i32) -> (i32, i32) {
    %c0_i32 = arith.constant 0 : i32
    %c0_i32_0 = arith.constant 0 : i32
    %c0_i32_1 = arith.constant 0 : i32
    return %c0_i32, %c0_i32_0 : i32, i32
  }
  func.func @transform_2(%arg0: i32) -> (i32, i32) {
    %c0_i32 = arith.constant 0 : i32
    %c0_i32_0 = arith.constant 0 : i32
    %c0_i32_1 = arith.constant 0 : i32
    return %c0_i32, %c0_i32_0 : i32, i32
  }
  func.func @transform_3(%arg0: i32) -> (i32, i32) {
    %c0_i32 = arith.constant 0 : i32
    %c0_i32_0 = arith.constant 0 : i32
    return %arg0, %c0_i32 : i32, i32
  }
}

module attributes {stable_mosaic.version = 11 : i64} {
  func.func @_conv_matmul_stats_kernel(%arg0: i32, %arg1: memref<512x144xbf16, #tpu.memory_space<vmem>>, %arg2: memref<144x16xbf16, #tpu.memory_space<vmem>>, %arg3: memref<512x16xbf16, #tpu.memory_space<vmem>>, %arg4: memref<1x1x16xf32, #tpu.memory_space<vmem>>, %arg5: memref<1x1x16xf32, #tpu.memory_space<vmem>>) attributes {dimension_semantics = [#tpu.dimension_semantics<parallel>], iteration_bounds = array<i64: 1>, scalar_prefetch = 0 : i64, scratch_operands = 0 : i64, tpu.core_type = #tpu.core_type<tc>, window_params = [{transform_indices = @transform_0, window_bounds = array<i64: 512, 144>}, {pipeline_mode = #tpu.pipeline_mode<synchronous>, transform_indices = @transform_1, window_bounds = array<i64: 144, 16>}, {transform_indices = @transform_2, window_bounds = array<i64: 512, 16>}, {transform_indices = @transform_3, window_bounds = array<i64: 1, 1, 16>}, {transform_indices = @transform_4, window_bounds = array<i64: 1, 1, 16>}]} {
    %c0 = arith.constant 0 : index
    %c0_0 = arith.constant 0 : index
    %0 = vector.load %arg1[%c0, %c0_0] : memref<512x144xbf16, #tpu.memory_space<vmem>>, vector<512x144xbf16>
    %c0_1 = arith.constant 0 : index
    %c0_2 = arith.constant 0 : index
    %1 = vector.load %arg2[%c0_1, %c0_2] : memref<144x16xbf16, #tpu.memory_space<vmem>>, vector<144x16xbf16>
    %cst = arith.constant dense<0.000000e+00> : vector<512x16xf32>
    %2 = tpu.matmul %0, %1, %cst {dimension_numbers = #tpu.dot_dimension_numbers<[1], [0], [0], [1], [0, 0, 1, 1], [], []>} : vector<512x144xbf16>, vector<144x16xbf16>, vector<512x16xf32> -> vector<512x16xf32>
    %3 = arith.truncf %2 : vector<512x16xf32> to vector<512x16xbf16>
    %c0_3 = arith.constant 0 : index
    %c0_4 = arith.constant 0 : index
    %4 = vector.load %arg3[%c0_3, %c0_4] : memref<512x16xbf16, #tpu.memory_space<vmem>>, vector<512x16xbf16>
    tpu.vector_store %arg3[%c0_3, %c0_4], %3 {strides = array<i32>} : memref<512x16xbf16, #tpu.memory_space<vmem>>, vector<512x16xbf16>,
    %cst_5 = arith.constant dense<0.000000e+00> : vector<16xf32>
    %5 = vector.multi_reduction <add>, %2, %cst_5 [0] : vector<512x16xf32> to vector<16xf32>
    %6 = vector.shape_cast %5 : vector<16xf32> to vector<1x16xf32>
    %7 = vector.shape_cast %6 : vector<1x16xf32> to vector<1x1x16xf32>
    %c0_6 = arith.constant 0 : index
    %c0_7 = arith.constant 0 : index
    %c0_8 = arith.constant 0 : index
    %8 = vector.load %arg4[%c0_6, %c0_7, %c0_8] : memref<1x1x16xf32, #tpu.memory_space<vmem>>, vector<1x1x16xf32>
    tpu.vector_store %arg4[%c0_6, %c0_7, %c0_8], %7 {strides = array<i32>} : memref<1x1x16xf32, #tpu.memory_space<vmem>>, vector<1x1x16xf32>,
    %9 = arith.mulf %2, %2 : vector<512x16xf32>
    %cst_9 = arith.constant dense<0.000000e+00> : vector<16xf32>
    %10 = vector.multi_reduction <add>, %9, %cst_9 [0] : vector<512x16xf32> to vector<16xf32>
    %11 = vector.shape_cast %10 : vector<16xf32> to vector<1x16xf32>
    %12 = vector.shape_cast %11 : vector<1x16xf32> to vector<1x1x16xf32>
    %c0_10 = arith.constant 0 : index
    %c0_11 = arith.constant 0 : index
    %c0_12 = arith.constant 0 : index
    %13 = vector.load %arg5[%c0_10, %c0_11, %c0_12] : memref<1x1x16xf32, #tpu.memory_space<vmem>>, vector<1x1x16xf32>
    tpu.vector_store %arg5[%c0_10, %c0_11, %c0_12], %12 {strides = array<i32>} : memref<1x1x16xf32, #tpu.memory_space<vmem>>, vector<1x1x16xf32>,
    return
  }
  func.func @transform_0(%arg0: i32) -> (i32, i32) {
    %c0_i32 = arith.constant 0 : i32
    %c0_i32_0 = arith.constant 0 : i32
    return %arg0, %c0_i32 : i32, i32
  }
  func.func @transform_1(%arg0: i32) -> (i32, i32) {
    %c0_i32 = arith.constant 0 : i32
    %c0_i32_0 = arith.constant 0 : i32
    %c0_i32_1 = arith.constant 0 : i32
    return %c0_i32, %c0_i32_0 : i32, i32
  }
  func.func @transform_2(%arg0: i32) -> (i32, i32) {
    %c0_i32 = arith.constant 0 : i32
    %c0_i32_0 = arith.constant 0 : i32
    return %arg0, %c0_i32 : i32, i32
  }
  func.func @transform_3(%arg0: i32) -> (i32, i32, i32) {
    %c0_i32 = arith.constant 0 : i32
    %c0_i32_0 = arith.constant 0 : i32
    %c0_i32_1 = arith.constant 0 : i32
    return %arg0, %c0_i32, %c0_i32_0 : i32, i32, i32
  }
  func.func @transform_4(%arg0: i32) -> (i32, i32, i32) {
    %c0_i32 = arith.constant 0 : i32
    %c0_i32_0 = arith.constant 0 : i32
    %c0_i32_1 = arith.constant 0 : i32
    return %arg0, %c0_i32, %c0_i32_0 : i32, i32, i32
  }
}

module attributes {stable_mosaic.version = 11 : i64} {
  func.func @_maxpool_fc_kernel(%arg0: i32, %arg1: memref<128x9x16xbf16, #tpu.memory_space<vmem>>, %arg2: memref<16x32xbf16, #tpu.memory_space<vmem>>, %arg3: memref<1x32xf32, #tpu.memory_space<vmem>>, %arg4: memref<128x16xbf16, #tpu.memory_space<vmem>>, %arg5: memref<128x32xf32, #tpu.memory_space<vmem>>) attributes {dimension_semantics = [#tpu.dimension_semantics<parallel>], iteration_bounds = array<i64: 1>, scalar_prefetch = 0 : i64, scratch_operands = 0 : i64, tpu.core_type = #tpu.core_type<tc>, window_params = [{transform_indices = @transform_0, window_bounds = array<i64: 128, 9, 16>}, {pipeline_mode = #tpu.pipeline_mode<synchronous>, transform_indices = @transform_1, window_bounds = array<i64: 16, 32>}, {pipeline_mode = #tpu.pipeline_mode<synchronous>, transform_indices = @transform_2, window_bounds = array<i64: 1, 32>}, {transform_indices = @transform_3, window_bounds = array<i64: 128, 16>}, {transform_indices = @transform_4, window_bounds = array<i64: 128, 32>}]} {
    %c0 = arith.constant 0 : index
    %c0_0 = arith.constant 0 : index
    %c0_1 = arith.constant 0 : index
    %0 = vector.load %arg1[%c0, %c0_0, %c0_1] : memref<128x9x16xbf16, #tpu.memory_space<vmem>>, vector<128x9x16xbf16>
    %1 = arith.extf %0 : vector<128x9x16xbf16> to vector<128x9x16xf32>
    %cst = arith.constant dense<0xFF800000> : vector<128x16xf32>
    %2 = vector.multi_reduction <maximumf>, %1, %cst [1] : vector<128x9x16xf32> to vector<128x16xf32>
    %3 = arith.truncf %2 : vector<128x16xf32> to vector<128x16xbf16>
    %c0_2 = arith.constant 0 : index
    %c0_3 = arith.constant 0 : index
    %4 = vector.load %arg4[%c0_2, %c0_3] : memref<128x16xbf16, #tpu.memory_space<vmem>>, vector<128x16xbf16>
    tpu.vector_store %arg4[%c0_2, %c0_3], %3 {strides = array<i32>} : memref<128x16xbf16, #tpu.memory_space<vmem>>, vector<128x16xbf16>,
    %5 = arith.truncf %2 : vector<128x16xf32> to vector<128x16xbf16>
    %c0_4 = arith.constant 0 : index
    %c0_5 = arith.constant 0 : index
    %6 = vector.load %arg2[%c0_4, %c0_5] : memref<16x32xbf16, #tpu.memory_space<vmem>>, vector<16x32xbf16>
    %cst_6 = arith.constant dense<0.000000e+00> : vector<128x32xf32>
    %7 = tpu.matmul %5, %6, %cst_6 {dimension_numbers = #tpu.dot_dimension_numbers<[1], [0], [0], [1], [0, 0, 1, 1], [], []>} : vector<128x16xbf16>, vector<16x32xbf16>, vector<128x32xf32> -> vector<128x32xf32>
    %c0_7 = arith.constant 0 : index
    %c0_8 = arith.constant 0 : index
    %8 = vector.load %arg3[%c0_7, %c0_8] : memref<1x32xf32, #tpu.memory_space<vmem>>, vector<1x32xf32>
    %9 = vector.broadcast %8 : vector<1x32xf32> to vector<128x32xf32>
    %10 = arith.addf %7, %9 : vector<128x32xf32>
    %c0_9 = arith.constant 0 : index
    %c0_10 = arith.constant 0 : index
    %11 = vector.load %arg5[%c0_9, %c0_10] : memref<128x32xf32, #tpu.memory_space<vmem>>, vector<128x32xf32>
    tpu.vector_store %arg5[%c0_9, %c0_10], %10 {strides = array<i32>} : memref<128x32xf32, #tpu.memory_space<vmem>>, vector<128x32xf32>,
    return
  }
  func.func @transform_0(%arg0: i32) -> (i32, i32, i32) {
    %c0_i32 = arith.constant 0 : i32
    %c0_i32_0 = arith.constant 0 : i32
    %c0_i32_1 = arith.constant 0 : i32
    return %arg0, %c0_i32, %c0_i32_0 : i32, i32, i32
  }
  func.func @transform_1(%arg0: i32) -> (i32, i32) {
    %c0_i32 = arith.constant 0 : i32
    %c0_i32_0 = arith.constant 0 : i32
    %c0_i32_1 = arith.constant 0 : i32
    return %c0_i32, %c0_i32_0 : i32, i32
  }
  func.func @transform_2(%arg0: i32) -> (i32, i32) {
    %c0_i32 = arith.constant 0 : i32
    %c0_i32_0 = arith.constant 0 : i32
    %c0_i32_1 = arith.constant 0 : i32
    return %c0_i32, %c0_i32_0 : i32, i32
  }
  func.func @transform_3(%arg0: i32) -> (i32, i32) {
    %c0_i32 = arith.constant 0 : i32
    %c0_i32_0 = arith.constant 0 : i32
    return %arg0, %c0_i32 : i32, i32
  }
  func.func @transform_4(%arg0: i32) -> (i32, i32) {
    %c0_i32 = arith.constant 0 : i32
    %c0_i32_0 = arith.constant 0 : i32
    return %arg0, %c0_i32 : i32, i32
  }
}

module attributes {stable_mosaic.version = 11 : i64} {
  func.func @_conv_matmul_stats_kernel(%arg0: i32, %arg1: memref<32x144xbf16, #tpu.memory_space<vmem>>, %arg2: memref<144x32xbf16, #tpu.memory_space<vmem>>, %arg3: memref<32x32xbf16, #tpu.memory_space<vmem>>, %arg4: memref<1x1x32xf32, #tpu.memory_space<vmem>>, %arg5: memref<1x1x32xf32, #tpu.memory_space<vmem>>) attributes {dimension_semantics = [#tpu.dimension_semantics<parallel>], iteration_bounds = array<i64: 1>, scalar_prefetch = 0 : i64, scratch_operands = 0 : i64, tpu.core_type = #tpu.core_type<tc>, window_params = [{transform_indices = @transform_0, window_bounds = array<i64: 32, 144>}, {pipeline_mode = #tpu.pipeline_mode<synchronous>, transform_indices = @transform_1, window_bounds = array<i64: 144, 32>}, {transform_indices = @transform_2, window_bounds = array<i64: 32, 32>}, {transform_indices = @transform_3, window_bounds = array<i64: 1, 1, 32>}, {transform_indices = @transform_4, window_bounds = array<i64: 1, 1, 32>}]} {
    %c0 = arith.constant 0 : index
    %c0_0 = arith.constant 0 : index
    %0 = vector.load %arg1[%c0, %c0_0] : memref<32x144xbf16, #tpu.memory_space<vmem>>, vector<32x144xbf16>
    %c0_1 = arith.constant 0 : index
    %c0_2 = arith.constant 0 : index
    %1 = vector.load %arg2[%c0_1, %c0_2] : memref<144x32xbf16, #tpu.memory_space<vmem>>, vector<144x32xbf16>
    %cst = arith.constant dense<0.000000e+00> : vector<32x32xf32>
    %2 = tpu.matmul %0, %1, %cst {dimension_numbers = #tpu.dot_dimension_numbers<[1], [0], [0], [1], [0, 0, 1, 1], [], []>} : vector<32x144xbf16>, vector<144x32xbf16>, vector<32x32xf32> -> vector<32x32xf32>
    %3 = arith.truncf %2 : vector<32x32xf32> to vector<32x32xbf16>
    %c0_3 = arith.constant 0 : index
    %c0_4 = arith.constant 0 : index
    %4 = vector.load %arg3[%c0_3, %c0_4] : memref<32x32xbf16, #tpu.memory_space<vmem>>, vector<32x32xbf16>
    tpu.vector_store %arg3[%c0_3, %c0_4], %3 {strides = array<i32>} : memref<32x32xbf16, #tpu.memory_space<vmem>>, vector<32x32xbf16>,
    %cst_5 = arith.constant dense<0.000000e+00> : vector<32xf32>
    %5 = vector.multi_reduction <add>, %2, %cst_5 [0] : vector<32x32xf32> to vector<32xf32>
    %6 = vector.shape_cast %5 : vector<32xf32> to vector<1x32xf32>
    %7 = vector.shape_cast %6 : vector<1x32xf32> to vector<1x1x32xf32>
    %c0_6 = arith.constant 0 : index
    %c0_7 = arith.constant 0 : index
    %c0_8 = arith.constant 0 : index
    %8 = vector.load %arg4[%c0_6, %c0_7, %c0_8] : memref<1x1x32xf32, #tpu.memory_space<vmem>>, vector<1x1x32xf32>
    tpu.vector_store %arg4[%c0_6, %c0_7, %c0_8], %7 {strides = array<i32>} : memref<1x1x32xf32, #tpu.memory_space<vmem>>, vector<1x1x32xf32>,
    %9 = arith.mulf %2, %2 : vector<32x32xf32>
    %cst_9 = arith.constant dense<0.000000e+00> : vector<32xf32>
    %10 = vector.multi_reduction <add>, %9, %cst_9 [0] : vector<32x32xf32> to vector<32xf32>
    %11 = vector.shape_cast %10 : vector<32xf32> to vector<1x32xf32>
    %12 = vector.shape_cast %11 : vector<1x32xf32> to vector<1x1x32xf32>
    %c0_10 = arith.constant 0 : index
    %c0_11 = arith.constant 0 : index
    %c0_12 = arith.constant 0 : index
    %13 = vector.load %arg5[%c0_10, %c0_11, %c0_12] : memref<1x1x32xf32, #tpu.memory_space<vmem>>, vector<1x1x32xf32>
    tpu.vector_store %arg5[%c0_10, %c0_11, %c0_12], %12 {strides = array<i32>} : memref<1x1x32xf32, #tpu.memory_space<vmem>>, vector<1x1x32xf32>,
    return
  }
  func.func @transform_0(%arg0: i32) -> (i32, i32) {
    %c0_i32 = arith.constant 0 : i32
    %c0_i32_0 = arith.constant 0 : i32
    return %arg0, %c0_i32 : i32, i32
  }
  func.func @transform_1(%arg0: i32) -> (i32, i32) {
    %c0_i32 = arith.constant 0 : i32
    %c0_i32_0 = arith.constant 0 : i32
    %c0_i32_1 = arith.constant 0 : i32
    return %c0_i32, %c0_i32_0 : i32, i32
  }
  func.func @transform_2(%arg0: i32) -> (i32, i32) {
    %c0_i32 = arith.constant 0 : i32
    %c0_i32_0 = arith.constant 0 : i32
    return %arg0, %c0_i32 : i32, i32
  }
  func.func @transform_3(%arg0: i32) -> (i32, i32, i32) {
    %c0_i32 = arith.constant 0 : i32
    %c0_i32_0 = arith.constant 0 : i32
    %c0_i32_1 = arith.constant 0 : i32
    return %arg0, %c0_i32, %c0_i32_0 : i32, i32, i32
  }
  func.func @transform_4(%arg0: i32) -> (i32, i32, i32) {
    %c0_i32 = arith.constant 0 : i32
    %c0_i32_0 = arith.constant 0 : i32
    %c0_i32_1 = arith.constant 0 : i32
    return %arg0, %c0_i32, %c0_i32_0 : i32, i32, i32
  }
}

module attributes {stable_mosaic.version = 11 : i64} {
  func.func @_bn_relu_fc_kernel(%arg0: i32, %arg1: memref<32x32xbf16, #tpu.memory_space<vmem>>, %arg2: memref<1x32xf32, #tpu.memory_space<vmem>>, %arg3: memref<1x32xf32, #tpu.memory_space<vmem>>, %arg4: memref<32x32xbf16, #tpu.memory_space<vmem>>, %arg5: memref<1x32xf32, #tpu.memory_space<vmem>>, %arg6: memref<32x32xbf16, #tpu.memory_space<vmem>>, %arg7: memref<32x32xf32, #tpu.memory_space<vmem>>) attributes {dimension_semantics = [#tpu.dimension_semantics<parallel>], iteration_bounds = array<i64: 1>, scalar_prefetch = 0 : i64, scratch_operands = 0 : i64, tpu.core_type = #tpu.core_type<tc>, window_params = [{transform_indices = @transform_0, window_bounds = array<i64: 32, 32>}, {pipeline_mode = #tpu.pipeline_mode<synchronous>, transform_indices = @transform_1, window_bounds = array<i64: 1, 32>}, {pipeline_mode = #tpu.pipeline_mode<synchronous>, transform_indices = @transform_2, window_bounds = array<i64: 1, 32>}, {pipeline_mode = #tpu.pipeline_mode<synchronous>, transform_indices = @transform_3, window_bounds = array<i64: 32, 32>}, {pipeline_mode = #tpu.pipeline_mode<synchronous>, transform_indices = @transform_4, window_bounds = array<i64: 1, 32>}, {transform_indices = @transform_5, window_bounds = array<i64: 32, 32>}, {transform_indices = @transform_6, window_bounds = array<i64: 32, 32>}]} {
    %c0 = arith.constant 0 : index
    %c0_0 = arith.constant 0 : index
    %0 = vector.load %arg1[%c0, %c0_0] : memref<32x32xbf16, #tpu.memory_space<vmem>>, vector<32x32xbf16>
    %1 = arith.extf %0 : vector<32x32xbf16> to vector<32x32xf32>
    %c0_1 = arith.constant 0 : index
    %c0_2 = arith.constant 0 : index
    %2 = vector.load %arg2[%c0_1, %c0_2] : memref<1x32xf32, #tpu.memory_space<vmem>>, vector<1x32xf32>
    %3 = vector.broadcast %2 : vector<1x32xf32> to vector<32x32xf32>
    %4 = arith.mulf %1, %3 : vector<32x32xf32>
    %c0_3 = arith.constant 0 : index
    %c0_4 = arith.constant 0 : index
    %5 = vector.load %arg3[%c0_3, %c0_4] : memref<1x32xf32, #tpu.memory_space<vmem>>, vector<1x32xf32>
    %6 = vector.broadcast %5 : vector<1x32xf32> to vector<32x32xf32>
    %7 = arith.addf %4, %6 : vector<32x32xf32>
    %cst = arith.constant 0.000000e+00 : f32
    %8 = vector.broadcast %cst : f32 to vector<32x32xf32>
    %9 = arith.maximumf %7, %8 : vector<32x32xf32>
    %10 = arith.truncf %9 : vector<32x32xf32> to vector<32x32xbf16>
    %c0_5 = arith.constant 0 : index
    %c0_6 = arith.constant 0 : index
    %11 = vector.load %arg6[%c0_5, %c0_6] : memref<32x32xbf16, #tpu.memory_space<vmem>>, vector<32x32xbf16>
    tpu.vector_store %arg6[%c0_5, %c0_6], %10 {strides = array<i32>} : memref<32x32xbf16, #tpu.memory_space<vmem>>, vector<32x32xbf16>,
    %c0_7 = arith.constant 0 : index
    %c0_8 = arith.constant 0 : index
    %12 = vector.load %arg4[%c0_7, %c0_8] : memref<32x32xbf16, #tpu.memory_space<vmem>>, vector<32x32xbf16>
    %cst_9 = arith.constant dense<0.000000e+00> : vector<32x32xf32>
    %13 = tpu.matmul %10, %12, %cst_9 {dimension_numbers = #tpu.dot_dimension_numbers<[1], [0], [0], [1], [0, 0, 1, 1], [], []>} : vector<32x32xbf16>, vector<32x32xbf16>, vector<32x32xf32> -> vector<32x32xf32>
    %c0_10 = arith.constant 0 : index
    %c0_11 = arith.constant 0 : index
    %14 = vector.load %arg5[%c0_10, %c0_11] : memref<1x32xf32, #tpu.memory_space<vmem>>, vector<1x32xf32>
    %15 = vector.broadcast %14 : vector<1x32xf32> to vector<32x32xf32>
    %16 = arith.addf %13, %15 : vector<32x32xf32>
    %c0_12 = arith.constant 0 : index
    %c0_13 = arith.constant 0 : index
    %17 = vector.load %arg7[%c0_12, %c0_13] : memref<32x32xf32, #tpu.memory_space<vmem>>, vector<32x32xf32>
    tpu.vector_store %arg7[%c0_12, %c0_13], %16 {strides = array<i32>} : memref<32x32xf32, #tpu.memory_space<vmem>>, vector<32x32xf32>,
    return
  }
  func.func @transform_0(%arg0: i32) -> (i32, i32) {
    %c0_i32 = arith.constant 0 : i32
    %c0_i32_0 = arith.constant 0 : i32
    return %arg0, %c0_i32 : i32, i32
  }
  func.func @transform_1(%arg0: i32) -> (i32, i32) {
    %c0_i32 = arith.constant 0 : i32
    %c0_i32_0 = arith.constant 0 : i32
    %c0_i32_1 = arith.constant 0 : i32
    return %c0_i32, %c0_i32_0 : i32, i32
  }
  func.func @transform_2(%arg0: i32) -> (i32, i32) {
    %c0_i32 = arith.constant 0 : i32
    %c0_i32_0 = arith.constant 0 : i32
    %c0_i32_1 = arith.constant 0 : i32
    return %c0_i32, %c0_i32_0 : i32, i32
  }
  func.func @transform_3(%arg0: i32) -> (i32, i32) {
    %c0_i32 = arith.constant 0 : i32
    %c0_i32_0 = arith.constant 0 : i32
    %c0_i32_1 = arith.constant 0 : i32
    return %c0_i32, %c0_i32_0 : i32, i32
  }
  func.func @transform_4(%arg0: i32) -> (i32, i32) {
    %c0_i32 = arith.constant 0 : i32
    %c0_i32_0 = arith.constant 0 : i32
    %c0_i32_1 = arith.constant 0 : i32
    return %c0_i32, %c0_i32_0 : i32, i32
  }
  func.func @transform_5(%arg0: i32) -> (i32, i32) {
    %c0_i32 = arith.constant 0 : i32
    %c0_i32_0 = arith.constant 0 : i32
    return %arg0, %c0_i32 : i32, i32
  }
  func.func @transform_6(%arg0: i32) -> (i32, i32) {
    %c0_i32 = arith.constant 0 : i32
    %c0_i32_0 = arith.constant 0 : i32
    return %arg0, %c0_i32 : i32, i32
  }
}

module attributes {stable_mosaic.version = 11 : i64} {
  func.func @_conv_matmul_stats_kernel(%arg0: i32, %arg1: memref<8x288xbf16, #tpu.memory_space<vmem>>, %arg2: memref<288x64xbf16, #tpu.memory_space<vmem>>, %arg3: memref<8x64xbf16, #tpu.memory_space<vmem>>, %arg4: memref<1x1x64xf32, #tpu.memory_space<vmem>>, %arg5: memref<1x1x64xf32, #tpu.memory_space<vmem>>) attributes {dimension_semantics = [#tpu.dimension_semantics<parallel>], iteration_bounds = array<i64: 1>, scalar_prefetch = 0 : i64, scratch_operands = 0 : i64, tpu.core_type = #tpu.core_type<tc>, window_params = [{transform_indices = @transform_0, window_bounds = array<i64: 8, 288>}, {pipeline_mode = #tpu.pipeline_mode<synchronous>, transform_indices = @transform_1, window_bounds = array<i64: 288, 64>}, {transform_indices = @transform_2, window_bounds = array<i64: 8, 64>}, {transform_indices = @transform_3, window_bounds = array<i64: 1, 1, 64>}, {transform_indices = @transform_4, window_bounds = array<i64: 1, 1, 64>}]} {
    %c0 = arith.constant 0 : index
    %c0_0 = arith.constant 0 : index
    %0 = vector.load %arg1[%c0, %c0_0] : memref<8x288xbf16, #tpu.memory_space<vmem>>, vector<8x288xbf16>
    %c0_1 = arith.constant 0 : index
    %c0_2 = arith.constant 0 : index
    %1 = vector.load %arg2[%c0_1, %c0_2] : memref<288x64xbf16, #tpu.memory_space<vmem>>, vector<288x64xbf16>
    %cst = arith.constant dense<0.000000e+00> : vector<8x64xf32>
    %2 = tpu.matmul %0, %1, %cst {dimension_numbers = #tpu.dot_dimension_numbers<[1], [0], [0], [1], [0, 0, 1, 1], [], []>} : vector<8x288xbf16>, vector<288x64xbf16>, vector<8x64xf32> -> vector<8x64xf32>
    %3 = arith.truncf %2 : vector<8x64xf32> to vector<8x64xbf16>
    %c0_3 = arith.constant 0 : index
    %c0_4 = arith.constant 0 : index
    %4 = vector.load %arg3[%c0_3, %c0_4] : memref<8x64xbf16, #tpu.memory_space<vmem>>, vector<8x64xbf16>
    tpu.vector_store %arg3[%c0_3, %c0_4], %3 {strides = array<i32>} : memref<8x64xbf16, #tpu.memory_space<vmem>>, vector<8x64xbf16>,
    %cst_5 = arith.constant dense<0.000000e+00> : vector<64xf32>
    %5 = vector.multi_reduction <add>, %2, %cst_5 [0] : vector<8x64xf32> to vector<64xf32>
    %6 = vector.shape_cast %5 : vector<64xf32> to vector<1x64xf32>
    %7 = vector.shape_cast %6 : vector<1x64xf32> to vector<1x1x64xf32>
    %c0_6 = arith.constant 0 : index
    %c0_7 = arith.constant 0 : index
    %c0_8 = arith.constant 0 : index
    %8 = vector.load %arg4[%c0_6, %c0_7, %c0_8] : memref<1x1x64xf32, #tpu.memory_space<vmem>>, vector<1x1x64xf32>
    tpu.vector_store %arg4[%c0_6, %c0_7, %c0_8], %7 {strides = array<i32>} : memref<1x1x64xf32, #tpu.memory_space<vmem>>, vector<1x1x64xf32>,
    %9 = arith.mulf %2, %2 : vector<8x64xf32>
    %cst_9 = arith.constant dense<0.000000e+00> : vector<64xf32>
    %10 = vector.multi_reduction <add>, %9, %cst_9 [0] : vector<8x64xf32> to vector<64xf32>
    %11 = vector.shape_cast %10 : vector<64xf32> to vector<1x64xf32>
    %12 = vector.shape_cast %11 : vector<1x64xf32> to vector<1x1x64xf32>
    %c0_10 = arith.constant 0 : index
    %c0_11 = arith.constant 0 : index
    %c0_12 = arith.constant 0 : index
    %13 = vector.load %arg5[%c0_10, %c0_11, %c0_12] : memref<1x1x64xf32, #tpu.memory_space<vmem>>, vector<1x1x64xf32>
    tpu.vector_store %arg5[%c0_10, %c0_11, %c0_12], %12 {strides = array<i32>} : memref<1x1x64xf32, #tpu.memory_space<vmem>>, vector<1x1x64xf32>,
    return
  }
  func.func @transform_0(%arg0: i32) -> (i32, i32) {
    %c0_i32 = arith.constant 0 : i32
    %c0_i32_0 = arith.constant 0 : i32
    return %arg0, %c0_i32 : i32, i32
  }
  func.func @transform_1(%arg0: i32) -> (i32, i32) {
    %c0_i32 = arith.constant 0 : i32
    %c0_i32_0 = arith.constant 0 : i32
    %c0_i32_1 = arith.constant 0 : i32
    return %c0_i32, %c0_i32_0 : i32, i32
  }
  func.func @transform_2(%arg0: i32) -> (i32, i32) {
    %c0_i32 = arith.constant 0 : i32
    %c0_i32_0 = arith.constant 0 : i32
    return %arg0, %c0_i32 : i32, i32
  }
  func.func @transform_3(%arg0: i32) -> (i32, i32, i32) {
    %c0_i32 = arith.constant 0 : i32
    %c0_i32_0 = arith.constant 0 : i32
    %c0_i32_1 = arith.constant 0 : i32
    return %arg0, %c0_i32, %c0_i32_0 : i32, i32, i32
  }
  func.func @transform_4(%arg0: i32) -> (i32, i32, i32) {
    %c0_i32 = arith.constant 0 : i32
    %c0_i32_0 = arith.constant 0 : i32
    %c0_i32_1 = arith.constant 0 : i32
    return %arg0, %c0_i32, %c0_i32_0 : i32, i32, i32
  }
}

module attributes {stable_mosaic.version = 11 : i64} {
  func.func @_bn_relu_fc_kernel(%arg0: i32, %arg1: memref<8x64xbf16, #tpu.memory_space<vmem>>, %arg2: memref<1x64xf32, #tpu.memory_space<vmem>>, %arg3: memref<1x64xf32, #tpu.memory_space<vmem>>, %arg4: memref<64x32xbf16, #tpu.memory_space<vmem>>, %arg5: memref<1x32xf32, #tpu.memory_space<vmem>>, %arg6: memref<8x64xbf16, #tpu.memory_space<vmem>>, %arg7: memref<8x32xf32, #tpu.memory_space<vmem>>) attributes {dimension_semantics = [#tpu.dimension_semantics<parallel>], iteration_bounds = array<i64: 1>, scalar_prefetch = 0 : i64, scratch_operands = 0 : i64, tpu.core_type = #tpu.core_type<tc>, window_params = [{transform_indices = @transform_0, window_bounds = array<i64: 8, 64>}, {pipeline_mode = #tpu.pipeline_mode<synchronous>, transform_indices = @transform_1, window_bounds = array<i64: 1, 64>}, {pipeline_mode = #tpu.pipeline_mode<synchronous>, transform_indices = @transform_2, window_bounds = array<i64: 1, 64>}, {pipeline_mode = #tpu.pipeline_mode<synchronous>, transform_indices = @transform_3, window_bounds = array<i64: 64, 32>}, {pipeline_mode = #tpu.pipeline_mode<synchronous>, transform_indices = @transform_4, window_bounds = array<i64: 1, 32>}, {transform_indices = @transform_5, window_bounds = array<i64: 8, 64>}, {transform_indices = @transform_6, window_bounds = array<i64: 8, 32>}]} {
    %c0 = arith.constant 0 : index
    %c0_0 = arith.constant 0 : index
    %0 = vector.load %arg1[%c0, %c0_0] : memref<8x64xbf16, #tpu.memory_space<vmem>>, vector<8x64xbf16>
    %1 = arith.extf %0 : vector<8x64xbf16> to vector<8x64xf32>
    %c0_1 = arith.constant 0 : index
    %c0_2 = arith.constant 0 : index
    %2 = vector.load %arg2[%c0_1, %c0_2] : memref<1x64xf32, #tpu.memory_space<vmem>>, vector<1x64xf32>
    %3 = vector.broadcast %2 : vector<1x64xf32> to vector<8x64xf32>
    %4 = arith.mulf %1, %3 : vector<8x64xf32>
    %c0_3 = arith.constant 0 : index
    %c0_4 = arith.constant 0 : index
    %5 = vector.load %arg3[%c0_3, %c0_4] : memref<1x64xf32, #tpu.memory_space<vmem>>, vector<1x64xf32>
    %6 = vector.broadcast %5 : vector<1x64xf32> to vector<8x64xf32>
    %7 = arith.addf %4, %6 : vector<8x64xf32>
    %cst = arith.constant 0.000000e+00 : f32
    %8 = vector.broadcast %cst : f32 to vector<8x64xf32>
    %9 = arith.maximumf %7, %8 : vector<8x64xf32>
    %10 = arith.truncf %9 : vector<8x64xf32> to vector<8x64xbf16>
    %c0_5 = arith.constant 0 : index
    %c0_6 = arith.constant 0 : index
    %11 = vector.load %arg6[%c0_5, %c0_6] : memref<8x64xbf16, #tpu.memory_space<vmem>>, vector<8x64xbf16>
    tpu.vector_store %arg6[%c0_5, %c0_6], %10 {strides = array<i32>} : memref<8x64xbf16, #tpu.memory_space<vmem>>, vector<8x64xbf16>,
    %c0_7 = arith.constant 0 : index
    %c0_8 = arith.constant 0 : index
    %12 = vector.load %arg4[%c0_7, %c0_8] : memref<64x32xbf16, #tpu.memory_space<vmem>>, vector<64x32xbf16>
    %cst_9 = arith.constant dense<0.000000e+00> : vector<8x32xf32>
    %13 = tpu.matmul %10, %12, %cst_9 {dimension_numbers = #tpu.dot_dimension_numbers<[1], [0], [0], [1], [0, 0, 1, 1], [], []>} : vector<8x64xbf16>, vector<64x32xbf16>, vector<8x32xf32> -> vector<8x32xf32>
    %c0_10 = arith.constant 0 : index
    %c0_11 = arith.constant 0 : index
    %14 = vector.load %arg5[%c0_10, %c0_11] : memref<1x32xf32, #tpu.memory_space<vmem>>, vector<1x32xf32>
    %15 = vector.broadcast %14 : vector<1x32xf32> to vector<8x32xf32>
    %16 = arith.addf %13, %15 : vector<8x32xf32>
    %c0_12 = arith.constant 0 : index
    %c0_13 = arith.constant 0 : index
    %17 = vector.load %arg7[%c0_12, %c0_13] : memref<8x32xf32, #tpu.memory_space<vmem>>, vector<8x32xf32>
    tpu.vector_store %arg7[%c0_12, %c0_13], %16 {strides = array<i32>} : memref<8x32xf32, #tpu.memory_space<vmem>>, vector<8x32xf32>,
    return
  }
  func.func @transform_0(%arg0: i32) -> (i32, i32) {
    %c0_i32 = arith.constant 0 : i32
    %c0_i32_0 = arith.constant 0 : i32
    return %arg0, %c0_i32 : i32, i32
  }
  func.func @transform_1(%arg0: i32) -> (i32, i32) {
    %c0_i32 = arith.constant 0 : i32
    %c0_i32_0 = arith.constant 0 : i32
    %c0_i32_1 = arith.constant 0 : i32
    return %c0_i32, %c0_i32_0 : i32, i32
  }
  func.func @transform_2(%arg0: i32) -> (i32, i32) {
    %c0_i32 = arith.constant 0 : i32
    %c0_i32_0 = arith.constant 0 : i32
    %c0_i32_1 = arith.constant 0 : i32
    return %c0_i32, %c0_i32_0 : i32, i32
  }
  func.func @transform_3(%arg0: i32) -> (i32, i32) {
    %c0_i32 = arith.constant 0 : i32
    %c0_i32_0 = arith.constant 0 : i32
    %c0_i32_1 = arith.constant 0 : i32
    return %c0_i32, %c0_i32_0 : i32, i32
  }
  func.func @transform_4(%arg0: i32) -> (i32, i32) {
    %c0_i32 = arith.constant 0 : i32
    %c0_i32_0 = arith.constant 0 : i32
    %c0_i32_1 = arith.constant 0 : i32
    return %c0_i32, %c0_i32_0 : i32, i32
  }
  func.func @transform_5(%arg0: i32) -> (i32, i32) {
    %c0_i32 = arith.constant 0 : i32
    %c0_i32_0 = arith.constant 0 : i32
    return %arg0, %c0_i32 : i32, i32
  }
  func.func @transform_6(%arg0: i32) -> (i32, i32) {
    %c0_i32 = arith.constant 0 : i32
    %c0_i32_0 = arith.constant 0 : i32
    return %arg0, %c0_i32 : i32, i32
  }
}

module attributes {stable_mosaic.version = 11 : i64} {
  func.func @_conv_matmul_stats_kernel(%arg0: i32, %arg1: memref<2x576xbf16, #tpu.memory_space<vmem>>, %arg2: memref<576x64xbf16, #tpu.memory_space<vmem>>, %arg3: memref<2x64xbf16, #tpu.memory_space<vmem>>, %arg4: memref<1x1x64xf32, #tpu.memory_space<vmem>>, %arg5: memref<1x1x64xf32, #tpu.memory_space<vmem>>) attributes {dimension_semantics = [#tpu.dimension_semantics<parallel>], iteration_bounds = array<i64: 1>, scalar_prefetch = 0 : i64, scratch_operands = 0 : i64, tpu.core_type = #tpu.core_type<tc>, window_params = [{transform_indices = @transform_0, window_bounds = array<i64: 2, 576>}, {pipeline_mode = #tpu.pipeline_mode<synchronous>, transform_indices = @transform_1, window_bounds = array<i64: 576, 64>}, {transform_indices = @transform_2, window_bounds = array<i64: 2, 64>}, {transform_indices = @transform_3, window_bounds = array<i64: 1, 1, 64>}, {transform_indices = @transform_4, window_bounds = array<i64: 1, 1, 64>}]} {
    %c0 = arith.constant 0 : index
    %c0_0 = arith.constant 0 : index
    %0 = vector.load %arg1[%c0, %c0_0] : memref<2x576xbf16, #tpu.memory_space<vmem>>, vector<2x576xbf16>
    %c0_1 = arith.constant 0 : index
    %c0_2 = arith.constant 0 : index
    %1 = vector.load %arg2[%c0_1, %c0_2] : memref<576x64xbf16, #tpu.memory_space<vmem>>, vector<576x64xbf16>
    %cst = arith.constant dense<0.000000e+00> : vector<2x64xf32>
    %2 = tpu.matmul %0, %1, %cst {dimension_numbers = #tpu.dot_dimension_numbers<[1], [0], [0], [1], [0, 0, 1, 1], [], []>} : vector<2x576xbf16>, vector<576x64xbf16>, vector<2x64xf32> -> vector<2x64xf32>
    %3 = arith.truncf %2 : vector<2x64xf32> to vector<2x64xbf16>
    %c0_3 = arith.constant 0 : index
    %c0_4 = arith.constant 0 : index
    %4 = vector.load %arg3[%c0_3, %c0_4] : memref<2x64xbf16, #tpu.memory_space<vmem>>, vector<2x64xbf16>
    tpu.vector_store %arg3[%c0_3, %c0_4], %3 {strides = array<i32>} : memref<2x64xbf16, #tpu.memory_space<vmem>>, vector<2x64xbf16>,
    %cst_5 = arith.constant dense<0.000000e+00> : vector<64xf32>
    %5 = vector.multi_reduction <add>, %2, %cst_5 [0] : vector<2x64xf32> to vector<64xf32>
    %6 = vector.shape_cast %5 : vector<64xf32> to vector<1x64xf32>
    %7 = vector.shape_cast %6 : vector<1x64xf32> to vector<1x1x64xf32>
    %c0_6 = arith.constant 0 : index
    %c0_7 = arith.constant 0 : index
    %c0_8 = arith.constant 0 : index
    %8 = vector.load %arg4[%c0_6, %c0_7, %c0_8] : memref<1x1x64xf32, #tpu.memory_space<vmem>>, vector<1x1x64xf32>
    tpu.vector_store %arg4[%c0_6, %c0_7, %c0_8], %7 {strides = array<i32>} : memref<1x1x64xf32, #tpu.memory_space<vmem>>, vector<1x1x64xf32>,
    %9 = arith.mulf %2, %2 : vector<2x64xf32>
    %cst_9 = arith.constant dense<0.000000e+00> : vector<64xf32>
    %10 = vector.multi_reduction <add>, %9, %cst_9 [0] : vector<2x64xf32> to vector<64xf32>
    %11 = vector.shape_cast %10 : vector<64xf32> to vector<1x64xf32>
    %12 = vector.shape_cast %11 : vector<1x64xf32> to vector<1x1x64xf32>
    %c0_10 = arith.constant 0 : index
    %c0_11 = arith.constant 0 : index
    %c0_12 = arith.constant 0 : index
    %13 = vector.load %arg5[%c0_10, %c0_11, %c0_12] : memref<1x1x64xf32, #tpu.memory_space<vmem>>, vector<1x1x64xf32>
    tpu.vector_store %arg5[%c0_10, %c0_11, %c0_12], %12 {strides = array<i32>} : memref<1x1x64xf32, #tpu.memory_space<vmem>>, vector<1x1x64xf32>,
    return
  }
  func.func @transform_0(%arg0: i32) -> (i32, i32) {
    %c0_i32 = arith.constant 0 : i32
    %c0_i32_0 = arith.constant 0 : i32
    return %arg0, %c0_i32 : i32, i32
  }
  func.func @transform_1(%arg0: i32) -> (i32, i32) {
    %c0_i32 = arith.constant 0 : i32
    %c0_i32_0 = arith.constant 0 : i32
    %c0_i32_1 = arith.constant 0 : i32
    return %c0_i32, %c0_i32_0 : i32, i32
  }
  func.func @transform_2(%arg0: i32) -> (i32, i32) {
    %c0_i32 = arith.constant 0 : i32
    %c0_i32_0 = arith.constant 0 : i32
    return %arg0, %c0_i32 : i32, i32
  }
  func.func @transform_3(%arg0: i32) -> (i32, i32, i32) {
    %c0_i32 = arith.constant 0 : i32
    %c0_i32_0 = arith.constant 0 : i32
    %c0_i32_1 = arith.constant 0 : i32
    return %arg0, %c0_i32, %c0_i32_0 : i32, i32, i32
  }
  func.func @transform_4(%arg0: i32) -> (i32, i32, i32) {
    %c0_i32 = arith.constant 0 : i32
    %c0_i32_0 = arith.constant 0 : i32
    %c0_i32_1 = arith.constant 0 : i32
    return %arg0, %c0_i32, %c0_i32_0 : i32, i32, i32
  }
}

module attributes {stable_mosaic.version = 11 : i64} {
  func.func @_bn_relu_fc_kernel(%arg0: i32, %arg1: memref<2x64xbf16, #tpu.memory_space<vmem>>, %arg2: memref<1x64xf32, #tpu.memory_space<vmem>>, %arg3: memref<1x64xf32, #tpu.memory_space<vmem>>, %arg4: memref<64x32xbf16, #tpu.memory_space<vmem>>, %arg5: memref<1x32xf32, #tpu.memory_space<vmem>>, %arg6: memref<2x64xbf16, #tpu.memory_space<vmem>>, %arg7: memref<2x32xf32, #tpu.memory_space<vmem>>) attributes {dimension_semantics = [#tpu.dimension_semantics<parallel>], iteration_bounds = array<i64: 1>, scalar_prefetch = 0 : i64, scratch_operands = 0 : i64, tpu.core_type = #tpu.core_type<tc>, window_params = [{transform_indices = @transform_0, window_bounds = array<i64: 2, 64>}, {pipeline_mode = #tpu.pipeline_mode<synchronous>, transform_indices = @transform_1, window_bounds = array<i64: 1, 64>}, {pipeline_mode = #tpu.pipeline_mode<synchronous>, transform_indices = @transform_2, window_bounds = array<i64: 1, 64>}, {pipeline_mode = #tpu.pipeline_mode<synchronous>, transform_indices = @transform_3, window_bounds = array<i64: 64, 32>}, {pipeline_mode = #tpu.pipeline_mode<synchronous>, transform_indices = @transform_4, window_bounds = array<i64: 1, 32>}, {transform_indices = @transform_5, window_bounds = array<i64: 2, 64>}, {transform_indices = @transform_6, window_bounds = array<i64: 2, 32>}]} {
    %c0 = arith.constant 0 : index
    %c0_0 = arith.constant 0 : index
    %0 = vector.load %arg1[%c0, %c0_0] : memref<2x64xbf16, #tpu.memory_space<vmem>>, vector<2x64xbf16>
    %1 = arith.extf %0 : vector<2x64xbf16> to vector<2x64xf32>
    %c0_1 = arith.constant 0 : index
    %c0_2 = arith.constant 0 : index
    %2 = vector.load %arg2[%c0_1, %c0_2] : memref<1x64xf32, #tpu.memory_space<vmem>>, vector<1x64xf32>
    %3 = vector.broadcast %2 : vector<1x64xf32> to vector<2x64xf32>
    %4 = arith.mulf %1, %3 : vector<2x64xf32>
    %c0_3 = arith.constant 0 : index
    %c0_4 = arith.constant 0 : index
    %5 = vector.load %arg3[%c0_3, %c0_4] : memref<1x64xf32, #tpu.memory_space<vmem>>, vector<1x64xf32>
    %6 = vector.broadcast %5 : vector<1x64xf32> to vector<2x64xf32>
    %7 = arith.addf %4, %6 : vector<2x64xf32>
    %cst = arith.constant 0.000000e+00 : f32
    %8 = vector.broadcast %cst : f32 to vector<2x64xf32>
    %9 = arith.maximumf %7, %8 : vector<2x64xf32>
    %10 = arith.truncf %9 : vector<2x64xf32> to vector<2x64xbf16>
    %c0_5 = arith.constant 0 : index
    %c0_6 = arith.constant 0 : index
    %11 = vector.load %arg6[%c0_5, %c0_6] : memref<2x64xbf16, #tpu.memory_space<vmem>>, vector<2x64xbf16>
    tpu.vector_store %arg6[%c0_5, %c0_6], %10 {strides = array<i32>} : memref<2x64xbf16, #tpu.memory_space<vmem>>, vector<2x64xbf16>,
    %c0_7 = arith.constant 0 : index
    %c0_8 = arith.constant 0 : index
    %12 = vector.load %arg4[%c0_7, %c0_8] : memref<64x32xbf16, #tpu.memory_space<vmem>>, vector<64x32xbf16>
    %cst_9 = arith.constant dense<0.000000e+00> : vector<2x32xf32>
    %13 = tpu.matmul %10, %12, %cst_9 {dimension_numbers = #tpu.dot_dimension_numbers<[1], [0], [0], [1], [0, 0, 1, 1], [], []>} : vector<2x64xbf16>, vector<64x32xbf16>, vector<2x32xf32> -> vector<2x32xf32>
    %c0_10 = arith.constant 0 : index
    %c0_11 = arith.constant 0 : index
    %14 = vector.load %arg5[%c0_10, %c0_11] : memref<1x32xf32, #tpu.memory_space<vmem>>, vector<1x32xf32>
    %15 = vector.broadcast %14 : vector<1x32xf32> to vector<2x32xf32>
    %16 = arith.addf %13, %15 : vector<2x32xf32>
    %c0_12 = arith.constant 0 : index
    %c0_13 = arith.constant 0 : index
    %17 = vector.load %arg7[%c0_12, %c0_13] : memref<2x32xf32, #tpu.memory_space<vmem>>, vector<2x32xf32>
    tpu.vector_store %arg7[%c0_12, %c0_13], %16 {strides = array<i32>} : memref<2x32xf32, #tpu.memory_space<vmem>>, vector<2x32xf32>,
    return
  }
  func.func @transform_0(%arg0: i32) -> (i32, i32) {
    %c0_i32 = arith.constant 0 : i32
    %c0_i32_0 = arith.constant 0 : i32
    return %arg0, %c0_i32 : i32, i32
  }
  func.func @transform_1(%arg0: i32) -> (i32, i32) {
    %c0_i32 = arith.constant 0 : i32
    %c0_i32_0 = arith.constant 0 : i32
    %c0_i32_1 = arith.constant 0 : i32
    return %c0_i32, %c0_i32_0 : i32, i32
  }
  func.func @transform_2(%arg0: i32) -> (i32, i32) {
    %c0_i32 = arith.constant 0 : i32
    %c0_i32_0 = arith.constant 0 : i32
    %c0_i32_1 = arith.constant 0 : i32
    return %c0_i32, %c0_i32_0 : i32, i32
  }
  func.func @transform_3(%arg0: i32) -> (i32, i32) {
    %c0_i32 = arith.constant 0 : i32
    %c0_i32_0 = arith.constant 0 : i32
    %c0_i32_1 = arith.constant 0 : i32
    return %c0_i32, %c0_i32_0 : i32, i32
  }
  func.func @transform_4(%arg0: i32) -> (i32, i32) {
    %c0_i32 = arith.constant 0 : i32
    %c0_i32_0 = arith.constant 0 : i32
    %c0_i32_1 = arith.constant 0 : i32
    return %c0_i32, %c0_i32_0 : i32, i32
  }
  func.func @transform_5(%arg0: i32) -> (i32, i32) {
    %c0_i32 = arith.constant 0 : i32
    %c0_i32_0 = arith.constant 0 : i32
    return %arg0, %c0_i32 : i32, i32
  }
  func.func @transform_6(%arg0: i32) -> (i32, i32) {
    %c0_i32 = arith.constant 0 : i32
    %c0_i32_0 = arith.constant 0 : i32
    return %arg0, %c0_i32 : i32, i32
  }
}

</mosaic_0001>

<llo_original>
// kernel: spatial_prior_module_forward.14
$region0: #{spatial_prior_module_forward.14}
  #allocation0 [shape = 'u32[]', space=smem, size = 0x4, offset = 0x4, fixed_abs, tag = 'smem constant byte address 0x4 - core index']
  #allocation1 [shape = 'u32[144,128]{1,0:T(1,128)}', space=vmem, size = 0x12000, scoped, tag = 'internal scratch']
  %s0 = inlined_call_operand.vmem [shape: bf16[512,16], index: 0, kind: input, shape index: {}]
  %s1 = inlined_call_operand.vmem [shape: f32[1,16], index: 1, kind: input, shape index: {}]
  %s2 = inlined_call_operand.vmem [shape: f32[1,16], index: 2, kind: input, shape index: {}]
  %s3 = inlined_call_operand.vmem [shape: bf16[512,16], index: 3, kind: output, shape index: {}]
  %s4 = sld [smem:[#allocation0]]
  $region22: #{spatial_prior_module_forward.14} parent=0
    _
  %s6 = ssub.s32 1, %s4
  %s7 = scalar_select 0, %s6, %s4
  // Predicated region
  $region2: #{spatial_prior_module_forward.14} parent=0 // pred_check
    _
  $region3: #{spatial_prior_module_forward.14} parent=0 // pred_check_branch
    %9 = sbr.rel (0) target = $region5
  $region4: #{spatial_prior_module_forward.14} parent=0 // pred_region
    _
  $region5: #{spatial_prior_module_forward.14} parent=0 // pred_fallthru
    _
  // Predicated region
  $region6: #{spatial_prior_module_forward.14} parent=0 // pred_check
    _
  $region7: #{spatial_prior_module_forward.14} parent=0 // pred_check_branch
    %11 = sbr.rel (0) target = $region9
  $region8: #{spatial_prior_module_forward.14} parent=0 // pred_region
    _
  $region9: #{spatial_prior_module_forward.14} parent=0 // pred_fallthru
    _
  // Predicated region
  $region10: #{spatial_prior_module_forward.14} parent=0 // pred_check
    _
  $region11: #{spatial_prior_module_forward.14} parent=0 // pred_check_branch
    %13 = sbr.rel (0) target = $region13
  $region12: #{spatial_prior_module_forward.14} parent=0 // pred_region
    _
  $region13: #{spatial_prior_module_forward.14} parent=0 // pred_fallthru
    _
  %v14 = vld [vmem:[%s0] sm:$0xf]
  %v15 = vld [vmem:[%s0 + $0x4] sm:$0xf]
  %v16 = vld [vmem:[%s0 + $0x8] sm:$0xf]
  %v17 = vld [vmem:[%s0 + $0xc] sm:$0xf]
  %v18 = vld [vmem:[%s0 + $0x10] sm:$0xf]
  %v19 = vld [vmem:[%s0 + $0x14] sm:$0xf]
  %v20 = vld [vmem:[%s0 + $0x18] sm:$0xf]
  %v21 = vld [vmem:[%s0 + $0x1c] sm:$0xf]
  %v22 = vld [vmem:[%s0 + $0x20] sm:$0xf]
  %v23 = vld [vmem:[%s0 + $0x24] sm:$0xf]
  %v24 = vld [vmem:[%s0 + $0x28] sm:$0xf]
  %v25 = vld [vmem:[%s0 + $0x2c] sm:$0xf]
  %v26 = vld [vmem:[%s0 + $0x30] sm:$0xf]
  %v27 = vld [vmem:[%s0 + $0x34] sm:$0xf]
  %v28 = vld [vmem:[%s0 + $0x38] sm:$0xf]
  %v29 = vld [vmem:[%s0 + $0x3c] sm:$0xf]
  %v30 = vld [vmem:[%s0 + $0x40] sm:$0xf]
  %v31 = vld [vmem:[%s0 + $0x44] sm:$0xf]
  %v32 = vld [vmem:[%s0 + $0x48] sm:$0xf]
  %v33 = vld [vmem:[%s0 + $0x4c] sm:$0xf]
  %v34 = vld [vmem:[%s0 + $0x50] sm:$0xf]
  %v35 = vld [vmem:[%s0 + $0x54] sm:$0xf]
  %v36 = vld [vmem:[%s0 + $0x58] sm:$0xf]
  %v37 = vld [vmem:[%s0 + $0x5c] sm:$0xf]
  %v38 = vld [vmem:[%s0 + $0x60] sm:$0xf]
  %v39 = vld [vmem:[%s0 + $0x64] sm:$0xf]
  %v40 = vld [vmem:[%s0 + $0x68] sm:$0xf]
  %v41 = vld [vmem:[%s0 + $0x6c] sm:$0xf]
  %v42 = vld [vmem:[%s0 + $0x70] sm:$0xf]
  %v43 = vld [vmem:[%s0 + $0x74] sm:$0xf]
  %v44 = vld [vmem:[%s0 + $0x78] sm:$0xf]
  %v45 = vld [vmem:[%s0 + $0x7c] sm:$0xf]
  %v46 = vld [vmem:[%s0 + $0x80] sm:$0xf]
  %v47 = vld [vmem:[%s0 + $0x84] sm:$0xf]
  %v48 = vld [vmem:[%s0 + $0x88] sm:$0xf]
  %v49 = vld [vmem:[%s0 + $0x8c] sm:$0xf]
  %v50 = vld [vmem:[%s0 + $0x90] sm:$0xf]
  %v51 = vld [vmem:[%s0 + $0x94] sm:$0xf]
  %v52 = vld [vmem:[%s0 + $0x98] sm:$0xf]
  %v53 = vld [vmem:[%s0 + $0x9c] sm:$0xf]
  %v54 = vld [vmem:[%s0 + $0xa0] sm:$0xf]
  %v55 = vld [vmem:[%s0 + $0xa4] sm:$0xf]
  %v56 = vld [vmem:[%s0 + $0xa8] sm:$0xf]
  %v57 = vld [vmem:[%s0 + $0xac] sm:$0xf]
  %v58 = vld [vmem:[%s0 + $0xb0] sm:$0xf]
  %v59 = vld [vmem:[%s0 + $0xb4] sm:$0xf]
  %v60 = vld [vmem:[%s0 + $0xb8] sm:$0xf]
  %v61 = vld [vmem:[%s0 + $0xbc] sm:$0xf]
  %v62 = vld [vmem:[%s0 + $0xc0] sm:$0xf]
  %v63 = vld [vmem:[%s0 + $0xc4] sm:$0xf]
  %v64 = vld [vmem:[%s0 + $0xc8] sm:$0xf]
  %v65 = vld [vmem:[%s0 + $0xcc] sm:$0xf]
  %v66 = vld [vmem:[%s0 + $0xd0] sm:$0xf]
  %v67 = vld [vmem:[%s0 + $0xd4] sm:$0xf]
  %v68 = vld [vmem:[%s0 + $0xd8] sm:$0xf]
  %v69 = vld [vmem:[%s0 + $0xdc] sm:$0xf]
  %v70 = vld [vmem:[%s0 + $0xe0] sm:$0xf]
  %v71 = vld [vmem:[%s0 + $0xe4] sm:$0xf]
  %v72 = vld [vmem:[%s0 + $0xe8] sm:$0xf]
  %v73 = vld [vmem:[%s0 + $0xec] sm:$0xf]
  %v74 = vld [vmem:[%s0 + $0xf0] sm:$0xf]
  %v75 = vld [vmem:[%s0 + $0xf4] sm:$0xf]
  %v76 = vld [vmem:[%s0 + $0xf8] sm:$0xf]
  %v77 = vld [vmem:[%s0 + $0xfc] sm:$0xf]
  %v78 = vunpack.c.l.bf16 %v14
  %v79 = vunpack.c.l.bf16 %v15
  %v80 = vunpack.c.l.bf16 %v16
  %v81 = vunpack.c.l.bf16 %v17
  %v82 = vunpack.c.l.bf16 %v18
  %v83 = vunpack.c.l.bf16 %v19
  %v84 = vunpack.c.l.bf16 %v20
  %v85 = vunpack.c.l.bf16 %v21
  %v86 = vunpack.c.l.bf16 %v22
  %v87 = vunpack.c.l.bf16 %v23
  %v88 = vunpack.c.l.bf16 %v24
  %v89 = vunpack.c.l.bf16 %v25
  %v90 = vunpack.c.l.bf16 %v26
  %v91 = vunpack.c.l.bf16 %v27
  %v92 = vunpack.c.l.bf16 %v28
  %v93 = vunpack.c.l.bf16 %v29
  %v94 = vunpack.c.l.bf16 %v30
  %v95 = vunpack.c.l.bf16 %v31
  %v96 = vunpack.c.l.bf16 %v32
  %v97 = vunpack.c.l.bf16 %v33
  %v98 = vunpack.c.l.bf16 %v34
  %v99 = vunpack.c.l.bf16 %v35
  %v100 = vunpack.c.l.bf16 %v36
  %v101 = vunpack.c.l.bf16 %v37
  %v102 = vunpack.c.l.bf16 %v38
  %v103 = vunpack.c.l.bf16 %v39
  %v104 = vunpack.c.l.bf16 %v40
  %v105 = vunpack.c.l.bf16 %v41
  %v106 = vunpack.c.l.bf16 %v42
  %v107 = vunpack.c.l.bf16 %v43
  %v108 = vunpack.c.l.bf16 %v44
  %v109 = vunpack.c.l.bf16 %v45
  %v110 = vunpack.c.l.bf16 %v46
  %v111 = vunpack.c.l.bf16 %v47
  %v112 = vunpack.c.l.bf16 %v48
  %v113 = vunpack.c.l.bf16 %v49
  %v114 = vunpack.c.l.bf16 %v50
  %v115 = vunpack.c.l.bf16 %v51
  %v116 = vunpack.c.l.bf16 %v52
  %v117 = vunpack.c.l.bf16 %v53
  %v118 = vunpack.c.l.bf16 %v54
  %v119 = vunpack.c.l.bf16 %v55
  %v120 = vunpack.c.l.bf16 %v56
  %v121 = vunpack.c.l.bf16 %v57
  %v122 = vunpack.c.l.bf16 %v58
  %v123 = vunpack.c.l.bf16 %v59
  %v124 = vunpack.c.l.bf16 %v60
  %v125 = vunpack.c.l.bf16 %v61
  %v126 = vunpack.c.l.bf16 %v62
  %v127 = vunpack.c.l.bf16 %v63
  %v128 = vunpack.c.l.bf16 %v64
  %v129 = vunpack.c.l.bf16 %v65
  %v130 = vunpack.c.l.bf16 %v66
  %v131 = vunpack.c.l.bf16 %v67
  %v132 = vunpack.c.l.bf16 %v68
  %v133 = vunpack.c.l.bf16 %v69
  %v134 = vunpack.c.l.bf16 %v70
  %v135 = vunpack.c.l.bf16 %v71
  %v136 = vunpack.c.l.bf16 %v72
  %v137 = vunpack.c.l.bf16 %v73
  %v138 = vunpack.c.l.bf16 %v74
  %v139 = vunpack.c.l.bf16 %v75
  %v140 = vunpack.c.l.bf16 %v76
  %v141 = vunpack.c.l.bf16 %v77
  %v142 = vld [vmem:[%s1] sm:$0x1]
  %v144 = vlaneseq
  %v145 = vshrl.u32 %v144, 7
  %v146 = vsub.s32 0, %v145
  %v147 = vrot.slane %v142, %v146
  %v149 = vmul.f32 %v78, %v147
  %v150 = vmul.f32 %v79, %v147
  %v151 = vmul.f32 %v80, %v147
  %v152 = vmul.f32 %v81, %v147
  %v153 = vmul.f32 %v82, %v147
  %v154 = vmul.f32 %v83, %v147
  %v155 = vmul.f32 %v84, %v147
  %v156 = vmul.f32 %v85, %v147
  %v157 = vmul.f32 %v86, %v147
  %v158 = vmul.f32 %v87, %v147
  %v159 = vmul.f32 %v88, %v147
  %v160 = vmul.f32 %v89, %v147
  %v161 = vmul.f32 %v90, %v147
  %v162 = vmul.f32 %v91, %v147
  %v163 = vmul.f32 %v92, %v147
  %v164 = vmul.f32 %v93, %v147
  %v165 = vmul.f32 %v94, %v147
  %v166 = vmul.f32 %v95, %v147
  %v167 = vmul.f32 %v96, %v147
  %v168 = vmul.f32 %v97, %v147
  %v169 = vmul.f32 %v98, %v147
  %v170 = vmul.f32 %v99, %v147
  %v171 = vmul.f32 %v100, %v147
  %v172 = vmul.f32 %v101, %v147
  %v173 = vmul.f32 %v102, %v147
  %v174 = vmul.f32 %v103, %v147
  %v175 = vmul.f32 %v104, %v147
  %v176 = vmul.f32 %v105, %v147
  %v177 = vmul.f32 %v106, %v147
  %v178 = vmul.f32 %v107, %v147
  %v179 = vmul.f32 %v108, %v147
  %v180 = vmul.f32 %v109, %v147
  %v181 = vmul.f32 %v110, %v147
  %v182 = vmul.f32 %v111, %v147
  %v183 = vmul.f32 %v112, %v147
  %v184 = vmul.f32 %v113, %v147
  %v185 = vmul.f32 %v114, %v147
  %v186 = vmul.f32 %v115, %v147
  %v187 = vmul.f32 %v116, %v147
  %v188 = vmul.f32 %v117, %v147
  %v189 = vmul.f32 %v118, %v147
  %v190 = vmul.f32 %v119, %v147
  %v191 = vmul.f32 %v120, %v147
  %v192 = vmul.f32 %v121, %v147
  %v193 = vmul.f32 %v122, %v147
  %v194 = vmul.f32 %v123, %v147
  %v195 = vmul.f32 %v124, %v147
  %v196 = vmul.f32 %v125, %v147
  %v197 = vmul.f32 %v126, %v147
  %v198 = vmul.f32 %v127, %v147
  %v199 = vmul.f32 %v128, %v147
  %v200 = vmul.f32 %v129, %v147
  %v201 = vmul.f32 %v130, %v147
  %v202 = vmul.f32 %v131, %v147
  %v203 = vmul.f32 %v132, %v147
  %v204 = vmul.f32 %v133, %v147
  %v205 = vmul.f32 %v134, %v147
  %v206 = vmul.f32 %v135, %v147
  %v207 = vmul.f32 %v136, %v147
  %v208 = vmul.f32 %v137, %v147
  %v209 = vmul.f32 %v138, %v147
  %v210 = vmul.f32 %v139, %v147
  %v211 = vmul.f32 %v140, %v147
  %v212 = vmul.f32 %v141, %v147
  %v213 = vld [vmem:[%s2] sm:$0x1]
  %v215 = vlaneseq
  %v216 = vshrl.u32 %v215, 7
  %v217 = vsub.s32 0, %v216
  %v218 = vrot.slane %v213, %v217
  %v220 = vadd.f32 %v149, %v218
  %v221 = vadd.f32 %v150, %v218
  %v222 = vadd.f32 %v151, %v218
  %v223 = vadd.f32 %v152, %v218
  %v224 = vadd.f32 %v153, %v218
  %v225 = vadd.f32 %v154, %v218
  %v226 = vadd.f32 %v155, %v218
  %v227 = vadd.f32 %v156, %v218
  %v228 = vadd.f32 %v157, %v218
  %v229 = vadd.f32 %v158, %v218
  %v230 = vadd.f32 %v159, %v218
  %v231 = vadd.f32 %v160, %v218
  %v232 = vadd.f32 %v161, %v218
  %v233 = vadd.f32 %v162, %v218
  %v234 = vadd.f32 %v163, %v218
  %v235 = vadd.f32 %v164, %v218
  %v236 = vadd.f32 %v165, %v218
  %v237 = vadd.f32 %v166, %v218
  %v238 = vadd.f32 %v167, %v218
  %v239 = vadd.f32 %v168, %v218
  %v240 = vadd.f32 %v169, %v218
  %v241 = vadd.f32 %v170, %v218
  %v242 = vadd.f32 %v171, %v218
  %v243 = vadd.f32 %v172, %v218
  %v244 = vadd.f32 %v173, %v218
  %v245 = vadd.f32 %v174, %v218
  %v246 = vadd.f32 %v175, %v218
  %v247 = vadd.f32 %v176, %v218
  %v248 = vadd.f32 %v177, %v218
  %v249 = vadd.f32 %v178, %v218
  %v250 = vadd.f32 %v179, %v218
  %v251 = vadd.f32 %v180, %v218
  %v252 = vadd.f32 %v181, %v218
  %v253 = vadd.f32 %v182, %v218
  %v254 = vadd.f32 %v183, %v218
  %v255 = vadd.f32 %v184, %v218
  %v256 = vadd.f32 %v185, %v218
  %v257 = vadd.f32 %v186, %v218
  %v258 = vadd.f32 %v187, %v218
  %v259 = vadd.f32 %v188, %v218
  %v260 = vadd.f32 %v189, %v218
  %v261 = vadd.f32 %v190, %v218
  %v262 = vadd.f32 %v191, %v218
  %v263 = vadd.f32 %v192, %v218
  %v264 = vadd.f32 %v193, %v218
  %v265 = vadd.f32 %v194, %v218
  %v266 = vadd.f32 %v195, %v218
  %v267 = vadd.f32 %v196, %v218
  %v268 = vadd.f32 %v197, %v218
  %v269 = vadd.f32 %v198, %v218
  %v270 = vadd.f32 %v199, %v218
  %v271 = vadd.f32 %v200, %v218
  %v272 = vadd.f32 %v201, %v218
  %v273 = vadd.f32 %v202, %v218
  %v274 = vadd.f32 %v203, %v218
  %v275 = vadd.f32 %v204, %v218
  %v276 = vadd.f32 %v205, %v218
  %v277 = vadd.f32 %v206, %v218
  %v278 = vadd.f32 %v207, %v218
  %v279 = vadd.f32 %v208, %v218
  %v280 = vadd.f32 %v209, %v218
  %v281 = vadd.f32 %v210, %v218
  %v282 = vadd.f32 %v211, %v218
  %v283 = vadd.f32 %v212, %v218
  %v284 = vmax.f32 %v220, 0.0
  %v285 = vmax.f32 %v221, 0.0
  %v286 = vmax.f32 %v222, 0.0
  %v287 = vmax.f32 %v223, 0.0
  %v288 = vmax.f32 %v224, 0.0
  %v289 = vmax.f32 %v225, 0.0
  %v290 = vmax.f32 %v226, 0.0
  %v291 = vmax.f32 %v227, 0.0
  %v292 = vmax.f32 %v228, 0.0
  %v293 = vmax.f32 %v229, 0.0
  %v294 = vmax.f32 %v230, 0.0
  %v295 = vmax.f32 %v231, 0.0
  %v296 = vmax.f32 %v232, 0.0
  %v297 = vmax.f32 %v233, 0.0
  %v298 = vmax.f32 %v234, 0.0
  %v299 = vmax.f32 %v235, 0.0
  %v300 = vmax.f32 %v236, 0.0
  %v301 = vmax.f32 %v237, 0.0
  %v302 = vmax.f32 %v238, 0.0
  %v303 = vmax.f32 %v239, 0.0
  %v304 = vmax.f32 %v240, 0.0
  %v305 = vmax.f32 %v241, 0.0
  %v306 = vmax.f32 %v242, 0.0
  %v307 = vmax.f32 %v243, 0.0
  %v308 = vmax.f32 %v244, 0.0
  %v309 = vmax.f32 %v245, 0.0
  %v310 = vmax.f32 %v246, 0.0
  %v311 = vmax.f32 %v247, 0.0
  %v312 = vmax.f32 %v248, 0.0
  %v313 = vmax.f32 %v249, 0.0
  %v314 = vmax.f32 %v250, 0.0
  %v315 = vmax.f32 %v251, 0.0
  %v316 = vmax.f32 %v252, 0.0
  %v317 = vmax.f32 %v253, 0.0
  %v318 = vmax.f32 %v254, 0.0
  %v319 = vmax.f32 %v255, 0.0
  %v320 = vmax.f32 %v256, 0.0
  %v321 = vmax.f32 %v257, 0.0
  %v322 = vmax.f32 %v258, 0.0
  %v323 = vmax.f32 %v259, 0.0
  %v324 = vmax.f32 %v260, 0.0
  %v325 = vmax.f32 %v261, 0.0
  %v326 = vmax.f32 %v262, 0.0
  %v327 = vmax.f32 %v263, 0.0
  %v328 = vmax.f32 %v264, 0.0
  %v329 = vmax.f32 %v265, 0.0
  %v330 = vmax.f32 %v266, 0.0
  %v331 = vmax.f32 %v267, 0.0
  %v332 = vmax.f32 %v268, 0.0
  %v333 = vmax.f32 %v269, 0.0
  %v334 = vmax.f32 %v270, 0.0
  %v335 = vmax.f32 %v271, 0.0
  %v336 = vmax.f32 %v272, 0.0
  %v337 = vmax.f32 %v273, 0.0
  %v338 = vmax.f32 %v274, 0.0
  %v339 = vmax.f32 %v275, 0.0
  %v340 = vmax.f32 %v276, 0.0
  %v341 = vmax.f32 %v277, 0.0
  %v342 = vmax.f32 %v278, 0.0
  %v343 = vmax.f32 %v279, 0.0
  %v344 = vmax.f32 %v280, 0.0
  %v345 = vmax.f32 %v281, 0.0
  %v346 = vmax.f32 %v282, 0.0
  %v347 = vmax.f32 %v283, 0.0
  %v348 = vpack.c.bf16 %v285, %v284
  %v349 = vpack.c.bf16 %v287, %v286
  %v350 = vpack.c.bf16 %v289, %v288
  %v351 = vpack.c.bf16 %v291, %v290
  %v352 = vpack.c.bf16 %v293, %v292
  %v353 = vpack.c.bf16 %v295, %v294
  %v354 = vpack.c.bf16 %v297, %v296
  %v355 = vpack.c.bf16 %v299, %v298
  %v356 = vpack.c.bf16 %v301, %v300
  %v357 = vpack.c.bf16 %v303, %v302
  %v358 = vpack.c.bf16 %v305, %v304
  %v359 = vpack.c.bf16 %v307, %v306
  %v360 = vpack.c.bf16 %v309, %v308
  %v361 = vpack.c.bf16 %v311, %v310
  %v362 = vpack.c.bf16 %v313, %v312
  %v363 = vpack.c.bf16 %v315, %v314
  %v364 = vpack.c.bf16 %v317, %v316
  %v365 = vpack.c.bf16 %v319, %v318
  %v366 = vpack.c.bf16 %v321, %v320
  %v367 = vpack.c.bf16 %v323, %v322
  %v368 = vpack.c.bf16 %v325, %v324
  %v369 = vpack.c.bf16 %v327, %v326
  %v370 = vpack.c.bf16 %v329, %v328
  %v371 = vpack.c.bf16 %v331, %v330
  %v372 = vpack.c.bf16 %v333, %v332
  %v373 = vpack.c.bf16 %v335, %v334
  %v374 = vpack.c.bf16 %v337, %v336
  %v375 = vpack.c.bf16 %v339, %v338
  %v376 = vpack.c.bf16 %v341, %v340
  %v377 = vpack.c.bf16 %v343, %v342
  %v378 = vpack.c.bf16 %v345, %v344
  %v379 = vpack.c.bf16 %v347, %v346
  %v412 = vunpack.c.l.b16 %v348
  %v413 = vunpack.c.h.b16 %v348
  %v414 = vunpack.c.l.b16 %v349
  %v415 = vunpack.c.h.b16 %v349
  %v416 = vunpack.c.l.b16 %v350
  %v417 = vunpack.c.h.b16 %v350
  %v418 = vunpack.c.l.b16 %v351
  %v419 = vunpack.c.h.b16 %v351
  %v420 = vunpack.c.l.b16 %v352
  %v421 = vunpack.c.h.b16 %v352
  %v422 = vunpack.c.l.b16 %v353
  %v423 = vunpack.c.h.b16 %v353
  %v424 = vunpack.c.l.b16 %v354
  %v425 = vunpack.c.h.b16 %v354
  %v426 = vunpack.c.l.b16 %v355
  %v427 = vunpack.c.h.b16 %v355
  %v428 = vunpack.c.l.b16 %v356
  %v429 = vunpack.c.h.b16 %v356
  %v430 = vunpack.c.l.b16 %v357
  %v431 = vunpack.c.h.b16 %v357
  %v432 = vunpack.c.l.b16 %v358
  %v433 = vunpack.c.h.b16 %v358
  %v434 = vunpack.c.l.b16 %v359
  %v435 = vunpack.c.h.b16 %v359
  %v436 = vunpack.c.l.b16 %v360
  %v437 = vunpack.c.h.b16 %v360
  %v438 = vunpack.c.l.b16 %v361
  %v439 = vunpack.c.h.b16 %v361
  %v440 = vunpack.c.l.b16 %v362
  %v441 = vunpack.c.h.b16 %v362
  %v442 = vunpack.c.l.b16 %v363
  %v443 = vunpack.c.h.b16 %v363
  %v444 = vunpack.c.l.b16 %v364
  %v445 = vunpack.c.h.b16 %v364
  %v446 = vunpack.c.l.b16 %v365
  %v447 = vunpack.c.h.b16 %v365
  %v448 = vunpack.c.l.b16 %v366
  %v449 = vunpack.c.h.b16 %v366
  %v450 = vunpack.c.l.b16 %v367
  %v451 = vunpack.c.h.b16 %v367
  %v452 = vunpack.c.l.b16 %v368
  %v453 = vunpack.c.h.b16 %v368
  %v454 = vunpack.c.l.b16 %v369
  %v455 = vunpack.c.h.b16 %v369
  %v456 = vunpack.c.l.b16 %v370
  %v457 = vunpack.c.h.b16 %v370
  %v458 = vunpack.c.l.b16 %v371
  %v459 = vunpack.c.h.b16 %v371
  %v460 = vunpack.c.l.b16 %v372
  %v461 = vunpack.c.h.b16 %v372
  %v462 = vunpack.c.l.b16 %v373
  %v463 = vunpack.c.h.b16 %v373
  %v464 = vunpack.c.l.b16 %v374
  %v465 = vunpack.c.h.b16 %v374
  %v466 = vunpack.c.l.b16 %v375
  %v467 = vunpack.c.h.b16 %v375
  %v468 = vunpack.c.l.b16 %v376
  %v469 = vunpack.c.h.b16 %v376
  %v470 = vunpack.c.l.b16 %v377
  %v471 = vunpack.c.h.b16 %v377
  %v472 = vunpack.c.l.b16 %v378
  %v473 = vunpack.c.h.b16 %v378
  %v474 = vunpack.c.l.b16 %v379
  %v475 = vunpack.c.h.b16 %v379
  %v476 = vpack.c.b16 %v412, %v412
  %v477 = vpack.c.b16 %v413, %v413
  %v478 = vpack.c.b16 %v414, %v414
  %v479 = vpack.c.b16 %v415, %v415
  %v480 = vpack.c.b16 %v416, %v416
  %v481 = vpack.c.b16 %v417, %v417
  %v482 = vpack.c.b16 %v418, %v418
  %v483 = vpack.c.b16 %v419, %v419
  %v484 = vpack.c.b16 %v420, %v420
  %v485 = vpack.c.b16 %v421, %v421
  %v486 = vpack.c.b16 %v422, %v422
  %v487 = vpack.c.b16 %v423, %v423
  %v488 = vpack.c.b16 %v424, %v424
  %v489 = vpack.c.b16 %v425, %v425
  %v490 = vpack.c.b16 %v426, %v426
  %v491 = vpack.c.b16 %v427, %v427
  %v492 = vpack.c.b16 %v428, %v428
  %v493 = vpack.c.b16 %v429, %v429
  %v494 = vpack.c.b16 %v430, %v430
  %v495 = vpack.c.b16 %v431, %v431
  %v496 = vpack.c.b16 %v432, %v432
  %v497 = vpack.c.b16 %v433, %v433
  %v498 = vpack.c.b16 %v434, %v434
  %v499 = vpack.c.b16 %v435, %v435
  %v500 = vpack.c.b16 %v436, %v436
  %v501 = vpack.c.b16 %v437, %v437
  %v502 = vpack.c.b16 %v438, %v438
  %v503 = vpack.c.b16 %v439, %v439
  %v504 = vpack.c.b16 %v440, %v440
  %v505 = vpack.c.b16 %v441, %v441
  %v506 = vpack.c.b16 %v442, %v442
  %v507 = vpack.c.b16 %v443, %v443
  %v508 = vpack.c.b16 %v444, %v444
  %v509 = vpack.c.b16 %v445, %v445
  %v510 = vpack.c.b16 %v446, %v446
  %v511 = vpack.c.b16 %v447, %v447
  %v512 = vpack.c.b16 %v448, %v448
  %v513 = vpack.c.b16 %v449, %v449
  %v514 = vpack.c.b16 %v450, %v450
  %v515 = vpack.c.b16 %v451, %v451
  %v516 = vpack.c.b16 %v452, %v452
  %v517 = vpack.c.b16 %v453, %v453
  %v518 = vpack.c.b16 %v454, %v454
  %v519 = vpack.c.b16 %v455, %v455
  %v520 = vpack.c.b16 %v456, %v456
  %v521 = vpack.c.b16 %v457, %v457
  %v522 = vpack.c.b16 %v458, %v458
  %v523 = vpack.c.b16 %v459, %v459
  %v524 = vpack.c.b16 %v460, %v460
  %v525 = vpack.c.b16 %v461, %v461
  %v526 = vpack.c.b16 %v462, %v462
  %v527 = vpack.c.b16 %v463, %v463
  %v528 = vpack.c.b16 %v464, %v464
  %v529 = vpack.c.b16 %v465, %v465
  %v530 = vpack.c.b16 %v466, %v466
  %v531 = vpack.c.b16 %v467, %v467
  %v532 = vpack.c.b16 %v468, %v468
  %v533 = vpack.c.b16 %v469, %v469
  %v534 = vpack.c.b16 %v470, %v470
  %v535 = vpack.c.b16 %v471, %v471
  %v536 = vpack.c.b16 %v472, %v472
  %v537 = vpack.c.b16 %v473, %v473
  %v538 = vpack.c.b16 %v474, %v474
  %v539 = vpack.c.b16 %v475, %v475
  %vm604 = vcmask 125952
  %605 = vst.msk [vmem:[%s3] sm:$0xf] %vm604, %v476
  %606 = vst.msk [vmem:[%s3 + $0x4] sm:$0xf] %vm604, %v477
  %607 = vst.msk [vmem:[%s3 + $0x8] sm:$0xf] %vm604, %v478
  %608 = vst.msk [vmem:[%s3 + $0xc] sm:$0xf] %vm604, %v479
  %609 = vst.msk [vmem:[%s3 + $0x10] sm:$0xf] %vm604, %v480
  %610 = vst.msk [vmem:[%s3 + $0x14] sm:$0xf] %vm604, %v481
  %611 = vst.msk [vmem:[%s3 + $0x18] sm:$0xf] %vm604, %v482
  %612 = vst.msk [vmem:[%s3 + $0x1c] sm:$0xf] %vm604, %v483
  %613 = vst.msk [vmem:[%s3 + $0x20] sm:$0xf] %vm604, %v484
  %614 = vst.msk [vmem:[%s3 + $0x24] sm:$0xf] %vm604, %v485
  %615 = vst.msk [vmem:[%s3 + $0x28] sm:$0xf] %vm604, %v486
  %616 = vst.msk [vmem:[%s3 + $0x2c] sm:$0xf] %vm604, %v487
  %617 = vst.msk [vmem:[%s3 + $0x30] sm:$0xf] %vm604, %v488
  %618 = vst.msk [vmem:[%s3 + $0x34] sm:$0xf] %vm604, %v489
  %619 = vst.msk [vmem:[%s3 + $0x38] sm:$0xf] %vm604, %v490
  %620 = vst.msk [vmem:[%s3 + $0x3c] sm:$0xf] %vm604, %v491
  %621 = vst.msk [vmem:[%s3 + $0x40] sm:$0xf] %vm604, %v492
  %622 = vst.msk [vmem:[%s3 + $0x44] sm:$0xf] %vm604, %v493
  %623 = vst.msk [vmem:[%s3 + $0x48] sm:$0xf] %vm604, %v494
  %624 = vst.msk [vmem:[%s3 + $0x4c] sm:$0xf] %vm604, %v495
  %625 = vst.msk [vmem:[%s3 + $0x50] sm:$0xf] %vm604, %v496
  %626 = vst.msk [vmem:[%s3 + $0x54] sm:$0xf] %vm604, %v497
  %627 = vst.msk [vmem:[%s3 + $0x58] sm:$0xf] %vm604, %v498
  %628 = vst.msk [vmem:[%s3 + $0x5c] sm:$0xf] %vm604, %v499
  %629 = vst.msk [vmem:[%s3 + $0x60] sm:$0xf] %vm604, %v500
  %630 = vst.msk [vmem:[%s3 + $0x64] sm:$0xf] %vm604, %v501
  %631 = vst.msk [vmem:[%s3 + $0x68] sm:$0xf] %vm604, %v502
  %632 = vst.msk [vmem:[%s3 + $0x6c] sm:$0xf] %vm604, %v503
  %633 = vst.msk [vmem:[%s3 + $0x70] sm:$0xf] %vm604, %v504
  %634 = vst.msk [vmem:[%s3 + $0x74] sm:$0xf] %vm604, %v505
  %635 = vst.msk [vmem:[%s3 + $0x78] sm:$0xf] %vm604, %v506
  %636 = vst.msk [vmem:[%s3 + $0x7c] sm:$0xf] %vm604, %v507
  %637 = vst.msk [vmem:[%s3 + $0x80] sm:$0xf] %vm604, %v508
  %638 = vst.msk [vmem:[%s3 + $0x84] sm:$0xf] %vm604, %v509
  %639 = vst.msk [vmem:[%s3 + $0x88] sm:$0xf] %vm604, %v510
  %640 = vst.msk [vmem:[%s3 + $0x8c] sm:$0xf] %vm604, %v511
  %641 = vst.msk [vmem:[%s3 + $0x90] sm:$0xf] %vm604, %v512
  %642 = vst.msk [vmem:[%s3 + $0x94] sm:$0xf] %vm604, %v513
  %643 = vst.msk [vmem:[%s3 + $0x98] sm:$0xf] %vm604, %v514
  %644 = vst.msk [vmem:[%s3 + $0x9c] sm:$0xf] %vm604, %v515
  %645 = vst.msk [vmem:[%s3 + $0xa0] sm:$0xf] %vm604, %v516
  %646 = vst.msk [vmem:[%s3 + $0xa4] sm:$0xf] %vm604, %v517
  %647 = vst.msk [vmem:[%s3 + $0xa8] sm:$0xf] %vm604, %v518
  %648 = vst.msk [vmem:[%s3 + $0xac] sm:$0xf] %vm604, %v519
  %649 = vst.msk [vmem:[%s3 + $0xb0] sm:$0xf] %vm604, %v520
  %650 = vst.msk [vmem:[%s3 + $0xb4] sm:$0xf] %vm604, %v521
  %651 = vst.msk [vmem:[%s3 + $0xb8] sm:$0xf] %vm604, %v522
  %652 = vst.msk [vmem:[%s3 + $0xbc] sm:$0xf] %vm604, %v523
  %653 = vst.msk [vmem:[%s3 + $0xc0] sm:$0xf] %vm604, %v524
  %654 = vst.msk [vmem:[%s3 + $0xc4] sm:$0xf] %vm604, %v525
  %655 = vst.msk [vmem:[%s3 + $0xc8] sm:$0xf] %vm604, %v526
  %656 = vst.msk [vmem:[%s3 + $0xcc] sm:$0xf] %vm604, %v527
  %657 = vst.msk [vmem:[%s3 + $0xd0] sm:$0xf] %vm604, %v528
  %658 = vst.msk [vmem:[%s3 + $0xd4] sm:$0xf] %vm604, %v529
  %659 = vst.msk [vmem:[%s3 + $0xd8] sm:$0xf] %vm604, %v530
  %660 = vst.msk [vmem:[%s3 + $0xdc] sm:$0xf] %vm604, %v531
  %661 = vst.msk [vmem:[%s3 + $0xe0] sm:$0xf] %vm604, %v532
  %662 = vst.msk [vmem:[%s3 + $0xe4] sm:$0xf] %vm604, %v533
  %663 = vst.msk [vmem:[%s3 + $0xe8] sm:$0xf] %vm604, %v534
  %664 = vst.msk [vmem:[%s3 + $0xec] sm:$0xf] %vm604, %v535
  %665 = vst.msk [vmem:[%s3 + $0xf0] sm:$0xf] %vm604, %v536
  %666 = vst.msk [vmem:[%s3 + $0xf4] sm:$0xf] %vm604, %v537
  %667 = vst.msk [vmem:[%s3 + $0xf8] sm:$0xf] %vm604, %v538
  %668 = vst.msk [vmem:[%s3 + $0xfc] sm:$0xf] %vm604, %v539
  // Predicated region
  $region14: #{spatial_prior_module_forward.14} parent=0 // pred_check
    _
  $region15: #{spatial_prior_module_forward.14} parent=0 // pred_check_branch
    %670 = sbr.rel (0) target = $region17
  $region16: #{spatial_prior_module_forward.14} parent=0 // pred_region
    _
  $region17: #{spatial_prior_module_forward.14} parent=0 // pred_fallthru
    _
  // Predicated region
  $region18: #{spatial_prior_module_forward.14} parent=0 // pred_check
    _
  $region19: #{spatial_prior_module_forward.14} parent=0 // pred_check_branch
    %672 = sbr.rel (0) target = $region21
  $region20: #{spatial_prior_module_forward.14} parent=0 // pred_region
    _
  $region21: #{spatial_prior_module_forward.14} parent=0 // pred_fallthru
    _

// kernel: spatial_prior_module_forward.13
$region0: #{spatial_prior_module_forward.13}
  #allocation0 [shape = 'u32[]', space=smem, size = 0x4, offset = 0x4, fixed_abs, tag = 'smem constant byte address 0x4 - core index']
  #allocation1 [shape = 'u32[144,128]{1,0:T(1,128)}', space=vmem, size = 0x12000, scoped, tag = 'internal scratch']
  %s0 = inlined_call_operand.vmem [shape: bf16[512,27], index: 0, kind: input, shape index: {}]
  %s1 = inlined_call_operand.vmem [shape: bf16[27,16], index: 1, kind: input, shape index: {}]
  %s2 = inlined_call_operand.vmem [shape: bf16[512,16], index: 2, kind: output, shape index: {0}]
  %s3 = inlined_call_operand.vmem [shape: f32[1,1,16], index: 3, kind: output, shape index: {1}]
  %s4 = inlined_call_operand.vmem [shape: f32[1,1,16], index: 4, kind: output, shape index: {2}]
  %5 = xla_tuple %s2, %s3, %s4
  %s6 = sld [smem:[#allocation0]]
  $region34: #{spatial_prior_module_forward.13} parent=0
    _
  %s8 = ssub.s32 1, %s6
  %s9 = scalar_select 0, %s8, %s6
  // Predicated region
  $region2: #{spatial_prior_module_forward.13} parent=0 // pred_check
    _
  $region3: #{spatial_prior_module_forward.13} parent=0 // pred_check_branch
    %11 = sbr.rel (0) target = $region5
  $region4: #{spatial_prior_module_forward.13} parent=0 // pred_region
    _
  $region5: #{spatial_prior_module_forward.13} parent=0 // pred_fallthru
    _
  // Predicated region
  $region6: #{spatial_prior_module_forward.13} parent=0 // pred_check
    _
  $region7: #{spatial_prior_module_forward.13} parent=0 // pred_check_branch
    %13 = sbr.rel (0) target = $region9
  $region8: #{spatial_prior_module_forward.13} parent=0 // pred_region
    _
  $region9: #{spatial_prior_module_forward.13} parent=0 // pred_fallthru
    _
  %v15 = vld [vmem:[%s0] sm:$0xf]
  %v16 = vld [vmem:[%s0 + $0x4] sm:$0xf]
  %v17 = vld [vmem:[%s0 + $0x8] sm:$0xf]
  %v18 = vld [vmem:[%s0 + $0xc] sm:$0xf]
  %v19 = vld [vmem:[%s0 + $0x10] sm:$0xf]
  %v20 = vld [vmem:[%s0 + $0x14] sm:$0xf]
  %v21 = vld [vmem:[%s0 + $0x18] sm:$0xf]
  %v22 = vld [vmem:[%s0 + $0x1c] sm:$0xf]
  %v23 = vld [vmem:[%s0 + $0x20] sm:$0xf]
  %v24 = vld [vmem:[%s0 + $0x24] sm:$0xf]
  %v25 = vld [vmem:[%s0 + $0x28] sm:$0xf]
  %v26 = vld [vmem:[%s0 + $0x2c] sm:$0xf]
  %v27 = vld [vmem:[%s0 + $0x30] sm:$0xf]
  %v28 = vld [vmem:[%s0 + $0x34] sm:$0xf]
  %v29 = vld [vmem:[%s0 + $0x38] sm:$0xf]
  %v30 = vld [vmem:[%s0 + $0x3c] sm:$0xf]
  %v31 = vld [vmem:[%s0 + $0x40] sm:$0xf]
  %v32 = vld [vmem:[%s0 + $0x44] sm:$0xf]
  %v33 = vld [vmem:[%s0 + $0x48] sm:$0xf]
  %v34 = vld [vmem:[%s0 + $0x4c] sm:$0xf]
  %v35 = vld [vmem:[%s0 + $0x50] sm:$0xf]
  %v36 = vld [vmem:[%s0 + $0x54] sm:$0xf]
  %v37 = vld [vmem:[%s0 + $0x58] sm:$0xf]
  %v38 = vld [vmem:[%s0 + $0x5c] sm:$0xf]
  %v39 = vld [vmem:[%s0 + $0x60] sm:$0xf]
  %v40 = vld [vmem:[%s0 + $0x64] sm:$0xf]
  %v41 = vld [vmem:[%s0 + $0x68] sm:$0xf]
  %v42 = vld [vmem:[%s0 + $0x6c] sm:$0xf]
  %v43 = vld [vmem:[%s0 + $0x70] sm:$0xf]
  %v44 = vld [vmem:[%s0 + $0x74] sm:$0xf]
  %v45 = vld [vmem:[%s0 + $0x78] sm:$0xf]
  %v46 = vld [vmem:[%s0 + $0x7c] sm:$0xf]
  %v47 = vld [vmem:[%s0 + $0x80] sm:$0xf]
  %v48 = vld [vmem:[%s0 + $0x84] sm:$0xf]
  %v49 = vld [vmem:[%s0 + $0x88] sm:$0xf]
  %v50 = vld [vmem:[%s0 + $0x8c] sm:$0xf]
  %v51 = vld [vmem:[%s0 + $0x90] sm:$0xf]
  %v52 = vld [vmem:[%s0 + $0x94] sm:$0xf]
  %v53 = vld [vmem:[%s0 + $0x98] sm:$0xf]
  %v54 = vld [vmem:[%s0 + $0x9c] sm:$0xf]
  %v55 = vld [vmem:[%s0 + $0xa0] sm:$0xf]
  %v56 = vld [vmem:[%s0 + $0xa4] sm:$0xf]
  %v57 = vld [vmem:[%s0 + $0xa8] sm:$0xf]
  %v58 = vld [vmem:[%s0 + $0xac] sm:$0xf]
  %v59 = vld [vmem:[%s0 + $0xb0] sm:$0xf]
  %v60 = vld [vmem:[%s0 + $0xb4] sm:$0xf]
  %v61 = vld [vmem:[%s0 + $0xb8] sm:$0xf]
  %v62 = vld [vmem:[%s0 + $0xbc] sm:$0xf]
  %v63 = vld [vmem:[%s0 + $0xc0] sm:$0xf]
  %v64 = vld [vmem:[%s0 + $0xc4] sm:$0xf]
  %v65 = vld [vmem:[%s0 + $0xc8] sm:$0xf]
  %v66 = vld [vmem:[%s0 + $0xcc] sm:$0xf]
  %v67 = vld [vmem:[%s0 + $0xd0] sm:$0xf]
  %v68 = vld [vmem:[%s0 + $0xd4] sm:$0xf]
  %v69 = vld [vmem:[%s0 + $0xd8] sm:$0xf]
  %v70 = vld [vmem:[%s0 + $0xdc] sm:$0xf]
  %v71 = vld [vmem:[%s0 + $0xe0] sm:$0xf]
  %v72 = vld [vmem:[%s0 + $0xe4] sm:$0xf]
  %v73 = vld [vmem:[%s0 + $0xe8] sm:$0xf]
  %v74 = vld [vmem:[%s0 + $0xec] sm:$0xf]
  %v75 = vld [vmem:[%s0 + $0xf0] sm:$0xf]
  %v76 = vld [vmem:[%s0 + $0xf4] sm:$0xf]
  %v77 = vld [vmem:[%s0 + $0xf8] sm:$0xf]
  %v78 = vld [vmem:[%s0 + $0xfc] sm:$0xf]
  %v79 = vld [vmem:[%s1] sm:$0xf]
  %v80 = vld [vmem:[%s1 + $0x4] sm:$0xf]
  %v81 = vld [vmem:[%s1 + $0x8] sm:$0xf]
  %v82 = vld [vmem:[%s1 + $0xc] sm:$0x3]
  %v147 = vunpack.c.l.b16 %v15
  %v148 = vunpack.c.l.b16 %v16
  %v149 = vunpack.c.l.b16 %v17
  %v150 = vunpack.c.l.b16 %v18
  %v151 = vunpack.c.l.b16 %v19
  %v152 = vunpack.c.l.b16 %v20
  %v153 = vunpack.c.l.b16 %v21
  %v154 = vunpack.c.l.b16 %v22
  %v155 = vunpack.c.l.b16 %v23
  %v156 = vunpack.c.l.b16 %v24
  %v157 = vunpack.c.l.b16 %v25
  %v158 = vunpack.c.l.b16 %v26
  %v159 = vunpack.c.l.b16 %v27
  %v160 = vunpack.c.l.b16 %v28
  %v161 = vunpack.c.l.b16 %v29
  %v162 = vunpack.c.l.b16 %v30
  %v163 = vunpack.c.l.b16 %v31
  %v164 = vunpack.c.l.b16 %v32
  %v165 = vunpack.c.l.b16 %v33
  %v166 = vunpack.c.l.b16 %v34
  %v167 = vunpack.c.l.b16 %v35
  %v168 = vunpack.c.l.b16 %v36
  %v169 = vunpack.c.l.b16 %v37
  %v170 = vunpack.c.l.b16 %v38
  %v171 = vunpack.c.l.b16 %v39
  %v172 = vunpack.c.l.b16 %v40
  %v173 = vunpack.c.l.b16 %v41
  %v174 = vunpack.c.l.b16 %v42
  %v175 = vunpack.c.l.b16 %v43
  %v176 = vunpack.c.l.b16 %v44
  %v177 = vunpack.c.l.b16 %v45
  %v178 = vunpack.c.l.b16 %v46
  %v179 = vunpack.c.l.b16 %v47
  %v180 = vunpack.c.l.b16 %v48
  %v181 = vunpack.c.l.b16 %v49
  %v182 = vunpack.c.l.b16 %v50
  %v183 = vunpack.c.l.b16 %v51
  %v184 = vunpack.c.l.b16 %v52
  %v185 = vunpack.c.l.b16 %v53
  %v186 = vunpack.c.l.b16 %v54
  %v187 = vunpack.c.l.b16 %v55
  %v188 = vunpack.c.l.b16 %v56
  %v189 = vunpack.c.l.b16 %v57
  %v190 = vunpack.c.l.b16 %v58
  %v191 = vunpack.c.l.b16 %v59
  %v192 = vunpack.c.l.b16 %v60
  %v193 = vunpack.c.l.b16 %v61
  %v194 = vunpack.c.l.b16 %v62
  %v195 = vunpack.c.l.b16 %v63
  %v196 = vunpack.c.l.b16 %v64
  %v197 = vunpack.c.l.b16 %v65
  %v198 = vunpack.c.l.b16 %v66
  %v199 = vunpack.c.l.b16 %v67
  %v200 = vunpack.c.l.b16 %v68
  %v201 = vunpack.c.l.b16 %v69
  %v202 = vunpack.c.l.b16 %v70
  %v203 = vunpack.c.l.b16 %v71
  %v204 = vunpack.c.l.b16 %v72
  %v205 = vunpack.c.l.b16 %v73
  %v206 = vunpack.c.l.b16 %v74
  %v207 = vunpack.c.l.b16 %v75
  %v208 = vunpack.c.l.b16 %v76
  %v209 = vunpack.c.l.b16 %v77
  %v210 = vunpack.c.l.b16 %v78
  %v211 = vpack.c.b16 %v148, %v147
  %v212 = vpack.c.b16 %v150, %v149
  %v213 = vpack.c.b16 %v152, %v151
  %v214 = vpack.c.b16 %v154, %v153
  %v215 = vpack.c.b16 %v156, %v155
  %v216 = vpack.c.b16 %v158, %v157
  %v217 = vpack.c.b16 %v160, %v159
  %v218 = vpack.c.b16 %v162, %v161
  %v219 = vpack.c.b16 %v164, %v163
  %v220 = vpack.c.b16 %v166, %v165
  %v221 = vpack.c.b16 %v168, %v167
  %v222 = vpack.c.b16 %v170, %v169
  %v223 = vpack.c.b16 %v172, %v171
  %v224 = vpack.c.b16 %v174, %v173
  %v225 = vpack.c.b16 %v176, %v175
  %v226 = vpack.c.b16 %v178, %v177
  %v227 = vpack.c.b16 %v180, %v179
  %v228 = vpack.c.b16 %v182, %v181
  %v229 = vpack.c.b16 %v184, %v183
  %v230 = vpack.c.b16 %v186, %v185
  %v231 = vpack.c.b16 %v188, %v187
  %v232 = vpack.c.b16 %v190, %v189
  %v233 = vpack.c.b16 %v192, %v191
  %v234 = vpack.c.b16 %v194, %v193
  %v235 = vpack.c.b16 %v196, %v195
  %v236 = vpack.c.b16 %v198, %v197
  %v237 = vpack.c.b16 %v200, %v199
  %v238 = vpack.c.b16 %v202, %v201
  %v239 = vpack.c.b16 %v204, %v203
  %v240 = vpack.c.b16 %v206, %v205
  %v241 = vpack.c.b16 %v208, %v207
  %v242 = vpack.c.b16 %v210, %v209
  %v247 = vunpack.c.l.b16 %v79
  %v248 = vunpack.c.l.b16 %v80
  %v249 = vunpack.c.l.b16 %v81
  %v250 = vunpack.c.l.b16 %v82
  %v251 = vpack.c.b16 %v248, %v247
  %v252 = vpack.c.b16 %v250, %v249
  %vm254 = vcmask 220160
  %v256 = vsel %vm254, %v211, 0
  %v259 = vsel %vm254, %v212, 0
  %v262 = vsel %vm254, %v213, 0
  %v265 = vsel %vm254, %v214, 0
  %v268 = vsel %vm254, %v215, 0
  %v271 = vsel %vm254, %v216, 0
  %v274 = vsel %vm254, %v217, 0
  %v277 = vsel %vm254, %v218, 0
  %v280 = vsel %vm254, %v219, 0
  %v283 = vsel %vm254, %v220, 0
  %v286 = vsel %vm254, %v221, 0
  %v289 = vsel %vm254, %v222, 0
  %v292 = vsel %vm254, %v223, 0
  %v295 = vsel %vm254, %v224, 0
  %v298 = vsel %vm254, %v225, 0
  %v301 = vsel %vm254, %v226, 0
  %v304 = vsel %vm254, %v227, 0
  %v307 = vsel %vm254, %v228, 0
  %v310 = vsel %vm254, %v229, 0
  %v313 = vsel %vm254, %v230, 0
  %v316 = vsel %vm254, %v231, 0
  %v319 = vsel %vm254, %v232, 0
  %v322 = vsel %vm254, %v233, 0
  %v325 = vsel %vm254, %v234, 0
  %v328 = vsel %vm254, %v235, 0
  %v331 = vsel %vm254, %v236, 0
  %v334 = vsel %vm254, %v237, 0
  %v337 = vsel %vm254, %v238, 0
  %v340 = vsel %vm254, %v239, 0
  %v343 = vsel %vm254, %v240, 0
  %v346 = vsel %vm254, %v241, 0
  %v349 = vsel %vm254, %v242, 0
  %vm351 = vcmask 1044480
  %vm352 = vcmask 1045504
  %v353 = vsel %vm351, 4294967295, 65535
  %v354 = vsel %vm352, %v353, 0
  %v356 = vand.u32 %v252, %v354
  %358 = vmatprep.subr.bf16.mxu0 0
  %359 = vmatpush1.bf16.msra.mxu0 %v251
  %360 = vmatprep.subr.bf16.mxu0 0
  %361 = vmatpush1.bf16.msra.mxu0 %v356
  %362 = vmatprep.subr.bf16.mxu0 0
  %363 = vmatpush1.bf16.msra.mxu0 0
  %364 = vmatprep.subr.bf16.mxu0 0
  %365 = vmatpush1.bf16.msra.mxu0 0
  %366 = vmatprep.subr.bf16.mxu0 0
  %367 = vmatpush1.bf16.msra.mxu0 0
  %368 = vmatprep.subr.bf16.mxu0 0
  %369 = vmatpush1.bf16.msra.mxu0 0
  %370 = vmatprep.subr.bf16.mxu0 0
  %371 = vmatpush1.bf16.msra.mxu0 0
  %372 = vmatprep.subr.bf16.mxu0 0
  %373 = vmatpush1.bf16.msra.mxu0 0
  %374 = vmatprep.subr.bf16.mxu0 0
  %375 = vmatpush1.bf16.msra.mxu0 0
  %376 = vmatprep.subr.bf16.mxu0 0
  %377 = vmatpush1.bf16.msra.mxu0 0
  %378 = vmatprep.subr.bf16.mxu0 0
  %379 = vmatpush1.bf16.msra.mxu0 0
  %380 = vmatprep.subr.bf16.mxu0 0
  %381 = vmatpush1.bf16.msra.mxu0 0
  %382 = vmatprep.subr.bf16.mxu0 0
  %383 = vmatpush1.bf16.msra.mxu0 0
  %384 = vmatprep.subr.bf16.mxu0 0
  %385 = vmatpush1.bf16.msra.mxu0 0
  %386 = vmatprep.subr.bf16.mxu0 0
  %387 = vmatpush1.bf16.msra.mxu0 0
  %388 = vmatprep.subr.bf16.mxu0 0
  %389 = vmatpush1.bf16.msra.mxu0 0
  %390 = vmatprep.mubr.bf16.mxu0 0
  %391 = vmatmul.mubr.bf16.gmra.mrb[0].mxu0 %v256
  %v392 = vpop.f32.mrb[0].mxu0
  %v393 = vadd.f32 0.0, %v392
  %v394 = vpop.f32.mrb[0].mxu0
  %v395 = vpop.f32.mrb[0].mxu0
  %v396 = vadd.f32 0.0, %v395
  %v397 = vpop.f32.mrb[0].mxu0
  %398 = vmatprep.mubr.bf16.mxu0 0
  %399 = vmatmul.mubr.bf16.gmra.mrb[0].mxu0 %v259
  %v400 = vpop.f32.mrb[0].mxu0
  %v401 = vadd.f32 0.0, %v400
  %v402 = vpop.f32.mrb[0].mxu0
  %v403 = vpop.f32.mrb[0].mxu0
  %v404 = vadd.f32 0.0, %v403
  %v405 = vpop.f32.mrb[0].mxu0
  %406 = vmatprep.mubr.bf16.mxu0 0
  %407 = vmatmul.mubr.bf16.gmra.mrb[0].mxu0 %v262
  %v408 = vpop.f32.mrb[0].mxu0
  %v409 = vadd.f32 0.0, %v408
  %v410 = vpop.f32.mrb[0].mxu0
  %v411 = vpop.f32.mrb[0].mxu0
  %v412 = vadd.f32 0.0, %v411
  %v413 = vpop.f32.mrb[0].mxu0
  %414 = vmatprep.mubr.bf16.mxu0 0
  %415 = vmatmul.mubr.bf16.gmra.mrb[0].mxu0 %v265
  %v416 = vpop.f32.mrb[0].mxu0
  %v417 = vadd.f32 0.0, %v416
  %v418 = vpop.f32.mrb[0].mxu0
  %v419 = vpop.f32.mrb[0].mxu0
  %v420 = vadd.f32 0.0, %v419
  %v421 = vpop.f32.mrb[0].mxu0
  %422 = vmatprep.mubr.bf16.mxu0 0
  %423 = vmatmul.mubr.bf16.gmra.mrb[0].mxu0 %v268
  %v424 = vpop.f32.mrb[0].mxu0
  %v425 = vadd.f32 0.0, %v424
  %v426 = vpop.f32.mrb[0].mxu0
  %v427 = vpop.f32.mrb[0].mxu0
  %v428 = vadd.f32 0.0, %v427
  %v429 = vpop.f32.mrb[0].mxu0
  %430 = vmatprep.mubr.bf16.mxu0 0
  %431 = vmatmul.mubr.bf16.gmra.mrb[0].mxu0 %v271
  %v432 = vpop.f32.mrb[0].mxu0
  %v433 = vadd.f32 0.0, %v432
  %v434 = vpop.f32.mrb[0].mxu0
  %v435 = vpop.f32.mrb[0].mxu0
  %v436 = vadd.f32 0.0, %v435
  %v437 = vpop.f32.mrb[0].mxu0
  %438 = vmatprep.mubr.bf16.mxu0 0
  %439 = vmatmul.mubr.bf16.gmra.mrb[0].mxu0 %v274
  %v440 = vpop.f32.mrb[0].mxu0
  %v441 = vadd.f32 0.0, %v440
  %v442 = vpop.f32.mrb[0].mxu0
  %v443 = vpop.f32.mrb[0].mxu0
  %v444 = vadd.f32 0.0, %v443
  %v445 = vpop.f32.mrb[0].mxu0
  %446 = vmatprep.mubr.bf16.mxu0 0
  %447 = vmatmul.mubr.bf16.gmra.mrb[0].mxu0 %v277
  %v448 = vpop.f32.mrb[0].mxu0
  %v449 = vadd.f32 0.0, %v448
  %v450 = vpop.f32.mrb[0].mxu0
  %v451 = vpop.f32.mrb[0].mxu0
  %v452 = vadd.f32 0.0, %v451
  %v453 = vpop.f32.mrb[0].mxu0
  %454 = vmatprep.mubr.bf16.mxu0 0
  %455 = vmatmul.mubr.bf16.gmra.mrb[0].mxu0 %v280
  %v456 = vpop.f32.mrb[0].mxu0
  %v457 = vadd.f32 0.0, %v456
  %v458 = vpop.f32.mrb[0].mxu0
  %v459 = vpop.f32.mrb[0].mxu0
  %v460 = vadd.f32 0.0, %v459
  %v461 = vpop.f32.mrb[0].mxu0
  %462 = vmatprep.mubr.bf16.mxu0 0
  %463 = vmatmul.mubr.bf16.gmra.mrb[0].mxu0 %v283
  %v464 = vpop.f32.mrb[0].mxu0
  %v465 = vadd.f32 0.0, %v464
  %v466 = vpop.f32.mrb[0].mxu0
  %v467 = vpop.f32.mrb[0].mxu0
  %v468 = vadd.f32 0.0, %v467
  %v469 = vpop.f32.mrb[0].mxu0
  %470 = vmatprep.mubr.bf16.mxu0 0
  %471 = vmatmul.mubr.bf16.gmra.mrb[0].mxu0 %v286
  %v472 = vpop.f32.mrb[0].mxu0
  %v473 = vadd.f32 0.0, %v472
  %v474 = vpop.f32.mrb[0].mxu0
  %v475 = vpop.f32.mrb[0].mxu0
  %v476 = vadd.f32 0.0, %v475
  %v477 = vpop.f32.mrb[0].mxu0
  %478 = vmatprep.mubr.bf16.mxu0 0
  %479 = vmatmul.mubr.bf16.gmra.mrb[0].mxu0 %v289
  %v480 = vpop.f32.mrb[0].mxu0
  %v481 = vadd.f32 0.0, %v480
  %v482 = vpop.f32.mrb[0].mxu0
  %v483 = vpop.f32.mrb[0].mxu0
  %v484 = vadd.f32 0.0, %v483
  %v485 = vpop.f32.mrb[0].mxu0
  %486 = vmatprep.mubr.bf16.mxu0 0
  %487 = vmatmul.mubr.bf16.gmra.mrb[0].mxu0 %v292
  %v488 = vpop.f32.mrb[0].mxu0
  %v489 = vadd.f32 0.0, %v488
  %v490 = vpop.f32.mrb[0].mxu0
  %v491 = vpop.f32.mrb[0].mxu0
  %v492 = vadd.f32 0.0, %v491
  %v493 = vpop.f32.mrb[0].mxu0
  %494 = vmatprep.mubr.bf16.mxu0 0
  %495 = vmatmul.mubr.bf16.gmra.mrb[0].mxu0 %v295
  %v496 = vpop.f32.mrb[0].mxu0
  %v497 = vadd.f32 0.0, %v496
  %v498 = vpop.f32.mrb[0].mxu0
  %v499 = vpop.f32.mrb[0].mxu0
  %v500 = vadd.f32 0.0, %v499
  %v501 = vpop.f32.mrb[0].mxu0
  %502 = vmatprep.mubr.bf16.mxu0 0
  %503 = vmatmul.mubr.bf16.gmra.mrb[0].mxu0 %v298
  %v504 = vpop.f32.mrb[0].mxu0
  %v505 = vadd.f32 0.0, %v504
  %v506 = vpop.f32.mrb[0].mxu0
  %v507 = vpop.f32.mrb[0].mxu0
  %v508 = vadd.f32 0.0, %v507
  %v509 = vpop.f32.mrb[0].mxu0
  %510 = vmatprep.mubr.bf16.mxu0 0
  %511 = vmatmul.mubr.bf16.gmra.mrb[0].mxu0 %v301
  %v512 = vpop.f32.mrb[0].mxu0
  %v513 = vadd.f32 0.0, %v512
  %v514 = vpop.f32.mrb[0].mxu0
  %v515 = vpop.f32.mrb[0].mxu0
  %v516 = vadd.f32 0.0, %v515
  %v517 = vpop.f32.mrb[0].mxu0
  %518 = vmatprep.mubr.bf16.mxu0 0
  %519 = vmatmul.mubr.bf16.gmra.mrb[0].mxu0 %v304
  %v520 = vpop.f32.mrb[0].mxu0
  %v521 = vadd.f32 0.0, %v520
  %v522 = vpop.f32.mrb[0].mxu0
  %v523 = vpop.f32.mrb[0].mxu0
  %v524 = vadd.f32 0.0, %v523
  %v525 = vpop.f32.mrb[0].mxu0
  %526 = vmatprep.mubr.bf16.mxu0 0
  %527 = vmatmul.mubr.bf16.gmra.mrb[0].mxu0 %v307
  %v528 = vpop.f32.mrb[0].mxu0
  %v529 = vadd.f32 0.0, %v528
  %v530 = vpop.f32.mrb[0].mxu0
  %v531 = vpop.f32.mrb[0].mxu0
  %v532 = vadd.f32 0.0, %v531
  %v533 = vpop.f32.mrb[0].mxu0
  %534 = vmatprep.mubr.bf16.mxu0 0
  %535 = vmatmul.mubr.bf16.gmra.mrb[0].mxu0 %v310
  %v536 = vpop.f32.mrb[0].mxu0
  %v537 = vadd.f32 0.0, %v536
  %v538 = vpop.f32.mrb[0].mxu0
  %v539 = vpop.f32.mrb[0].mxu0
  %v540 = vadd.f32 0.0, %v539
  %v541 = vpop.f32.mrb[0].mxu0
  %542 = vmatprep.mubr.bf16.mxu0 0
  %543 = vmatmul.mubr.bf16.gmra.mrb[0].mxu0 %v313
  %v544 = vpop.f32.mrb[0].mxu0
  %v545 = vadd.f32 0.0, %v544
  %v546 = vpop.f32.mrb[0].mxu0
  %v547 = vpop.f32.mrb[0].mxu0
  %v548 = vadd.f32 0.0, %v547
  %v549 = vpop.f32.mrb[0].mxu0
  %550 = vmatprep.mubr.bf16.mxu0 0
  %551 = vmatmul.mubr.bf16.gmra.mrb[0].mxu0 %v316
  %v552 = vpop.f32.mrb[0].mxu0
  %v553 = vadd.f32 0.0, %v552
  %v554 = vpop.f32.mrb[0].mxu0
  %v555 = vpop.f32.mrb[0].mxu0
  %v556 = vadd.f32 0.0, %v555
  %v557 = vpop.f32.mrb[0].mxu0
  %558 = vmatprep.mubr.bf16.mxu0 0
  %559 = vmatmul.mubr.bf16.gmra.mrb[0].mxu0 %v319
  %v560 = vpop.f32.mrb[0].mxu0
  %v561 = vadd.f32 0.0, %v560
  %v562 = vpop.f32.mrb[0].mxu0
  %v563 = vpop.f32.mrb[0].mxu0
  %v564 = vadd.f32 0.0, %v563
  %v565 = vpop.f32.mrb[0].mxu0
  %566 = vmatprep.mubr.bf16.mxu0 0
  %567 = vmatmul.mubr.bf16.gmra.mrb[0].mxu0 %v322
  %v568 = vpop.f32.mrb[0].mxu0
  %v569 = vadd.f32 0.0, %v568
  %v570 = vpop.f32.mrb[0].mxu0
  %v571 = vpop.f32.mrb[0].mxu0
  %v572 = vadd.f32 0.0, %v571
  %v573 = vpop.f32.mrb[0].mxu0
  %574 = vmatprep.mubr.bf16.mxu0 0
  %575 = vmatmul.mubr.bf16.gmra.mrb[0].mxu0 %v325
  %v576 = vpop.f32.mrb[0].mxu0
  %v577 = vadd.f32 0.0, %v576
  %v578 = vpop.f32.mrb[0].mxu0
  %v579 = vpop.f32.mrb[0].mxu0
  %v580 = vadd.f32 0.0, %v579
  %v581 = vpop.f32.mrb[0].mxu0
  %582 = vmatprep.mubr.bf16.mxu0 0
  %583 = vmatmul.mubr.bf16.gmra.mrb[0].mxu0 %v328
  %v584 = vpop.f32.mrb[0].mxu0
  %v585 = vadd.f32 0.0, %v584
  %v586 = vpop.f32.mrb[0].mxu0
  %v587 = vpop.f32.mrb[0].mxu0
  %v588 = vadd.f32 0.0, %v587
  %v589 = vpop.f32.mrb[0].mxu0
  %590 = vmatprep.mubr.bf16.mxu0 0
  %591 = vmatmul.mubr.bf16.gmra.mrb[0].mxu0 %v331
  %v592 = vpop.f32.mrb[0].mxu0
  %v593 = vadd.f32 0.0, %v592
  %v594 = vpop.f32.mrb[0].mxu0
  %v595 = vpop.f32.mrb[0].mxu0
  %v596 = vadd.f32 0.0, %v595
  %v597 = vpop.f32.mrb[0].mxu0
  %598 = vmatprep.mubr.bf16.mxu0 0
  %599 = vmatmul.mubr.bf16.gmra.mrb[0].mxu0 %v334
  %v600 = vpop.f32.mrb[0].mxu0
  %v601 = vadd.f32 0.0, %v600
  %v602 = vpop.f32.mrb[0].mxu0
  %v603 = vpop.f32.mrb[0].mxu0
  %v604 = vadd.f32 0.0, %v603
  %v605 = vpop.f32.mrb[0].mxu0
  %606 = vmatprep.mubr.bf16.mxu0 0
  %607 = vmatmul.mubr.bf16.gmra.mrb[0].mxu0 %v337
  %v608 = vpop.f32.mrb[0].mxu0
  %v609 = vadd.f32 0.0, %v608
  %v610 = vpop.f32.mrb[0].mxu0
  %v611 = vpop.f32.mrb[0].mxu0
  %v612 = vadd.f32 0.0, %v611
  %v613 = vpop.f32.mrb[0].mxu0
  %614 = vmatprep.mubr.bf16.mxu0 0
  %615 = vmatmul.mubr.bf16.gmra.mrb[0].mxu0 %v340
  %v616 = vpop.f32.mrb[0].mxu0
  %v617 = vadd.f32 0.0, %v616
  %v618 = vpop.f32.mrb[0].mxu0
  %v619 = vpop.f32.mrb[0].mxu0
  %v620 = vadd.f32 0.0, %v619
  %v621 = vpop.f32.mrb[0].mxu0
  %622 = vmatprep.mubr.bf16.mxu0 0
  %623 = vmatmul.mubr.bf16.gmra.mrb[0].mxu0 %v343
  %v624 = vpop.f32.mrb[0].mxu0
  %v625 = vadd.f32 0.0, %v624
  %v626 = vpop.f32.mrb[0].mxu0
  %v627 = vpop.f32.mrb[0].mxu0
  %v628 = vadd.f32 0.0, %v627
  %v629 = vpop.f32.mrb[0].mxu0
  %630 = vmatprep.mubr.bf16.mxu0 0
  %631 = vmatmul.mubr.bf16.gmra.mrb[0].mxu0 %v346
  %v632 = vpop.f32.mrb[0].mxu0
  %v633 = vadd.f32 0.0, %v632
  %v634 = vpop.f32.mrb[0].mxu0
  %v635 = vpop.f32.mrb[0].mxu0
  %v636 = vadd.f32 0.0, %v635
  %v637 = vpop.f32.mrb[0].mxu0
  %638 = vmatprep.mubr.bf16.mxu0 0
  %639 = vmatmul.mubr.bf16.gmra.mrb[0].mxu0 %v349
  %v640 = vpop.f32.mrb[0].mxu0
  %v641 = vadd.f32 0.0, %v640
  %v642 = vpop.f32.mrb[0].mxu0
  %v643 = vpop.f32.mrb[0].mxu0
  %v644 = vadd.f32 0.0, %v643
  %v645 = vpop.f32.mrb[0].mxu0
  %646 = vdwg.mxu0
  %v647 = vpack.c.bf16 %v396, %v393
  %v648 = vpack.c.bf16 %v404, %v401
  %v649 = vpack.c.bf16 %v412, %v409
  %v650 = vpack.c.bf16 %v420, %v417
  %v651 = vpack.c.bf16 %v428, %v425
  %v652 = vpack.c.bf16 %v436, %v433
  %v653 = vpack.c.bf16 %v444, %v441
  %v654 = vpack.c.bf16 %v452, %v449
  %v655 = vpack.c.bf16 %v460, %v457
  %v656 = vpack.c.bf16 %v468, %v465
  %v657 = vpack.c.bf16 %v476, %v473
  %v658 = vpack.c.bf16 %v484, %v481
  %v659 = vpack.c.bf16 %v492, %v489
  %v660 = vpack.c.bf16 %v500, %v497
  %v661 = vpack.c.bf16 %v508, %v505
  %v662 = vpack.c.bf16 %v516, %v513
  %v663 = vpack.c.bf16 %v524, %v521
  %v664 = vpack.c.bf16 %v532, %v529
  %v665 = vpack.c.bf16 %v540, %v537
  %v666 = vpack.c.bf16 %v548, %v545
  %v667 = vpack.c.bf16 %v556, %v553
  %v668 = vpack.c.bf16 %v564, %v561
  %v669 = vpack.c.bf16 %v572, %v569
  %v670 = vpack.c.bf16 %v580, %v577
  %v671 = vpack.c.bf16 %v588, %v585
  %v672 = vpack.c.bf16 %v596, %v593
  %v673 = vpack.c.bf16 %v604, %v601
  %v674 = vpack.c.bf16 %v612, %v609
  %v675 = vpack.c.bf16 %v620, %v617
  %v676 = vpack.c.bf16 %v628, %v625
  %v677 = vpack.c.bf16 %v636, %v633
  %v678 = vpack.c.bf16 %v644, %v641
  %v711 = vunpack.c.l.b16 %v647
  %v712 = vunpack.c.h.b16 %v647
  %v713 = vunpack.c.l.b16 %v648
  %v714 = vunpack.c.h.b16 %v648
  %v715 = vunpack.c.l.b16 %v649
  %v716 = vunpack.c.h.b16 %v649
  %v717 = vunpack.c.l.b16 %v650
  %v718 = vunpack.c.h.b16 %v650
  %v719 = vunpack.c.l.b16 %v651
  %v720 = vunpack.c.h.b16 %v651
  %v721 = vunpack.c.l.b16 %v652
  %v722 = vunpack.c.h.b16 %v652
  %v723 = vunpack.c.l.b16 %v653
  %v724 = vunpack.c.h.b16 %v653
  %v725 = vunpack.c.l.b16 %v654
  %v726 = vunpack.c.h.b16 %v654
  %v727 = vunpack.c.l.b16 %v655
  %v728 = vunpack.c.h.b16 %v655
  %v729 = vunpack.c.l.b16 %v656
  %v730 = vunpack.c.h.b16 %v656
  %v731 = vunpack.c.l.b16 %v657
  %v732 = vunpack.c.h.b16 %v657
  %v733 = vunpack.c.l.b16 %v658
  %v734 = vunpack.c.h.b16 %v658
  %v735 = vunpack.c.l.b16 %v659
  %v736 = vunpack.c.h.b16 %v659
  %v737 = vunpack.c.l.b16 %v660
  %v738 = vunpack.c.h.b16 %v660
  %v739 = vunpack.c.l.b16 %v661
  %v740 = vunpack.c.h.b16 %v661
  %v741 = vunpack.c.l.b16 %v662
  %v742 = vunpack.c.h.b16 %v662
  %v743 = vunpack.c.l.b16 %v663
  %v744 = vunpack.c.h.b16 %v663
  %v745 = vunpack.c.l.b16 %v664
  %v746 = vunpack.c.h.b16 %v664
  %v747 = vunpack.c.l.b16 %v665
  %v748 = vunpack.c.h.b16 %v665
  %v749 = vunpack.c.l.b16 %v666
  %v750 = vunpack.c.h.b16 %v666
  %v751 = vunpack.c.l.b16 %v667
  %v752 = vunpack.c.h.b16 %v667
  %v753 = vunpack.c.l.b16 %v668
  %v754 = vunpack.c.h.b16 %v668
  %v755 = vunpack.c.l.b16 %v669
  %v756 = vunpack.c.h.b16 %v669
  %v757 = vunpack.c.l.b16 %v670
  %v758 = vunpack.c.h.b16 %v670
  %v759 = vunpack.c.l.b16 %v671
  %v760 = vunpack.c.h.b16 %v671
  %v761 = vunpack.c.l.b16 %v672
  %v762 = vunpack.c.h.b16 %v672
  %v763 = vunpack.c.l.b16 %v673
  %v764 = vunpack.c.h.b16 %v673
  %v765 = vunpack.c.l.b16 %v674
  %v766 = vunpack.c.h.b16 %v674
  %v767 = vunpack.c.l.b16 %v675
  %v768 = vunpack.c.h.b16 %v675
  %v769 = vunpack.c.l.b16 %v676
  %v770 = vunpack.c.h.b16 %v676
  %v771 = vunpack.c.l.b16 %v677
  %v772 = vunpack.c.h.b16 %v677
  %v773 = vunpack.c.l.b16 %v678
  %v774 = vunpack.c.h.b16 %v678
  %v775 = vpack.c.b16 %v711, %v711
  %v776 = vpack.c.b16 %v712, %v712
  %v777 = vpack.c.b16 %v713, %v713
  %v778 = vpack.c.b16 %v714, %v714
  %v779 = vpack.c.b16 %v715, %v715
  %v780 = vpack.c.b16 %v716, %v716
  %v781 = vpack.c.b16 %v717, %v717
  %v782 = vpack.c.b16 %v718, %v718
  %v783 = vpack.c.b16 %v719, %v719
  %v784 = vpack.c.b16 %v720, %v720
  %v785 = vpack.c.b16 %v721, %v721
  %v786 = vpack.c.b16 %v722, %v722
  %v787 = vpack.c.b16 %v723, %v723
  %v788 = vpack.c.b16 %v724, %v724
  %v789 = vpack.c.b16 %v725, %v725
  %v790 = vpack.c.b16 %v726, %v726
  %v791 = vpack.c.b16 %v727, %v727
  %v792 = vpack.c.b16 %v728, %v728
  %v793 = vpack.c.b16 %v729, %v729
  %v794 = vpack.c.b16 %v730, %v730
  %v795 = vpack.c.b16 %v731, %v731
  %v796 = vpack.c.b16 %v732, %v732
  %v797 = vpack.c.b16 %v733, %v733
  %v798 = vpack.c.b16 %v734, %v734
  %v799 = vpack.c.b16 %v735, %v735
  %v800 = vpack.c.b16 %v736, %v736
  %v801 = vpack.c.b16 %v737, %v737
  %v802 = vpack.c.b16 %v738, %v738
  %v803 = vpack.c.b16 %v739, %v739
  %v804 = vpack.c.b16 %v740, %v740
  %v805 = vpack.c.b16 %v741, %v741
  %v806 = vpack.c.b16 %v742, %v742
  %v807 = vpack.c.b16 %v743, %v743
  %v808 = vpack.c.b16 %v744, %v744
  %v809 = vpack.c.b16 %v745, %v745
  %v810 = vpack.c.b16 %v746, %v746
  %v811 = vpack.c.b16 %v747, %v747
  %v812 = vpack.c.b16 %v748, %v748
  %v813 = vpack.c.b16 %v749, %v749
  %v814 = vpack.c.b16 %v750, %v750
  %v815 = vpack.c.b16 %v751, %v751
  %v816 = vpack.c.b16 %v752, %v752
  %v817 = vpack.c.b16 %v753, %v753
  %v818 = vpack.c.b16 %v754, %v754
  %v819 = vpack.c.b16 %v755, %v755
  %v820 = vpack.c.b16 %v756, %v756
  %v821 = vpack.c.b16 %v757, %v757
  %v822 = vpack.c.b16 %v758, %v758
  %v823 = vpack.c.b16 %v759, %v759
  %v824 = vpack.c.b16 %v760, %v760
  %v825 = vpack.c.b16 %v761, %v761
  %v826 = vpack.c.b16 %v762, %v762
  %v827 = vpack.c.b16 %v763, %v763
  %v828 = vpack.c.b16 %v764, %v764
  %v829 = vpack.c.b16 %v765, %v765
  %v830 = vpack.c.b16 %v766, %v766
  %v831 = vpack.c.b16 %v767, %v767
  %v832 = vpack.c.b16 %v768, %v768
  %v833 = vpack.c.b16 %v769, %v769
  %v834 = vpack.c.b16 %v770, %v770
  %v835 = vpack.c.b16 %v771, %v771
  %v836 = vpack.c.b16 %v772, %v772
  %v837 = vpack.c.b16 %v773, %v773
  %v838 = vpack.c.b16 %v774, %v774
  %vm903 = vcmask 125952
  %904 = vst.msk [vmem:[%s2] sm:$0xf] %vm903, %v775
  %905 = vst.msk [vmem:[%s2 + $0x4] sm:$0xf] %vm903, %v776
  %906 = vst.msk [vmem:[%s2 + $0x8] sm:$0xf] %vm903, %v777
  %907 = vst.msk [vmem:[%s2 + $0xc] sm:$0xf] %vm903, %v778
  %908 = vst.msk [vmem:[%s2 + $0x10] sm:$0xf] %vm903, %v779
  %909 = vst.msk [vmem:[%s2 + $0x14] sm:$0xf] %vm903, %v780
  %910 = vst.msk [vmem:[%s2 + $0x18] sm:$0xf] %vm903, %v781
  %911 = vst.msk [vmem:[%s2 + $0x1c] sm:$0xf] %vm903, %v782
  %912 = vst.msk [vmem:[%s2 + $0x20] sm:$0xf] %vm903, %v783
  %913 = vst.msk [vmem:[%s2 + $0x24] sm:$0xf] %vm903, %v784
  %914 = vst.msk [vmem:[%s2 + $0x28] sm:$0xf] %vm903, %v785
  %915 = vst.msk [vmem:[%s2 + $0x2c] sm:$0xf] %vm903, %v786
  %916 = vst.msk [vmem:[%s2 + $0x30] sm:$0xf] %vm903, %v787
  %917 = vst.msk [vmem:[%s2 + $0x34] sm:$0xf] %vm903, %v788
  %918 = vst.msk [vmem:[%s2 + $0x38] sm:$0xf] %vm903, %v789
  %919 = vst.msk [vmem:[%s2 + $0x3c] sm:$0xf] %vm903, %v790
  %920 = vst.msk [vmem:[%s2 + $0x40] sm:$0xf] %vm903, %v791
  %921 = vst.msk [vmem:[%s2 + $0x44] sm:$0xf] %vm903, %v792
  %922 = vst.msk [vmem:[%s2 + $0x48] sm:$0xf] %vm903, %v793
  %923 = vst.msk [vmem:[%s2 + $0x4c] sm:$0xf] %vm903, %v794
  %924 = vst.msk [vmem:[%s2 + $0x50] sm:$0xf] %vm903, %v795
  %925 = vst.msk [vmem:[%s2 + $0x54] sm:$0xf] %vm903, %v796
  %926 = vst.msk [vmem:[%s2 + $0x58] sm:$0xf] %vm903, %v797
  %927 = vst.msk [vmem:[%s2 + $0x5c] sm:$0xf] %vm903, %v798
  %928 = vst.msk [vmem:[%s2 + $0x60] sm:$0xf] %vm903, %v799
  %929 = vst.msk [vmem:[%s2 + $0x64] sm:$0xf] %vm903, %v800
  %930 = vst.msk [vmem:[%s2 + $0x68] sm:$0xf] %vm903, %v801
  %931 = vst.msk [vmem:[%s2 + $0x6c] sm:$0xf] %vm903, %v802
  %932 = vst.msk [vmem:[%s2 + $0x70] sm:$0xf] %vm903, %v803
  %933 = vst.msk [vmem:[%s2 + $0x74] sm:$0xf] %vm903, %v804
  %934 = vst.msk [vmem:[%s2 + $0x78] sm:$0xf] %vm903, %v805
  %935 = vst.msk [vmem:[%s2 + $0x7c] sm:$0xf] %vm903, %v806
  %936 = vst.msk [vmem:[%s2 + $0x80] sm:$0xf] %vm903, %v807
  %937 = vst.msk [vmem:[%s2 + $0x84] sm:$0xf] %vm903, %v808
  %938 = vst.msk [vmem:[%s2 + $0x88] sm:$0xf] %vm903, %v809
  %939 = vst.msk [vmem:[%s2 + $0x8c] sm:$0xf] %vm903, %v810
  %940 = vst.msk [vmem:[%s2 + $0x90] sm:$0xf] %vm903, %v811
  %941 = vst.msk [vmem:[%s2 + $0x94] sm:$0xf] %vm903, %v812
  %942 = vst.msk [vmem:[%s2 + $0x98] sm:$0xf] %vm903, %v813
  %943 = vst.msk [vmem:[%s2 + $0x9c] sm:$0xf] %vm903, %v814
  %944 = vst.msk [vmem:[%s2 + $0xa0] sm:$0xf] %vm903, %v815
  %945 = vst.msk [vmem:[%s2 + $0xa4] sm:$0xf] %vm903, %v816
  %946 = vst.msk [vmem:[%s2 + $0xa8] sm:$0xf] %vm903, %v817
  %947 = vst.msk [vmem:[%s2 + $0xac] sm:$0xf] %vm903, %v818
  %948 = vst.msk [vmem:[%s2 + $0xb0] sm:$0xf] %vm903, %v819
  %949 = vst.msk [vmem:[%s2 + $0xb4] sm:$0xf] %vm903, %v820
  %950 = vst.msk [vmem:[%s2 + $0xb8] sm:$0xf] %vm903, %v821
  %951 = vst.msk [vmem:[%s2 + $0xbc] sm:$0xf] %vm903, %v822
  %952 = vst.msk [vmem:[%s2 + $0xc0] sm:$0xf] %vm903, %v823
  %953 = vst.msk [vmem:[%s2 + $0xc4] sm:$0xf] %vm903, %v824
  %954 = vst.msk [vmem:[%s2 + $0xc8] sm:$0xf] %vm903, %v825
  %955 = vst.msk [vmem:[%s2 + $0xcc] sm:$0xf] %vm903, %v826
  %956 = vst.msk [vmem:[%s2 + $0xd0] sm:$0xf] %vm903, %v827
  %957 = vst.msk [vmem:[%s2 + $0xd4] sm:$0xf] %vm903, %v828
  %958 = vst.msk [vmem:[%s2 + $0xd8] sm:$0xf] %vm903, %v829
  %959 = vst.msk [vmem:[%s2 + $0xdc] sm:$0xf] %vm903, %v830
  %960 = vst.msk [vmem:[%s2 + $0xe0] sm:$0xf] %vm903, %v831
  %961 = vst.msk [vmem:[%s2 + $0xe4] sm:$0xf] %vm903, %v832
  %962 = vst.msk [vmem:[%s2 + $0xe8] sm:$0xf] %vm903, %v833
  %963 = vst.msk [vmem:[%s2 + $0xec] sm:$0xf] %vm903, %v834
  %964 = vst.msk [vmem:[%s2 + $0xf0] sm:$0xf] %vm903, %v835
  %965 = vst.msk [vmem:[%s2 + $0xf4] sm:$0xf] %vm903, %v836
  %966 = vst.msk [vmem:[%s2 + $0xf8] sm:$0xf] %vm903, %v837
  %967 = vst.msk [vmem:[%s2 + $0xfc] sm:$0xf] %vm903, %v838
  %vm968 = vcmask 130048
  %v969 = vsel %vm968, %v393, 0.0
  %v970 = vsel %vm968, %v396, 0.0
  %v971 = vadd.f32 %v969, %v970
  %v972 = vsel %vm968, %v401, 0.0
  %v973 = vadd.f32 %v971, %v972
  %v974 = vsel %vm968, %v404, 0.0
  %v975 = vadd.f32 %v973, %v974
  %v976 = vsel %vm968, %v409, 0.0
  %v977 = vadd.f32 %v975, %v976
  %v978 = vsel %vm968, %v412, 0.0
  %v979 = vadd.f32 %v977, %v978
  %v980 = vsel %vm968, %v417, 0.0
  %v981 = vadd.f32 %v979, %v980
  %v982 = vsel %vm968, %v420, 0.0
  %v983 = vadd.f32 %v981, %v982
  %v984 = vsel %vm968, %v425, 0.0
  %v985 = vadd.f32 %v983, %v984
  %v986 = vsel %vm968, %v428, 0.0
  %v987 = vadd.f32 %v985, %v986
  %v988 = vsel %vm968, %v433, 0.0
  %v989 = vadd.f32 %v987, %v988
  %v990 = vsel %vm968, %v436, 0.0
  %v991 = vadd.f32 %v989, %v990
  %v992 = vsel %vm968, %v441, 0.0
  %v993 = vadd.f32 %v991, %v992
  %v994 = vsel %vm968, %v444, 0.0
  %v995 = vadd.f32 %v993, %v994
  %v996 = vsel %vm968, %v449, 0.0
  %v997 = vadd.f32 %v995, %v996
  %v998 = vsel %vm968, %v452, 0.0
  %v999 = vadd.f32 %v997, %v998
  %v1000 = vsel %vm968, %v457, 0.0
  %v1001 = vadd.f32 %v999, %v1000
  %v1002 = vsel %vm968, %v460, 0.0
  %v1003 = vadd.f32 %v1001, %v1002
  %v1004 = vsel %vm968, %v465, 0.0
  %v1005 = vadd.f32 %v1003, %v1004
  %v1006 = vsel %vm968, %v468, 0.0
  %v1007 = vadd.f32 %v1005, %v1006
  %v1008 = vsel %vm968, %v473, 0.0
  %v1009 = vadd.f32 %v1007, %v1008
  %v1010 = vsel %vm968, %v476, 0.0
  %v1011 = vadd.f32 %v1009, %v1010
  %v1012 = vsel %vm968, %v481, 0.0
  %v1013 = vadd.f32 %v1011, %v1012
  %v1014 = vsel %vm968, %v484, 0.0
  %v1015 = vadd.f32 %v1013, %v1014
  %v1016 = vsel %vm968, %v489, 0.0
  %v1017 = vadd.f32 %v1015, %v1016
  %v1018 = vsel %vm968, %v492, 0.0
  %v1019 = vadd.f32 %v1017, %v1018
  %v1020 = vsel %vm968, %v497, 0.0
  %v1021 = vadd.f32 %v1019, %v1020
  %v1022 = vsel %vm968, %v500, 0.0
  %v1023 = vadd.f32 %v1021, %v1022
  %v1024 = vsel %vm968, %v505, 0.0
  %v1025 = vadd.f32 %v1023, %v1024
  %v1026 = vsel %vm968, %v508, 0.0
  %v1027 = vadd.f32 %v1025, %v1026
  %v1028 = vsel %vm968, %v513, 0.0
  %v1029 = vadd.f32 %v1027, %v1028
  %v1030 = vsel %vm968, %v516, 0.0
  %v1031 = vadd.f32 %v1029, %v1030
  %v1032 = vsel %vm968, %v521, 0.0
  %v1033 = vadd.f32 %v1031, %v1032
  %v1034 = vsel %vm968, %v524, 0.0
  %v1035 = vadd.f32 %v1033, %v1034
  %v1036 = vsel %vm968, %v529, 0.0
  %v1037 = vadd.f32 %v1035, %v1036
  %v1038 = vsel %vm968, %v532, 0.0
  %v1039 = vadd.f32 %v1037, %v1038
  %v1040 = vsel %vm968, %v537, 0.0
  %v1041 = vadd.f32 %v1039, %v1040
  %v1042 = vsel %vm968, %v540, 0.0
  %v1043 = vadd.f32 %v1041, %v1042
  %v1044 = vsel %vm968, %v545, 0.0
  %v1045 = vadd.f32 %v1043, %v1044
  %v1046 = vsel %vm968, %v548, 0.0
  %v1047 = vadd.f32 %v1045, %v1046
  %v1048 = vsel %vm968, %v553, 0.0
  %v1049 = vadd.f32 %v1047, %v1048
  %v1050 = vsel %vm968, %v556, 0.0
  %v1051 = vadd.f32 %v1049, %v1050
  %v1052 = vsel %vm968, %v561, 0.0
  %v1053 = vadd.f32 %v1051, %v1052
  %v1054 = vsel %vm968, %v564, 0.0
  %v1055 = vadd.f32 %v1053, %v1054
  %v1056 = vsel %vm968, %v569, 0.0
  %v1057 = vadd.f32 %v1055, %v1056
  %v1058 = vsel %vm968, %v572, 0.0
  %v1059 = vadd.f32 %v1057, %v1058
  %v1060 = vsel %vm968, %v577, 0.0
  %v1061 = vadd.f32 %v1059, %v1060
  %v1062 = vsel %vm968, %v580, 0.0
  %v1063 = vadd.f32 %v1061, %v1062
  %v1064 = vsel %vm968, %v585, 0.0
  %v1065 = vadd.f32 %v1063, %v1064
  %v1066 = vsel %vm968, %v588, 0.0
  %v1067 = vadd.f32 %v1065, %v1066
  %v1068 = vsel %vm968, %v593, 0.0
  %v1069 = vadd.f32 %v1067, %v1068
  %v1070 = vsel %vm968, %v596, 0.0
  %v1071 = vadd.f32 %v1069, %v1070
  %v1072 = vsel %vm968, %v601, 0.0
  %v1073 = vadd.f32 %v1071, %v1072
  %v1074 = vsel %vm968, %v604, 0.0
  %v1075 = vadd.f32 %v1073, %v1074
  %v1076 = vsel %vm968, %v609, 0.0
  %v1077 = vadd.f32 %v1075, %v1076
  %v1078 = vsel %vm968, %v612, 0.0
  %v1079 = vadd.f32 %v1077, %v1078
  %v1080 = vsel %vm968, %v617, 0.0
  %v1081 = vadd.f32 %v1079, %v1080
  %v1082 = vsel %vm968, %v620, 0.0
  %v1083 = vadd.f32 %v1081, %v1082
  %v1084 = vsel %vm968, %v625, 0.0
  %v1085 = vadd.f32 %v1083, %v1084
  %v1086 = vsel %vm968, %v628, 0.0
  %v1087 = vadd.f32 %v1085, %v1086
  %v1088 = vsel %vm968, %v633, 0.0
  %v1089 = vadd.f32 %v1087, %v1088
  %v1090 = vsel %vm968, %v636, 0.0
  %v1091 = vadd.f32 %v1089, %v1090
  %v1092 = vsel %vm968, %v641, 0.0
  %v1093 = vadd.f32 %v1091, %v1092
  %v1094 = vsel %vm968, %v644, 0.0
  %v1095 = vadd.f32 %v1093, %v1094
  %v1096 = vrot.slane %v1095, 4
  %v1097 = vadd.f32 %v1095, %v1096
  %v1098 = vrot.slane %v1097, 2
  %v1099 = vadd.f32 %v1097, %v1098
  %v1100 = vrot.slane %v1099, 1
  %v1101 = vadd.f32 %v1099, %v1100
  %vm1102 = vcmask 122880
  %1103 = vst.msk [vmem:[%s3] sm:$0x1] %vm1102, %v1101
  %v1104 = vmul.f32 %v393, %v393
  %v1105 = vmul.f32 %v396, %v396
  %v1106 = vmul.f32 %v401, %v401
  %v1107 = vmul.f32 %v404, %v404
  %v1108 = vmul.f32 %v409, %v409
  %v1109 = vmul.f32 %v412, %v412
  %v1110 = vmul.f32 %v417, %v417
  %v1111 = vmul.f32 %v420, %v420
  %v1112 = vmul.f32 %v425, %v425
  %v1113 = vmul.f32 %v428, %v428
  %v1114 = vmul.f32 %v433, %v433
  %v1115 = vmul.f32 %v436, %v436
  %v1116 = vmul.f32 %v441, %v441
  %v1117 = vmul.f32 %v444, %v444
  %v1118 = vmul.f32 %v449, %v449
  %v1119 = vmul.f32 %v452, %v452
  %v1120 = vmul.f32 %v457, %v457
  %v1121 = vmul.f32 %v460, %v460
  %v1122 = vmul.f32 %v465, %v465
  %v1123 = vmul.f32 %v468, %v468
  %v1124 = vmul.f32 %v473, %v473
  %v1125 = vmul.f32 %v476, %v476
  %v1126 = vmul.f32 %v481, %v481
  %v1127 = vmul.f32 %v484, %v484
  %v1128 = vmul.f32 %v489, %v489
  %v1129 = vmul.f32 %v492, %v492
  %v1130 = vmul.f32 %v497, %v497
  %v1131 = vmul.f32 %v500, %v500
  %v1132 = vmul.f32 %v505, %v505
  %v1133 = vmul.f32 %v508, %v508
  %v1134 = vmul.f32 %v513, %v513
  %v1135 = vmul.f32 %v516, %v516
  %v1136 = vmul.f32 %v521, %v521
  %v1137 = vmul.f32 %v524, %v524
  %v1138 = vmul.f32 %v529, %v529
  %v1139 = vmul.f32 %v532, %v532
  %v1140 = vmul.f32 %v537, %v537
  %v1141 = vmul.f32 %v540, %v540
  %v1142 = vmul.f32 %v545, %v545
  %v1143 = vmul.f32 %v548, %v548
  %v1144 = vmul.f32 %v553, %v553
  %v1145 = vmul.f32 %v556, %v556
  %v1146 = vmul.f32 %v561, %v561
  %v1147 = vmul.f32 %v564, %v564
  %v1148 = vmul.f32 %v569, %v569
  %v1149 = vmul.f32 %v572, %v572
  %v1150 = vmul.f32 %v577, %v577
  %v1151 = vmul.f32 %v580, %v580
  %v1152 = vmul.f32 %v585, %v585
  %v1153 = vmul.f32 %v588, %v588
  %v1154 = vmul.f32 %v593, %v593
  %v1155 = vmul.f32 %v596, %v596
  %v1156 = vmul.f32 %v601, %v601
  %v1157 = vmul.f32 %v604, %v604
  %v1158 = vmul.f32 %v609, %v609
  %v1159 = vmul.f32 %v612, %v612
  %v1160 = vmul.f32 %v617, %v617
  %v1161 = vmul.f32 %v620, %v620
  %v1162 = vmul.f32 %v625, %v625
  %v1163 = vmul.f32 %v628, %v628
  %v1164 = vmul.f32 %v633, %v633
  %v1165 = vmul.f32 %v636, %v636
  %v1166 = vmul.f32 %v641, %v641
  %v1167 = vmul.f32 %v644, %v644
  %v1168 = vsel %vm968, %v1104, 0.0
  %v1169 = vsel %vm968, %v1105, 0.0
  %v1170 = vadd.f32 %v1168, %v1169
  %v1171 = vsel %vm968, %v1106, 0.0
  %v1172 = vadd.f32 %v1170, %v1171
  %v1173 = vsel %vm968, %v1107, 0.0
  %v1174 = vadd.f32 %v1172, %v1173
  %v1175 = vsel %vm968, %v1108, 0.0
  %v1176 = vadd.f32 %v1174, %v1175
  %v1177 = vsel %vm968, %v1109, 0.0
  %v1178 = vadd.f32 %v1176, %v1177
  %v1179 = vsel %vm968, %v1110, 0.0
  %v1180 = vadd.f32 %v1178, %v1179
  %v1181 = vsel %vm968, %v1111, 0.0
  %v1182 = vadd.f32 %v1180, %v1181
  %v1183 = vsel %vm968, %v1112, 0.0
  %v1184 = vadd.f32 %v1182, %v1183
  %v1185 = vsel %vm968, %v1113, 0.0
  %v1186 = vadd.f32 %v1184, %v1185
  %v1187 = vsel %vm968, %v1114, 0.0
  %v1188 = vadd.f32 %v1186, %v1187
  %v1189 = vsel %vm968, %v1115, 0.0
  %v1190 = vadd.f32 %v1188, %v1189
  %v1191 = vsel %vm968, %v1116, 0.0
  %v1192 = vadd.f32 %v1190, %v1191
  %v1193 = vsel %vm968, %v1117, 0.0
  %v1194 = vadd.f32 %v1192, %v1193
  %v1195 = vsel %vm968, %v1118, 0.0
  %v1196 = vadd.f32 %v1194, %v1195
  %v1197 = vsel %vm968, %v1119, 0.0
  %v1198 = vadd.f32 %v1196, %v1197
  %v1199 = vsel %vm968, %v1120, 0.0
  %v1200 = vadd.f32 %v1198, %v1199
  %v1201 = vsel %vm968, %v1121, 0.0
  %v1202 = vadd.f32 %v1200, %v1201
  %v1203 = vsel %vm968, %v1122, 0.0
  %v1204 = vadd.f32 %v1202, %v1203
  %v1205 = vsel %vm968, %v1123, 0.0
  %v1206 = vadd.f32 %v1204, %v1205
  %v1207 = vsel %vm968, %v1124, 0.0
  %v1208 = vadd.f32 %v1206, %v1207
  %v1209 = vsel %vm968, %v1125, 0.0
  %v1210 = vadd.f32 %v1208, %v1209
  %v1211 = vsel %vm968, %v1126, 0.0
  %v1212 = vadd.f32 %v1210, %v1211
  %v1213 = vsel %vm968, %v1127, 0.0
  %v1214 = vadd.f32 %v1212, %v1213
  %v1215 = vsel %vm968, %v1128, 0.0
  %v1216 = vadd.f32 %v1214, %v1215
  %v1217 = vsel %vm968, %v1129, 0.0
  %v1218 = vadd.f32 %v1216, %v1217
  %v1219 = vsel %vm968, %v1130, 0.0
  %v1220 = vadd.f32 %v1218, %v1219
  %v1221 = vsel %vm968, %v1131, 0.0
  %v1222 = vadd.f32 %v1220, %v1221
  %v1223 = vsel %vm968, %v1132, 0.0
  %v1224 = vadd.f32 %v1222, %v1223
  %v1225 = vsel %vm968, %v1133, 0.0
  %v1226 = vadd.f32 %v1224, %v1225
  %v1227 = vsel %vm968, %v1134, 0.0
  %v1228 = vadd.f32 %v1226, %v1227
  %v1229 = vsel %vm968, %v1135, 0.0
  %v1230 = vadd.f32 %v1228, %v1229
  %v1231 = vsel %vm968, %v1136, 0.0
  %v1232 = vadd.f32 %v1230, %v1231
  %v1233 = vsel %vm968, %v1137, 0.0
  %v1234 = vadd.f32 %v1232, %v1233
  %v1235 = vsel %vm968, %v1138, 0.0
  %v1236 = vadd.f32 %v1234, %v1235
  %v1237 = vsel %vm968, %v1139, 0.0
  %v1238 = vadd.f32 %v1236, %v1237
  %v1239 = vsel %vm968, %v1140, 0.0
  %v1240 = vadd.f32 %v1238, %v1239
  %v1241 = vsel %vm968, %v1141, 0.0
  %v1242 = vadd.f32 %v1240, %v1241
  %v1243 = vsel %vm968, %v1142, 0.0
  %v1244 = vadd.f32 %v1242, %v1243
  %v1245 = vsel %vm968, %v1143, 0.0
  %v1246 = vadd.f32 %v1244, %v1245
  %v1247 = vsel %vm968, %v1144, 0.0
  %v1248 = vadd.f32 %v1246, %v1247
  %v1249 = vsel %vm968, %v1145, 0.0
  %v1250 = vadd.f32 %v1248, %v1249
  %v1251 = vsel %vm968, %v1146, 0.0
  %v1252 = vadd.f32 %v1250, %v1251
  %v1253 = vsel %vm968, %v1147, 0.0
  %v1254 = vadd.f32 %v1252, %v1253
  %v1255 = vsel %vm968, %v1148, 0.0
  %v1256 = vadd.f32 %v1254, %v1255
  %v1257 = vsel %vm968, %v1149, 0.0
  %v1258 = vadd.f32 %v1256, %v1257
  %v1259 = vsel %vm968, %v1150, 0.0
  %v1260 = vadd.f32 %v1258, %v1259
  %v1261 = vsel %vm968, %v1151, 0.0
  %v1262 = vadd.f32 %v1260, %v1261
  %v1263 = vsel %vm968, %v1152, 0.0
  %v1264 = vadd.f32 %v1262, %v1263
  %v1265 = vsel %vm968, %v1153, 0.0
  %v1266 = vadd.f32 %v1264, %v1265
  %v1267 = vsel %vm968, %v1154, 0.0
  %v1268 = vadd.f32 %v1266, %v1267
  %v1269 = vsel %vm968, %v1155, 0.0
  %v1270 = vadd.f32 %v1268, %v1269
  %v1271 = vsel %vm968, %v1156, 0.0
  %v1272 = vadd.f32 %v1270, %v1271
  %v1273 = vsel %vm968, %v1157, 0.0
  %v1274 = vadd.f32 %v1272, %v1273
  %v1275 = vsel %vm968, %v1158, 0.0
  %v1276 = vadd.f32 %v1274, %v1275
  %v1277 = vsel %vm968, %v1159, 0.0
  %v1278 = vadd.f32 %v1276, %v1277
  %v1279 = vsel %vm968, %v1160, 0.0
  %v1280 = vadd.f32 %v1278, %v1279
  %v1281 = vsel %vm968, %v1161, 0.0
  %v1282 = vadd.f32 %v1280, %v1281
  %v1283 = vsel %vm968, %v1162, 0.0
  %v1284 = vadd.f32 %v1282, %v1283
  %v1285 = vsel %vm968, %v1163, 0.0
  %v1286 = vadd.f32 %v1284, %v1285
  %v1287 = vsel %vm968, %v1164, 0.0
  %v1288 = vadd.f32 %v1286, %v1287
  %v1289 = vsel %vm968, %v1165, 0.0
  %v1290 = vadd.f32 %v1288, %v1289
  %v1291 = vsel %vm968, %v1166, 0.0
  %v1292 = vadd.f32 %v1290, %v1291
  %v1293 = vsel %vm968, %v1167, 0.0
  %v1294 = vadd.f32 %v1292, %v1293
  %v1295 = vrot.slane %v1294, 4
  %v1296 = vadd.f32 %v1294, %v1295
  %v1297 = vrot.slane %v1296, 2
  %v1298 = vadd.f32 %v1296, %v1297
  %v1299 = vrot.slane %v1298, 1
  %v1300 = vadd.f32 %v1298, %v1299
  %1301 = vst.msk [vmem:[%s4] sm:$0x1] %vm1102, %v1300
  // Predicated region
  $region10: #{spatial_prior_module_forward.13} parent=0 // pred_check
    _
  $region11: #{spatial_prior_module_forward.13} parent=0 // pred_check_branch
    %1303 = sbr.rel (0) target = $region13
  $region12: #{spatial_prior_module_forward.13} parent=0 // pred_region
    _
  $region13: #{spatial_prior_module_forward.13} parent=0 // pred_fallthru
    _
  // Predicated region
  $region14: #{spatial_prior_module_forward.13} parent=0 // pred_check
    _
  $region15: #{spatial_prior_module_forward.13} parent=0 // pred_check_branch
    %1305 = sbr.rel (0) target = $region17
  $region16: #{spatial_prior_module_forward.13} parent=0 // pred_region
    _
  $region17: #{spatial_prior_module_forward.13} parent=0 // pred_fallthru
    _
  // Predicated region
  $region18: #{spatial_prior_module_forward.13} parent=0 // pred_check
    _
  $region19: #{spatial_prior_module_forward.13} parent=0 // pred_check_branch
    %1307 = sbr.rel (0) target = $region21
  $region20: #{spatial_prior_module_forward.13} parent=0 // pred_region
    _
  $region21: #{spatial_prior_module_forward.13} parent=0 // pred_fallthru
    _
  // Predicated region
  $region22: #{spatial_prior_module_forward.13} parent=0 // pred_check
    _
  $region23: #{spatial_prior_module_forward.13} parent=0 // pred_check_branch
    %1309 = sbr.rel (0) target = $region25
  $region24: #{spatial_prior_module_forward.13} parent=0 // pred_region
    _
  $region25: #{spatial_prior_module_forward.13} parent=0 // pred_fallthru
    _
  // Predicated region
  $region26: #{spatial_prior_module_forward.13} parent=0 // pred_check
    _
  $region27: #{spatial_prior_module_forward.13} parent=0 // pred_check_branch
    %1311 = sbr.rel (0) target = $region29
  $region28: #{spatial_prior_module_forward.13} parent=0 // pred_region
    _
  $region29: #{spatial_prior_module_forward.13} parent=0 // pred_fallthru
    _
  // Predicated region
  $region30: #{spatial_prior_module_forward.13} parent=0 // pred_check
    _
  $region31: #{spatial_prior_module_forward.13} parent=0 // pred_check_branch
    %1313 = sbr.rel (0) target = $region33
  $region32: #{spatial_prior_module_forward.13} parent=0 // pred_region
    _
  $region33: #{spatial_prior_module_forward.13} parent=0 // pred_fallthru
    _

// kernel: spatial_prior_module_forward.15
$region0: #{spatial_prior_module_forward.15}
  #allocation0 [shape = 'u32[]', space=smem, size = 0x4, offset = 0x4, fixed_abs, tag = 'smem constant byte address 0x4 - core index']
  #allocation1 [shape = 'u32[144,128]{1,0:T(1,128)}', space=vmem, size = 0x12000, scoped, tag = 'internal scratch']
  %s0 = inlined_call_operand.vmem [shape: bf16[512,144], index: 0, kind: input, shape index: {}]
  %s1 = inlined_call_operand.vmem [shape: bf16[144,16], index: 1, kind: input, shape index: {}]
  %s2 = inlined_call_operand.vmem [shape: bf16[512,16], index: 2, kind: output, shape index: {0}]
  %s3 = inlined_call_operand.vmem [shape: f32[1,1,16], index: 3, kind: output, shape index: {1}]
  %s4 = inlined_call_operand.vmem [shape: f32[1,1,16], index: 4, kind: output, shape index: {2}]
  %5 = xla_tuple %s2, %s3, %s4
  %s6 = sld [smem:[#allocation0]]
  $region34: #{spatial_prior_module_forward.15} parent=0
    _
  %s8 = ssub.s32 1, %s6
  %s9 = scalar_select 0, %s8, %s6
  // Predicated region
  $region2: #{spatial_prior_module_forward.15} parent=0 // pred_check
    _
  $region3: #{spatial_prior_module_forward.15} parent=0 // pred_check_branch
    %11 = sbr.rel (0) target = $region5
  $region4: #{spatial_prior_module_forward.15} parent=0 // pred_region
    _
  $region5: #{spatial_prior_module_forward.15} parent=0 // pred_fallthru
    _
  // Predicated region
  $region6: #{spatial_prior_module_forward.15} parent=0 // pred_check
    _
  $region7: #{spatial_prior_module_forward.15} parent=0 // pred_check_branch
    %13 = sbr.rel (0) target = $region9
  $region8: #{spatial_prior_module_forward.15} parent=0 // pred_region
    _
  $region9: #{spatial_prior_module_forward.15} parent=0 // pred_fallthru
    _
  %v15 = vld [vmem:[%s0] sm:$0xff]
  %v16 = vld [vmem:[%s0 + $0x8] sm:$0xff]
  %v17 = vld [vmem:[%s0 + $0x10] sm:$0xff]
  %v18 = vld [vmem:[%s0 + $0x18] sm:$0xff]
  %v19 = vld [vmem:[%s0 + $0x20] sm:$0xff]
  %v20 = vld [vmem:[%s0 + $0x28] sm:$0xff]
  %v21 = vld [vmem:[%s0 + $0x30] sm:$0xff]
  %v22 = vld [vmem:[%s0 + $0x38] sm:$0xff]
  %v23 = vld [vmem:[%s0 + $0x40] sm:$0xff]
  %v24 = vld [vmem:[%s0 + $0x48] sm:$0xff]
  %v25 = vld [vmem:[%s0 + $0x50] sm:$0xff]
  %v26 = vld [vmem:[%s0 + $0x58] sm:$0xff]
  %v27 = vld [vmem:[%s0 + $0x60] sm:$0xff]
  %v28 = vld [vmem:[%s0 + $0x68] sm:$0xff]
  %v29 = vld [vmem:[%s0 + $0x70] sm:$0xff]
  %v30 = vld [vmem:[%s0 + $0x78] sm:$0xff]
  %v31 = vld [vmem:[%s0 + $0x80] sm:$0xff]
  %v32 = vld [vmem:[%s0 + $0x88] sm:$0xff]
  %v33 = vld [vmem:[%s0 + $0x90] sm:$0xff]
  %v34 = vld [vmem:[%s0 + $0x98] sm:$0xff]
  %v35 = vld [vmem:[%s0 + $0xa0] sm:$0xff]
  %v36 = vld [vmem:[%s0 + $0xa8] sm:$0xff]
  %v37 = vld [vmem:[%s0 + $0xb0] sm:$0xff]
  %v38 = vld [vmem:[%s0 + $0xb8] sm:$0xff]
  %v39 = vld [vmem:[%s0 + $0xc0] sm:$0xff]
  %v40 = vld [vmem:[%s0 + $0xc8] sm:$0xff]
  %v41 = vld [vmem:[%s0 + $0xd0] sm:$0xff]
  %v42 = vld [vmem:[%s0 + $0xd8] sm:$0xff]
  %v43 = vld [vmem:[%s0 + $0xe0] sm:$0xff]
  %v44 = vld [vmem:[%s0 + $0xe8] sm:$0xff]
  %v45 = vld [vmem:[%s0 + $0xf0] sm:$0xff]
  %v46 = vld [vmem:[%s0 + $0xf8] sm:$0xff]
  %v47 = vld [vmem:[%s0 + $0x100] sm:$0xff]
  %v48 = vld [vmem:[%s0 + $0x108] sm:$0xff]
  %v49 = vld [vmem:[%s0 + $0x110] sm:$0xff]
  %v50 = vld [vmem:[%s0 + $0x118] sm:$0xff]
  %v51 = vld [vmem:[%s0 + $0x120] sm:$0xff]
  %v52 = vld [vmem:[%s0 + $0x128] sm:$0xff]
  %v53 = vld [vmem:[%s0 + $0x130] sm:$0xff]
  %v54 = vld [vmem:[%s0 + $0x138] sm:$0xff]
  %v55 = vld [vmem:[%s0 + $0x140] sm:$0xff]
  %v56 = vld [vmem:[%s0 + $0x148] sm:$0xff]
  %v57 = vld [vmem:[%s0 + $0x150] sm:$0xff]
  %v58 = vld [vmem:[%s0 + $0x158] sm:$0xff]
  %v59 = vld [vmem:[%s0 + $0x160] sm:$0xff]
  %v60 = vld [vmem:[%s0 + $0x168] sm:$0xff]
  %v61 = vld [vmem:[%s0 + $0x170] sm:$0xff]
  %v62 = vld [vmem:[%s0 + $0x178] sm:$0xff]
  %v63 = vld [vmem:[%s0 + $0x180] sm:$0xff]
  %v64 = vld [vmem:[%s0 + $0x188] sm:$0xff]
  %v65 = vld [vmem:[%s0 + $0x190] sm:$0xff]
  %v66 = vld [vmem:[%s0 + $0x198] sm:$0xff]
  %v67 = vld [vmem:[%s0 + $0x1a0] sm:$0xff]
  %v68 = vld [vmem:[%s0 + $0x1a8] sm:$0xff]
  %v69 = vld [vmem:[%s0 + $0x1b0] sm:$0xff]
  %v70 = vld [vmem:[%s0 + $0x1b8] sm:$0xff]
  %v71 = vld [vmem:[%s0 + $0x1c0] sm:$0xff]
  %v72 = vld [vmem:[%s0 + $0x1c8] sm:$0xff]
  %v73 = vld [vmem:[%s0 + $0x1d0] sm:$0xff]
  %v74 = vld [vmem:[%s0 + $0x1d8] sm:$0xff]
  %v75 = vld [vmem:[%s0 + $0x1e0] sm:$0xff]
  %v76 = vld [vmem:[%s0 + $0x1e8] sm:$0xff]
  %v77 = vld [vmem:[%s0 + $0x1f0] sm:$0xff]
  %v78 = vld [vmem:[%s0 + $0x1f8] sm:$0xff]
  %v79 = vld [vmem:[%s1] sm:$0xf]
  %v80 = vld [vmem:[%s1 + $0x4] sm:$0xf]
  %v81 = vld [vmem:[%s1 + $0x8] sm:$0xf]
  %v82 = vld [vmem:[%s1 + $0xc] sm:$0xf]
  %v83 = vld [vmem:[%s1 + $0x10] sm:$0xf]
  %v84 = vld [vmem:[%s1 + $0x14] sm:$0xf]
  %v85 = vld [vmem:[%s1 + $0x18] sm:$0xf]
  %v86 = vld [vmem:[%s1 + $0x1c] sm:$0xf]
  %v87 = vld [vmem:[%s1 + $0x20] sm:$0xf]
  %v88 = vld [vmem:[%s1 + $0x24] sm:$0xf]
  %v89 = vld [vmem:[%s1 + $0x28] sm:$0xf]
  %v90 = vld [vmem:[%s1 + $0x2c] sm:$0xf]
  %v91 = vld [vmem:[%s1 + $0x30] sm:$0xf]
  %v92 = vld [vmem:[%s1 + $0x34] sm:$0xf]
  %v93 = vld [vmem:[%s1 + $0x38] sm:$0xf]
  %v94 = vld [vmem:[%s1 + $0x3c] sm:$0xf]
  %v95 = vld [vmem:[%s1 + $0x40] sm:$0xf]
  %v96 = vld [vmem:[%s1 + $0x44] sm:$0xf]
  %v161 = vunpack.c.l.b16 %v15
  %v162 = vunpack.c.h.b16 %v15
  %v163 = vunpack.c.l.b16 %v16
  %v164 = vunpack.c.h.b16 %v16
  %v165 = vunpack.c.l.b16 %v17
  %v166 = vunpack.c.h.b16 %v17
  %v167 = vunpack.c.l.b16 %v18
  %v168 = vunpack.c.h.b16 %v18
  %v169 = vunpack.c.l.b16 %v19
  %v170 = vunpack.c.h.b16 %v19
  %v171 = vunpack.c.l.b16 %v20
  %v172 = vunpack.c.h.b16 %v20
  %v173 = vunpack.c.l.b16 %v21
  %v174 = vunpack.c.h.b16 %v21
  %v175 = vunpack.c.l.b16 %v22
  %v176 = vunpack.c.h.b16 %v22
  %v177 = vunpack.c.l.b16 %v23
  %v178 = vunpack.c.h.b16 %v23
  %v179 = vunpack.c.l.b16 %v24
  %v180 = vunpack.c.h.b16 %v24
  %v181 = vunpack.c.l.b16 %v25
  %v182 = vunpack.c.h.b16 %v25
  %v183 = vunpack.c.l.b16 %v26
  %v184 = vunpack.c.h.b16 %v26
  %v185 = vunpack.c.l.b16 %v27
  %v186 = vunpack.c.h.b16 %v27
  %v187 = vunpack.c.l.b16 %v28
  %v188 = vunpack.c.h.b16 %v28
  %v189 = vunpack.c.l.b16 %v29
  %v190 = vunpack.c.h.b16 %v29
  %v191 = vunpack.c.l.b16 %v30
  %v192 = vunpack.c.h.b16 %v30
  %v193 = vunpack.c.l.b16 %v31
  %v194 = vunpack.c.h.b16 %v31
  %v195 = vunpack.c.l.b16 %v32
  %v196 = vunpack.c.h.b16 %v32
  %v197 = vunpack.c.l.b16 %v33
  %v198 = vunpack.c.h.b16 %v33
  %v199 = vunpack.c.l.b16 %v34
  %v200 = vunpack.c.h.b16 %v34
  %v201 = vunpack.c.l.b16 %v35
  %v202 = vunpack.c.h.b16 %v35
  %v203 = vunpack.c.l.b16 %v36
  %v204 = vunpack.c.h.b16 %v36
  %v205 = vunpack.c.l.b16 %v37
  %v206 = vunpack.c.h.b16 %v37
  %v207 = vunpack.c.l.b16 %v38
  %v208 = vunpack.c.h.b16 %v38
  %v209 = vunpack.c.l.b16 %v39
  %v210 = vunpack.c.h.b16 %v39
  %v211 = vunpack.c.l.b16 %v40
  %v212 = vunpack.c.h.b16 %v40
  %v213 = vunpack.c.l.b16 %v41
  %v214 = vunpack.c.h.b16 %v41
  %v215 = vunpack.c.l.b16 %v42
  %v216 = vunpack.c.h.b16 %v42
  %v217 = vunpack.c.l.b16 %v43
  %v218 = vunpack.c.h.b16 %v43
  %v219 = vunpack.c.l.b16 %v44
  %v220 = vunpack.c.h.b16 %v44
  %v221 = vunpack.c.l.b16 %v45
  %v222 = vunpack.c.h.b16 %v45
  %v223 = vunpack.c.l.b16 %v46
  %v224 = vunpack.c.h.b16 %v46
  %v225 = vunpack.c.l.b16 %v47
  %v226 = vunpack.c.h.b16 %v47
  %v227 = vunpack.c.l.b16 %v48
  %v228 = vunpack.c.h.b16 %v48
  %v229 = vunpack.c.l.b16 %v49
  %v230 = vunpack.c.h.b16 %v49
  %v231 = vunpack.c.l.b16 %v50
  %v232 = vunpack.c.h.b16 %v50
  %v233 = vunpack.c.l.b16 %v51
  %v234 = vunpack.c.h.b16 %v51
  %v235 = vunpack.c.l.b16 %v52
  %v236 = vunpack.c.h.b16 %v52
  %v237 = vunpack.c.l.b16 %v53
  %v238 = vunpack.c.h.b16 %v53
  %v239 = vunpack.c.l.b16 %v54
  %v240 = vunpack.c.h.b16 %v54
  %v241 = vunpack.c.l.b16 %v55
  %v242 = vunpack.c.h.b16 %v55
  %v243 = vunpack.c.l.b16 %v56
  %v244 = vunpack.c.h.b16 %v56
  %v245 = vunpack.c.l.b16 %v57
  %v246 = vunpack.c.h.b16 %v57
  %v247 = vunpack.c.l.b16 %v58
  %v248 = vunpack.c.h.b16 %v58
  %v249 = vunpack.c.l.b16 %v59
  %v250 = vunpack.c.h.b16 %v59
  %v251 = vunpack.c.l.b16 %v60
  %v252 = vunpack.c.h.b16 %v60
  %v253 = vunpack.c.l.b16 %v61
  %v254 = vunpack.c.h.b16 %v61
  %v255 = vunpack.c.l.b16 %v62
  %v256 = vunpack.c.h.b16 %v62
  %v257 = vunpack.c.l.b16 %v63
  %v258 = vunpack.c.h.b16 %v63
  %v259 = vunpack.c.l.b16 %v64
  %v260 = vunpack.c.h.b16 %v64
  %v261 = vunpack.c.l.b16 %v65
  %v262 = vunpack.c.h.b16 %v65
  %v263 = vunpack.c.l.b16 %v66
  %v264 = vunpack.c.h.b16 %v66
  %v265 = vunpack.c.l.b16 %v67
  %v266 = vunpack.c.h.b16 %v67
  %v267 = vunpack.c.l.b16 %v68
  %v268 = vunpack.c.h.b16 %v68
  %v269 = vunpack.c.l.b16 %v69
  %v270 = vunpack.c.h.b16 %v69
  %v271 = vunpack.c.l.b16 %v70
  %v272 = vunpack.c.h.b16 %v70
  %v273 = vunpack.c.l.b16 %v71
  %v274 = vunpack.c.h.b16 %v71
  %v275 = vunpack.c.l.b16 %v72
  %v276 = vunpack.c.h.b16 %v72
  %v277 = vunpack.c.l.b16 %v73
  %v278 = vunpack.c.h.b16 %v73
  %v279 = vunpack.c.l.b16 %v74
  %v280 = vunpack.c.h.b16 %v74
  %v281 = vunpack.c.l.b16 %v75
  %v282 = vunpack.c.h.b16 %v75
  %v283 = vunpack.c.l.b16 %v76
  %v284 = vunpack.c.h.b16 %v76
  %v285 = vunpack.c.l.b16 %v77
  %v286 = vunpack.c.h.b16 %v77
  %v287 = vunpack.c.l.b16 %v78
  %v288 = vunpack.c.h.b16 %v78
  %v289 = vpack.c.b16 %v163, %v161
  %v290 = vpack.c.b16 %v164, %v162
  %v291 = vpack.c.b16 %v167, %v165
  %v292 = vpack.c.b16 %v168, %v166
  %v293 = vpack.c.b16 %v171, %v169
  %v294 = vpack.c.b16 %v172, %v170
  %v295 = vpack.c.b16 %v175, %v173
  %v296 = vpack.c.b16 %v176, %v174
  %v297 = vpack.c.b16 %v179, %v177
  %v298 = vpack.c.b16 %v180, %v178
  %v299 = vpack.c.b16 %v183, %v181
  %v300 = vpack.c.b16 %v184, %v182
  %v301 = vpack.c.b16 %v187, %v185
  %v302 = vpack.c.b16 %v188, %v186
  %v303 = vpack.c.b16 %v191, %v189
  %v304 = vpack.c.b16 %v192, %v190
  %v305 = vpack.c.b16 %v195, %v193
  %v306 = vpack.c.b16 %v196, %v194
  %v307 = vpack.c.b16 %v199, %v197
  %v308 = vpack.c.b16 %v200, %v198
  %v309 = vpack.c.b16 %v203, %v201
  %v310 = vpack.c.b16 %v204, %v202
  %v311 = vpack.c.b16 %v207, %v205
  %v312 = vpack.c.b16 %v208, %v206
  %v313 = vpack.c.b16 %v211, %v209
  %v314 = vpack.c.b16 %v212, %v210
  %v315 = vpack.c.b16 %v215, %v213
  %v316 = vpack.c.b16 %v216, %v214
  %v317 = vpack.c.b16 %v219, %v217
  %v318 = vpack.c.b16 %v220, %v218
  %v319 = vpack.c.b16 %v223, %v221
  %v320 = vpack.c.b16 %v224, %v222
  %v321 = vpack.c.b16 %v227, %v225
  %v322 = vpack.c.b16 %v228, %v226
  %v323 = vpack.c.b16 %v231, %v229
  %v324 = vpack.c.b16 %v232, %v230
  %v325 = vpack.c.b16 %v235, %v233
  %v326 = vpack.c.b16 %v236, %v234
  %v327 = vpack.c.b16 %v239, %v237
  %v328 = vpack.c.b16 %v240, %v238
  %v329 = vpack.c.b16 %v243, %v241
  %v330 = vpack.c.b16 %v244, %v242
  %v331 = vpack.c.b16 %v247, %v245
  %v332 = vpack.c.b16 %v248, %v246
  %v333 = vpack.c.b16 %v251, %v249
  %v334 = vpack.c.b16 %v252, %v250
  %v335 = vpack.c.b16 %v255, %v253
  %v336 = vpack.c.b16 %v256, %v254
  %v337 = vpack.c.b16 %v259, %v257
  %v338 = vpack.c.b16 %v260, %v258
  %v339 = vpack.c.b16 %v263, %v261
  %v340 = vpack.c.b16 %v264, %v262
  %v341 = vpack.c.b16 %v267, %v265
  %v342 = vpack.c.b16 %v268, %v266
  %v343 = vpack.c.b16 %v271, %v269
  %v344 = vpack.c.b16 %v272, %v270
  %v345 = vpack.c.b16 %v275, %v273
  %v346 = vpack.c.b16 %v276, %v274
  %v347 = vpack.c.b16 %v279, %v277
  %v348 = vpack.c.b16 %v280, %v278
  %v349 = vpack.c.b16 %v283, %v281
  %v350 = vpack.c.b16 %v284, %v282
  %v351 = vpack.c.b16 %v287, %v285
  %v352 = vpack.c.b16 %v288, %v286
  %v403 = vunpack.c.l.b16 %v79
  %v404 = vunpack.c.l.b16 %v80
  %v405 = vunpack.c.l.b16 %v81
  %v406 = vunpack.c.l.b16 %v82
  %v407 = vunpack.c.l.b16 %v83
  %v408 = vunpack.c.l.b16 %v84
  %v409 = vunpack.c.l.b16 %v85
  %v410 = vunpack.c.l.b16 %v86
  %v411 = vunpack.c.l.b16 %v87
  %v412 = vunpack.c.l.b16 %v88
  %v413 = vunpack.c.l.b16 %v89
  %v414 = vunpack.c.l.b16 %v90
  %v415 = vunpack.c.l.b16 %v91
  %v416 = vunpack.c.l.b16 %v92
  %v417 = vunpack.c.l.b16 %v93
  %v418 = vunpack.c.l.b16 %v94
  %v419 = vunpack.c.l.b16 %v95
  %v420 = vunpack.c.l.b16 %v96
  %v421 = vpack.c.b16 %v404, %v403
  %v422 = vpack.c.b16 %v406, %v405
  %v423 = vpack.c.b16 %v408, %v407
  %v424 = vpack.c.b16 %v410, %v409
  %v425 = vpack.c.b16 %v412, %v411
  %v426 = vpack.c.b16 %v414, %v413
  %v427 = vpack.c.b16 %v416, %v415
  %v428 = vpack.c.b16 %v418, %v417
  %v429 = vpack.c.b16 %v420, %v419
  %vm439 = vcmask 130048
  %v441 = vsel %vm439, %v290, 0
  %v444 = vsel %vm439, %v292, 0
  %v447 = vsel %vm439, %v294, 0
  %v450 = vsel %vm439, %v296, 0
  %v453 = vsel %vm439, %v298, 0
  %v456 = vsel %vm439, %v300, 0
  %v459 = vsel %vm439, %v302, 0
  %v462 = vsel %vm439, %v304, 0
  %v465 = vsel %vm439, %v306, 0
  %v468 = vsel %vm439, %v308, 0
  %v471 = vsel %vm439, %v310, 0
  %v474 = vsel %vm439, %v312, 0
  %v477 = vsel %vm439, %v314, 0
  %v480 = vsel %vm439, %v316, 0
  %v483 = vsel %vm439, %v318, 0
  %v486 = vsel %vm439, %v320, 0
  %v489 = vsel %vm439, %v322, 0
  %v492 = vsel %vm439, %v324, 0
  %v495 = vsel %vm439, %v326, 0
  %v498 = vsel %vm439, %v328, 0
  %v501 = vsel %vm439, %v330, 0
  %v504 = vsel %vm439, %v332, 0
  %v507 = vsel %vm439, %v334, 0
  %v510 = vsel %vm439, %v336, 0
  %v513 = vsel %vm439, %v338, 0
  %v516 = vsel %vm439, %v340, 0
  %v519 = vsel %vm439, %v342, 0
  %v522 = vsel %vm439, %v344, 0
  %v525 = vsel %vm439, %v346, 0
  %v528 = vsel %vm439, %v348, 0
  %v531 = vsel %vm439, %v350, 0
  %v534 = vsel %vm439, %v352, 0
  %536 = vmatprep.subr.bf16.mxu0 0
  %537 = vmatpush1.bf16.msra.mxu0 %v421
  %538 = vmatprep.subr.bf16.mxu0 0
  %539 = vmatpush1.bf16.msra.mxu0 %v422
  %540 = vmatprep.subr.bf16.mxu0 0
  %541 = vmatpush1.bf16.msra.mxu0 %v423
  %542 = vmatprep.subr.bf16.mxu0 0
  %543 = vmatpush1.bf16.msra.mxu0 %v424
  %544 = vmatprep.subr.bf16.mxu0 0
  %545 = vmatpush1.bf16.msra.mxu0 %v425
  %546 = vmatprep.subr.bf16.mxu0 0
  %547 = vmatpush1.bf16.msra.mxu0 %v426
  %548 = vmatprep.subr.bf16.mxu0 0
  %549 = vmatpush1.bf16.msra.mxu0 %v427
  %550 = vmatprep.subr.bf16.mxu0 0
  %551 = vmatpush1.bf16.msra.mxu0 %v428
  %552 = vmatprep.subr.bf16.mxu0 0
  %553 = vmatpush1.bf16.msra.mxu0 %v429
  %554 = vmatprep.subr.bf16.mxu0 0
  %555 = vmatpush1.bf16.msra.mxu0 0
  %556 = vmatprep.subr.bf16.mxu0 0
  %557 = vmatpush1.bf16.msra.mxu0 0
  %558 = vmatprep.subr.bf16.mxu0 0
  %559 = vmatpush1.bf16.msra.mxu0 0
  %560 = vmatprep.subr.bf16.mxu0 0
  %561 = vmatpush1.bf16.msra.mxu0 0
  %562 = vmatprep.subr.bf16.mxu0 0
  %563 = vmatpush1.bf16.msra.mxu0 0
  %564 = vmatprep.subr.bf16.mxu0 0
  %565 = vmatpush1.bf16.msra.mxu0 0
  %566 = vmatprep.subr.bf16.mxu0 0
  %567 = vmatpush1.bf16.msra.mxu0 0
  %568 = vmatprep.mubr.bf16.mxu0 %v441
  %569 = vmatmul.mubr.bf16.gmra.mrb[0].mxu0 %v289
  %v570 = vpop.f32.mrb[0].mxu0
  %v571 = vadd.f32 0.0, %v570
  %v572 = vpop.f32.mrb[0].mxu0
  %v573 = vpop.f32.mrb[0].mxu0
  %v574 = vadd.f32 0.0, %v573
  %v575 = vpop.f32.mrb[0].mxu0
  %576 = vmatprep.mubr.bf16.mxu0 %v444
  %577 = vmatmul.mubr.bf16.gmra.mrb[0].mxu0 %v291
  %v578 = vpop.f32.mrb[0].mxu0
  %v579 = vadd.f32 0.0, %v578
  %v580 = vpop.f32.mrb[0].mxu0
  %v581 = vpop.f32.mrb[0].mxu0
  %v582 = vadd.f32 0.0, %v581
  %v583 = vpop.f32.mrb[0].mxu0
  %584 = vmatprep.mubr.bf16.mxu0 %v447
  %585 = vmatmul.mubr.bf16.gmra.mrb[0].mxu0 %v293
  %v586 = vpop.f32.mrb[0].mxu0
  %v587 = vadd.f32 0.0, %v586
  %v588 = vpop.f32.mrb[0].mxu0
  %v589 = vpop.f32.mrb[0].mxu0
  %v590 = vadd.f32 0.0, %v589
  %v591 = vpop.f32.mrb[0].mxu0
  %592 = vmatprep.mubr.bf16.mxu0 %v450
  %593 = vmatmul.mubr.bf16.gmra.mrb[0].mxu0 %v295
  %v594 = vpop.f32.mrb[0].mxu0
  %v595 = vadd.f32 0.0, %v594
  %v596 = vpop.f32.mrb[0].mxu0
  %v597 = vpop.f32.mrb[0].mxu0
  %v598 = vadd.f32 0.0, %v597
  %v599 = vpop.f32.mrb[0].mxu0
  %600 = vmatprep.mubr.bf16.mxu0 %v453
  %601 = vmatmul.mubr.bf16.gmra.mrb[0].mxu0 %v297
  %v602 = vpop.f32.mrb[0].mxu0
  %v603 = vadd.f32 0.0, %v602
  %v604 = vpop.f32.mrb[0].mxu0
  %v605 = vpop.f32.mrb[0].mxu0
  %v606 = vadd.f32 0.0, %v605
  %v607 = vpop.f32.mrb[0].mxu0
  %608 = vmatprep.mubr.bf16.mxu0 %v456
  %609 = vmatmul.mubr.bf16.gmra.mrb[0].mxu0 %v299
  %v610 = vpop.f32.mrb[0].mxu0
  %v611 = vadd.f32 0.0, %v610
  %v612 = vpop.f32.mrb[0].mxu0
  %v613 = vpop.f32.mrb[0].mxu0
  %v614 = vadd.f32 0.0, %v613
  %v615 = vpop.f32.mrb[0].mxu0
  %616 = vmatprep.mubr.bf16.mxu0 %v459
  %617 = vmatmul.mubr.bf16.gmra.mrb[0].mxu0 %v301
  %v618 = vpop.f32.mrb[0].mxu0
  %v619 = vadd.f32 0.0, %v618
  %v620 = vpop.f32.mrb[0].mxu0
  %v621 = vpop.f32.mrb[0].mxu0
  %v622 = vadd.f32 0.0, %v621
  %v623 = vpop.f32.mrb[0].mxu0
  %624 = vmatprep.mubr.bf16.mxu0 %v462
  %625 = vmatmul.mubr.bf16.gmra.mrb[0].mxu0 %v303
  %v626 = vpop.f32.mrb[0].mxu0
  %v627 = vadd.f32 0.0, %v626
  %v628 = vpop.f32.mrb[0].mxu0
  %v629 = vpop.f32.mrb[0].mxu0
  %v630 = vadd.f32 0.0, %v629
  %v631 = vpop.f32.mrb[0].mxu0
  %632 = vmatprep.mubr.bf16.mxu0 %v465
  %633 = vmatmul.mubr.bf16.gmra.mrb[0].mxu0 %v305
  %v634 = vpop.f32.mrb[0].mxu0
  %v635 = vadd.f32 0.0, %v634
  %v636 = vpop.f32.mrb[0].mxu0
  %v637 = vpop.f32.mrb[0].mxu0
  %v638 = vadd.f32 0.0, %v637
  %v639 = vpop.f32.mrb[0].mxu0
  %640 = vmatprep.mubr.bf16.mxu0 %v468
  %641 = vmatmul.mubr.bf16.gmra.mrb[0].mxu0 %v307
  %v642 = vpop.f32.mrb[0].mxu0
  %v643 = vadd.f32 0.0, %v642
  %v644 = vpop.f32.mrb[0].mxu0
  %v645 = vpop.f32.mrb[0].mxu0
  %v646 = vadd.f32 0.0, %v645
  %v647 = vpop.f32.mrb[0].mxu0
  %648 = vmatprep.mubr.bf16.mxu0 %v471
  %649 = vmatmul.mubr.bf16.gmra.mrb[0].mxu0 %v309
  %v650 = vpop.f32.mrb[0].mxu0
  %v651 = vadd.f32 0.0, %v650
  %v652 = vpop.f32.mrb[0].mxu0
  %v653 = vpop.f32.mrb[0].mxu0
  %v654 = vadd.f32 0.0, %v653
  %v655 = vpop.f32.mrb[0].mxu0
  %656 = vmatprep.mubr.bf16.mxu0 %v474
  %657 = vmatmul.mubr.bf16.gmra.mrb[0].mxu0 %v311
  %v658 = vpop.f32.mrb[0].mxu0
  %v659 = vadd.f32 0.0, %v658
  %v660 = vpop.f32.mrb[0].mxu0
  %v661 = vpop.f32.mrb[0].mxu0
  %v662 = vadd.f32 0.0, %v661
  %v663 = vpop.f32.mrb[0].mxu0
  %664 = vmatprep.mubr.bf16.mxu0 %v477
  %665 = vmatmul.mubr.bf16.gmra.mrb[0].mxu0 %v313
  %v666 = vpop.f32.mrb[0].mxu0
  %v667 = vadd.f32 0.0, %v666
  %v668 = vpop.f32.mrb[0].mxu0
  %v669 = vpop.f32.mrb[0].mxu0
  %v670 = vadd.f32 0.0, %v669
  %v671 = vpop.f32.mrb[0].mxu0
  %672 = vmatprep.mubr.bf16.mxu0 %v480
  %673 = vmatmul.mubr.bf16.gmra.mrb[0].mxu0 %v315
  %v674 = vpop.f32.mrb[0].mxu0
  %v675 = vadd.f32 0.0, %v674
  %v676 = vpop.f32.mrb[0].mxu0
  %v677 = vpop.f32.mrb[0].mxu0
  %v678 = vadd.f32 0.0, %v677
  %v679 = vpop.f32.mrb[0].mxu0
  %680 = vmatprep.mubr.bf16.mxu0 %v483
  %681 = vmatmul.mubr.bf16.gmra.mrb[0].mxu0 %v317
  %v682 = vpop.f32.mrb[0].mxu0
  %v683 = vadd.f32 0.0, %v682
  %v684 = vpop.f32.mrb[0].mxu0
  %v685 = vpop.f32.mrb[0].mxu0
  %v686 = vadd.f32 0.0, %v685
  %v687 = vpop.f32.mrb[0].mxu0
  %688 = vmatprep.mubr.bf16.mxu0 %v486
  %689 = vmatmul.mubr.bf16.gmra.mrb[0].mxu0 %v319
  %v690 = vpop.f32.mrb[0].mxu0
  %v691 = vadd.f32 0.0, %v690
  %v692 = vpop.f32.mrb[0].mxu0
  %v693 = vpop.f32.mrb[0].mxu0
  %v694 = vadd.f32 0.0, %v693
  %v695 = vpop.f32.mrb[0].mxu0
  %696 = vmatprep.mubr.bf16.mxu0 %v489
  %697 = vmatmul.mubr.bf16.gmra.mrb[0].mxu0 %v321
  %v698 = vpop.f32.mrb[0].mxu0
  %v699 = vadd.f32 0.0, %v698
  %v700 = vpop.f32.mrb[0].mxu0
  %v701 = vpop.f32.mrb[0].mxu0
  %v702 = vadd.f32 0.0, %v701
  %v703 = vpop.f32.mrb[0].mxu0
  %704 = vmatprep.mubr.bf16.mxu0 %v492
  %705 = vmatmul.mubr.bf16.gmra.mrb[0].mxu0 %v323
  %v706 = vpop.f32.mrb[0].mxu0
  %v707 = vadd.f32 0.0, %v706
  %v708 = vpop.f32.mrb[0].mxu0
  %v709 = vpop.f32.mrb[0].mxu0
  %v710 = vadd.f32 0.0, %v709
  %v711 = vpop.f32.mrb[0].mxu0
  %712 = vmatprep.mubr.bf16.mxu0 %v495
  %713 = vmatmul.mubr.bf16.gmra.mrb[0].mxu0 %v325
  %v714 = vpop.f32.mrb[0].mxu0
  %v715 = vadd.f32 0.0, %v714
  %v716 = vpop.f32.mrb[0].mxu0
  %v717 = vpop.f32.mrb[0].mxu0
  %v718 = vadd.f32 0.0, %v717
  %v719 = vpop.f32.mrb[0].mxu0
  %720 = vmatprep.mubr.bf16.mxu0 %v498
  %721 = vmatmul.mubr.bf16.gmra.mrb[0].mxu0 %v327
  %v722 = vpop.f32.mrb[0].mxu0
  %v723 = vadd.f32 0.0, %v722
  %v724 = vpop.f32.mrb[0].mxu0
  %v725 = vpop.f32.mrb[0].mxu0
  %v726 = vadd.f32 0.0, %v725
  %v727 = vpop.f32.mrb[0].mxu0
  %728 = vmatprep.mubr.bf16.mxu0 %v501
  %729 = vmatmul.mubr.bf16.gmra.mrb[0].mxu0 %v329
  %v730 = vpop.f32.mrb[0].mxu0
  %v731 = vadd.f32 0.0, %v730
  %v732 = vpop.f32.mrb[0].mxu0
  %v733 = vpop.f32.mrb[0].mxu0
  %v734 = vadd.f32 0.0, %v733
  %v735 = vpop.f32.mrb[0].mxu0
  %736 = vmatprep.mubr.bf16.mxu0 %v504
  %737 = vmatmul.mubr.bf16.gmra.mrb[0].mxu0 %v331
  %v738 = vpop.f32.mrb[0].mxu0
  %v739 = vadd.f32 0.0, %v738
  %v740 = vpop.f32.mrb[0].mxu0
  %v741 = vpop.f32.mrb[0].mxu0
  %v742 = vadd.f32 0.0, %v741
  %v743 = vpop.f32.mrb[0].mxu0
  %744 = vmatprep.mubr.bf16.mxu0 %v507
  %745 = vmatmul.mubr.bf16.gmra.mrb[0].mxu0 %v333
  %v746 = vpop.f32.mrb[0].mxu0
  %v747 = vadd.f32 0.0, %v746
  %v748 = vpop.f32.mrb[0].mxu0
  %v749 = vpop.f32.mrb[0].mxu0
  %v750 = vadd.f32 0.0, %v749
  %v751 = vpop.f32.mrb[0].mxu0
  %752 = vmatprep.mubr.bf16.mxu0 %v510
  %753 = vmatmul.mubr.bf16.gmra.mrb[0].mxu0 %v335
  %v754 = vpop.f32.mrb[0].mxu0
  %v755 = vadd.f32 0.0, %v754
  %v756 = vpop.f32.mrb[0].mxu0
  %v757 = vpop.f32.mrb[0].mxu0
  %v758 = vadd.f32 0.0, %v757
  %v759 = vpop.f32.mrb[0].mxu0
  %760 = vmatprep.mubr.bf16.mxu0 %v513
  %761 = vmatmul.mubr.bf16.gmra.mrb[0].mxu0 %v337
  %v762 = vpop.f32.mrb[0].mxu0
  %v763 = vadd.f32 0.0, %v762
  %v764 = vpop.f32.mrb[0].mxu0
  %v765 = vpop.f32.mrb[0].mxu0
  %v766 = vadd.f32 0.0, %v765
  %v767 = vpop.f32.mrb[0].mxu0
  %768 = vmatprep.mubr.bf16.mxu0 %v516
  %769 = vmatmul.mubr.bf16.gmra.mrb[0].mxu0 %v339
  %v770 = vpop.f32.mrb[0].mxu0
  %v771 = vadd.f32 0.0, %v770
  %v772 = vpop.f32.mrb[0].mxu0
  %v773 = vpop.f32.mrb[0].mxu0
  %v774 = vadd.f32 0.0, %v773
  %v775 = vpop.f32.mrb[0].mxu0
  %776 = vmatprep.mubr.bf16.mxu0 %v519
  %777 = vmatmul.mubr.bf16.gmra.mrb[0].mxu0 %v341
  %v778 = vpop.f32.mrb[0].mxu0
  %v779 = vadd.f32 0.0, %v778
  %v780 = vpop.f32.mrb[0].mxu0
  %v781 = vpop.f32.mrb[0].mxu0
  %v782 = vadd.f32 0.0, %v781
  %v783 = vpop.f32.mrb[0].mxu0
  %784 = vmatprep.mubr.bf16.mxu0 %v522
  %785 = vmatmul.mubr.bf16.gmra.mrb[0].mxu0 %v343
  %v786 = vpop.f32.mrb[0].mxu0
  %v787 = vadd.f32 0.0, %v786
  %v788 = vpop.f32.mrb[0].mxu0
  %v789 = vpop.f32.mrb[0].mxu0
  %v790 = vadd.f32 0.0, %v789
  %v791 = vpop.f32.mrb[0].mxu0
  %792 = vmatprep.mubr.bf16.mxu0 %v525
  %793 = vmatmul.mubr.bf16.gmra.mrb[0].mxu0 %v345
  %v794 = vpop.f32.mrb[0].mxu0
  %v795 = vadd.f32 0.0, %v794
  %v796 = vpop.f32.mrb[0].mxu0
  %v797 = vpop.f32.mrb[0].mxu0
  %v798 = vadd.f32 0.0, %v797
  %v799 = vpop.f32.mrb[0].mxu0
  %800 = vmatprep.mubr.bf16.mxu0 %v528
  %801 = vmatmul.mubr.bf16.gmra.mrb[0].mxu0 %v347
  %v802 = vpop.f32.mrb[0].mxu0
  %v803 = vadd.f32 0.0, %v802
  %v804 = vpop.f32.mrb[0].mxu0
  %v805 = vpop.f32.mrb[0].mxu0
  %v806 = vadd.f32 0.0, %v805
  %v807 = vpop.f32.mrb[0].mxu0
  %808 = vmatprep.mubr.bf16.mxu0 %v531
  %809 = vmatmul.mubr.bf16.gmra.mrb[0].mxu0 %v349
  %v810 = vpop.f32.mrb[0].mxu0
  %v811 = vadd.f32 0.0, %v810
  %v812 = vpop.f32.mrb[0].mxu0
  %v813 = vpop.f32.mrb[0].mxu0
  %v814 = vadd.f32 0.0, %v813
  %v815 = vpop.f32.mrb[0].mxu0
  %816 = vmatprep.mubr.bf16.mxu0 %v534
  %817 = vmatmul.mubr.bf16.gmra.mrb[0].mxu0 %v351
  %v818 = vpop.f32.mrb[0].mxu0
  %v819 = vadd.f32 0.0, %v818
  %v820 = vpop.f32.mrb[0].mxu0
  %v821 = vpop.f32.mrb[0].mxu0
  %v822 = vadd.f32 0.0, %v821
  %v823 = vpop.f32.mrb[0].mxu0
  %824 = vdwg.mxu0
  %v825 = vpack.c.bf16 %v574, %v571
  %v826 = vpack.c.bf16 %v582, %v579
  %v827 = vpack.c.bf16 %v590, %v587
  %v828 = vpack.c.bf16 %v598, %v595
  %v829 = vpack.c.bf16 %v606, %v603
  %v830 = vpack.c.bf16 %v614, %v611
  %v831 = vpack.c.bf16 %v622, %v619
  %v832 = vpack.c.bf16 %v630, %v627
  %v833 = vpack.c.bf16 %v638, %v635
  %v834 = vpack.c.bf16 %v646, %v643
  %v835 = vpack.c.bf16 %v654, %v651
  %v836 = vpack.c.bf16 %v662, %v659
  %v837 = vpack.c.bf16 %v670, %v667
  %v838 = vpack.c.bf16 %v678, %v675
  %v839 = vpack.c.bf16 %v686, %v683
  %v840 = vpack.c.bf16 %v694, %v691
  %v841 = vpack.c.bf16 %v702, %v699
  %v842 = vpack.c.bf16 %v710, %v707
  %v843 = vpack.c.bf16 %v718, %v715
  %v844 = vpack.c.bf16 %v726, %v723
  %v845 = vpack.c.bf16 %v734, %v731
  %v846 = vpack.c.bf16 %v742, %v739
  %v847 = vpack.c.bf16 %v750, %v747
  %v848 = vpack.c.bf16 %v758, %v755
  %v849 = vpack.c.bf16 %v766, %v763
  %v850 = vpack.c.bf16 %v774, %v771
  %v851 = vpack.c.bf16 %v782, %v779
  %v852 = vpack.c.bf16 %v790, %v787
  %v853 = vpack.c.bf16 %v798, %v795
  %v854 = vpack.c.bf16 %v806, %v803
  %v855 = vpack.c.bf16 %v814, %v811
  %v856 = vpack.c.bf16 %v822, %v819
  %v889 = vunpack.c.l.b16 %v825
  %v890 = vunpack.c.h.b16 %v825
  %v891 = vunpack.c.l.b16 %v826
  %v892 = vunpack.c.h.b16 %v826
  %v893 = vunpack.c.l.b16 %v827
  %v894 = vunpack.c.h.b16 %v827
  %v895 = vunpack.c.l.b16 %v828
  %v896 = vunpack.c.h.b16 %v828
  %v897 = vunpack.c.l.b16 %v829
  %v898 = vunpack.c.h.b16 %v829
  %v899 = vunpack.c.l.b16 %v830
  %v900 = vunpack.c.h.b16 %v830
  %v901 = vunpack.c.l.b16 %v831
  %v902 = vunpack.c.h.b16 %v831
  %v903 = vunpack.c.l.b16 %v832
  %v904 = vunpack.c.h.b16 %v832
  %v905 = vunpack.c.l.b16 %v833
  %v906 = vunpack.c.h.b16 %v833
  %v907 = vunpack.c.l.b16 %v834
  %v908 = vunpack.c.h.b16 %v834
  %v909 = vunpack.c.l.b16 %v835
  %v910 = vunpack.c.h.b16 %v835
  %v911 = vunpack.c.l.b16 %v836
  %v912 = vunpack.c.h.b16 %v836
  %v913 = vunpack.c.l.b16 %v837
  %v914 = vunpack.c.h.b16 %v837
  %v915 = vunpack.c.l.b16 %v838
  %v916 = vunpack.c.h.b16 %v838
  %v917 = vunpack.c.l.b16 %v839
  %v918 = vunpack.c.h.b16 %v839
  %v919 = vunpack.c.l.b16 %v840
  %v920 = vunpack.c.h.b16 %v840
  %v921 = vunpack.c.l.b16 %v841
  %v922 = vunpack.c.h.b16 %v841
  %v923 = vunpack.c.l.b16 %v842
  %v924 = vunpack.c.h.b16 %v842
  %v925 = vunpack.c.l.b16 %v843
  %v926 = vunpack.c.h.b16 %v843
  %v927 = vunpack.c.l.b16 %v844
  %v928 = vunpack.c.h.b16 %v844
  %v929 = vunpack.c.l.b16 %v845
  %v930 = vunpack.c.h.b16 %v845
  %v931 = vunpack.c.l.b16 %v846
  %v932 = vunpack.c.h.b16 %v846
  %v933 = vunpack.c.l.b16 %v847
  %v934 = vunpack.c.h.b16 %v847
  %v935 = vunpack.c.l.b16 %v848
  %v936 = vunpack.c.h.b16 %v848
  %v937 = vunpack.c.l.b16 %v849
  %v938 = vunpack.c.h.b16 %v849
  %v939 = vunpack.c.l.b16 %v850
  %v940 = vunpack.c.h.b16 %v850
  %v941 = vunpack.c.l.b16 %v851
  %v942 = vunpack.c.h.b16 %v851
  %v943 = vunpack.c.l.b16 %v852
  %v944 = vunpack.c.h.b16 %v852
  %v945 = vunpack.c.l.b16 %v853
  %v946 = vunpack.c.h.b16 %v853
  %v947 = vunpack.c.l.b16 %v854
  %v948 = vunpack.c.h.b16 %v854
  %v949 = vunpack.c.l.b16 %v855
  %v950 = vunpack.c.h.b16 %v855
  %v951 = vunpack.c.l.b16 %v856
  %v952 = vunpack.c.h.b16 %v856
  %v953 = vpack.c.b16 %v889, %v889
  %v954 = vpack.c.b16 %v890, %v890
  %v955 = vpack.c.b16 %v891, %v891
  %v956 = vpack.c.b16 %v892, %v892
  %v957 = vpack.c.b16 %v893, %v893
  %v958 = vpack.c.b16 %v894, %v894
  %v959 = vpack.c.b16 %v895, %v895
  %v960 = vpack.c.b16 %v896, %v896
  %v961 = vpack.c.b16 %v897, %v897
  %v962 = vpack.c.b16 %v898, %v898
  %v963 = vpack.c.b16 %v899, %v899
  %v964 = vpack.c.b16 %v900, %v900
  %v965 = vpack.c.b16 %v901, %v901
  %v966 = vpack.c.b16 %v902, %v902
  %v967 = vpack.c.b16 %v903, %v903
  %v968 = vpack.c.b16 %v904, %v904
  %v969 = vpack.c.b16 %v905, %v905
  %v970 = vpack.c.b16 %v906, %v906
  %v971 = vpack.c.b16 %v907, %v907
  %v972 = vpack.c.b16 %v908, %v908
  %v973 = vpack.c.b16 %v909, %v909
  %v974 = vpack.c.b16 %v910, %v910
  %v975 = vpack.c.b16 %v911, %v911
  %v976 = vpack.c.b16 %v912, %v912
  %v977 = vpack.c.b16 %v913, %v913
  %v978 = vpack.c.b16 %v914, %v914
  %v979 = vpack.c.b16 %v915, %v915
  %v980 = vpack.c.b16 %v916, %v916
  %v981 = vpack.c.b16 %v917, %v917
  %v982 = vpack.c.b16 %v918, %v918
  %v983 = vpack.c.b16 %v919, %v919
  %v984 = vpack.c.b16 %v920, %v920
  %v985 = vpack.c.b16 %v921, %v921
  %v986 = vpack.c.b16 %v922, %v922
  %v987 = vpack.c.b16 %v923, %v923
  %v988 = vpack.c.b16 %v924, %v924
  %v989 = vpack.c.b16 %v925, %v925
  %v990 = vpack.c.b16 %v926, %v926
  %v991 = vpack.c.b16 %v927, %v927
  %v992 = vpack.c.b16 %v928, %v928
  %v993 = vpack.c.b16 %v929, %v929
  %v994 = vpack.c.b16 %v930, %v930
  %v995 = vpack.c.b16 %v931, %v931
  %v996 = vpack.c.b16 %v932, %v932
  %v997 = vpack.c.b16 %v933, %v933
  %v998 = vpack.c.b16 %v934, %v934
  %v999 = vpack.c.b16 %v935, %v935
  %v1000 = vpack.c.b16 %v936, %v936
  %v1001 = vpack.c.b16 %v937, %v937
  %v1002 = vpack.c.b16 %v938, %v938
  %v1003 = vpack.c.b16 %v939, %v939
  %v1004 = vpack.c.b16 %v940, %v940
  %v1005 = vpack.c.b16 %v941, %v941
  %v1006 = vpack.c.b16 %v942, %v942
  %v1007 = vpack.c.b16 %v943, %v943
  %v1008 = vpack.c.b16 %v944, %v944
  %v1009 = vpack.c.b16 %v945, %v945
  %v1010 = vpack.c.b16 %v946, %v946
  %v1011 = vpack.c.b16 %v947, %v947
  %v1012 = vpack.c.b16 %v948, %v948
  %v1013 = vpack.c.b16 %v949, %v949
  %v1014 = vpack.c.b16 %v950, %v950
  %v1015 = vpack.c.b16 %v951, %v951
  %v1016 = vpack.c.b16 %v952, %v952
  %vm1081 = vcmask 125952
  %1082 = vst.msk [vmem:[%s2] sm:$0xf] %vm1081, %v953
  %1083 = vst.msk [vmem:[%s2 + $0x4] sm:$0xf] %vm1081, %v954
  %1084 = vst.msk [vmem:[%s2 + $0x8] sm:$0xf] %vm1081, %v955
  %1085 = vst.msk [vmem:[%s2 + $0xc] sm:$0xf] %vm1081, %v956
  %1086 = vst.msk [vmem:[%s2 + $0x10] sm:$0xf] %vm1081, %v957
  %1087 = vst.msk [vmem:[%s2 + $0x14] sm:$0xf] %vm1081, %v958
  %1088 = vst.msk [vmem:[%s2 + $0x18] sm:$0xf] %vm1081, %v959
  %1089 = vst.msk [vmem:[%s2 + $0x1c] sm:$0xf] %vm1081, %v960
  %1090 = vst.msk [vmem:[%s2 + $0x20] sm:$0xf] %vm1081, %v961
  %1091 = vst.msk [vmem:[%s2 + $0x24] sm:$0xf] %vm1081, %v962
  %1092 = vst.msk [vmem:[%s2 + $0x28] sm:$0xf] %vm1081, %v963
  %1093 = vst.msk [vmem:[%s2 + $0x2c] sm:$0xf] %vm1081, %v964
  %1094 = vst.msk [vmem:[%s2 + $0x30] sm:$0xf] %vm1081, %v965
  %1095 = vst.msk [vmem:[%s2 + $0x34] sm:$0xf] %vm1081, %v966
  %1096 = vst.msk [vmem:[%s2 + $0x38] sm:$0xf] %vm1081, %v967
  %1097 = vst.msk [vmem:[%s2 + $0x3c] sm:$0xf] %vm1081, %v968
  %1098 = vst.msk [vmem:[%s2 + $0x40] sm:$0xf] %vm1081, %v969
  %1099 = vst.msk [vmem:[%s2 + $0x44] sm:$0xf] %vm1081, %v970
  %1100 = vst.msk [vmem:[%s2 + $0x48] sm:$0xf] %vm1081, %v971
  %1101 = vst.msk [vmem:[%s2 + $0x4c] sm:$0xf] %vm1081, %v972
  %1102 = vst.msk [vmem:[%s2 + $0x50] sm:$0xf] %vm1081, %v973
  %1103 = vst.msk [vmem:[%s2 + $0x54] sm:$0xf] %vm1081, %v974
  %1104 = vst.msk [vmem:[%s2 + $0x58] sm:$0xf] %vm1081, %v975
  %1105 = vst.msk [vmem:[%s2 + $0x5c] sm:$0xf] %vm1081, %v976
  %1106 = vst.msk [vmem:[%s2 + $0x60] sm:$0xf] %vm1081, %v977
  %1107 = vst.msk [vmem:[%s2 + $0x64] sm:$0xf] %vm1081, %v978
  %1108 = vst.msk [vmem:[%s2 + $0x68] sm:$0xf] %vm1081, %v979
  %1109 = vst.msk [vmem:[%s2 + $0x6c] sm:$0xf] %vm1081, %v980
  %1110 = vst.msk [vmem:[%s2 + $0x70] sm:$0xf] %vm1081, %v981
  %1111 = vst.msk [vmem:[%s2 + $0x74] sm:$0xf] %vm1081, %v982
  %1112 = vst.msk [vmem:[%s2 + $0x78] sm:$0xf] %vm1081, %v983
  %1113 = vst.msk [vmem:[%s2 + $0x7c] sm:$0xf] %vm1081, %v984
  %1114 = vst.msk [vmem:[%s2 + $0x80] sm:$0xf] %vm1081, %v985
  %1115 = vst.msk [vmem:[%s2 + $0x84] sm:$0xf] %vm1081, %v986
  %1116 = vst.msk [vmem:[%s2 + $0x88] sm:$0xf] %vm1081, %v987
  %1117 = vst.msk [vmem:[%s2 + $0x8c] sm:$0xf] %vm1081, %v988
  %1118 = vst.msk [vmem:[%s2 + $0x90] sm:$0xf] %vm1081, %v989
  %1119 = vst.msk [vmem:[%s2 + $0x94] sm:$0xf] %vm1081, %v990
  %1120 = vst.msk [vmem:[%s2 + $0x98] sm:$0xf] %vm1081, %v991
  %1121 = vst.msk [vmem:[%s2 + $0x9c] sm:$0xf] %vm1081, %v992
  %1122 = vst.msk [vmem:[%s2 + $0xa0] sm:$0xf] %vm1081, %v993
  %1123 = vst.msk [vmem:[%s2 + $0xa4] sm:$0xf] %vm1081, %v994
  %1124 = vst.msk [vmem:[%s2 + $0xa8] sm:$0xf] %vm1081, %v995
  %1125 = vst.msk [vmem:[%s2 + $0xac] sm:$0xf] %vm1081, %v996
  %1126 = vst.msk [vmem:[%s2 + $0xb0] sm:$0xf] %vm1081, %v997
  %1127 = vst.msk [vmem:[%s2 + $0xb4] sm:$0xf] %vm1081, %v998
  %1128 = vst.msk [vmem:[%s2 + $0xb8] sm:$0xf] %vm1081, %v999
  %1129 = vst.msk [vmem:[%s2 + $0xbc] sm:$0xf] %vm1081, %v1000
  %1130 = vst.msk [vmem:[%s2 + $0xc0] sm:$0xf] %vm1081, %v1001
  %1131 = vst.msk [vmem:[%s2 + $0xc4] sm:$0xf] %vm1081, %v1002
  %1132 = vst.msk [vmem:[%s2 + $0xc8] sm:$0xf] %vm1081, %v1003
  %1133 = vst.msk [vmem:[%s2 + $0xcc] sm:$0xf] %vm1081, %v1004
  %1134 = vst.msk [vmem:[%s2 + $0xd0] sm:$0xf] %vm1081, %v1005
  %1135 = vst.msk [vmem:[%s2 + $0xd4] sm:$0xf] %vm1081, %v1006
  %1136 = vst.msk [vmem:[%s2 + $0xd8] sm:$0xf] %vm1081, %v1007
  %1137 = vst.msk [vmem:[%s2 + $0xdc] sm:$0xf] %vm1081, %v1008
  %1138 = vst.msk [vmem:[%s2 + $0xe0] sm:$0xf] %vm1081, %v1009
  %1139 = vst.msk [vmem:[%s2 + $0xe4] sm:$0xf] %vm1081, %v1010
  %1140 = vst.msk [vmem:[%s2 + $0xe8] sm:$0xf] %vm1081, %v1011
  %1141 = vst.msk [vmem:[%s2 + $0xec] sm:$0xf] %vm1081, %v1012
  %1142 = vst.msk [vmem:[%s2 + $0xf0] sm:$0xf] %vm1081, %v1013
  %1143 = vst.msk [vmem:[%s2 + $0xf4] sm:$0xf] %vm1081, %v1014
  %1144 = vst.msk [vmem:[%s2 + $0xf8] sm:$0xf] %vm1081, %v1015
  %1145 = vst.msk [vmem:[%s2 + $0xfc] sm:$0xf] %vm1081, %v1016
  %v1146 = vsel %vm439, %v571, 0.0
  %v1147 = vsel %vm439, %v574, 0.0
  %v1148 = vadd.f32 %v1146, %v1147
  %v1149 = vsel %vm439, %v579, 0.0
  %v1150 = vadd.f32 %v1148, %v1149
  %v1151 = vsel %vm439, %v582, 0.0
  %v1152 = vadd.f32 %v1150, %v1151
  %v1153 = vsel %vm439, %v587, 0.0
  %v1154 = vadd.f32 %v1152, %v1153
  %v1155 = vsel %vm439, %v590, 0.0
  %v1156 = vadd.f32 %v1154, %v1155
  %v1157 = vsel %vm439, %v595, 0.0
  %v1158 = vadd.f32 %v1156, %v1157
  %v1159 = vsel %vm439, %v598, 0.0
  %v1160 = vadd.f32 %v1158, %v1159
  %v1161 = vsel %vm439, %v603, 0.0
  %v1162 = vadd.f32 %v1160, %v1161
  %v1163 = vsel %vm439, %v606, 0.0
  %v1164 = vadd.f32 %v1162, %v1163
  %v1165 = vsel %vm439, %v611, 0.0
  %v1166 = vadd.f32 %v1164, %v1165
  %v1167 = vsel %vm439, %v614, 0.0
  %v1168 = vadd.f32 %v1166, %v1167
  %v1169 = vsel %vm439, %v619, 0.0
  %v1170 = vadd.f32 %v1168, %v1169
  %v1171 = vsel %vm439, %v622, 0.0
  %v1172 = vadd.f32 %v1170, %v1171
  %v1173 = vsel %vm439, %v627, 0.0
  %v1174 = vadd.f32 %v1172, %v1173
  %v1175 = vsel %vm439, %v630, 0.0
  %v1176 = vadd.f32 %v1174, %v1175
  %v1177 = vsel %vm439, %v635, 0.0
  %v1178 = vadd.f32 %v1176, %v1177
  %v1179 = vsel %vm439, %v638, 0.0
  %v1180 = vadd.f32 %v1178, %v1179
  %v1181 = vsel %vm439, %v643, 0.0
  %v1182 = vadd.f32 %v1180, %v1181
  %v1183 = vsel %vm439, %v646, 0.0
  %v1184 = vadd.f32 %v1182, %v1183
  %v1185 = vsel %vm439, %v651, 0.0
  %v1186 = vadd.f32 %v1184, %v1185
  %v1187 = vsel %vm439, %v654, 0.0
  %v1188 = vadd.f32 %v1186, %v1187
  %v1189 = vsel %vm439, %v659, 0.0
  %v1190 = vadd.f32 %v1188, %v1189
  %v1191 = vsel %vm439, %v662, 0.0
  %v1192 = vadd.f32 %v1190, %v1191
  %v1193 = vsel %vm439, %v667, 0.0
  %v1194 = vadd.f32 %v1192, %v1193
  %v1195 = vsel %vm439, %v670, 0.0
  %v1196 = vadd.f32 %v1194, %v1195
  %v1197 = vsel %vm439, %v675, 0.0
  %v1198 = vadd.f32 %v1196, %v1197
  %v1199 = vsel %vm439, %v678, 0.0
  %v1200 = vadd.f32 %v1198, %v1199
  %v1201 = vsel %vm439, %v683, 0.0
  %v1202 = vadd.f32 %v1200, %v1201
  %v1203 = vsel %vm439, %v686, 0.0
  %v1204 = vadd.f32 %v1202, %v1203
  %v1205 = vsel %vm439, %v691, 0.0
  %v1206 = vadd.f32 %v1204, %v1205
  %v1207 = vsel %vm439, %v694, 0.0
  %v1208 = vadd.f32 %v1206, %v1207
  %v1209 = vsel %vm439, %v699, 0.0
  %v1210 = vadd.f32 %v1208, %v1209
  %v1211 = vsel %vm439, %v702, 0.0
  %v1212 = vadd.f32 %v1210, %v1211
  %v1213 = vsel %vm439, %v707, 0.0
  %v1214 = vadd.f32 %v1212, %v1213
  %v1215 = vsel %vm439, %v710, 0.0
  %v1216 = vadd.f32 %v1214, %v1215
  %v1217 = vsel %vm439, %v715, 0.0
  %v1218 = vadd.f32 %v1216, %v1217
  %v1219 = vsel %vm439, %v718, 0.0
  %v1220 = vadd.f32 %v1218, %v1219
  %v1221 = vsel %vm439, %v723, 0.0
  %v1222 = vadd.f32 %v1220, %v1221
  %v1223 = vsel %vm439, %v726, 0.0
  %v1224 = vadd.f32 %v1222, %v1223
  %v1225 = vsel %vm439, %v731, 0.0
  %v1226 = vadd.f32 %v1224, %v1225
  %v1227 = vsel %vm439, %v734, 0.0
  %v1228 = vadd.f32 %v1226, %v1227
  %v1229 = vsel %vm439, %v739, 0.0
  %v1230 = vadd.f32 %v1228, %v1229
  %v1231 = vsel %vm439, %v742, 0.0
  %v1232 = vadd.f32 %v1230, %v1231
  %v1233 = vsel %vm439, %v747, 0.0
  %v1234 = vadd.f32 %v1232, %v1233
  %v1235 = vsel %vm439, %v750, 0.0
  %v1236 = vadd.f32 %v1234, %v1235
  %v1237 = vsel %vm439, %v755, 0.0
  %v1238 = vadd.f32 %v1236, %v1237
  %v1239 = vsel %vm439, %v758, 0.0
  %v1240 = vadd.f32 %v1238, %v1239
  %v1241 = vsel %vm439, %v763, 0.0
  %v1242 = vadd.f32 %v1240, %v1241
  %v1243 = vsel %vm439, %v766, 0.0
  %v1244 = vadd.f32 %v1242, %v1243
  %v1245 = vsel %vm439, %v771, 0.0
  %v1246 = vadd.f32 %v1244, %v1245
  %v1247 = vsel %vm439, %v774, 0.0
  %v1248 = vadd.f32 %v1246, %v1247
  %v1249 = vsel %vm439, %v779, 0.0
  %v1250 = vadd.f32 %v1248, %v1249
  %v1251 = vsel %vm439, %v782, 0.0
  %v1252 = vadd.f32 %v1250, %v1251
  %v1253 = vsel %vm439, %v787, 0.0
  %v1254 = vadd.f32 %v1252, %v1253
  %v1255 = vsel %vm439, %v790, 0.0
  %v1256 = vadd.f32 %v1254, %v1255
  %v1257 = vsel %vm439, %v795, 0.0
  %v1258 = vadd.f32 %v1256, %v1257
  %v1259 = vsel %vm439, %v798, 0.0
  %v1260 = vadd.f32 %v1258, %v1259
  %v1261 = vsel %vm439, %v803, 0.0
  %v1262 = vadd.f32 %v1260, %v1261
  %v1263 = vsel %vm439, %v806, 0.0
  %v1264 = vadd.f32 %v1262, %v1263
  %v1265 = vsel %vm439, %v811, 0.0
  %v1266 = vadd.f32 %v1264, %v1265
  %v1267 = vsel %vm439, %v814, 0.0
  %v1268 = vadd.f32 %v1266, %v1267
  %v1269 = vsel %vm439, %v819, 0.0
  %v1270 = vadd.f32 %v1268, %v1269
  %v1271 = vsel %vm439, %v822, 0.0
  %v1272 = vadd.f32 %v1270, %v1271
  %v1273 = vrot.slane %v1272, 4
  %v1274 = vadd.f32 %v1272, %v1273
  %v1275 = vrot.slane %v1274, 2
  %v1276 = vadd.f32 %v1274, %v1275
  %v1277 = vrot.slane %v1276, 1
  %v1278 = vadd.f32 %v1276, %v1277
  %vm1279 = vcmask 122880
  %1280 = vst.msk [vmem:[%s3] sm:$0x1] %vm1279, %v1278
  %v1281 = vmul.f32 %v571, %v571
  %v1282 = vmul.f32 %v574, %v574
  %v1283 = vmul.f32 %v579, %v579
  %v1284 = vmul.f32 %v582, %v582
  %v1285 = vmul.f32 %v587, %v587
  %v1286 = vmul.f32 %v590, %v590
  %v1287 = vmul.f32 %v595, %v595
  %v1288 = vmul.f32 %v598, %v598
  %v1289 = vmul.f32 %v603, %v603
  %v1290 = vmul.f32 %v606, %v606
  %v1291 = vmul.f32 %v611, %v611
  %v1292 = vmul.f32 %v614, %v614
  %v1293 = vmul.f32 %v619, %v619
  %v1294 = vmul.f32 %v622, %v622
  %v1295 = vmul.f32 %v627, %v627
  %v1296 = vmul.f32 %v630, %v630
  %v1297 = vmul.f32 %v635, %v635
  %v1298 = vmul.f32 %v638, %v638
  %v1299 = vmul.f32 %v643, %v643
  %v1300 = vmul.f32 %v646, %v646
  %v1301 = vmul.f32 %v651, %v651
  %v1302 = vmul.f32 %v654, %v654
  %v1303 = vmul.f32 %v659, %v659
  %v1304 = vmul.f32 %v662, %v662
  %v1305 = vmul.f32 %v667, %v667
  %v1306 = vmul.f32 %v670, %v670
  %v1307 = vmul.f32 %v675, %v675
  %v1308 = vmul.f32 %v678, %v678
  %v1309 = vmul.f32 %v683, %v683
  %v1310 = vmul.f32 %v686, %v686
  %v1311 = vmul.f32 %v691, %v691
  %v1312 = vmul.f32 %v694, %v694
  %v1313 = vmul.f32 %v699, %v699
  %v1314 = vmul.f32 %v702, %v702
  %v1315 = vmul.f32 %v707, %v707
  %v1316 = vmul.f32 %v710, %v710
  %v1317 = vmul.f32 %v715, %v715
  %v1318 = vmul.f32 %v718, %v718
  %v1319 = vmul.f32 %v723, %v723
  %v1320 = vmul.f32 %v726, %v726
  %v1321 = vmul.f32 %v731, %v731
  %v1322 = vmul.f32 %v734, %v734
  %v1323 = vmul.f32 %v739, %v739
  %v1324 = vmul.f32 %v742, %v742
  %v1325 = vmul.f32 %v747, %v747
  %v1326 = vmul.f32 %v750, %v750
  %v1327 = vmul.f32 %v755, %v755
  %v1328 = vmul.f32 %v758, %v758
  %v1329 = vmul.f32 %v763, %v763
  %v1330 = vmul.f32 %v766, %v766
  %v1331 = vmul.f32 %v771, %v771
  %v1332 = vmul.f32 %v774, %v774
  %v1333 = vmul.f32 %v779, %v779
  %v1334 = vmul.f32 %v782, %v782
  %v1335 = vmul.f32 %v787, %v787
  %v1336 = vmul.f32 %v790, %v790
  %v1337 = vmul.f32 %v795, %v795
  %v1338 = vmul.f32 %v798, %v798
  %v1339 = vmul.f32 %v803, %v803
  %v1340 = vmul.f32 %v806, %v806
  %v1341 = vmul.f32 %v811, %v811
  %v1342 = vmul.f32 %v814, %v814
  %v1343 = vmul.f32 %v819, %v819
  %v1344 = vmul.f32 %v822, %v822
  %v1345 = vsel %vm439, %v1281, 0.0
  %v1346 = vsel %vm439, %v1282, 0.0
  %v1347 = vadd.f32 %v1345, %v1346
  %v1348 = vsel %vm439, %v1283, 0.0
  %v1349 = vadd.f32 %v1347, %v1348
  %v1350 = vsel %vm439, %v1284, 0.0
  %v1351 = vadd.f32 %v1349, %v1350
  %v1352 = vsel %vm439, %v1285, 0.0
  %v1353 = vadd.f32 %v1351, %v1352
  %v1354 = vsel %vm439, %v1286, 0.0
  %v1355 = vadd.f32 %v1353, %v1354
  %v1356 = vsel %vm439, %v1287, 0.0
  %v1357 = vadd.f32 %v1355, %v1356
  %v1358 = vsel %vm439, %v1288, 0.0
  %v1359 = vadd.f32 %v1357, %v1358
  %v1360 = vsel %vm439, %v1289, 0.0
  %v1361 = vadd.f32 %v1359, %v1360
  %v1362 = vsel %vm439, %v1290, 0.0
  %v1363 = vadd.f32 %v1361, %v1362
  %v1364 = vsel %vm439, %v1291, 0.0
  %v1365 = vadd.f32 %v1363, %v1364
  %v1366 = vsel %vm439, %v1292, 0.0
  %v1367 = vadd.f32 %v1365, %v1366
  %v1368 = vsel %vm439, %v1293, 0.0
  %v1369 = vadd.f32 %v1367, %v1368
  %v1370 = vsel %vm439, %v1294, 0.0
  %v1371 = vadd.f32 %v1369, %v1370
  %v1372 = vsel %vm439, %v1295, 0.0
  %v1373 = vadd.f32 %v1371, %v1372
  %v1374 = vsel %vm439, %v1296, 0.0
  %v1375 = vadd.f32 %v1373, %v1374
  %v1376 = vsel %vm439, %v1297, 0.0
  %v1377 = vadd.f32 %v1375, %v1376
  %v1378 = vsel %vm439, %v1298, 0.0
  %v1379 = vadd.f32 %v1377, %v1378
  %v1380 = vsel %vm439, %v1299, 0.0
  %v1381 = vadd.f32 %v1379, %v1380
  %v1382 = vsel %vm439, %v1300, 0.0
  %v1383 = vadd.f32 %v1381, %v1382
  %v1384 = vsel %vm439, %v1301, 0.0
  %v1385 = vadd.f32 %v1383, %v1384
  %v1386 = vsel %vm439, %v1302, 0.0
  %v1387 = vadd.f32 %v1385, %v1386
  %v1388 = vsel %vm439, %v1303, 0.0
  %v1389 = vadd.f32 %v1387, %v1388
  %v1390 = vsel %vm439, %v1304, 0.0
  %v1391 = vadd.f32 %v1389, %v1390
  %v1392 = vsel %vm439, %v1305, 0.0
  %v1393 = vadd.f32 %v1391, %v1392
  %v1394 = vsel %vm439, %v1306, 0.0
  %v1395 = vadd.f32 %v1393, %v1394
  %v1396 = vsel %vm439, %v1307, 0.0
  %v1397 = vadd.f32 %v1395, %v1396
  %v1398 = vsel %vm439, %v1308, 0.0
  %v1399 = vadd.f32 %v1397, %v1398
  %v1400 = vsel %vm439, %v1309, 0.0
  %v1401 = vadd.f32 %v1399, %v1400
  %v1402 = vsel %vm439, %v1310, 0.0
  %v1403 = vadd.f32 %v1401, %v1402
  %v1404 = vsel %vm439, %v1311, 0.0
  %v1405 = vadd.f32 %v1403, %v1404
  %v1406 = vsel %vm439, %v1312, 0.0
  %v1407 = vadd.f32 %v1405, %v1406
  %v1408 = vsel %vm439, %v1313, 0.0
  %v1409 = vadd.f32 %v1407, %v1408
  %v1410 = vsel %vm439, %v1314, 0.0
  %v1411 = vadd.f32 %v1409, %v1410
  %v1412 = vsel %vm439, %v1315, 0.0
  %v1413 = vadd.f32 %v1411, %v1412
  %v1414 = vsel %vm439, %v1316, 0.0
  %v1415 = vadd.f32 %v1413, %v1414
  %v1416 = vsel %vm439, %v1317, 0.0
  %v1417 = vadd.f32 %v1415, %v1416
  %v1418 = vsel %vm439, %v1318, 0.0
  %v1419 = vadd.f32 %v1417, %v1418
  %v1420 = vsel %vm439, %v1319, 0.0
  %v1421 = vadd.f32 %v1419, %v1420
  %v1422 = vsel %vm439, %v1320, 0.0
  %v1423 = vadd.f32 %v1421, %v1422
  %v1424 = vsel %vm439, %v1321, 0.0
  %v1425 = vadd.f32 %v1423, %v1424
  %v1426 = vsel %vm439, %v1322, 0.0
  %v1427 = vadd.f32 %v1425, %v1426
  %v1428 = vsel %vm439, %v1323, 0.0
  %v1429 = vadd.f32 %v1427, %v1428
  %v1430 = vsel %vm439, %v1324, 0.0
  %v1431 = vadd.f32 %v1429, %v1430
  %v1432 = vsel %vm439, %v1325, 0.0
  %v1433 = vadd.f32 %v1431, %v1432
  %v1434 = vsel %vm439, %v1326, 0.0
  %v1435 = vadd.f32 %v1433, %v1434
  %v1436 = vsel %vm439, %v1327, 0.0
  %v1437 = vadd.f32 %v1435, %v1436
  %v1438 = vsel %vm439, %v1328, 0.0
  %v1439 = vadd.f32 %v1437, %v1438
  %v1440 = vsel %vm439, %v1329, 0.0
  %v1441 = vadd.f32 %v1439, %v1440
  %v1442 = vsel %vm439, %v1330, 0.0
  %v1443 = vadd.f32 %v1441, %v1442
  %v1444 = vsel %vm439, %v1331, 0.0
  %v1445 = vadd.f32 %v1443, %v1444
  %v1446 = vsel %vm439, %v1332, 0.0
  %v1447 = vadd.f32 %v1445, %v1446
  %v1448 = vsel %vm439, %v1333, 0.0
  %v1449 = vadd.f32 %v1447, %v1448
  %v1450 = vsel %vm439, %v1334, 0.0
  %v1451 = vadd.f32 %v1449, %v1450
  %v1452 = vsel %vm439, %v1335, 0.0
  %v1453 = vadd.f32 %v1451, %v1452
  %v1454 = vsel %vm439, %v1336, 0.0
  %v1455 = vadd.f32 %v1453, %v1454
  %v1456 = vsel %vm439, %v1337, 0.0
  %v1457 = vadd.f32 %v1455, %v1456
  %v1458 = vsel %vm439, %v1338, 0.0
  %v1459 = vadd.f32 %v1457, %v1458
  %v1460 = vsel %vm439, %v1339, 0.0
  %v1461 = vadd.f32 %v1459, %v1460
  %v1462 = vsel %vm439, %v1340, 0.0
  %v1463 = vadd.f32 %v1461, %v1462
  %v1464 = vsel %vm439, %v1341, 0.0
  %v1465 = vadd.f32 %v1463, %v1464
  %v1466 = vsel %vm439, %v1342, 0.0
  %v1467 = vadd.f32 %v1465, %v1466
  %v1468 = vsel %vm439, %v1343, 0.0
  %v1469 = vadd.f32 %v1467, %v1468
  %v1470 = vsel %vm439, %v1344, 0.0
  %v1471 = vadd.f32 %v1469, %v1470
  %v1472 = vrot.slane %v1471, 4
  %v1473 = vadd.f32 %v1471, %v1472
  %v1474 = vrot.slane %v1473, 2
  %v1475 = vadd.f32 %v1473, %v1474
  %v1476 = vrot.slane %v1475, 1
  %v1477 = vadd.f32 %v1475, %v1476
  %1478 = vst.msk [vmem:[%s4] sm:$0x1] %vm1279, %v1477
  // Predicated region
  $region10: #{spatial_prior_module_forward.15} parent=0 // pred_check
    _
  $region11: #{spatial_prior_module_forward.15} parent=0 // pred_check_branch
    %1480 = sbr.rel (0) target = $region13
  $region12: #{spatial_prior_module_forward.15} parent=0 // pred_region
    _
  $region13: #{spatial_prior_module_forward.15} parent=0 // pred_fallthru
    _
  // Predicated region
  $region14: #{spatial_prior_module_forward.15} parent=0 // pred_check
    _
  $region15: #{spatial_prior_module_forward.15} parent=0 // pred_check_branch
    %1482 = sbr.rel (0) target = $region17
  $region16: #{spatial_prior_module_forward.15} parent=0 // pred_region
    _
  $region17: #{spatial_prior_module_forward.15} parent=0 // pred_fallthru
    _
  // Predicated region
  $region18: #{spatial_prior_module_forward.15} parent=0 // pred_check
    _
  $region19: #{spatial_prior_module_forward.15} parent=0 // pred_check_branch
    %1484 = sbr.rel (0) target = $region21
  $region20: #{spatial_prior_module_forward.15} parent=0 // pred_region
    _
  $region21: #{spatial_prior_module_forward.15} parent=0 // pred_fallthru
    _
  // Predicated region
  $region22: #{spatial_prior_module_forward.15} parent=0 // pred_check
    _
  $region23: #{spatial_prior_module_forward.15} parent=0 // pred_check_branch
    %1486 = sbr.rel (0) target = $region25
  $region24: #{spatial_prior_module_forward.15} parent=0 // pred_region
    _
  $region25: #{spatial_prior_module_forward.15} parent=0 // pred_fallthru
    _
  // Predicated region
  $region26: #{spatial_prior_module_forward.15} parent=0 // pred_check
    _
  $region27: #{spatial_prior_module_forward.15} parent=0 // pred_check_branch
    %1488 = sbr.rel (0) target = $region29
  $region28: #{spatial_prior_module_forward.15} parent=0 // pred_region
    _
  $region29: #{spatial_prior_module_forward.15} parent=0 // pred_fallthru
    _
  // Predicated region
  $region30: #{spatial_prior_module_forward.15} parent=0 // pred_check
    _
  $region31: #{spatial_prior_module_forward.15} parent=0 // pred_check_branch
    %1490 = sbr.rel (0) target = $region33
  $region32: #{spatial_prior_module_forward.15} parent=0 // pred_region
    _
  $region33: #{spatial_prior_module_forward.15} parent=0 // pred_fallthru
    _

// kernel: spatial_prior_module_forward.21
$region0: #{spatial_prior_module_forward.21}
  #allocation0 [shape = 'u32[]', space=smem, size = 0x4, offset = 0x4, fixed_abs, tag = 'smem constant byte address 0x4 - core index']
  #allocation1 [shape = 'u32[144,128]{1,0:T(1,128)}', space=vmem, size = 0x12000, scoped, tag = 'internal scratch']
  %s0 = inlined_call_operand.vmem [shape: bf16[32,32], index: 0, kind: input, shape index: {}]
  %s1 = inlined_call_operand.vmem [shape: f32[1,32], index: 1, kind: input, shape index: {}]
  %s2 = inlined_call_operand.vmem [shape: f32[1,32], index: 2, kind: input, shape index: {}]
  %s3 = inlined_call_operand.vmem [shape: bf16[32,32], index: 3, kind: input, shape index: {}]
  %s4 = inlined_call_operand.vmem [shape: f32[1,32], index: 4, kind: input, shape index: {}]
  %s5 = inlined_call_operand.vmem [shape: bf16[32,32], index: 5, kind: output, shape index: {0}]
  %s6 = inlined_call_operand.hbm [shape: f32[32,32], index: 6, kind: output, shape index: {1}]
  %7 = xla_tuple %s5, %s6
  %s8 = sld [smem:[#allocation0]]
  $region38: #{spatial_prior_module_forward.21} parent=0
    _
  %s10 = ssub.s32 1, %s8
  %s11 = scalar_select 0, %s10, %s8
  $region1: #{spatial_prior_module_forward.21} parent=0
    #allocation2 [shape = 'u8[16384]{0}', space=vmem, size = 0x4000, scoped, tag = 'output window, operand 1, single buffered']
    #allocation3 [shape = 's32[1]{0}', space=sflag, size = 0x4, scoped, tag = 'scoped memory for spatial_prior_module_forward.21']
    %12 = vsyncpa [#allocation3], 0
    // Predicated region
    $region2: #{spatial_prior_module_forward.21} parent=1 // pred_check
      _
    $region3: #{spatial_prior_module_forward.21} parent=1 // pred_check_branch
      %14 = sbr.rel (0) target = $region5
    $region4: #{spatial_prior_module_forward.21} parent=1 // pred_region
      _
    $region5: #{spatial_prior_module_forward.21} parent=1 // pred_fallthru
      _
    // Predicated region
    $region6: #{spatial_prior_module_forward.21} parent=1 // pred_check
      _
    $region7: #{spatial_prior_module_forward.21} parent=1 // pred_check_branch
      %16 = sbr.rel (0) target = $region9
    $region8: #{spatial_prior_module_forward.21} parent=1 // pred_region
      _
    $region9: #{spatial_prior_module_forward.21} parent=1 // pred_fallthru
      _
    // Predicated region
    $region10: #{spatial_prior_module_forward.21} parent=1 // pred_check
      _
    $region11: #{spatial_prior_module_forward.21} parent=1 // pred_check_branch
      %18 = sbr.rel (0) target = $region13
    $region12: #{spatial_prior_module_forward.21} parent=1 // pred_region
      _
    $region13: #{spatial_prior_module_forward.21} parent=1 // pred_fallthru
      _
    // Predicated region
    $region14: #{spatial_prior_module_forward.21} parent=1 // pred_check
      _
    $region15: #{spatial_prior_module_forward.21} parent=1 // pred_check_branch
      %20 = sbr.rel (0) target = $region17
    $region16: #{spatial_prior_module_forward.21} parent=1 // pred_region
      _
    $region17: #{spatial_prior_module_forward.21} parent=1 // pred_fallthru
      _
    // Predicated region
    $region18: #{spatial_prior_module_forward.21} parent=1 // pred_check
      _
    $region19: #{spatial_prior_module_forward.21} parent=1 // pred_check_branch
      %22 = sbr.rel (0) target = $region21
    $region20: #{spatial_prior_module_forward.21} parent=1 // pred_region
      _
    $region21: #{spatial_prior_module_forward.21} parent=1 // pred_fallthru
      _
    %v24 = vld [vmem:[%s0] sm:$0xf]
    %v25 = vld [vmem:[%s0 + $0x4] sm:$0xf]
    %v26 = vld [vmem:[%s0 + $0x8] sm:$0xf]
    %v27 = vld [vmem:[%s0 + $0xc] sm:$0xf]
    %v28 = vunpack.c.l.bf16 %v24
    %v29 = vunpack.c.l.bf16 %v25
    %v30 = vunpack.c.l.bf16 %v26
    %v31 = vunpack.c.l.bf16 %v27
    %v32 = vld [vmem:[%s1] sm:$0x1]
    %v34 = vlaneseq
    %v35 = vshrl.u32 %v34, 7
    %v36 = vsub.s32 0, %v35
    %v37 = vrot.slane %v32, %v36
    %v39 = vmul.f32 %v28, %v37
    %v40 = vmul.f32 %v29, %v37
    %v41 = vmul.f32 %v30, %v37
    %v42 = vmul.f32 %v31, %v37
    %v43 = vld [vmem:[%s2] sm:$0x1]
    %v45 = vlaneseq
    %v46 = vshrl.u32 %v45, 7
    %v47 = vsub.s32 0, %v46
    %v48 = vrot.slane %v43, %v47
    %v50 = vadd.f32 %v39, %v48
    %v51 = vadd.f32 %v40, %v48
    %v52 = vadd.f32 %v41, %v48
    %v53 = vadd.f32 %v42, %v48
    %v54 = vmax.f32 %v50, 0.0
    %v55 = vmax.f32 %v51, 0.0
    %v56 = vmax.f32 %v52, 0.0
    %v57 = vmax.f32 %v53, 0.0
    %v58 = vpack.c.bf16 %v55, %v54
    %v59 = vpack.c.bf16 %v57, %v56
    %v62 = vunpack.c.l.b16 %v58
    %v63 = vunpack.c.h.b16 %v58
    %v64 = vunpack.c.l.b16 %v59
    %v65 = vunpack.c.h.b16 %v59
    %v66 = vpack.c.b16 %v62, %v62
    %v67 = vpack.c.b16 %v63, %v63
    %v68 = vpack.c.b16 %v64, %v64
    %v69 = vpack.c.b16 %v65, %v65
    %vm74 = vcmask 257024
    %75 = vst.msk [vmem:[%s5] sm:$0xf] %vm74, %v66
    %76 = vst.msk [vmem:[%s5 + $0x4] sm:$0xf] %vm74, %v67
    %77 = vst.msk [vmem:[%s5 + $0x8] sm:$0xf] %vm74, %v68
    %78 = vst.msk [vmem:[%s5 + $0xc] sm:$0xf] %vm74, %v69
    %v79 = vld [vmem:[%s3] sm:$0xf]
    %v80 = vld [vmem:[%s3 + $0x4] sm:$0xf]
    %v81 = vld [vmem:[%s3 + $0x8] sm:$0xf]
    %v82 = vld [vmem:[%s3 + $0xc] sm:$0xf]
    %v83 = vld [vmem:[%s4] sm:$0x1]
    %v85 = vlaneseq
    %v86 = vshrl.u32 %v85, 7
    %v87 = vsub.s32 0, %v86
    %v88 = vrot.slane %v83, %v87
    %v94 = vunpack.c.l.b16 %v79
    %v95 = vunpack.c.l.b16 %v80
    %v96 = vunpack.c.l.b16 %v81
    %v97 = vunpack.c.l.b16 %v82
    %v98 = vpack.c.b16 %v95, %v94
    %v99 = vpack.c.b16 %v97, %v96
    %vm102 = vcmask 261120
    %v104 = vsel %vm102, %v58, 0
    %v107 = vsel %vm102, %v59, 0
    %109 = vmatprep.subr.bf16.mxu0 0
    %110 = vmatpush1.bf16.msra.mxu0 %v98
    %111 = vmatprep.subr.bf16.mxu0 0
    %112 = vmatpush1.bf16.msra.mxu0 %v99
    %113 = vmatprep.subr.bf16.mxu0 0
    %114 = vmatpush1.bf16.msra.mxu0 0
    %115 = vmatprep.subr.bf16.mxu0 0
    %116 = vmatpush1.bf16.msra.mxu0 0
    %117 = vmatprep.subr.bf16.mxu0 0
    %118 = vmatpush1.bf16.msra.mxu0 0
    %119 = vmatprep.subr.bf16.mxu0 0
    %120 = vmatpush1.bf16.msra.mxu0 0
    %121 = vmatprep.subr.bf16.mxu0 0
    %122 = vmatpush1.bf16.msra.mxu0 0
    %123 = vmatprep.subr.bf16.mxu0 0
    %124 = vmatpush1.bf16.msra.mxu0 0
    %125 = vmatprep.subr.bf16.mxu0 0
    %126 = vmatpush1.bf16.msra.mxu0 0
    %127 = vmatprep.subr.bf16.mxu0 0
    %128 = vmatpush1.bf16.msra.mxu0 0
    %129 = vmatprep.subr.bf16.mxu0 0
    %130 = vmatpush1.bf16.msra.mxu0 0
    %131 = vmatprep.subr.bf16.mxu0 0
    %132 = vmatpush1.bf16.msra.mxu0 0
    %133 = vmatprep.subr.bf16.mxu0 0
    %134 = vmatpush1.bf16.msra.mxu0 0
    %135 = vmatprep.subr.bf16.mxu0 0
    %136 = vmatpush1.bf16.msra.mxu0 0
    %137 = vmatprep.subr.bf16.mxu0 0
    %138 = vmatpush1.bf16.msra.mxu0 0
    %139 = vmatprep.subr.bf16.mxu0 0
    %140 = vmatpush1.bf16.msra.mxu0 0
    %141 = vmatprep.mubr.bf16.mxu0 0
    %142 = vmatmul.mubr.bf16.gmra.mrb[0].mxu0 %v104
    %v143 = vpop.f32.mrb[0].mxu0
    %v144 = vadd.f32 %v88, %v143
    %v145 = vpop.f32.mrb[0].mxu0
    %v146 = vpop.f32.mrb[0].mxu0
    %v147 = vadd.f32 %v88, %v146
    %v148 = vpop.f32.mrb[0].mxu0
    %149 = vmatprep.mubr.bf16.mxu0 0
    %150 = vmatmul.mubr.bf16.gmra.mrb[0].mxu0 %v107
    %v151 = vpop.f32.mrb[0].mxu0
    %v152 = vadd.f32 %v88, %v151
    %v153 = vpop.f32.mrb[0].mxu0
    %v154 = vpop.f32.mrb[0].mxu0
    %v155 = vadd.f32 %v88, %v154
    %v156 = vpop.f32.mrb[0].mxu0
    %157 = vdwg.mxu0
    %158 = vst.msk [vmem:[#allocation2] sm:$0xff] %vm102, %v144
    %159 = vst.msk [vmem:[#allocation2 + $0x8] sm:$0xff] %vm102, %v147
    %160 = vst.msk [vmem:[#allocation2 + $0x10] sm:$0xff] %vm102, %v152
    %161 = vst.msk [vmem:[#allocation2 + $0x18] sm:$0xff] %vm102, %v155
    // Predicated region
    $region22: #{spatial_prior_module_forward.21} parent=1 // pred_check
      _
    $region23: #{spatial_prior_module_forward.21} parent=1 // pred_check_branch
      %163 = sbr.rel (0) target = $region25
    $region24: #{spatial_prior_module_forward.21} parent=1 // pred_region
      _
    $region25: #{spatial_prior_module_forward.21} parent=1 // pred_fallthru
      _
    // Predicated region
    $region26: #{spatial_prior_module_forward.21} parent=1 // pred_check
      _
    $region27: #{spatial_prior_module_forward.21} parent=1 // pred_check_branch
      %165 = sbr.rel (0) target = $region29
    $region28: #{spatial_prior_module_forward.21} parent=1 // pred_region
      %s167 = ssub.s32 512, 512
      %168 = vsyncadd [#allocation3], %s167
      %s169 = sshll.u32 [#allocation2], 4
      %s170 = int_to_ptr.vmem [resolvable:$true] %s169
      %175 = dma.vmem_to_hbm [thread:$0]  %s170, 512, %s6, [#allocation3], 128, 128, 8
    $region29: #{spatial_prior_module_forward.21} parent=1 // pred_fallthru
      _
    // Predicated region
    $region30: #{spatial_prior_module_forward.21} parent=1 // pred_check
      _
    $region31: #{spatial_prior_module_forward.21} parent=1 // pred_check_branch
      %177 = sbr.rel (0) target = $region33
    $region32: #{spatial_prior_module_forward.21} parent=1 // pred_region
      _
    $region33: #{spatial_prior_module_forward.21} parent=1 // pred_fallthru
      _
    // Predicated region
    $region34: #{spatial_prior_module_forward.21} parent=1 // pred_check
      _
    $region35: #{spatial_prior_module_forward.21} parent=1 // pred_check_branch
      %179 = sbr.rel (0) target = $region37
    $region36: #{spatial_prior_module_forward.21} parent=1 // pred_region
      %180 = dma.done [#allocation3], 512
    $region37: #{spatial_prior_module_forward.21} parent=1 // pred_fallthru
      _
    %181 = vsyncpa [#allocation3], 1

// kernel: spatial_prior_module_forward.20
$region0: #{spatial_prior_module_forward.20}
  #allocation0 [shape = 'u32[]', space=smem, size = 0x4, offset = 0x4, fixed_abs, tag = 'smem constant byte address 0x4 - core index']
  #allocation1 [shape = 'u32[144,128]{1,0:T(1,128)}', space=vmem, size = 0x12000, scoped, tag = 'internal scratch']
  %s0 = inlined_call_operand.vmem [shape: bf16[32,144], index: 0, kind: input, shape index: {}]
  %s1 = inlined_call_operand.vmem [shape: bf16[144,32], index: 1, kind: input, shape index: {}]
  %s2 = inlined_call_operand.vmem [shape: bf16[32,32], index: 2, kind: output, shape index: {0}]
  %s3 = inlined_call_operand.vmem [shape: f32[1,1,32], index: 3, kind: output, shape index: {1}]
  %s4 = inlined_call_operand.vmem [shape: f32[1,1,32], index: 4, kind: output, shape index: {2}]
  %5 = xla_tuple %s2, %s3, %s4
  %s6 = sld [smem:[#allocation0]]
  $region34: #{spatial_prior_module_forward.20} parent=0
    _
  %s8 = ssub.s32 1, %s6
  %s9 = scalar_select 0, %s8, %s6
  // Predicated region
  $region2: #{spatial_prior_module_forward.20} parent=0 // pred_check
    _
  $region3: #{spatial_prior_module_forward.20} parent=0 // pred_check_branch
    %11 = sbr.rel (0) target = $region5
  $region4: #{spatial_prior_module_forward.20} parent=0 // pred_region
    _
  $region5: #{spatial_prior_module_forward.20} parent=0 // pred_fallthru
    _
  // Predicated region
  $region6: #{spatial_prior_module_forward.20} parent=0 // pred_check
    _
  $region7: #{spatial_prior_module_forward.20} parent=0 // pred_check_branch
    %13 = sbr.rel (0) target = $region9
  $region8: #{spatial_prior_module_forward.20} parent=0 // pred_region
    _
  $region9: #{spatial_prior_module_forward.20} parent=0 // pred_fallthru
    _
  %v15 = vld [vmem:[%s0] sm:$0xff]
  %v16 = vld [vmem:[%s0 + $0x8] sm:$0xff]
  %v17 = vld [vmem:[%s0 + $0x10] sm:$0xff]
  %v18 = vld [vmem:[%s0 + $0x18] sm:$0xff]
  %v19 = vld [vmem:[%s1] sm:$0xf]
  %v20 = vld [vmem:[%s1 + $0x4] sm:$0xf]
  %v21 = vld [vmem:[%s1 + $0x8] sm:$0xf]
  %v22 = vld [vmem:[%s1 + $0xc] sm:$0xf]
  %v23 = vld [vmem:[%s1 + $0x10] sm:$0xf]
  %v24 = vld [vmem:[%s1 + $0x14] sm:$0xf]
  %v25 = vld [vmem:[%s1 + $0x18] sm:$0xf]
  %v26 = vld [vmem:[%s1 + $0x1c] sm:$0xf]
  %v27 = vld [vmem:[%s1 + $0x20] sm:$0xf]
  %v28 = vld [vmem:[%s1 + $0x24] sm:$0xf]
  %v29 = vld [vmem:[%s1 + $0x28] sm:$0xf]
  %v30 = vld [vmem:[%s1 + $0x2c] sm:$0xf]
  %v31 = vld [vmem:[%s1 + $0x30] sm:$0xf]
  %v32 = vld [vmem:[%s1 + $0x34] sm:$0xf]
  %v33 = vld [vmem:[%s1 + $0x38] sm:$0xf]
  %v34 = vld [vmem:[%s1 + $0x3c] sm:$0xf]
  %v35 = vld [vmem:[%s1 + $0x40] sm:$0xf]
  %v36 = vld [vmem:[%s1 + $0x44] sm:$0xf]
  %v41 = vunpack.c.l.b16 %v15
  %v42 = vunpack.c.h.b16 %v15
  %v43 = vunpack.c.l.b16 %v16
  %v44 = vunpack.c.h.b16 %v16
  %v45 = vunpack.c.l.b16 %v17
  %v46 = vunpack.c.h.b16 %v17
  %v47 = vunpack.c.l.b16 %v18
  %v48 = vunpack.c.h.b16 %v18
  %v49 = vpack.c.b16 %v43, %v41
  %v50 = vpack.c.b16 %v44, %v42
  %v51 = vpack.c.b16 %v47, %v45
  %v52 = vpack.c.b16 %v48, %v46
  %v73 = vunpack.c.l.b16 %v19
  %v74 = vunpack.c.l.b16 %v20
  %v75 = vunpack.c.l.b16 %v21
  %v76 = vunpack.c.l.b16 %v22
  %v77 = vunpack.c.l.b16 %v23
  %v78 = vunpack.c.l.b16 %v24
  %v79 = vunpack.c.l.b16 %v25
  %v80 = vunpack.c.l.b16 %v26
  %v81 = vunpack.c.l.b16 %v27
  %v82 = vunpack.c.l.b16 %v28
  %v83 = vunpack.c.l.b16 %v29
  %v84 = vunpack.c.l.b16 %v30
  %v85 = vunpack.c.l.b16 %v31
  %v86 = vunpack.c.l.b16 %v32
  %v87 = vunpack.c.l.b16 %v33
  %v88 = vunpack.c.l.b16 %v34
  %v89 = vunpack.c.l.b16 %v35
  %v90 = vunpack.c.l.b16 %v36
  %v91 = vpack.c.b16 %v74, %v73
  %v92 = vpack.c.b16 %v76, %v75
  %v93 = vpack.c.b16 %v78, %v77
  %v94 = vpack.c.b16 %v80, %v79
  %v95 = vpack.c.b16 %v82, %v81
  %v96 = vpack.c.b16 %v84, %v83
  %v97 = vpack.c.b16 %v86, %v85
  %v98 = vpack.c.b16 %v88, %v87
  %v99 = vpack.c.b16 %v90, %v89
  %vm109 = vcmask 130048
  %v111 = vsel %vm109, %v50, 0
  %v114 = vsel %vm109, %v52, 0
  %116 = vmatprep.subr.bf16.mxu0 0
  %117 = vmatpush1.bf16.msra.mxu0 %v91
  %118 = vmatprep.subr.bf16.mxu0 0
  %119 = vmatpush1.bf16.msra.mxu0 %v92
  %120 = vmatprep.subr.bf16.mxu0 0
  %121 = vmatpush1.bf16.msra.mxu0 %v93
  %122 = vmatprep.subr.bf16.mxu0 0
  %123 = vmatpush1.bf16.msra.mxu0 %v94
  %124 = vmatprep.subr.bf16.mxu0 0
  %125 = vmatpush1.bf16.msra.mxu0 %v95
  %126 = vmatprep.subr.bf16.mxu0 0
  %127 = vmatpush1.bf16.msra.mxu0 %v96
  %128 = vmatprep.subr.bf16.mxu0 0
  %129 = vmatpush1.bf16.msra.mxu0 %v97
  %130 = vmatprep.subr.bf16.mxu0 0
  %131 = vmatpush1.bf16.msra.mxu0 %v98
  %132 = vmatprep.subr.bf16.mxu0 0
  %133 = vmatpush1.bf16.msra.mxu0 %v99
  %134 = vmatprep.subr.bf16.mxu0 0
  %135 = vmatpush1.bf16.msra.mxu0 0
  %136 = vmatprep.subr.bf16.mxu0 0
  %137 = vmatpush1.bf16.msra.mxu0 0
  %138 = vmatprep.subr.bf16.mxu0 0
  %139 = vmatpush1.bf16.msra.mxu0 0
  %140 = vmatprep.subr.bf16.mxu0 0
  %141 = vmatpush1.bf16.msra.mxu0 0
  %142 = vmatprep.subr.bf16.mxu0 0
  %143 = vmatpush1.bf16.msra.mxu0 0
  %144 = vmatprep.subr.bf16.mxu0 0
  %145 = vmatpush1.bf16.msra.mxu0 0
  %146 = vmatprep.subr.bf16.mxu0 0
  %147 = vmatpush1.bf16.msra.mxu0 0
  %148 = vmatprep.mubr.bf16.mxu0 %v111
  %149 = vmatmul.mubr.bf16.gmra.mrb[0].mxu0 %v49
  %v150 = vpop.f32.mrb[0].mxu0
  %v151 = vadd.f32 0.0, %v150
  %v152 = vpop.f32.mrb[0].mxu0
  %v153 = vpop.f32.mrb[0].mxu0
  %v154 = vadd.f32 0.0, %v153
  %v155 = vpop.f32.mrb[0].mxu0
  %156 = vmatprep.mubr.bf16.mxu0 %v114
  %157 = vmatmul.mubr.bf16.gmra.mrb[0].mxu0 %v51
  %v158 = vpop.f32.mrb[0].mxu0
  %v159 = vadd.f32 0.0, %v158
  %v160 = vpop.f32.mrb[0].mxu0
  %v161 = vpop.f32.mrb[0].mxu0
  %v162 = vadd.f32 0.0, %v161
  %v163 = vpop.f32.mrb[0].mxu0
  %164 = vdwg.mxu0
  %v165 = vpack.c.bf16 %v154, %v151
  %v166 = vpack.c.bf16 %v162, %v159
  %v169 = vunpack.c.l.b16 %v165
  %v170 = vunpack.c.h.b16 %v165
  %v171 = vunpack.c.l.b16 %v166
  %v172 = vunpack.c.h.b16 %v166
  %v173 = vpack.c.b16 %v169, %v169
  %v174 = vpack.c.b16 %v170, %v170
  %v175 = vpack.c.b16 %v171, %v171
  %v176 = vpack.c.b16 %v172, %v172
  %vm181 = vcmask 257024
  %182 = vst.msk [vmem:[%s2] sm:$0xf] %vm181, %v173
  %183 = vst.msk [vmem:[%s2 + $0x4] sm:$0xf] %vm181, %v174
  %184 = vst.msk [vmem:[%s2 + $0x8] sm:$0xf] %vm181, %v175
  %185 = vst.msk [vmem:[%s2 + $0xc] sm:$0xf] %vm181, %v176
  %vm186 = vcmask 261120
  %v187 = vsel %vm186, %v151, 0.0
  %v188 = vsel %vm186, %v154, 0.0
  %v189 = vadd.f32 %v187, %v188
  %v190 = vsel %vm186, %v159, 0.0
  %v191 = vadd.f32 %v189, %v190
  %v192 = vsel %vm186, %v162, 0.0
  %v193 = vadd.f32 %v191, %v192
  %v194 = vrot.slane %v193, 4
  %v195 = vadd.f32 %v193, %v194
  %v196 = vrot.slane %v195, 2
  %v197 = vadd.f32 %v195, %v196
  %v198 = vrot.slane %v197, 1
  %v199 = vadd.f32 %v197, %v198
  %vm200 = vcmask 253952
  %201 = vst.msk [vmem:[%s3] sm:$0x1] %vm200, %v199
  %v202 = vmul.f32 %v151, %v151
  %v203 = vmul.f32 %v154, %v154
  %v204 = vmul.f32 %v159, %v159
  %v205 = vmul.f32 %v162, %v162
  %v206 = vsel %vm186, %v202, 0.0
  %v207 = vsel %vm186, %v203, 0.0
  %v208 = vadd.f32 %v206, %v207
  %v209 = vsel %vm186, %v204, 0.0
  %v210 = vadd.f32 %v208, %v209
  %v211 = vsel %vm186, %v205, 0.0
  %v212 = vadd.f32 %v210, %v211
  %v213 = vrot.slane %v212, 4
  %v214 = vadd.f32 %v212, %v213
  %v215 = vrot.slane %v214, 2
  %v216 = vadd.f32 %v214, %v215
  %v217 = vrot.slane %v216, 1
  %v218 = vadd.f32 %v216, %v217
  %219 = vst.msk [vmem:[%s4] sm:$0x1] %vm200, %v218
  // Predicated region
  $region10: #{spatial_prior_module_forward.20} parent=0 // pred_check
    _
  $region11: #{spatial_prior_module_forward.20} parent=0 // pred_check_branch
    %221 = sbr.rel (0) target = $region13
  $region12: #{spatial_prior_module_forward.20} parent=0 // pred_region
    _
  $region13: #{spatial_prior_module_forward.20} parent=0 // pred_fallthru
    _
  // Predicated region
  $region14: #{spatial_prior_module_forward.20} parent=0 // pred_check
    _
  $region15: #{spatial_prior_module_forward.20} parent=0 // pred_check_branch
    %223 = sbr.rel (0) target = $region17
  $region16: #{spatial_prior_module_forward.20} parent=0 // pred_region
    _
  $region17: #{spatial_prior_module_forward.20} parent=0 // pred_fallthru
    _
  // Predicated region
  $region18: #{spatial_prior_module_forward.20} parent=0 // pred_check
    _
  $region19: #{spatial_prior_module_forward.20} parent=0 // pred_check_branch
    %225 = sbr.rel (0) target = $region21
  $region20: #{spatial_prior_module_forward.20} parent=0 // pred_region
    _
  $region21: #{spatial_prior_module_forward.20} parent=0 // pred_fallthru
    _
  // Predicated region
  $region22: #{spatial_prior_module_forward.20} parent=0 // pred_check
    _
  $region23: #{spatial_prior_module_forward.20} parent=0 // pred_check_branch
    %227 = sbr.rel (0) target = $region25
  $region24: #{spatial_prior_module_forward.20} parent=0 // pred_region
    _
  $region25: #{spatial_prior_module_forward.20} parent=0 // pred_fallthru
    _
  // Predicated region
  $region26: #{spatial_prior_module_forward.20} parent=0 // pred_check
    _
  $region27: #{spatial_prior_module_forward.20} parent=0 // pred_check_branch
    %229 = sbr.rel (0) target = $region29
  $region28: #{spatial_prior_module_forward.20} parent=0 // pred_region
    _
  $region29: #{spatial_prior_module_forward.20} parent=0 // pred_fallthru
    _
  // Predicated region
  $region30: #{spatial_prior_module_forward.20} parent=0 // pred_check
    _
  $region31: #{spatial_prior_module_forward.20} parent=0 // pred_check_branch
    %231 = sbr.rel (0) target = $region33
  $region32: #{spatial_prior_module_forward.20} parent=0 // pred_region
    _
  $region33: #{spatial_prior_module_forward.20} parent=0 // pred_fallthru
    _

// kernel: spatial_prior_module_forward.19
$region0: #{spatial_prior_module_forward.19}
  #allocation0 [shape = 'u32[]', space=smem, size = 0x4, offset = 0x4, fixed_abs, tag = 'smem constant byte address 0x4 - core index']
  #allocation1 [shape = 'u32[144,128]{1,0:T(1,128)}', space=vmem, size = 0x12000, scoped, tag = 'internal scratch']
  %s0 = inlined_call_operand.vmem [shape: bf16[128,9,16], index: 0, kind: input, shape index: {}]
  %s1 = inlined_call_operand.vmem [shape: bf16[16,32], index: 1, kind: input, shape index: {}]
  %s2 = inlined_call_operand.vmem [shape: f32[1,32], index: 2, kind: input, shape index: {}]
  %s3 = inlined_call_operand.vmem [shape: bf16[128,16], index: 3, kind: output, shape index: {0}]
  %s4 = inlined_call_operand.hbm [shape: f32[128,32], index: 4, kind: output, shape index: {1}]
  %5 = xla_tuple %s3, %s4
  %s6 = sld [smem:[#allocation0]]
  $region30: #{spatial_prior_module_forward.19} parent=0
    _
  %s8 = ssub.s32 1, %s6
  %s9 = scalar_select 0, %s8, %s6
  $region1: #{spatial_prior_module_forward.19} parent=0
    #allocation2 [shape = 'u8[65536]{0}', space=vmem, size = 0x10000, scoped, tag = 'output window, operand 1, single buffered']
    #allocation3 [shape = 's32[1]{0}', space=sflag, size = 0x4, scoped, tag = 'scoped memory for spatial_prior_module_forward.19']
    %10 = vsyncpa [#allocation3], 0
    // Predicated region
    $region2: #{spatial_prior_module_forward.19} parent=1 // pred_check
      _
    $region3: #{spatial_prior_module_forward.19} parent=1 // pred_check_branch
      %12 = sbr.rel (0) target = $region5
    $region4: #{spatial_prior_module_forward.19} parent=1 // pred_region
      _
    $region5: #{spatial_prior_module_forward.19} parent=1 // pred_fallthru
      _
    // Predicated region
    $region6: #{spatial_prior_module_forward.19} parent=1 // pred_check
      _
    $region7: #{spatial_prior_module_forward.19} parent=1 // pred_check_branch
      %14 = sbr.rel (0) target = $region9
    $region8: #{spatial_prior_module_forward.19} parent=1 // pred_region
      _
    $region9: #{spatial_prior_module_forward.19} parent=1 // pred_fallthru
      _
    // Predicated region
    $region10: #{spatial_prior_module_forward.19} parent=1 // pred_check
      _
    $region11: #{spatial_prior_module_forward.19} parent=1 // pred_check_branch
      %16 = sbr.rel (0) target = $region13
    $region12: #{spatial_prior_module_forward.19} parent=1 // pred_region
      _
    $region13: #{spatial_prior_module_forward.19} parent=1 // pred_fallthru
      _
    %v18 = vld [vmem:[%s0] sm:$0xf]
    %v19 = vld [vmem:[%s0 + $0x4] sm:$0x1]
    %v20 = vld [vmem:[%s0 + $0x8] sm:$0xf]
    %v21 = vld [vmem:[%s0 + $0xc] sm:$0x1]
    %v22 = vld [vmem:[%s0 + $0x10] sm:$0xf]
    %v23 = vld [vmem:[%s0 + $0x14] sm:$0x1]
    %v24 = vld [vmem:[%s0 + $0x18] sm:$0xf]
    %v25 = vld [vmem:[%s0 + $0x1c] sm:$0x1]
    %v26 = vld [vmem:[%s0 + $0x20] sm:$0xf]
    %v27 = vld [vmem:[%s0 + $0x24] sm:$0x1]
    %v28 = vld [vmem:[%s0 + $0x28] sm:$0xf]
    %v29 = vld [vmem:[%s0 + $0x2c] sm:$0x1]
    %v30 = vld [vmem:[%s0 + $0x30] sm:$0xf]
    %v31 = vld [vmem:[%s0 + $0x34] sm:$0x1]
    %v32 = vld [vmem:[%s0 + $0x38] sm:$0xf]
    %v33 = vld [vmem:[%s0 + $0x3c] sm:$0x1]
    %v34 = vld [vmem:[%s0 + $0x40] sm:$0xf]
    %v35 = vld [vmem:[%s0 + $0x44] sm:$0x1]
    %v36 = vld [vmem:[%s0 + $0x48] sm:$0xf]
    %v37 = vld [vmem:[%s0 + $0x4c] sm:$0x1]
    %v38 = vld [vmem:[%s0 + $0x50] sm:$0xf]
    %v39 = vld [vmem:[%s0 + $0x54] sm:$0x1]
    %v40 = vld [vmem:[%s0 + $0x58] sm:$0xf]
    %v41 = vld [vmem:[%s0 + $0x5c] sm:$0x1]
    %v42 = vld [vmem:[%s0 + $0x60] sm:$0xf]
    %v43 = vld [vmem:[%s0 + $0x64] sm:$0x1]
    %v44 = vld [vmem:[%s0 + $0x68] sm:$0xf]
    %v45 = vld [vmem:[%s0 + $0x6c] sm:$0x1]
    %v46 = vld [vmem:[%s0 + $0x70] sm:$0xf]
    %v47 = vld [vmem:[%s0 + $0x74] sm:$0x1]
    %v48 = vld [vmem:[%s0 + $0x78] sm:$0xf]
    %v49 = vld [vmem:[%s0 + $0x7c] sm:$0x1]
    %v50 = vld [vmem:[%s0 + $0x80] sm:$0xf]
    %v51 = vld [vmem:[%s0 + $0x84] sm:$0x1]
    %v52 = vld [vmem:[%s0 + $0x88] sm:$0xf]
    %v53 = vld [vmem:[%s0 + $0x8c] sm:$0x1]
    %v54 = vld [vmem:[%s0 + $0x90] sm:$0xf]
    %v55 = vld [vmem:[%s0 + $0x94] sm:$0x1]
    %v56 = vld [vmem:[%s0 + $0x98] sm:$0xf]
    %v57 = vld [vmem:[%s0 + $0x9c] sm:$0x1]
    %v58 = vld [vmem:[%s0 + $0xa0] sm:$0xf]
    %v59 = vld [vmem:[%s0 + $0xa4] sm:$0x1]
    %v60 = vld [vmem:[%s0 + $0xa8] sm:$0xf]
    %v61 = vld [vmem:[%s0 + $0xac] sm:$0x1]
    %v62 = vld [vmem:[%s0 + $0xb0] sm:$0xf]
    %v63 = vld [vmem:[%s0 + $0xb4] sm:$0x1]
    %v64 = vld [vmem:[%s0 + $0xb8] sm:$0xf]
    %v65 = vld [vmem:[%s0 + $0xbc] sm:$0x1]
    %v66 = vld [vmem:[%s0 + $0xc0] sm:$0xf]
    %v67 = vld [vmem:[%s0 + $0xc4] sm:$0x1]
    %v68 = vld [vmem:[%s0 + $0xc8] sm:$0xf]
    %v69 = vld [vmem:[%s0 + $0xcc] sm:$0x1]
    %v70 = vld [vmem:[%s0 + $0xd0] sm:$0xf]
    %v71 = vld [vmem:[%s0 + $0xd4] sm:$0x1]
    %v72 = vld [vmem:[%s0 + $0xd8] sm:$0xf]
    %v73 = vld [vmem:[%s0 + $0xdc] sm:$0x1]
    %v74 = vld [vmem:[%s0 + $0xe0] sm:$0xf]
    %v75 = vld [vmem:[%s0 + $0xe4] sm:$0x1]
    %v76 = vld [vmem:[%s0 + $0xe8] sm:$0xf]
    %v77 = vld [vmem:[%s0 + $0xec] sm:$0x1]
    %v78 = vld [vmem:[%s0 + $0xf0] sm:$0xf]
    %v79 = vld [vmem:[%s0 + $0xf4] sm:$0x1]
    %v80 = vld [vmem:[%s0 + $0xf8] sm:$0xf]
    %v81 = vld [vmem:[%s0 + $0xfc] sm:$0x1]
    %v82 = vld [vmem:[%s0 + $0x100] sm:$0xf]
    %v83 = vld [vmem:[%s0 + $0x104] sm:$0x1]
    %v84 = vld [vmem:[%s0 + $0x108] sm:$0xf]
    %v85 = vld [vmem:[%s0 + $0x10c] sm:$0x1]
    %v86 = vld [vmem:[%s0 + $0x110] sm:$0xf]
    %v87 = vld [vmem:[%s0 + $0x114] sm:$0x1]
    %v88 = vld [vmem:[%s0 + $0x118] sm:$0xf]
    %v89 = vld [vmem:[%s0 + $0x11c] sm:$0x1]
    %v90 = vld [vmem:[%s0 + $0x120] sm:$0xf]
    %v91 = vld [vmem:[%s0 + $0x124] sm:$0x1]
    %v92 = vld [vmem:[%s0 + $0x128] sm:$0xf]
    %v93 = vld [vmem:[%s0 + $0x12c] sm:$0x1]
    %v94 = vld [vmem:[%s0 + $0x130] sm:$0xf]
    %v95 = vld [vmem:[%s0 + $0x134] sm:$0x1]
    %v96 = vld [vmem:[%s0 + $0x138] sm:$0xf]
    %v97 = vld [vmem:[%s0 + $0x13c] sm:$0x1]
    %v98 = vld [vmem:[%s0 + $0x140] sm:$0xf]
    %v99 = vld [vmem:[%s0 + $0x144] sm:$0x1]
    %v100 = vld [vmem:[%s0 + $0x148] sm:$0xf]
    %v101 = vld [vmem:[%s0 + $0x14c] sm:$0x1]
    %v102 = vld [vmem:[%s0 + $0x150] sm:$0xf]
    %v103 = vld [vmem:[%s0 + $0x154] sm:$0x1]
    %v104 = vld [vmem:[%s0 + $0x158] sm:$0xf]
    %v105 = vld [vmem:[%s0 + $0x15c] sm:$0x1]
    %v106 = vld [vmem:[%s0 + $0x160] sm:$0xf]
    %v107 = vld [vmem:[%s0 + $0x164] sm:$0x1]
    %v108 = vld [vmem:[%s0 + $0x168] sm:$0xf]
    %v109 = vld [vmem:[%s0 + $0x16c] sm:$0x1]
    %v110 = vld [vmem:[%s0 + $0x170] sm:$0xf]
    %v111 = vld [vmem:[%s0 + $0x174] sm:$0x1]
    %v112 = vld [vmem:[%s0 + $0x178] sm:$0xf]
    %v113 = vld [vmem:[%s0 + $0x17c] sm:$0x1]
    %v114 = vld [vmem:[%s0 + $0x180] sm:$0xf]
    %v115 = vld [vmem:[%s0 + $0x184] sm:$0x1]
    %v116 = vld [vmem:[%s0 + $0x188] sm:$0xf]
    %v117 = vld [vmem:[%s0 + $0x18c] sm:$0x1]
    %v118 = vld [vmem:[%s0 + $0x190] sm:$0xf]
    %v119 = vld [vmem:[%s0 + $0x194] sm:$0x1]
    %v120 = vld [vmem:[%s0 + $0x198] sm:$0xf]
    %v121 = vld [vmem:[%s0 + $0x19c] sm:$0x1]
    %v122 = vld [vmem:[%s0 + $0x1a0] sm:$0xf]
    %v123 = vld [vmem:[%s0 + $0x1a4] sm:$0x1]
    %v124 = vld [vmem:[%s0 + $0x1a8] sm:$0xf]
    %v125 = vld [vmem:[%s0 + $0x1ac] sm:$0x1]
    %v126 = vld [vmem:[%s0 + $0x1b0] sm:$0xf]
    %v127 = vld [vmem:[%s0 + $0x1b4] sm:$0x1]
    %v128 = vld [vmem:[%s0 + $0x1b8] sm:$0xf]
    %v129 = vld [vmem:[%s0 + $0x1bc] sm:$0x1]
    %v130 = vld [vmem:[%s0 + $0x1c0] sm:$0xf]
    %v131 = vld [vmem:[%s0 + $0x1c4] sm:$0x1]
    %v132 = vld [vmem:[%s0 + $0x1c8] sm:$0xf]
    %v133 = vld [vmem:[%s0 + $0x1cc] sm:$0x1]
    %v134 = vld [vmem:[%s0 + $0x1d0] sm:$0xf]
    %v135 = vld [vmem:[%s0 + $0x1d4] sm:$0x1]
    %v136 = vld [vmem:[%s0 + $0x1d8] sm:$0xf]
    %v137 = vld [vmem:[%s0 + $0x1dc] sm:$0x1]
    %v138 = vld [vmem:[%s0 + $0x1e0] sm:$0xf]
    %v139 = vld [vmem:[%s0 + $0x1e4] sm:$0x1]
    %v140 = vld [vmem:[%s0 + $0x1e8] sm:$0xf]
    %v141 = vld [vmem:[%s0 + $0x1ec] sm:$0x1]
    %v142 = vld [vmem:[%s0 + $0x1f0] sm:$0xf]
    %v143 = vld [vmem:[%s0 + $0x1f4] sm:$0x1]
    %v144 = vld [vmem:[%s0 + $0x1f8] sm:$0xf]
    %v145 = vld [vmem:[%s0 + $0x1fc] sm:$0x1]
    %v146 = vld [vmem:[%s0 + $0x200] sm:$0xf]
    %v147 = vld [vmem:[%s0 + $0x204] sm:$0x1]
    %v148 = vld [vmem:[%s0 + $0x208] sm:$0xf]
    %v149 = vld [vmem:[%s0 + $0x20c] sm:$0x1]
    %v150 = vld [vmem:[%s0 + $0x210] sm:$0xf]
    %v151 = vld [vmem:[%s0 + $0x214] sm:$0x1]
    %v152 = vld [vmem:[%s0 + $0x218] sm:$0xf]
    %v153 = vld [vmem:[%s0 + $0x21c] sm:$0x1]
    %v154 = vld [vmem:[%s0 + $0x220] sm:$0xf]
    %v155 = vld [vmem:[%s0 + $0x224] sm:$0x1]
    %v156 = vld [vmem:[%s0 + $0x228] sm:$0xf]
    %v157 = vld [vmem:[%s0 + $0x22c] sm:$0x1]
    %v158 = vld [vmem:[%s0 + $0x230] sm:$0xf]
    %v159 = vld [vmem:[%s0 + $0x234] sm:$0x1]
    %v160 = vld [vmem:[%s0 + $0x238] sm:$0xf]
    %v161 = vld [vmem:[%s0 + $0x23c] sm:$0x1]
    %v162 = vld [vmem:[%s0 + $0x240] sm:$0xf]
    %v163 = vld [vmem:[%s0 + $0x244] sm:$0x1]
    %v164 = vld [vmem:[%s0 + $0x248] sm:$0xf]
    %v165 = vld [vmem:[%s0 + $0x24c] sm:$0x1]
    %v166 = vld [vmem:[%s0 + $0x250] sm:$0xf]
    %v167 = vld [vmem:[%s0 + $0x254] sm:$0x1]
    %v168 = vld [vmem:[%s0 + $0x258] sm:$0xf]
    %v169 = vld [vmem:[%s0 + $0x25c] sm:$0x1]
    %v170 = vld [vmem:[%s0 + $0x260] sm:$0xf]
    %v171 = vld [vmem:[%s0 + $0x264] sm:$0x1]
    %v172 = vld [vmem:[%s0 + $0x268] sm:$0xf]
    %v173 = vld [vmem:[%s0 + $0x26c] sm:$0x1]
    %v174 = vld [vmem:[%s0 + $0x270] sm:$0xf]
    %v175 = vld [vmem:[%s0 + $0x274] sm:$0x1]
    %v176 = vld [vmem:[%s0 + $0x278] sm:$0xf]
    %v177 = vld [vmem:[%s0 + $0x27c] sm:$0x1]
    %v178 = vld [vmem:[%s0 + $0x280] sm:$0xf]
    %v179 = vld [vmem:[%s0 + $0x284] sm:$0x1]
    %v180 = vld [vmem:[%s0 + $0x288] sm:$0xf]
    %v181 = vld [vmem:[%s0 + $0x28c] sm:$0x1]
    %v182 = vld [vmem:[%s0 + $0x290] sm:$0xf]
    %v183 = vld [vmem:[%s0 + $0x294] sm:$0x1]
    %v184 = vld [vmem:[%s0 + $0x298] sm:$0xf]
    %v185 = vld [vmem:[%s0 + $0x29c] sm:$0x1]
    %v186 = vld [vmem:[%s0 + $0x2a0] sm:$0xf]
    %v187 = vld [vmem:[%s0 + $0x2a4] sm:$0x1]
    %v188 = vld [vmem:[%s0 + $0x2a8] sm:$0xf]
    %v189 = vld [vmem:[%s0 + $0x2ac] sm:$0x1]
    %v190 = vld [vmem:[%s0 + $0x2b0] sm:$0xf]
    %v191 = vld [vmem:[%s0 + $0x2b4] sm:$0x1]
    %v192 = vld [vmem:[%s0 + $0x2b8] sm:$0xf]
    %v193 = vld [vmem:[%s0 + $0x2bc] sm:$0x1]
    %v194 = vld [vmem:[%s0 + $0x2c0] sm:$0xf]
    %v195 = vld [vmem:[%s0 + $0x2c4] sm:$0x1]
    %v196 = vld [vmem:[%s0 + $0x2c8] sm:$0xf]
    %v197 = vld [vmem:[%s0 + $0x2cc] sm:$0x1]
    %v198 = vld [vmem:[%s0 + $0x2d0] sm:$0xf]
    %v199 = vld [vmem:[%s0 + $0x2d4] sm:$0x1]
    %v200 = vld [vmem:[%s0 + $0x2d8] sm:$0xf]
    %v201 = vld [vmem:[%s0 + $0x2dc] sm:$0x1]
    %v202 = vld [vmem:[%s0 + $0x2e0] sm:$0xf]
    %v203 = vld [vmem:[%s0 + $0x2e4] sm:$0x1]
    %v204 = vld [vmem:[%s0 + $0x2e8] sm:$0xf]
    %v205 = vld [vmem:[%s0 + $0x2ec] sm:$0x1]
    %v206 = vld [vmem:[%s0 + $0x2f0] sm:$0xf]
    %v207 = vld [vmem:[%s0 + $0x2f4] sm:$0x1]
    %v208 = vld [vmem:[%s0 + $0x2f8] sm:$0xf]
    %v209 = vld [vmem:[%s0 + $0x2fc] sm:$0x1]
    %v210 = vld [vmem:[%s0 + $0x300] sm:$0xf]
    %v211 = vld [vmem:[%s0 + $0x304] sm:$0x1]
    %v212 = vld [vmem:[%s0 + $0x308] sm:$0xf]
    %v213 = vld [vmem:[%s0 + $0x30c] sm:$0x1]
    %v214 = vld [vmem:[%s0 + $0x310] sm:$0xf]
    %v215 = vld [vmem:[%s0 + $0x314] sm:$0x1]
    %v216 = vld [vmem:[%s0 + $0x318] sm:$0xf]
    %v217 = vld [vmem:[%s0 + $0x31c] sm:$0x1]
    %v218 = vld [vmem:[%s0 + $0x320] sm:$0xf]
    %v219 = vld [vmem:[%s0 + $0x324] sm:$0x1]
    %v220 = vld [vmem:[%s0 + $0x328] sm:$0xf]
    %v221 = vld [vmem:[%s0 + $0x32c] sm:$0x1]
    %v222 = vld [vmem:[%s0 + $0x330] sm:$0xf]
    %v223 = vld [vmem:[%s0 + $0x334] sm:$0x1]
    %v224 = vld [vmem:[%s0 + $0x338] sm:$0xf]
    %v225 = vld [vmem:[%s0 + $0x33c] sm:$0x1]
    %v226 = vld [vmem:[%s0 + $0x340] sm:$0xf]
    %v227 = vld [vmem:[%s0 + $0x344] sm:$0x1]
    %v228 = vld [vmem:[%s0 + $0x348] sm:$0xf]
    %v229 = vld [vmem:[%s0 + $0x34c] sm:$0x1]
    %v230 = vld [vmem:[%s0 + $0x350] sm:$0xf]
    %v231 = vld [vmem:[%s0 + $0x354] sm:$0x1]
    %v232 = vld [vmem:[%s0 + $0x358] sm:$0xf]
    %v233 = vld [vmem:[%s0 + $0x35c] sm:$0x1]
    %v234 = vld [vmem:[%s0 + $0x360] sm:$0xf]
    %v235 = vld [vmem:[%s0 + $0x364] sm:$0x1]
    %v236 = vld [vmem:[%s0 + $0x368] sm:$0xf]
    %v237 = vld [vmem:[%s0 + $0x36c] sm:$0x1]
    %v238 = vld [vmem:[%s0 + $0x370] sm:$0xf]
    %v239 = vld [vmem:[%s0 + $0x374] sm:$0x1]
    %v240 = vld [vmem:[%s0 + $0x378] sm:$0xf]
    %v241 = vld [vmem:[%s0 + $0x37c] sm:$0x1]
    %v242 = vld [vmem:[%s0 + $0x380] sm:$0xf]
    %v243 = vld [vmem:[%s0 + $0x384] sm:$0x1]
    %v244 = vld [vmem:[%s0 + $0x388] sm:$0xf]
    %v245 = vld [vmem:[%s0 + $0x38c] sm:$0x1]
    %v246 = vld [vmem:[%s0 + $0x390] sm:$0xf]
    %v247 = vld [vmem:[%s0 + $0x394] sm:$0x1]
    %v248 = vld [vmem:[%s0 + $0x398] sm:$0xf]
    %v249 = vld [vmem:[%s0 + $0x39c] sm:$0x1]
    %v250 = vld [vmem:[%s0 + $0x3a0] sm:$0xf]
    %v251 = vld [vmem:[%s0 + $0x3a4] sm:$0x1]
    %v252 = vld [vmem:[%s0 + $0x3a8] sm:$0xf]
    %v253 = vld [vmem:[%s0 + $0x3ac] sm:$0x1]
    %v254 = vld [vmem:[%s0 + $0x3b0] sm:$0xf]
    %v255 = vld [vmem:[%s0 + $0x3b4] sm:$0x1]
    %v256 = vld [vmem:[%s0 + $0x3b8] sm:$0xf]
    %v257 = vld [vmem:[%s0 + $0x3bc] sm:$0x1]
    %v258 = vld [vmem:[%s0 + $0x3c0] sm:$0xf]
    %v259 = vld [vmem:[%s0 + $0x3c4] sm:$0x1]
    %v260 = vld [vmem:[%s0 + $0x3c8] sm:$0xf]
    %v261 = vld [vmem:[%s0 + $0x3cc] sm:$0x1]
    %v262 = vld [vmem:[%s0 + $0x3d0] sm:$0xf]
    %v263 = vld [vmem:[%s0 + $0x3d4] sm:$0x1]
    %v264 = vld [vmem:[%s0 + $0x3d8] sm:$0xf]
    %v265 = vld [vmem:[%s0 + $0x3dc] sm:$0x1]
    %v266 = vld [vmem:[%s0 + $0x3e0] sm:$0xf]
    %v267 = vld [vmem:[%s0 + $0x3e4] sm:$0x1]
    %v268 = vld [vmem:[%s0 + $0x3e8] sm:$0xf]
    %v269 = vld [vmem:[%s0 + $0x3ec] sm:$0x1]
    %v270 = vld [vmem:[%s0 + $0x3f0] sm:$0xf]
    %v271 = vld [vmem:[%s0 + $0x3f4] sm:$0x1]
    %v272 = vld [vmem:[%s0 + $0x3f8] sm:$0xf]
    %v273 = vld [vmem:[%s0 + $0x3fc] sm:$0x1]
    %v274 = vunpack.c.l.bf16 %v18
    %v275 = vunpack.c.l.bf16 %v19
    %v276 = vunpack.c.l.bf16 %v20
    %v277 = vunpack.c.l.bf16 %v21
    %v278 = vunpack.c.l.bf16 %v22
    %v279 = vunpack.c.l.bf16 %v23
    %v280 = vunpack.c.l.bf16 %v24
    %v281 = vunpack.c.l.bf16 %v25
    %v282 = vunpack.c.l.bf16 %v26
    %v283 = vunpack.c.l.bf16 %v27
    %v284 = vunpack.c.l.bf16 %v28
    %v285 = vunpack.c.l.bf16 %v29
    %v286 = vunpack.c.l.bf16 %v30
    %v287 = vunpack.c.l.bf16 %v31
    %v288 = vunpack.c.l.bf16 %v32
    %v289 = vunpack.c.l.bf16 %v33
    %v290 = vunpack.c.l.bf16 %v34
    %v291 = vunpack.c.l.bf16 %v35
    %v292 = vunpack.c.l.bf16 %v36
    %v293 = vunpack.c.l.bf16 %v37
    %v294 = vunpack.c.l.bf16 %v38
    %v295 = vunpack.c.l.bf16 %v39
    %v296 = vunpack.c.l.bf16 %v40
    %v297 = vunpack.c.l.bf16 %v41
    %v298 = vunpack.c.l.bf16 %v42
    %v299 = vunpack.c.l.bf16 %v43
    %v300 = vunpack.c.l.bf16 %v44
    %v301 = vunpack.c.l.bf16 %v45
    %v302 = vunpack.c.l.bf16 %v46
    %v303 = vunpack.c.l.bf16 %v47
    %v304 = vunpack.c.l.bf16 %v48
    %v305 = vunpack.c.l.bf16 %v49
    %v306 = vunpack.c.l.bf16 %v50
    %v307 = vunpack.c.l.bf16 %v51
    %v308 = vunpack.c.l.bf16 %v52
    %v309 = vunpack.c.l.bf16 %v53
    %v310 = vunpack.c.l.bf16 %v54
    %v311 = vunpack.c.l.bf16 %v55
    %v312 = vunpack.c.l.bf16 %v56
    %v313 = vunpack.c.l.bf16 %v57
    %v314 = vunpack.c.l.bf16 %v58
    %v315 = vunpack.c.l.bf16 %v59
    %v316 = vunpack.c.l.bf16 %v60
    %v317 = vunpack.c.l.bf16 %v61
    %v318 = vunpack.c.l.bf16 %v62
    %v319 = vunpack.c.l.bf16 %v63
    %v320 = vunpack.c.l.bf16 %v64
    %v321 = vunpack.c.l.bf16 %v65
    %v322 = vunpack.c.l.bf16 %v66
    %v323 = vunpack.c.l.bf16 %v67
    %v324 = vunpack.c.l.bf16 %v68
    %v325 = vunpack.c.l.bf16 %v69
    %v326 = vunpack.c.l.bf16 %v70
    %v327 = vunpack.c.l.bf16 %v71
    %v328 = vunpack.c.l.bf16 %v72
    %v329 = vunpack.c.l.bf16 %v73
    %v330 = vunpack.c.l.bf16 %v74
    %v331 = vunpack.c.l.bf16 %v75
    %v332 = vunpack.c.l.bf16 %v76
    %v333 = vunpack.c.l.bf16 %v77
    %v334 = vunpack.c.l.bf16 %v78
    %v335 = vunpack.c.l.bf16 %v79
    %v336 = vunpack.c.l.bf16 %v80
    %v337 = vunpack.c.l.bf16 %v81
    %v338 = vunpack.c.l.bf16 %v82
    %v339 = vunpack.c.l.bf16 %v83
    %v340 = vunpack.c.l.bf16 %v84
    %v341 = vunpack.c.l.bf16 %v85
    %v342 = vunpack.c.l.bf16 %v86
    %v343 = vunpack.c.l.bf16 %v87
    %v344 = vunpack.c.l.bf16 %v88
    %v345 = vunpack.c.l.bf16 %v89
    %v346 = vunpack.c.l.bf16 %v90
    %v347 = vunpack.c.l.bf16 %v91
    %v348 = vunpack.c.l.bf16 %v92
    %v349 = vunpack.c.l.bf16 %v93
    %v350 = vunpack.c.l.bf16 %v94
    %v351 = vunpack.c.l.bf16 %v95
    %v352 = vunpack.c.l.bf16 %v96
    %v353 = vunpack.c.l.bf16 %v97
    %v354 = vunpack.c.l.bf16 %v98
    %v355 = vunpack.c.l.bf16 %v99
    %v356 = vunpack.c.l.bf16 %v100
    %v357 = vunpack.c.l.bf16 %v101
    %v358 = vunpack.c.l.bf16 %v102
    %v359 = vunpack.c.l.bf16 %v103
    %v360 = vunpack.c.l.bf16 %v104
    %v361 = vunpack.c.l.bf16 %v105
    %v362 = vunpack.c.l.bf16 %v106
    %v363 = vunpack.c.l.bf16 %v107
    %v364 = vunpack.c.l.bf16 %v108
    %v365 = vunpack.c.l.bf16 %v109
    %v366 = vunpack.c.l.bf16 %v110
    %v367 = vunpack.c.l.bf16 %v111
    %v368 = vunpack.c.l.bf16 %v112
    %v369 = vunpack.c.l.bf16 %v113
    %v370 = vunpack.c.l.bf16 %v114
    %v371 = vunpack.c.l.bf16 %v115
    %v372 = vunpack.c.l.bf16 %v116
    %v373 = vunpack.c.l.bf16 %v117
    %v374 = vunpack.c.l.bf16 %v118
    %v375 = vunpack.c.l.bf16 %v119
    %v376 = vunpack.c.l.bf16 %v120
    %v377 = vunpack.c.l.bf16 %v121
    %v378 = vunpack.c.l.bf16 %v122
    %v379 = vunpack.c.l.bf16 %v123
    %v380 = vunpack.c.l.bf16 %v124
    %v381 = vunpack.c.l.bf16 %v125
    %v382 = vunpack.c.l.bf16 %v126
    %v383 = vunpack.c.l.bf16 %v127
    %v384 = vunpack.c.l.bf16 %v128
    %v385 = vunpack.c.l.bf16 %v129
    %v386 = vunpack.c.l.bf16 %v130
    %v387 = vunpack.c.l.bf16 %v131
    %v388 = vunpack.c.l.bf16 %v132
    %v389 = vunpack.c.l.bf16 %v133
    %v390 = vunpack.c.l.bf16 %v134
    %v391 = vunpack.c.l.bf16 %v135
    %v392 = vunpack.c.l.bf16 %v136
    %v393 = vunpack.c.l.bf16 %v137
    %v394 = vunpack.c.l.bf16 %v138
    %v395 = vunpack.c.l.bf16 %v139
    %v396 = vunpack.c.l.bf16 %v140
    %v397 = vunpack.c.l.bf16 %v141
    %v398 = vunpack.c.l.bf16 %v142
    %v399 = vunpack.c.l.bf16 %v143
    %v400 = vunpack.c.l.bf16 %v144
    %v401 = vunpack.c.l.bf16 %v145
    %v402 = vunpack.c.l.bf16 %v146
    %v403 = vunpack.c.l.bf16 %v147
    %v404 = vunpack.c.l.bf16 %v148
    %v405 = vunpack.c.l.bf16 %v149
    %v406 = vunpack.c.l.bf16 %v150
    %v407 = vunpack.c.l.bf16 %v151
    %v408 = vunpack.c.l.bf16 %v152
    %v409 = vunpack.c.l.bf16 %v153
    %v410 = vunpack.c.l.bf16 %v154
    %v411 = vunpack.c.l.bf16 %v155
    %v412 = vunpack.c.l.bf16 %v156
    %v413 = vunpack.c.l.bf16 %v157
    %v414 = vunpack.c.l.bf16 %v158
    %v415 = vunpack.c.l.bf16 %v159
    %v416 = vunpack.c.l.bf16 %v160
    %v417 = vunpack.c.l.bf16 %v161
    %v418 = vunpack.c.l.bf16 %v162
    %v419 = vunpack.c.l.bf16 %v163
    %v420 = vunpack.c.l.bf16 %v164
    %v421 = vunpack.c.l.bf16 %v165
    %v422 = vunpack.c.l.bf16 %v166
    %v423 = vunpack.c.l.bf16 %v167
    %v424 = vunpack.c.l.bf16 %v168
    %v425 = vunpack.c.l.bf16 %v169
    %v426 = vunpack.c.l.bf16 %v170
    %v427 = vunpack.c.l.bf16 %v171
    %v428 = vunpack.c.l.bf16 %v172
    %v429 = vunpack.c.l.bf16 %v173
    %v430 = vunpack.c.l.bf16 %v174
    %v431 = vunpack.c.l.bf16 %v175
    %v432 = vunpack.c.l.bf16 %v176
    %v433 = vunpack.c.l.bf16 %v177
    %v434 = vunpack.c.l.bf16 %v178
    %v435 = vunpack.c.l.bf16 %v179
    %v436 = vunpack.c.l.bf16 %v180
    %v437 = vunpack.c.l.bf16 %v181
    %v438 = vunpack.c.l.bf16 %v182
    %v439 = vunpack.c.l.bf16 %v183
    %v440 = vunpack.c.l.bf16 %v184
    %v441 = vunpack.c.l.bf16 %v185
    %v442 = vunpack.c.l.bf16 %v186
    %v443 = vunpack.c.l.bf16 %v187
    %v444 = vunpack.c.l.bf16 %v188
    %v445 = vunpack.c.l.bf16 %v189
    %v446 = vunpack.c.l.bf16 %v190
    %v447 = vunpack.c.l.bf16 %v191
    %v448 = vunpack.c.l.bf16 %v192
    %v449 = vunpack.c.l.bf16 %v193
    %v450 = vunpack.c.l.bf16 %v194
    %v451 = vunpack.c.l.bf16 %v195
    %v452 = vunpack.c.l.bf16 %v196
    %v453 = vunpack.c.l.bf16 %v197
    %v454 = vunpack.c.l.bf16 %v198
    %v455 = vunpack.c.l.bf16 %v199
    %v456 = vunpack.c.l.bf16 %v200
    %v457 = vunpack.c.l.bf16 %v201
    %v458 = vunpack.c.l.bf16 %v202
    %v459 = vunpack.c.l.bf16 %v203
    %v460 = vunpack.c.l.bf16 %v204
    %v461 = vunpack.c.l.bf16 %v205
    %v462 = vunpack.c.l.bf16 %v206
    %v463 = vunpack.c.l.bf16 %v207
    %v464 = vunpack.c.l.bf16 %v208
    %v465 = vunpack.c.l.bf16 %v209
    %v466 = vunpack.c.l.bf16 %v210
    %v467 = vunpack.c.l.bf16 %v211
    %v468 = vunpack.c.l.bf16 %v212
    %v469 = vunpack.c.l.bf16 %v213
    %v470 = vunpack.c.l.bf16 %v214
    %v471 = vunpack.c.l.bf16 %v215
    %v472 = vunpack.c.l.bf16 %v216
    %v473 = vunpack.c.l.bf16 %v217
    %v474 = vunpack.c.l.bf16 %v218
    %v475 = vunpack.c.l.bf16 %v219
    %v476 = vunpack.c.l.bf16 %v220
    %v477 = vunpack.c.l.bf16 %v221
    %v478 = vunpack.c.l.bf16 %v222
    %v479 = vunpack.c.l.bf16 %v223
    %v480 = vunpack.c.l.bf16 %v224
    %v481 = vunpack.c.l.bf16 %v225
    %v482 = vunpack.c.l.bf16 %v226
    %v483 = vunpack.c.l.bf16 %v227
    %v484 = vunpack.c.l.bf16 %v228
    %v485 = vunpack.c.l.bf16 %v229
    %v486 = vunpack.c.l.bf16 %v230
    %v487 = vunpack.c.l.bf16 %v231
    %v488 = vunpack.c.l.bf16 %v232
    %v489 = vunpack.c.l.bf16 %v233
    %v490 = vunpack.c.l.bf16 %v234
    %v491 = vunpack.c.l.bf16 %v235
    %v492 = vunpack.c.l.bf16 %v236
    %v493 = vunpack.c.l.bf16 %v237
    %v494 = vunpack.c.l.bf16 %v238
    %v495 = vunpack.c.l.bf16 %v239
    %v496 = vunpack.c.l.bf16 %v240
    %v497 = vunpack.c.l.bf16 %v241
    %v498 = vunpack.c.l.bf16 %v242
    %v499 = vunpack.c.l.bf16 %v243
    %v500 = vunpack.c.l.bf16 %v244
    %v501 = vunpack.c.l.bf16 %v245
    %v502 = vunpack.c.l.bf16 %v246
    %v503 = vunpack.c.l.bf16 %v247
    %v504 = vunpack.c.l.bf16 %v248
    %v505 = vunpack.c.l.bf16 %v249
    %v506 = vunpack.c.l.bf16 %v250
    %v507 = vunpack.c.l.bf16 %v251
    %v508 = vunpack.c.l.bf16 %v252
    %v509 = vunpack.c.l.bf16 %v253
    %v510 = vunpack.c.l.bf16 %v254
    %v511 = vunpack.c.l.bf16 %v255
    %v512 = vunpack.c.l.bf16 %v256
    %v513 = vunpack.c.l.bf16 %v257
    %v514 = vunpack.c.l.bf16 %v258
    %v515 = vunpack.c.l.bf16 %v259
    %v516 = vunpack.c.l.bf16 %v260
    %v517 = vunpack.c.l.bf16 %v261
    %v518 = vunpack.c.l.bf16 %v262
    %v519 = vunpack.c.l.bf16 %v263
    %v520 = vunpack.c.l.bf16 %v264
    %v521 = vunpack.c.l.bf16 %v265
    %v522 = vunpack.c.l.bf16 %v266
    %v523 = vunpack.c.l.bf16 %v267
    %v524 = vunpack.c.l.bf16 %v268
    %v525 = vunpack.c.l.bf16 %v269
    %v526 = vunpack.c.l.bf16 %v270
    %v527 = vunpack.c.l.bf16 %v271
    %v528 = vunpack.c.l.bf16 %v272
    %v529 = vunpack.c.l.bf16 %v273
    %vm530 = vcmask 130048
    %v531 = vsel %vm530, %v274, -inf
    %vm532 = vcmask 122880
    %v533 = vsel %vm532, %v275, -inf
    %v534 = vmax.f32 %v531, %v533
    %v535 = vrot.slane %v534, 4
    %v536 = vmax.f32 %v534, %v535
    %v537 = vrot.slane %v536, 2
    %v538 = vmax.f32 %v536, %v537
    %v539 = vrot.slane %v538, 1
    %v540 = vmax.f32 %v538, %v539
    %v541 = vsel %vm530, %v276, -inf
    %v542 = vsel %vm532, %v277, -inf
    %v543 = vmax.f32 %v541, %v542
    %v544 = vrot.slane %v543, 4
    %v545 = vmax.f32 %v543, %v544
    %v546 = vrot.slane %v545, 2
    %v547 = vmax.f32 %v545, %v546
    %v548 = vrot.slane %v547, 1
    %v549 = vmax.f32 %v547, %v548
    %v550 = vsel %vm530, %v278, -inf
    %v551 = vsel %vm532, %v279, -inf
    %v552 = vmax.f32 %v550, %v551
    %v553 = vrot.slane %v552, 4
    %v554 = vmax.f32 %v552, %v553
    %v555 = vrot.slane %v554, 2
    %v556 = vmax.f32 %v554, %v555
    %v557 = vrot.slane %v556, 1
    %v558 = vmax.f32 %v556, %v557
    %v559 = vsel %vm530, %v280, -inf
    %v560 = vsel %vm532, %v281, -inf
    %v561 = vmax.f32 %v559, %v560
    %v562 = vrot.slane %v561, 4
    %v563 = vmax.f32 %v561, %v562
    %v564 = vrot.slane %v563, 2
    %v565 = vmax.f32 %v563, %v564
    %v566 = vrot.slane %v565, 1
    %v567 = vmax.f32 %v565, %v566
    %v568 = vsel %vm530, %v282, -inf
    %v569 = vsel %vm532, %v283, -inf
    %v570 = vmax.f32 %v568, %v569
    %v571 = vrot.slane %v570, 4
    %v572 = vmax.f32 %v570, %v571
    %v573 = vrot.slane %v572, 2
    %v574 = vmax.f32 %v572, %v573
    %v575 = vrot.slane %v574, 1
    %v576 = vmax.f32 %v574, %v575
    %v577 = vsel %vm530, %v284, -inf
    %v578 = vsel %vm532, %v285, -inf
    %v579 = vmax.f32 %v577, %v578
    %v580 = vrot.slane %v579, 4
    %v581 = vmax.f32 %v579, %v580
    %v582 = vrot.slane %v581, 2
    %v583 = vmax.f32 %v581, %v582
    %v584 = vrot.slane %v583, 1
    %v585 = vmax.f32 %v583, %v584
    %v586 = vsel %vm530, %v286, -inf
    %v587 = vsel %vm532, %v287, -inf
    %v588 = vmax.f32 %v586, %v587
    %v589 = vrot.slane %v588, 4
    %v590 = vmax.f32 %v588, %v589
    %v591 = vrot.slane %v590, 2
    %v592 = vmax.f32 %v590, %v591
    %v593 = vrot.slane %v592, 1
    %v594 = vmax.f32 %v592, %v593
    %v595 = vsel %vm530, %v288, -inf
    %v596 = vsel %vm532, %v289, -inf
    %v597 = vmax.f32 %v595, %v596
    %v598 = vrot.slane %v597, 4
    %v599 = vmax.f32 %v597, %v598
    %v600 = vrot.slane %v599, 2
    %v601 = vmax.f32 %v599, %v600
    %v602 = vrot.slane %v601, 1
    %v603 = vmax.f32 %v601, %v602
    %v604 = vsel %vm530, %v290, -inf
    %v605 = vsel %vm532, %v291, -inf
    %v606 = vmax.f32 %v604, %v605
    %v607 = vrot.slane %v606, 4
    %v608 = vmax.f32 %v606, %v607
    %v609 = vrot.slane %v608, 2
    %v610 = vmax.f32 %v608, %v609
    %v611 = vrot.slane %v610, 1
    %v612 = vmax.f32 %v610, %v611
    %v613 = vsel %vm530, %v292, -inf
    %v614 = vsel %vm532, %v293, -inf
    %v615 = vmax.f32 %v613, %v614
    %v616 = vrot.slane %v615, 4
    %v617 = vmax.f32 %v615, %v616
    %v618 = vrot.slane %v617, 2
    %v619 = vmax.f32 %v617, %v618
    %v620 = vrot.slane %v619, 1
    %v621 = vmax.f32 %v619, %v620
    %v622 = vsel %vm530, %v294, -inf
    %v623 = vsel %vm532, %v295, -inf
    %v624 = vmax.f32 %v622, %v623
    %v625 = vrot.slane %v624, 4
    %v626 = vmax.f32 %v624, %v625
    %v627 = vrot.slane %v626, 2
    %v628 = vmax.f32 %v626, %v627
    %v629 = vrot.slane %v628, 1
    %v630 = vmax.f32 %v628, %v629
    %v631 = vsel %vm530, %v296, -inf
    %v632 = vsel %vm532, %v297, -inf
    %v633 = vmax.f32 %v631, %v632
    %v634 = vrot.slane %v633, 4
    %v635 = vmax.f32 %v633, %v634
    %v636 = vrot.slane %v635, 2
    %v637 = vmax.f32 %v635, %v636
    %v638 = vrot.slane %v637, 1
    %v639 = vmax.f32 %v637, %v638
    %v640 = vsel %vm530, %v298, -inf
    %v641 = vsel %vm532, %v299, -inf
    %v642 = vmax.f32 %v640, %v641
    %v643 = vrot.slane %v642, 4
    %v644 = vmax.f32 %v642, %v643
    %v645 = vrot.slane %v644, 2
    %v646 = vmax.f32 %v644, %v645
    %v647 = vrot.slane %v646, 1
    %v648 = vmax.f32 %v646, %v647
    %v649 = vsel %vm530, %v300, -inf
    %v650 = vsel %vm532, %v301, -inf
    %v651 = vmax.f32 %v649, %v650
    %v652 = vrot.slane %v651, 4
    %v653 = vmax.f32 %v651, %v652
    %v654 = vrot.slane %v653, 2
    %v655 = vmax.f32 %v653, %v654
    %v656 = vrot.slane %v655, 1
    %v657 = vmax.f32 %v655, %v656
    %v658 = vsel %vm530, %v302, -inf
    %v659 = vsel %vm532, %v303, -inf
    %v660 = vmax.f32 %v658, %v659
    %v661 = vrot.slane %v660, 4
    %v662 = vmax.f32 %v660, %v661
    %v663 = vrot.slane %v662, 2
    %v664 = vmax.f32 %v662, %v663
    %v665 = vrot.slane %v664, 1
    %v666 = vmax.f32 %v664, %v665
    %v667 = vsel %vm530, %v304, -inf
    %v668 = vsel %vm532, %v305, -inf
    %v669 = vmax.f32 %v667, %v668
    %v670 = vrot.slane %v669, 4
    %v671 = vmax.f32 %v669, %v670
    %v672 = vrot.slane %v671, 2
    %v673 = vmax.f32 %v671, %v672
    %v674 = vrot.slane %v673, 1
    %v675 = vmax.f32 %v673, %v674
    %v676 = vsel %vm530, %v306, -inf
    %v677 = vsel %vm532, %v307, -inf
    %v678 = vmax.f32 %v676, %v677
    %v679 = vrot.slane %v678, 4
    %v680 = vmax.f32 %v678, %v679
    %v681 = vrot.slane %v680, 2
    %v682 = vmax.f32 %v680, %v681
    %v683 = vrot.slane %v682, 1
    %v684 = vmax.f32 %v682, %v683
    %v685 = vsel %vm530, %v308, -inf
    %v686 = vsel %vm532, %v309, -inf
    %v687 = vmax.f32 %v685, %v686
    %v688 = vrot.slane %v687, 4
    %v689 = vmax.f32 %v687, %v688
    %v690 = vrot.slane %v689, 2
    %v691 = vmax.f32 %v689, %v690
    %v692 = vrot.slane %v691, 1
    %v693 = vmax.f32 %v691, %v692
    %v694 = vsel %vm530, %v310, -inf
    %v695 = vsel %vm532, %v311, -inf
    %v696 = vmax.f32 %v694, %v695
    %v697 = vrot.slane %v696, 4
    %v698 = vmax.f32 %v696, %v697
    %v699 = vrot.slane %v698, 2
    %v700 = vmax.f32 %v698, %v699
    %v701 = vrot.slane %v700, 1
    %v702 = vmax.f32 %v700, %v701
    %v703 = vsel %vm530, %v312, -inf
    %v704 = vsel %vm532, %v313, -inf
    %v705 = vmax.f32 %v703, %v704
    %v706 = vrot.slane %v705, 4
    %v707 = vmax.f32 %v705, %v706
    %v708 = vrot.slane %v707, 2
    %v709 = vmax.f32 %v707, %v708
    %v710 = vrot.slane %v709, 1
    %v711 = vmax.f32 %v709, %v710
    %v712 = vsel %vm530, %v314, -inf
    %v713 = vsel %vm532, %v315, -inf
    %v714 = vmax.f32 %v712, %v713
    %v715 = vrot.slane %v714, 4
    %v716 = vmax.f32 %v714, %v715
    %v717 = vrot.slane %v716, 2
    %v718 = vmax.f32 %v716, %v717
    %v719 = vrot.slane %v718, 1
    %v720 = vmax.f32 %v718, %v719
    %v721 = vsel %vm530, %v316, -inf
    %v722 = vsel %vm532, %v317, -inf
    %v723 = vmax.f32 %v721, %v722
    %v724 = vrot.slane %v723, 4
    %v725 = vmax.f32 %v723, %v724
    %v726 = vrot.slane %v725, 2
    %v727 = vmax.f32 %v725, %v726
    %v728 = vrot.slane %v727, 1
    %v729 = vmax.f32 %v727, %v728
    %v730 = vsel %vm530, %v318, -inf
    %v731 = vsel %vm532, %v319, -inf
    %v732 = vmax.f32 %v730, %v731
    %v733 = vrot.slane %v732, 4
    %v734 = vmax.f32 %v732, %v733
    %v735 = vrot.slane %v734, 2
    %v736 = vmax.f32 %v734, %v735
    %v737 = vrot.slane %v736, 1
    %v738 = vmax.f32 %v736, %v737
    %v739 = vsel %vm530, %v320, -inf
    %v740 = vsel %vm532, %v321, -inf
    %v741 = vmax.f32 %v739, %v740
    %v742 = vrot.slane %v741, 4
    %v743 = vmax.f32 %v741, %v742
    %v744 = vrot.slane %v743, 2
    %v745 = vmax.f32 %v743, %v744
    %v746 = vrot.slane %v745, 1
    %v747 = vmax.f32 %v745, %v746
    %v748 = vsel %vm530, %v322, -inf
    %v749 = vsel %vm532, %v323, -inf
    %v750 = vmax.f32 %v748, %v749
    %v751 = vrot.slane %v750, 4
    %v752 = vmax.f32 %v750, %v751
    %v753 = vrot.slane %v752, 2
    %v754 = vmax.f32 %v752, %v753
    %v755 = vrot.slane %v754, 1
    %v756 = vmax.f32 %v754, %v755
    %v757 = vsel %vm530, %v324, -inf
    %v758 = vsel %vm532, %v325, -inf
    %v759 = vmax.f32 %v757, %v758
    %v760 = vrot.slane %v759, 4
    %v761 = vmax.f32 %v759, %v760
    %v762 = vrot.slane %v761, 2
    %v763 = vmax.f32 %v761, %v762
    %v764 = vrot.slane %v763, 1
    %v765 = vmax.f32 %v763, %v764
    %v766 = vsel %vm530, %v326, -inf
    %v767 = vsel %vm532, %v327, -inf
    %v768 = vmax.f32 %v766, %v767
    %v769 = vrot.slane %v768, 4
    %v770 = vmax.f32 %v768, %v769
    %v771 = vrot.slane %v770, 2
    %v772 = vmax.f32 %v770, %v771
    %v773 = vrot.slane %v772, 1
    %v774 = vmax.f32 %v772, %v773
    %v775 = vsel %vm530, %v328, -inf
    %v776 = vsel %vm532, %v329, -inf
    %v777 = vmax.f32 %v775, %v776
    %v778 = vrot.slane %v777, 4
    %v779 = vmax.f32 %v777, %v778
    %v780 = vrot.slane %v779, 2
    %v781 = vmax.f32 %v779, %v780
    %v782 = vrot.slane %v781, 1
    %v783 = vmax.f32 %v781, %v782
    %v784 = vsel %vm530, %v330, -inf
    %v785 = vsel %vm532, %v331, -inf
    %v786 = vmax.f32 %v784, %v785
    %v787 = vrot.slane %v786, 4
    %v788 = vmax.f32 %v786, %v787
    %v789 = vrot.slane %v788, 2
    %v790 = vmax.f32 %v788, %v789
    %v791 = vrot.slane %v790, 1
    %v792 = vmax.f32 %v790, %v791
    %v793 = vsel %vm530, %v332, -inf
    %v794 = vsel %vm532, %v333, -inf
    %v795 = vmax.f32 %v793, %v794
    %v796 = vrot.slane %v795, 4
    %v797 = vmax.f32 %v795, %v796
    %v798 = vrot.slane %v797, 2
    %v799 = vmax.f32 %v797, %v798
    %v800 = vrot.slane %v799, 1
    %v801 = vmax.f32 %v799, %v800
    %v802 = vsel %vm530, %v334, -inf
    %v803 = vsel %vm532, %v335, -inf
    %v804 = vmax.f32 %v802, %v803
    %v805 = vrot.slane %v804, 4
    %v806 = vmax.f32 %v804, %v805
    %v807 = vrot.slane %v806, 2
    %v808 = vmax.f32 %v806, %v807
    %v809 = vrot.slane %v808, 1
    %v810 = vmax.f32 %v808, %v809
    %v811 = vsel %vm530, %v336, -inf
    %v812 = vsel %vm532, %v337, -inf
    %v813 = vmax.f32 %v811, %v812
    %v814 = vrot.slane %v813, 4
    %v815 = vmax.f32 %v813, %v814
    %v816 = vrot.slane %v815, 2
    %v817 = vmax.f32 %v815, %v816
    %v818 = vrot.slane %v817, 1
    %v819 = vmax.f32 %v817, %v818
    %v820 = vsel %vm530, %v338, -inf
    %v821 = vsel %vm532, %v339, -inf
    %v822 = vmax.f32 %v820, %v821
    %v823 = vrot.slane %v822, 4
    %v824 = vmax.f32 %v822, %v823
    %v825 = vrot.slane %v824, 2
    %v826 = vmax.f32 %v824, %v825
    %v827 = vrot.slane %v826, 1
    %v828 = vmax.f32 %v826, %v827
    %v829 = vsel %vm530, %v340, -inf
    %v830 = vsel %vm532, %v341, -inf
    %v831 = vmax.f32 %v829, %v830
    %v832 = vrot.slane %v831, 4
    %v833 = vmax.f32 %v831, %v832
    %v834 = vrot.slane %v833, 2
    %v835 = vmax.f32 %v833, %v834
    %v836 = vrot.slane %v835, 1
    %v837 = vmax.f32 %v835, %v836
    %v838 = vsel %vm530, %v342, -inf
    %v839 = vsel %vm532, %v343, -inf
    %v840 = vmax.f32 %v838, %v839
    %v841 = vrot.slane %v840, 4
    %v842 = vmax.f32 %v840, %v841
    %v843 = vrot.slane %v842, 2
    %v844 = vmax.f32 %v842, %v843
    %v845 = vrot.slane %v844, 1
    %v846 = vmax.f32 %v844, %v845
    %v847 = vsel %vm530, %v344, -inf
    %v848 = vsel %vm532, %v345, -inf
    %v849 = vmax.f32 %v847, %v848
    %v850 = vrot.slane %v849, 4
    %v851 = vmax.f32 %v849, %v850
    %v852 = vrot.slane %v851, 2
    %v853 = vmax.f32 %v851, %v852
    %v854 = vrot.slane %v853, 1
    %v855 = vmax.f32 %v853, %v854
    %v856 = vsel %vm530, %v346, -inf
    %v857 = vsel %vm532, %v347, -inf
    %v858 = vmax.f32 %v856, %v857
    %v859 = vrot.slane %v858, 4
    %v860 = vmax.f32 %v858, %v859
    %v861 = vrot.slane %v860, 2
    %v862 = vmax.f32 %v860, %v861
    %v863 = vrot.slane %v862, 1
    %v864 = vmax.f32 %v862, %v863
    %v865 = vsel %vm530, %v348, -inf
    %v866 = vsel %vm532, %v349, -inf
    %v867 = vmax.f32 %v865, %v866
    %v868 = vrot.slane %v867, 4
    %v869 = vmax.f32 %v867, %v868
    %v870 = vrot.slane %v869, 2
    %v871 = vmax.f32 %v869, %v870
    %v872 = vrot.slane %v871, 1
    %v873 = vmax.f32 %v871, %v872
    %v874 = vsel %vm530, %v350, -inf
    %v875 = vsel %vm532, %v351, -inf
    %v876 = vmax.f32 %v874, %v875
    %v877 = vrot.slane %v876, 4
    %v878 = vmax.f32 %v876, %v877
    %v879 = vrot.slane %v878, 2
    %v880 = vmax.f32 %v878, %v879
    %v881 = vrot.slane %v880, 1
    %v882 = vmax.f32 %v880, %v881
    %v883 = vsel %vm530, %v352, -inf
    %v884 = vsel %vm532, %v353, -inf
    %v885 = vmax.f32 %v883, %v884
    %v886 = vrot.slane %v885, 4
    %v887 = vmax.f32 %v885, %v886
    %v888 = vrot.slane %v887, 2
    %v889 = vmax.f32 %v887, %v888
    %v890 = vrot.slane %v889, 1
    %v891 = vmax.f32 %v889, %v890
    %v892 = vsel %vm530, %v354, -inf
    %v893 = vsel %vm532, %v355, -inf
    %v894 = vmax.f32 %v892, %v893
    %v895 = vrot.slane %v894, 4
    %v896 = vmax.f32 %v894, %v895
    %v897 = vrot.slane %v896, 2
    %v898 = vmax.f32 %v896, %v897
    %v899 = vrot.slane %v898, 1
    %v900 = vmax.f32 %v898, %v899
    %v901 = vsel %vm530, %v356, -inf
    %v902 = vsel %vm532, %v357, -inf
    %v903 = vmax.f32 %v901, %v902
    %v904 = vrot.slane %v903, 4
    %v905 = vmax.f32 %v903, %v904
    %v906 = vrot.slane %v905, 2
    %v907 = vmax.f32 %v905, %v906
    %v908 = vrot.slane %v907, 1
    %v909 = vmax.f32 %v907, %v908
    %v910 = vsel %vm530, %v358, -inf
    %v911 = vsel %vm532, %v359, -inf
    %v912 = vmax.f32 %v910, %v911
    %v913 = vrot.slane %v912, 4
    %v914 = vmax.f32 %v912, %v913
    %v915 = vrot.slane %v914, 2
    %v916 = vmax.f32 %v914, %v915
    %v917 = vrot.slane %v916, 1
    %v918 = vmax.f32 %v916, %v917
    %v919 = vsel %vm530, %v360, -inf
    %v920 = vsel %vm532, %v361, -inf
    %v921 = vmax.f32 %v919, %v920
    %v922 = vrot.slane %v921, 4
    %v923 = vmax.f32 %v921, %v922
    %v924 = vrot.slane %v923, 2
    %v925 = vmax.f32 %v923, %v924
    %v926 = vrot.slane %v925, 1
    %v927 = vmax.f32 %v925, %v926
    %v928 = vsel %vm530, %v362, -inf
    %v929 = vsel %vm532, %v363, -inf
    %v930 = vmax.f32 %v928, %v929
    %v931 = vrot.slane %v930, 4
    %v932 = vmax.f32 %v930, %v931
    %v933 = vrot.slane %v932, 2
    %v934 = vmax.f32 %v932, %v933
    %v935 = vrot.slane %v934, 1
    %v936 = vmax.f32 %v934, %v935
    %v937 = vsel %vm530, %v364, -inf
    %v938 = vsel %vm532, %v365, -inf
    %v939 = vmax.f32 %v937, %v938
    %v940 = vrot.slane %v939, 4
    %v941 = vmax.f32 %v939, %v940
    %v942 = vrot.slane %v941, 2
    %v943 = vmax.f32 %v941, %v942
    %v944 = vrot.slane %v943, 1
    %v945 = vmax.f32 %v943, %v944
    %v946 = vsel %vm530, %v366, -inf
    %v947 = vsel %vm532, %v367, -inf
    %v948 = vmax.f32 %v946, %v947
    %v949 = vrot.slane %v948, 4
    %v950 = vmax.f32 %v948, %v949
    %v951 = vrot.slane %v950, 2
    %v952 = vmax.f32 %v950, %v951
    %v953 = vrot.slane %v952, 1
    %v954 = vmax.f32 %v952, %v953
    %v955 = vsel %vm530, %v368, -inf
    %v956 = vsel %vm532, %v369, -inf
    %v957 = vmax.f32 %v955, %v956
    %v958 = vrot.slane %v957, 4
    %v959 = vmax.f32 %v957, %v958
    %v960 = vrot.slane %v959, 2
    %v961 = vmax.f32 %v959, %v960
    %v962 = vrot.slane %v961, 1
    %v963 = vmax.f32 %v961, %v962
    %v964 = vsel %vm530, %v370, -inf
    %v965 = vsel %vm532, %v371, -inf
    %v966 = vmax.f32 %v964, %v965
    %v967 = vrot.slane %v966, 4
    %v968 = vmax.f32 %v966, %v967
    %v969 = vrot.slane %v968, 2
    %v970 = vmax.f32 %v968, %v969
    %v971 = vrot.slane %v970, 1
    %v972 = vmax.f32 %v970, %v971
    %v973 = vsel %vm530, %v372, -inf
    %v974 = vsel %vm532, %v373, -inf
    %v975 = vmax.f32 %v973, %v974
    %v976 = vrot.slane %v975, 4
    %v977 = vmax.f32 %v975, %v976
    %v978 = vrot.slane %v977, 2
    %v979 = vmax.f32 %v977, %v978
    %v980 = vrot.slane %v979, 1
    %v981 = vmax.f32 %v979, %v980
    %v982 = vsel %vm530, %v374, -inf
    %v983 = vsel %vm532, %v375, -inf
    %v984 = vmax.f32 %v982, %v983
    %v985 = vrot.slane %v984, 4
    %v986 = vmax.f32 %v984, %v985
    %v987 = vrot.slane %v986, 2
    %v988 = vmax.f32 %v986, %v987
    %v989 = vrot.slane %v988, 1
    %v990 = vmax.f32 %v988, %v989
    %v991 = vsel %vm530, %v376, -inf
    %v992 = vsel %vm532, %v377, -inf
    %v993 = vmax.f32 %v991, %v992
    %v994 = vrot.slane %v993, 4
    %v995 = vmax.f32 %v993, %v994
    %v996 = vrot.slane %v995, 2
    %v997 = vmax.f32 %v995, %v996
    %v998 = vrot.slane %v997, 1
    %v999 = vmax.f32 %v997, %v998
    %v1000 = vsel %vm530, %v378, -inf
    %v1001 = vsel %vm532, %v379, -inf
    %v1002 = vmax.f32 %v1000, %v1001
    %v1003 = vrot.slane %v1002, 4
    %v1004 = vmax.f32 %v1002, %v1003
    %v1005 = vrot.slane %v1004, 2
    %v1006 = vmax.f32 %v1004, %v1005
    %v1007 = vrot.slane %v1006, 1
    %v1008 = vmax.f32 %v1006, %v1007
    %v1009 = vsel %vm530, %v380, -inf
    %v1010 = vsel %vm532, %v381, -inf
    %v1011 = vmax.f32 %v1009, %v1010
    %v1012 = vrot.slane %v1011, 4
    %v1013 = vmax.f32 %v1011, %v1012
    %v1014 = vrot.slane %v1013, 2
    %v1015 = vmax.f32 %v1013, %v1014
    %v1016 = vrot.slane %v1015, 1
    %v1017 = vmax.f32 %v1015, %v1016
    %v1018 = vsel %vm530, %v382, -inf
    %v1019 = vsel %vm532, %v383, -inf
    %v1020 = vmax.f32 %v1018, %v1019
    %v1021 = vrot.slane %v1020, 4
    %v1022 = vmax.f32 %v1020, %v1021
    %v1023 = vrot.slane %v1022, 2
    %v1024 = vmax.f32 %v1022, %v1023
    %v1025 = vrot.slane %v1024, 1
    %v1026 = vmax.f32 %v1024, %v1025
    %v1027 = vsel %vm530, %v384, -inf
    %v1028 = vsel %vm532, %v385, -inf
    %v1029 = vmax.f32 %v1027, %v1028
    %v1030 = vrot.slane %v1029, 4
    %v1031 = vmax.f32 %v1029, %v1030
    %v1032 = vrot.slane %v1031, 2
    %v1033 = vmax.f32 %v1031, %v1032
    %v1034 = vrot.slane %v1033, 1
    %v1035 = vmax.f32 %v1033, %v1034
    %v1036 = vsel %vm530, %v386, -inf
    %v1037 = vsel %vm532, %v387, -inf
    %v1038 = vmax.f32 %v1036, %v1037
    %v1039 = vrot.slane %v1038, 4
    %v1040 = vmax.f32 %v1038, %v1039
    %v1041 = vrot.slane %v1040, 2
    %v1042 = vmax.f32 %v1040, %v1041
    %v1043 = vrot.slane %v1042, 1
    %v1044 = vmax.f32 %v1042, %v1043
    %v1045 = vsel %vm530, %v388, -inf
    %v1046 = vsel %vm532, %v389, -inf
    %v1047 = vmax.f32 %v1045, %v1046
    %v1048 = vrot.slane %v1047, 4
    %v1049 = vmax.f32 %v1047, %v1048
    %v1050 = vrot.slane %v1049, 2
    %v1051 = vmax.f32 %v1049, %v1050
    %v1052 = vrot.slane %v1051, 1
    %v1053 = vmax.f32 %v1051, %v1052
    %v1054 = vsel %vm530, %v390, -inf
    %v1055 = vsel %vm532, %v391, -inf
    %v1056 = vmax.f32 %v1054, %v1055
    %v1057 = vrot.slane %v1056, 4
    %v1058 = vmax.f32 %v1056, %v1057
    %v1059 = vrot.slane %v1058, 2
    %v1060 = vmax.f32 %v1058, %v1059
    %v1061 = vrot.slane %v1060, 1
    %v1062 = vmax.f32 %v1060, %v1061
    %v1063 = vsel %vm530, %v392, -inf
    %v1064 = vsel %vm532, %v393, -inf
    %v1065 = vmax.f32 %v1063, %v1064
    %v1066 = vrot.slane %v1065, 4
    %v1067 = vmax.f32 %v1065, %v1066
    %v1068 = vrot.slane %v1067, 2
    %v1069 = vmax.f32 %v1067, %v1068
    %v1070 = vrot.slane %v1069, 1
    %v1071 = vmax.f32 %v1069, %v1070
    %v1072 = vsel %vm530, %v394, -inf
    %v1073 = vsel %vm532, %v395, -inf
    %v1074 = vmax.f32 %v1072, %v1073
    %v1075 = vrot.slane %v1074, 4
    %v1076 = vmax.f32 %v1074, %v1075
    %v1077 = vrot.slane %v1076, 2
    %v1078 = vmax.f32 %v1076, %v1077
    %v1079 = vrot.slane %v1078, 1
    %v1080 = vmax.f32 %v1078, %v1079
    %v1081 = vsel %vm530, %v396, -inf
    %v1082 = vsel %vm532, %v397, -inf
    %v1083 = vmax.f32 %v1081, %v1082
    %v1084 = vrot.slane %v1083, 4
    %v1085 = vmax.f32 %v1083, %v1084
    %v1086 = vrot.slane %v1085, 2
    %v1087 = vmax.f32 %v1085, %v1086
    %v1088 = vrot.slane %v1087, 1
    %v1089 = vmax.f32 %v1087, %v1088
    %v1090 = vsel %vm530, %v398, -inf
    %v1091 = vsel %vm532, %v399, -inf
    %v1092 = vmax.f32 %v1090, %v1091
    %v1093 = vrot.slane %v1092, 4
    %v1094 = vmax.f32 %v1092, %v1093
    %v1095 = vrot.slane %v1094, 2
    %v1096 = vmax.f32 %v1094, %v1095
    %v1097 = vrot.slane %v1096, 1
    %v1098 = vmax.f32 %v1096, %v1097
    %v1099 = vsel %vm530, %v400, -inf
    %v1100 = vsel %vm532, %v401, -inf
    %v1101 = vmax.f32 %v1099, %v1100
    %v1102 = vrot.slane %v1101, 4
    %v1103 = vmax.f32 %v1101, %v1102
    %v1104 = vrot.slane %v1103, 2
    %v1105 = vmax.f32 %v1103, %v1104
    %v1106 = vrot.slane %v1105, 1
    %v1107 = vmax.f32 %v1105, %v1106
    %v1108 = vsel %vm530, %v402, -inf
    %v1109 = vsel %vm532, %v403, -inf
    %v1110 = vmax.f32 %v1108, %v1109
    %v1111 = vrot.slane %v1110, 4
    %v1112 = vmax.f32 %v1110, %v1111
    %v1113 = vrot.slane %v1112, 2
    %v1114 = vmax.f32 %v1112, %v1113
    %v1115 = vrot.slane %v1114, 1
    %v1116 = vmax.f32 %v1114, %v1115
    %v1117 = vsel %vm530, %v404, -inf
    %v1118 = vsel %vm532, %v405, -inf
    %v1119 = vmax.f32 %v1117, %v1118
    %v1120 = vrot.slane %v1119, 4
    %v1121 = vmax.f32 %v1119, %v1120
    %v1122 = vrot.slane %v1121, 2
    %v1123 = vmax.f32 %v1121, %v1122
    %v1124 = vrot.slane %v1123, 1
    %v1125 = vmax.f32 %v1123, %v1124
    %v1126 = vsel %vm530, %v406, -inf
    %v1127 = vsel %vm532, %v407, -inf
    %v1128 = vmax.f32 %v1126, %v1127
    %v1129 = vrot.slane %v1128, 4
    %v1130 = vmax.f32 %v1128, %v1129
    %v1131 = vrot.slane %v1130, 2
    %v1132 = vmax.f32 %v1130, %v1131
    %v1133 = vrot.slane %v1132, 1
    %v1134 = vmax.f32 %v1132, %v1133
    %v1135 = vsel %vm530, %v408, -inf
    %v1136 = vsel %vm532, %v409, -inf
    %v1137 = vmax.f32 %v1135, %v1136
    %v1138 = vrot.slane %v1137, 4
    %v1139 = vmax.f32 %v1137, %v1138
    %v1140 = vrot.slane %v1139, 2
    %v1141 = vmax.f32 %v1139, %v1140
    %v1142 = vrot.slane %v1141, 1
    %v1143 = vmax.f32 %v1141, %v1142
    %v1144 = vsel %vm530, %v410, -inf
    %v1145 = vsel %vm532, %v411, -inf
    %v1146 = vmax.f32 %v1144, %v1145
    %v1147 = vrot.slane %v1146, 4
    %v1148 = vmax.f32 %v1146, %v1147
    %v1149 = vrot.slane %v1148, 2
    %v1150 = vmax.f32 %v1148, %v1149
    %v1151 = vrot.slane %v1150, 1
    %v1152 = vmax.f32 %v1150, %v1151
    %v1153 = vsel %vm530, %v412, -inf
    %v1154 = vsel %vm532, %v413, -inf
    %v1155 = vmax.f32 %v1153, %v1154
    %v1156 = vrot.slane %v1155, 4
    %v1157 = vmax.f32 %v1155, %v1156
    %v1158 = vrot.slane %v1157, 2
    %v1159 = vmax.f32 %v1157, %v1158
    %v1160 = vrot.slane %v1159, 1
    %v1161 = vmax.f32 %v1159, %v1160
    %v1162 = vsel %vm530, %v414, -inf
    %v1163 = vsel %vm532, %v415, -inf
    %v1164 = vmax.f32 %v1162, %v1163
    %v1165 = vrot.slane %v1164, 4
    %v1166 = vmax.f32 %v1164, %v1165
    %v1167 = vrot.slane %v1166, 2
    %v1168 = vmax.f32 %v1166, %v1167
    %v1169 = vrot.slane %v1168, 1
    %v1170 = vmax.f32 %v1168, %v1169
    %v1171 = vsel %vm530, %v416, -inf
    %v1172 = vsel %vm532, %v417, -inf
    %v1173 = vmax.f32 %v1171, %v1172
    %v1174 = vrot.slane %v1173, 4
    %v1175 = vmax.f32 %v1173, %v1174
    %v1176 = vrot.slane %v1175, 2
    %v1177 = vmax.f32 %v1175, %v1176
    %v1178 = vrot.slane %v1177, 1
    %v1179 = vmax.f32 %v1177, %v1178
    %v1180 = vsel %vm530, %v418, -inf
    %v1181 = vsel %vm532, %v419, -inf
    %v1182 = vmax.f32 %v1180, %v1181
    %v1183 = vrot.slane %v1182, 4
    %v1184 = vmax.f32 %v1182, %v1183
    %v1185 = vrot.slane %v1184, 2
    %v1186 = vmax.f32 %v1184, %v1185
    %v1187 = vrot.slane %v1186, 1
    %v1188 = vmax.f32 %v1186, %v1187
    %v1189 = vsel %vm530, %v420, -inf
    %v1190 = vsel %vm532, %v421, -inf
    %v1191 = vmax.f32 %v1189, %v1190
    %v1192 = vrot.slane %v1191, 4
    %v1193 = vmax.f32 %v1191, %v1192
    %v1194 = vrot.slane %v1193, 2
    %v1195 = vmax.f32 %v1193, %v1194
    %v1196 = vrot.slane %v1195, 1
    %v1197 = vmax.f32 %v1195, %v1196
    %v1198 = vsel %vm530, %v422, -inf
    %v1199 = vsel %vm532, %v423, -inf
    %v1200 = vmax.f32 %v1198, %v1199
    %v1201 = vrot.slane %v1200, 4
    %v1202 = vmax.f32 %v1200, %v1201
    %v1203 = vrot.slane %v1202, 2
    %v1204 = vmax.f32 %v1202, %v1203
    %v1205 = vrot.slane %v1204, 1
    %v1206 = vmax.f32 %v1204, %v1205
    %v1207 = vsel %vm530, %v424, -inf
    %v1208 = vsel %vm532, %v425, -inf
    %v1209 = vmax.f32 %v1207, %v1208
    %v1210 = vrot.slane %v1209, 4
    %v1211 = vmax.f32 %v1209, %v1210
    %v1212 = vrot.slane %v1211, 2
    %v1213 = vmax.f32 %v1211, %v1212
    %v1214 = vrot.slane %v1213, 1
    %v1215 = vmax.f32 %v1213, %v1214
    %v1216 = vsel %vm530, %v426, -inf
    %v1217 = vsel %vm532, %v427, -inf
    %v1218 = vmax.f32 %v1216, %v1217
    %v1219 = vrot.slane %v1218, 4
    %v1220 = vmax.f32 %v1218, %v1219
    %v1221 = vrot.slane %v1220, 2
    %v1222 = vmax.f32 %v1220, %v1221
    %v1223 = vrot.slane %v1222, 1
    %v1224 = vmax.f32 %v1222, %v1223
    %v1225 = vsel %vm530, %v428, -inf
    %v1226 = vsel %vm532, %v429, -inf
    %v1227 = vmax.f32 %v1225, %v1226
    %v1228 = vrot.slane %v1227, 4
    %v1229 = vmax.f32 %v1227, %v1228
    %v1230 = vrot.slane %v1229, 2
    %v1231 = vmax.f32 %v1229, %v1230
    %v1232 = vrot.slane %v1231, 1
    %v1233 = vmax.f32 %v1231, %v1232
    %v1234 = vsel %vm530, %v430, -inf
    %v1235 = vsel %vm532, %v431, -inf
    %v1236 = vmax.f32 %v1234, %v1235
    %v1237 = vrot.slane %v1236, 4
    %v1238 = vmax.f32 %v1236, %v1237
    %v1239 = vrot.slane %v1238, 2
    %v1240 = vmax.f32 %v1238, %v1239
    %v1241 = vrot.slane %v1240, 1
    %v1242 = vmax.f32 %v1240, %v1241
    %v1243 = vsel %vm530, %v432, -inf
    %v1244 = vsel %vm532, %v433, -inf
    %v1245 = vmax.f32 %v1243, %v1244
    %v1246 = vrot.slane %v1245, 4
    %v1247 = vmax.f32 %v1245, %v1246
    %v1248 = vrot.slane %v1247, 2
    %v1249 = vmax.f32 %v1247, %v1248
    %v1250 = vrot.slane %v1249, 1
    %v1251 = vmax.f32 %v1249, %v1250
    %v1252 = vsel %vm530, %v434, -inf
    %v1253 = vsel %vm532, %v435, -inf
    %v1254 = vmax.f32 %v1252, %v1253
    %v1255 = vrot.slane %v1254, 4
    %v1256 = vmax.f32 %v1254, %v1255
    %v1257 = vrot.slane %v1256, 2
    %v1258 = vmax.f32 %v1256, %v1257
    %v1259 = vrot.slane %v1258, 1
    %v1260 = vmax.f32 %v1258, %v1259
    %v1261 = vsel %vm530, %v436, -inf
    %v1262 = vsel %vm532, %v437, -inf
    %v1263 = vmax.f32 %v1261, %v1262
    %v1264 = vrot.slane %v1263, 4
    %v1265 = vmax.f32 %v1263, %v1264
    %v1266 = vrot.slane %v1265, 2
    %v1267 = vmax.f32 %v1265, %v1266
    %v1268 = vrot.slane %v1267, 1
    %v1269 = vmax.f32 %v1267, %v1268
    %v1270 = vsel %vm530, %v438, -inf
    %v1271 = vsel %vm532, %v439, -inf
    %v1272 = vmax.f32 %v1270, %v1271
    %v1273 = vrot.slane %v1272, 4
    %v1274 = vmax.f32 %v1272, %v1273
    %v1275 = vrot.slane %v1274, 2
    %v1276 = vmax.f32 %v1274, %v1275
    %v1277 = vrot.slane %v1276, 1
    %v1278 = vmax.f32 %v1276, %v1277
    %v1279 = vsel %vm530, %v440, -inf
    %v1280 = vsel %vm532, %v441, -inf
    %v1281 = vmax.f32 %v1279, %v1280
    %v1282 = vrot.slane %v1281, 4
    %v1283 = vmax.f32 %v1281, %v1282
    %v1284 = vrot.slane %v1283, 2
    %v1285 = vmax.f32 %v1283, %v1284
    %v1286 = vrot.slane %v1285, 1
    %v1287 = vmax.f32 %v1285, %v1286
    %v1288 = vsel %vm530, %v442, -inf
    %v1289 = vsel %vm532, %v443, -inf
    %v1290 = vmax.f32 %v1288, %v1289
    %v1291 = vrot.slane %v1290, 4
    %v1292 = vmax.f32 %v1290, %v1291
    %v1293 = vrot.slane %v1292, 2
    %v1294 = vmax.f32 %v1292, %v1293
    %v1295 = vrot.slane %v1294, 1
    %v1296 = vmax.f32 %v1294, %v1295
    %v1297 = vsel %vm530, %v444, -inf
    %v1298 = vsel %vm532, %v445, -inf
    %v1299 = vmax.f32 %v1297, %v1298
    %v1300 = vrot.slane %v1299, 4
    %v1301 = vmax.f32 %v1299, %v1300
    %v1302 = vrot.slane %v1301, 2
    %v1303 = vmax.f32 %v1301, %v1302
    %v1304 = vrot.slane %v1303, 1
    %v1305 = vmax.f32 %v1303, %v1304
    %v1306 = vsel %vm530, %v446, -inf
    %v1307 = vsel %vm532, %v447, -inf
    %v1308 = vmax.f32 %v1306, %v1307
    %v1309 = vrot.slane %v1308, 4
    %v1310 = vmax.f32 %v1308, %v1309
    %v1311 = vrot.slane %v1310, 2
    %v1312 = vmax.f32 %v1310, %v1311
    %v1313 = vrot.slane %v1312, 1
    %v1314 = vmax.f32 %v1312, %v1313
    %v1315 = vsel %vm530, %v448, -inf
    %v1316 = vsel %vm532, %v449, -inf
    %v1317 = vmax.f32 %v1315, %v1316
    %v1318 = vrot.slane %v1317, 4
    %v1319 = vmax.f32 %v1317, %v1318
    %v1320 = vrot.slane %v1319, 2
    %v1321 = vmax.f32 %v1319, %v1320
    %v1322 = vrot.slane %v1321, 1
    %v1323 = vmax.f32 %v1321, %v1322
    %v1324 = vsel %vm530, %v450, -inf
    %v1325 = vsel %vm532, %v451, -inf
    %v1326 = vmax.f32 %v1324, %v1325
    %v1327 = vrot.slane %v1326, 4
    %v1328 = vmax.f32 %v1326, %v1327
    %v1329 = vrot.slane %v1328, 2
    %v1330 = vmax.f32 %v1328, %v1329
    %v1331 = vrot.slane %v1330, 1
    %v1332 = vmax.f32 %v1330, %v1331
    %v1333 = vsel %vm530, %v452, -inf
    %v1334 = vsel %vm532, %v453, -inf
    %v1335 = vmax.f32 %v1333, %v1334
    %v1336 = vrot.slane %v1335, 4
    %v1337 = vmax.f32 %v1335, %v1336
    %v1338 = vrot.slane %v1337, 2
    %v1339 = vmax.f32 %v1337, %v1338
    %v1340 = vrot.slane %v1339, 1
    %v1341 = vmax.f32 %v1339, %v1340
    %v1342 = vsel %vm530, %v454, -inf
    %v1343 = vsel %vm532, %v455, -inf
    %v1344 = vmax.f32 %v1342, %v1343
    %v1345 = vrot.slane %v1344, 4
    %v1346 = vmax.f32 %v1344, %v1345
    %v1347 = vrot.slane %v1346, 2
    %v1348 = vmax.f32 %v1346, %v1347
    %v1349 = vrot.slane %v1348, 1
    %v1350 = vmax.f32 %v1348, %v1349
    %v1351 = vsel %vm530, %v456, -inf
    %v1352 = vsel %vm532, %v457, -inf
    %v1353 = vmax.f32 %v1351, %v1352
    %v1354 = vrot.slane %v1353, 4
    %v1355 = vmax.f32 %v1353, %v1354
    %v1356 = vrot.slane %v1355, 2
    %v1357 = vmax.f32 %v1355, %v1356
    %v1358 = vrot.slane %v1357, 1
    %v1359 = vmax.f32 %v1357, %v1358
    %v1360 = vsel %vm530, %v458, -inf
    %v1361 = vsel %vm532, %v459, -inf
    %v1362 = vmax.f32 %v1360, %v1361
    %v1363 = vrot.slane %v1362, 4
    %v1364 = vmax.f32 %v1362, %v1363
    %v1365 = vrot.slane %v1364, 2
    %v1366 = vmax.f32 %v1364, %v1365
    %v1367 = vrot.slane %v1366, 1
    %v1368 = vmax.f32 %v1366, %v1367
    %v1369 = vsel %vm530, %v460, -inf
    %v1370 = vsel %vm532, %v461, -inf
    %v1371 = vmax.f32 %v1369, %v1370
    %v1372 = vrot.slane %v1371, 4
    %v1373 = vmax.f32 %v1371, %v1372
    %v1374 = vrot.slane %v1373, 2
    %v1375 = vmax.f32 %v1373, %v1374
    %v1376 = vrot.slane %v1375, 1
    %v1377 = vmax.f32 %v1375, %v1376
    %v1378 = vsel %vm530, %v462, -inf
    %v1379 = vsel %vm532, %v463, -inf
    %v1380 = vmax.f32 %v1378, %v1379
    %v1381 = vrot.slane %v1380, 4
    %v1382 = vmax.f32 %v1380, %v1381
    %v1383 = vrot.slane %v1382, 2
    %v1384 = vmax.f32 %v1382, %v1383
    %v1385 = vrot.slane %v1384, 1
    %v1386 = vmax.f32 %v1384, %v1385
    %v1387 = vsel %vm530, %v464, -inf
    %v1388 = vsel %vm532, %v465, -inf
    %v1389 = vmax.f32 %v1387, %v1388
    %v1390 = vrot.slane %v1389, 4
    %v1391 = vmax.f32 %v1389, %v1390
    %v1392 = vrot.slane %v1391, 2
    %v1393 = vmax.f32 %v1391, %v1392
    %v1394 = vrot.slane %v1393, 1
    %v1395 = vmax.f32 %v1393, %v1394
    %v1396 = vsel %vm530, %v466, -inf
    %v1397 = vsel %vm532, %v467, -inf
    %v1398 = vmax.f32 %v1396, %v1397
    %v1399 = vrot.slane %v1398, 4
    %v1400 = vmax.f32 %v1398, %v1399
    %v1401 = vrot.slane %v1400, 2
    %v1402 = vmax.f32 %v1400, %v1401
    %v1403 = vrot.slane %v1402, 1
    %v1404 = vmax.f32 %v1402, %v1403
    %v1405 = vsel %vm530, %v468, -inf
    %v1406 = vsel %vm532, %v469, -inf
    %v1407 = vmax.f32 %v1405, %v1406
    %v1408 = vrot.slane %v1407, 4
    %v1409 = vmax.f32 %v1407, %v1408
    %v1410 = vrot.slane %v1409, 2
    %v1411 = vmax.f32 %v1409, %v1410
    %v1412 = vrot.slane %v1411, 1
    %v1413 = vmax.f32 %v1411, %v1412
    %v1414 = vsel %vm530, %v470, -inf
    %v1415 = vsel %vm532, %v471, -inf
    %v1416 = vmax.f32 %v1414, %v1415
    %v1417 = vrot.slane %v1416, 4
    %v1418 = vmax.f32 %v1416, %v1417
    %v1419 = vrot.slane %v1418, 2
    %v1420 = vmax.f32 %v1418, %v1419
    %v1421 = vrot.slane %v1420, 1
    %v1422 = vmax.f32 %v1420, %v1421
    %v1423 = vsel %vm530, %v472, -inf
    %v1424 = vsel %vm532, %v473, -inf
    %v1425 = vmax.f32 %v1423, %v1424
    %v1426 = vrot.slane %v1425, 4
    %v1427 = vmax.f32 %v1425, %v1426
    %v1428 = vrot.slane %v1427, 2
    %v1429 = vmax.f32 %v1427, %v1428
    %v1430 = vrot.slane %v1429, 1
    %v1431 = vmax.f32 %v1429, %v1430
    %v1432 = vsel %vm530, %v474, -inf
    %v1433 = vsel %vm532, %v475, -inf
    %v1434 = vmax.f32 %v1432, %v1433
    %v1435 = vrot.slane %v1434, 4
    %v1436 = vmax.f32 %v1434, %v1435
    %v1437 = vrot.slane %v1436, 2
    %v1438 = vmax.f32 %v1436, %v1437
    %v1439 = vrot.slane %v1438, 1
    %v1440 = vmax.f32 %v1438, %v1439
    %v1441 = vsel %vm530, %v476, -inf
    %v1442 = vsel %vm532, %v477, -inf
    %v1443 = vmax.f32 %v1441, %v1442
    %v1444 = vrot.slane %v1443, 4
    %v1445 = vmax.f32 %v1443, %v1444
    %v1446 = vrot.slane %v1445, 2
    %v1447 = vmax.f32 %v1445, %v1446
    %v1448 = vrot.slane %v1447, 1
    %v1449 = vmax.f32 %v1447, %v1448
    %v1450 = vsel %vm530, %v478, -inf
    %v1451 = vsel %vm532, %v479, -inf
    %v1452 = vmax.f32 %v1450, %v1451
    %v1453 = vrot.slane %v1452, 4
    %v1454 = vmax.f32 %v1452, %v1453
    %v1455 = vrot.slane %v1454, 2
    %v1456 = vmax.f32 %v1454, %v1455
    %v1457 = vrot.slane %v1456, 1
    %v1458 = vmax.f32 %v1456, %v1457
    %v1459 = vsel %vm530, %v480, -inf
    %v1460 = vsel %vm532, %v481, -inf
    %v1461 = vmax.f32 %v1459, %v1460
    %v1462 = vrot.slane %v1461, 4
    %v1463 = vmax.f32 %v1461, %v1462
    %v1464 = vrot.slane %v1463, 2
    %v1465 = vmax.f32 %v1463, %v1464
    %v1466 = vrot.slane %v1465, 1
    %v1467 = vmax.f32 %v1465, %v1466
    %v1468 = vsel %vm530, %v482, -inf
    %v1469 = vsel %vm532, %v483, -inf
    %v1470 = vmax.f32 %v1468, %v1469
    %v1471 = vrot.slane %v1470, 4
    %v1472 = vmax.f32 %v1470, %v1471
    %v1473 = vrot.slane %v1472, 2
    %v1474 = vmax.f32 %v1472, %v1473
    %v1475 = vrot.slane %v1474, 1
    %v1476 = vmax.f32 %v1474, %v1475
    %v1477 = vsel %vm530, %v484, -inf
    %v1478 = vsel %vm532, %v485, -inf
    %v1479 = vmax.f32 %v1477, %v1478
    %v1480 = vrot.slane %v1479, 4
    %v1481 = vmax.f32 %v1479, %v1480
    %v1482 = vrot.slane %v1481, 2
    %v1483 = vmax.f32 %v1481, %v1482
    %v1484 = vrot.slane %v1483, 1
    %v1485 = vmax.f32 %v1483, %v1484
    %v1486 = vsel %vm530, %v486, -inf
    %v1487 = vsel %vm532, %v487, -inf
    %v1488 = vmax.f32 %v1486, %v1487
    %v1489 = vrot.slane %v1488, 4
    %v1490 = vmax.f32 %v1488, %v1489
    %v1491 = vrot.slane %v1490, 2
    %v1492 = vmax.f32 %v1490, %v1491
    %v1493 = vrot.slane %v1492, 1
    %v1494 = vmax.f32 %v1492, %v1493
    %v1495 = vsel %vm530, %v488, -inf
    %v1496 = vsel %vm532, %v489, -inf
    %v1497 = vmax.f32 %v1495, %v1496
    %v1498 = vrot.slane %v1497, 4
    %v1499 = vmax.f32 %v1497, %v1498
    %v1500 = vrot.slane %v1499, 2
    %v1501 = vmax.f32 %v1499, %v1500
    %v1502 = vrot.slane %v1501, 1
    %v1503 = vmax.f32 %v1501, %v1502
    %v1504 = vsel %vm530, %v490, -inf
    %v1505 = vsel %vm532, %v491, -inf
    %v1506 = vmax.f32 %v1504, %v1505
    %v1507 = vrot.slane %v1506, 4
    %v1508 = vmax.f32 %v1506, %v1507
    %v1509 = vrot.slane %v1508, 2
    %v1510 = vmax.f32 %v1508, %v1509
    %v1511 = vrot.slane %v1510, 1
    %v1512 = vmax.f32 %v1510, %v1511
    %v1513 = vsel %vm530, %v492, -inf
    %v1514 = vsel %vm532, %v493, -inf
    %v1515 = vmax.f32 %v1513, %v1514
    %v1516 = vrot.slane %v1515, 4
    %v1517 = vmax.f32 %v1515, %v1516
    %v1518 = vrot.slane %v1517, 2
    %v1519 = vmax.f32 %v1517, %v1518
    %v1520 = vrot.slane %v1519, 1
    %v1521 = vmax.f32 %v1519, %v1520
    %v1522 = vsel %vm530, %v494, -inf
    %v1523 = vsel %vm532, %v495, -inf
    %v1524 = vmax.f32 %v1522, %v1523
    %v1525 = vrot.slane %v1524, 4
    %v1526 = vmax.f32 %v1524, %v1525
    %v1527 = vrot.slane %v1526, 2
    %v1528 = vmax.f32 %v1526, %v1527
    %v1529 = vrot.slane %v1528, 1
    %v1530 = vmax.f32 %v1528, %v1529
    %v1531 = vsel %vm530, %v496, -inf
    %v1532 = vsel %vm532, %v497, -inf
    %v1533 = vmax.f32 %v1531, %v1532
    %v1534 = vrot.slane %v1533, 4
    %v1535 = vmax.f32 %v1533, %v1534
    %v1536 = vrot.slane %v1535, 2
    %v1537 = vmax.f32 %v1535, %v1536
    %v1538 = vrot.slane %v1537, 1
    %v1539 = vmax.f32 %v1537, %v1538
    %v1540 = vsel %vm530, %v498, -inf
    %v1541 = vsel %vm532, %v499, -inf
    %v1542 = vmax.f32 %v1540, %v1541
    %v1543 = vrot.slane %v1542, 4
    %v1544 = vmax.f32 %v1542, %v1543
    %v1545 = vrot.slane %v1544, 2
    %v1546 = vmax.f32 %v1544, %v1545
    %v1547 = vrot.slane %v1546, 1
    %v1548 = vmax.f32 %v1546, %v1547
    %v1549 = vsel %vm530, %v500, -inf
    %v1550 = vsel %vm532, %v501, -inf
    %v1551 = vmax.f32 %v1549, %v1550
    %v1552 = vrot.slane %v1551, 4
    %v1553 = vmax.f32 %v1551, %v1552
    %v1554 = vrot.slane %v1553, 2
    %v1555 = vmax.f32 %v1553, %v1554
    %v1556 = vrot.slane %v1555, 1
    %v1557 = vmax.f32 %v1555, %v1556
    %v1558 = vsel %vm530, %v502, -inf
    %v1559 = vsel %vm532, %v503, -inf
    %v1560 = vmax.f32 %v1558, %v1559
    %v1561 = vrot.slane %v1560, 4
    %v1562 = vmax.f32 %v1560, %v1561
    %v1563 = vrot.slane %v1562, 2
    %v1564 = vmax.f32 %v1562, %v1563
    %v1565 = vrot.slane %v1564, 1
    %v1566 = vmax.f32 %v1564, %v1565
    %v1567 = vsel %vm530, %v504, -inf
    %v1568 = vsel %vm532, %v505, -inf
    %v1569 = vmax.f32 %v1567, %v1568
    %v1570 = vrot.slane %v1569, 4
    %v1571 = vmax.f32 %v1569, %v1570
    %v1572 = vrot.slane %v1571, 2
    %v1573 = vmax.f32 %v1571, %v1572
    %v1574 = vrot.slane %v1573, 1
    %v1575 = vmax.f32 %v1573, %v1574
    %v1576 = vsel %vm530, %v506, -inf
    %v1577 = vsel %vm532, %v507, -inf
    %v1578 = vmax.f32 %v1576, %v1577
    %v1579 = vrot.slane %v1578, 4
    %v1580 = vmax.f32 %v1578, %v1579
    %v1581 = vrot.slane %v1580, 2
    %v1582 = vmax.f32 %v1580, %v1581
    %v1583 = vrot.slane %v1582, 1
    %v1584 = vmax.f32 %v1582, %v1583
    %v1585 = vsel %vm530, %v508, -inf
    %v1586 = vsel %vm532, %v509, -inf
    %v1587 = vmax.f32 %v1585, %v1586
    %v1588 = vrot.slane %v1587, 4
    %v1589 = vmax.f32 %v1587, %v1588
    %v1590 = vrot.slane %v1589, 2
    %v1591 = vmax.f32 %v1589, %v1590
    %v1592 = vrot.slane %v1591, 1
    %v1593 = vmax.f32 %v1591, %v1592
    %v1594 = vsel %vm530, %v510, -inf
    %v1595 = vsel %vm532, %v511, -inf
    %v1596 = vmax.f32 %v1594, %v1595
    %v1597 = vrot.slane %v1596, 4
    %v1598 = vmax.f32 %v1596, %v1597
    %v1599 = vrot.slane %v1598, 2
    %v1600 = vmax.f32 %v1598, %v1599
    %v1601 = vrot.slane %v1600, 1
    %v1602 = vmax.f32 %v1600, %v1601
    %v1603 = vsel %vm530, %v512, -inf
    %v1604 = vsel %vm532, %v513, -inf
    %v1605 = vmax.f32 %v1603, %v1604
    %v1606 = vrot.slane %v1605, 4
    %v1607 = vmax.f32 %v1605, %v1606
    %v1608 = vrot.slane %v1607, 2
    %v1609 = vmax.f32 %v1607, %v1608
    %v1610 = vrot.slane %v1609, 1
    %v1611 = vmax.f32 %v1609, %v1610
    %v1612 = vsel %vm530, %v514, -inf
    %v1613 = vsel %vm532, %v515, -inf
    %v1614 = vmax.f32 %v1612, %v1613
    %v1615 = vrot.slane %v1614, 4
    %v1616 = vmax.f32 %v1614, %v1615
    %v1617 = vrot.slane %v1616, 2
    %v1618 = vmax.f32 %v1616, %v1617
    %v1619 = vrot.slane %v1618, 1
    %v1620 = vmax.f32 %v1618, %v1619
    %v1621 = vsel %vm530, %v516, -inf
    %v1622 = vsel %vm532, %v517, -inf
    %v1623 = vmax.f32 %v1621, %v1622
    %v1624 = vrot.slane %v1623, 4
    %v1625 = vmax.f32 %v1623, %v1624
    %v1626 = vrot.slane %v1625, 2
    %v1627 = vmax.f32 %v1625, %v1626
    %v1628 = vrot.slane %v1627, 1
    %v1629 = vmax.f32 %v1627, %v1628
    %v1630 = vsel %vm530, %v518, -inf
    %v1631 = vsel %vm532, %v519, -inf
    %v1632 = vmax.f32 %v1630, %v1631
    %v1633 = vrot.slane %v1632, 4
    %v1634 = vmax.f32 %v1632, %v1633
    %v1635 = vrot.slane %v1634, 2
    %v1636 = vmax.f32 %v1634, %v1635
    %v1637 = vrot.slane %v1636, 1
    %v1638 = vmax.f32 %v1636, %v1637
    %v1639 = vsel %vm530, %v520, -inf
    %v1640 = vsel %vm532, %v521, -inf
    %v1641 = vmax.f32 %v1639, %v1640
    %v1642 = vrot.slane %v1641, 4
    %v1643 = vmax.f32 %v1641, %v1642
    %v1644 = vrot.slane %v1643, 2
    %v1645 = vmax.f32 %v1643, %v1644
    %v1646 = vrot.slane %v1645, 1
    %v1647 = vmax.f32 %v1645, %v1646
    %v1648 = vsel %vm530, %v522, -inf
    %v1649 = vsel %vm532, %v523, -inf
    %v1650 = vmax.f32 %v1648, %v1649
    %v1651 = vrot.slane %v1650, 4
    %v1652 = vmax.f32 %v1650, %v1651
    %v1653 = vrot.slane %v1652, 2
    %v1654 = vmax.f32 %v1652, %v1653
    %v1655 = vrot.slane %v1654, 1
    %v1656 = vmax.f32 %v1654, %v1655
    %v1657 = vsel %vm530, %v524, -inf
    %v1658 = vsel %vm532, %v525, -inf
    %v1659 = vmax.f32 %v1657, %v1658
    %v1660 = vrot.slane %v1659, 4
    %v1661 = vmax.f32 %v1659, %v1660
    %v1662 = vrot.slane %v1661, 2
    %v1663 = vmax.f32 %v1661, %v1662
    %v1664 = vrot.slane %v1663, 1
    %v1665 = vmax.f32 %v1663, %v1664
    %v1666 = vsel %vm530, %v526, -inf
    %v1667 = vsel %vm532, %v527, -inf
    %v1668 = vmax.f32 %v1666, %v1667
    %v1669 = vrot.slane %v1668, 4
    %v1670 = vmax.f32 %v1668, %v1669
    %v1671 = vrot.slane %v1670, 2
    %v1672 = vmax.f32 %v1670, %v1671
    %v1673 = vrot.slane %v1672, 1
    %v1674 = vmax.f32 %v1672, %v1673
    %v1675 = vsel %vm530, %v528, -inf
    %v1676 = vsel %vm532, %v529, -inf
    %v1677 = vmax.f32 %v1675, %v1676
    %v1678 = vrot.slane %v1677, 4
    %v1679 = vmax.f32 %v1677, %v1678
    %v1680 = vrot.slane %v1679, 2
    %v1681 = vmax.f32 %v1679, %v1680
    %v1682 = vrot.slane %v1681, 1
    %v1683 = vmax.f32 %v1681, %v1682
    %v1684 = vpack.c.bf16 %v540, %v540
    %v1685 = vpack.c.bf16 %v549, %v549
    %v1686 = vpack.c.bf16 %v558, %v558
    %v1687 = vpack.c.bf16 %v567, %v567
    %v1688 = vpack.c.bf16 %v576, %v576
    %v1689 = vpack.c.bf16 %v585, %v585
    %v1690 = vpack.c.bf16 %v594, %v594
    %v1691 = vpack.c.bf16 %v603, %v603
    %v1692 = vpack.c.bf16 %v612, %v612
    %v1693 = vpack.c.bf16 %v621, %v621
    %v1694 = vpack.c.bf16 %v630, %v630
    %v1695 = vpack.c.bf16 %v639, %v639
    %v1696 = vpack.c.bf16 %v648, %v648
    %v1697 = vpack.c.bf16 %v657, %v657
    %v1698 = vpack.c.bf16 %v666, %v666
    %v1699 = vpack.c.bf16 %v675, %v675
    %v1700 = vpack.c.bf16 %v684, %v684
    %v1701 = vpack.c.bf16 %v693, %v693
    %v1702 = vpack.c.bf16 %v702, %v702
    %v1703 = vpack.c.bf16 %v711, %v711
    %v1704 = vpack.c.bf16 %v720, %v720
    %v1705 = vpack.c.bf16 %v729, %v729
    %v1706 = vpack.c.bf16 %v738, %v738
    %v1707 = vpack.c.bf16 %v747, %v747
    %v1708 = vpack.c.bf16 %v756, %v756
    %v1709 = vpack.c.bf16 %v765, %v765
    %v1710 = vpack.c.bf16 %v774, %v774
    %v1711 = vpack.c.bf16 %v783, %v783
    %v1712 = vpack.c.bf16 %v792, %v792
    %v1713 = vpack.c.bf16 %v801, %v801
    %v1714 = vpack.c.bf16 %v810, %v810
    %v1715 = vpack.c.bf16 %v819, %v819
    %v1716 = vpack.c.bf16 %v828, %v828
    %v1717 = vpack.c.bf16 %v837, %v837
    %v1718 = vpack.c.bf16 %v846, %v846
    %v1719 = vpack.c.bf16 %v855, %v855
    %v1720 = vpack.c.bf16 %v864, %v864
    %v1721 = vpack.c.bf16 %v873, %v873
    %v1722 = vpack.c.bf16 %v882, %v882
    %v1723 = vpack.c.bf16 %v891, %v891
    %v1724 = vpack.c.bf16 %v900, %v900
    %v1725 = vpack.c.bf16 %v909, %v909
    %v1726 = vpack.c.bf16 %v918, %v918
    %v1727 = vpack.c.bf16 %v927, %v927
    %v1728 = vpack.c.bf16 %v936, %v936
    %v1729 = vpack.c.bf16 %v945, %v945
    %v1730 = vpack.c.bf16 %v954, %v954
    %v1731 = vpack.c.bf16 %v963, %v963
    %v1732 = vpack.c.bf16 %v972, %v972
    %v1733 = vpack.c.bf16 %v981, %v981
    %v1734 = vpack.c.bf16 %v990, %v990
    %v1735 = vpack.c.bf16 %v999, %v999
    %v1736 = vpack.c.bf16 %v1008, %v1008
    %v1737 = vpack.c.bf16 %v1017, %v1017
    %v1738 = vpack.c.bf16 %v1026, %v1026
    %v1739 = vpack.c.bf16 %v1035, %v1035
    %v1740 = vpack.c.bf16 %v1044, %v1044
    %v1741 = vpack.c.bf16 %v1053, %v1053
    %v1742 = vpack.c.bf16 %v1062, %v1062
    %v1743 = vpack.c.bf16 %v1071, %v1071
    %v1744 = vpack.c.bf16 %v1080, %v1080
    %v1745 = vpack.c.bf16 %v1089, %v1089
    %v1746 = vpack.c.bf16 %v1098, %v1098
    %v1747 = vpack.c.bf16 %v1107, %v1107
    %v1748 = vpack.c.bf16 %v1116, %v1116
    %v1749 = vpack.c.bf16 %v1125, %v1125
    %v1750 = vpack.c.bf16 %v1134, %v1134
    %v1751 = vpack.c.bf16 %v1143, %v1143
    %v1752 = vpack.c.bf16 %v1152, %v1152
    %v1753 = vpack.c.bf16 %v1161, %v1161
    %v1754 = vpack.c.bf16 %v1170, %v1170
    %v1755 = vpack.c.bf16 %v1179, %v1179
    %v1756 = vpack.c.bf16 %v1188, %v1188
    %v1757 = vpack.c.bf16 %v1197, %v1197
    %v1758 = vpack.c.bf16 %v1206, %v1206
    %v1759 = vpack.c.bf16 %v1215, %v1215
    %v1760 = vpack.c.bf16 %v1224, %v1224
    %v1761 = vpack.c.bf16 %v1233, %v1233
    %v1762 = vpack.c.bf16 %v1242, %v1242
    %v1763 = vpack.c.bf16 %v1251, %v1251
    %v1764 = vpack.c.bf16 %v1260, %v1260
    %v1765 = vpack.c.bf16 %v1269, %v1269
    %v1766 = vpack.c.bf16 %v1278, %v1278
    %v1767 = vpack.c.bf16 %v1287, %v1287
    %v1768 = vpack.c.bf16 %v1296, %v1296
    %v1769 = vpack.c.bf16 %v1305, %v1305
    %v1770 = vpack.c.bf16 %v1314, %v1314
    %v1771 = vpack.c.bf16 %v1323, %v1323
    %v1772 = vpack.c.bf16 %v1332, %v1332
    %v1773 = vpack.c.bf16 %v1341, %v1341
    %v1774 = vpack.c.bf16 %v1350, %v1350
    %v1775 = vpack.c.bf16 %v1359, %v1359
    %v1776 = vpack.c.bf16 %v1368, %v1368
    %v1777 = vpack.c.bf16 %v1377, %v1377
    %v1778 = vpack.c.bf16 %v1386, %v1386
    %v1779 = vpack.c.bf16 %v1395, %v1395
    %v1780 = vpack.c.bf16 %v1404, %v1404
    %v1781 = vpack.c.bf16 %v1413, %v1413
    %v1782 = vpack.c.bf16 %v1422, %v1422
    %v1783 = vpack.c.bf16 %v1431, %v1431
    %v1784 = vpack.c.bf16 %v1440, %v1440
    %v1785 = vpack.c.bf16 %v1449, %v1449
    %v1786 = vpack.c.bf16 %v1458, %v1458
    %v1787 = vpack.c.bf16 %v1467, %v1467
    %v1788 = vpack.c.bf16 %v1476, %v1476
    %v1789 = vpack.c.bf16 %v1485, %v1485
    %v1790 = vpack.c.bf16 %v1494, %v1494
    %v1791 = vpack.c.bf16 %v1503, %v1503
    %v1792 = vpack.c.bf16 %v1512, %v1512
    %v1793 = vpack.c.bf16 %v1521, %v1521
    %v1794 = vpack.c.bf16 %v1530, %v1530
    %v1795 = vpack.c.bf16 %v1539, %v1539
    %v1796 = vpack.c.bf16 %v1548, %v1548
    %v1797 = vpack.c.bf16 %v1557, %v1557
    %v1798 = vpack.c.bf16 %v1566, %v1566
    %v1799 = vpack.c.bf16 %v1575, %v1575
    %v1800 = vpack.c.bf16 %v1584, %v1584
    %v1801 = vpack.c.bf16 %v1593, %v1593
    %v1802 = vpack.c.bf16 %v1602, %v1602
    %v1803 = vpack.c.bf16 %v1611, %v1611
    %v1804 = vpack.c.bf16 %v1620, %v1620
    %v1805 = vpack.c.bf16 %v1629, %v1629
    %v1806 = vpack.c.bf16 %v1638, %v1638
    %v1807 = vpack.c.bf16 %v1647, %v1647
    %v1808 = vpack.c.bf16 %v1656, %v1656
    %v1809 = vpack.c.bf16 %v1665, %v1665
    %v1810 = vpack.c.bf16 %v1674, %v1674
    %v1811 = vpack.c.bf16 %v1683, %v1683
    %v1940 = vunpack.c.l.b16 %v1684
    %v1941 = vunpack.c.l.b16 %v1685
    %v1942 = vunpack.c.l.b16 %v1686
    %v1943 = vunpack.c.l.b16 %v1687
    %v1944 = vunpack.c.l.b16 %v1688
    %v1945 = vunpack.c.l.b16 %v1689
    %v1946 = vunpack.c.l.b16 %v1690
    %v1947 = vunpack.c.l.b16 %v1691
    %v1948 = vunpack.c.l.b16 %v1692
    %v1949 = vunpack.c.l.b16 %v1693
    %v1950 = vunpack.c.l.b16 %v1694
    %v1951 = vunpack.c.l.b16 %v1695
    %v1952 = vunpack.c.l.b16 %v1696
    %v1953 = vunpack.c.l.b16 %v1697
    %v1954 = vunpack.c.l.b16 %v1698
    %v1955 = vunpack.c.l.b16 %v1699
    %v1956 = vunpack.c.l.b16 %v1700
    %v1957 = vunpack.c.l.b16 %v1701
    %v1958 = vunpack.c.l.b16 %v1702
    %v1959 = vunpack.c.l.b16 %v1703
    %v1960 = vunpack.c.l.b16 %v1704
    %v1961 = vunpack.c.l.b16 %v1705
    %v1962 = vunpack.c.l.b16 %v1706
    %v1963 = vunpack.c.l.b16 %v1707
    %v1964 = vunpack.c.l.b16 %v1708
    %v1965 = vunpack.c.l.b16 %v1709
    %v1966 = vunpack.c.l.b16 %v1710
    %v1967 = vunpack.c.l.b16 %v1711
    %v1968 = vunpack.c.l.b16 %v1712
    %v1969 = vunpack.c.l.b16 %v1713
    %v1970 = vunpack.c.l.b16 %v1714
    %v1971 = vunpack.c.l.b16 %v1715
    %v1972 = vunpack.c.l.b16 %v1716
    %v1973 = vunpack.c.l.b16 %v1717
    %v1974 = vunpack.c.l.b16 %v1718
    %v1975 = vunpack.c.l.b16 %v1719
    %v1976 = vunpack.c.l.b16 %v1720
    %v1977 = vunpack.c.l.b16 %v1721
    %v1978 = vunpack.c.l.b16 %v1722
    %v1979 = vunpack.c.l.b16 %v1723
    %v1980 = vunpack.c.l.b16 %v1724
    %v1981 = vunpack.c.l.b16 %v1725
    %v1982 = vunpack.c.l.b16 %v1726
    %v1983 = vunpack.c.l.b16 %v1727
    %v1984 = vunpack.c.l.b16 %v1728
    %v1985 = vunpack.c.l.b16 %v1729
    %v1986 = vunpack.c.l.b16 %v1730
    %v1987 = vunpack.c.l.b16 %v1731
    %v1988 = vunpack.c.l.b16 %v1732
    %v1989 = vunpack.c.l.b16 %v1733
    %v1990 = vunpack.c.l.b16 %v1734
    %v1991 = vunpack.c.l.b16 %v1735
    %v1992 = vunpack.c.l.b16 %v1736
    %v1993 = vunpack.c.l.b16 %v1737
    %v1994 = vunpack.c.l.b16 %v1738
    %v1995 = vunpack.c.l.b16 %v1739
    %v1996 = vunpack.c.l.b16 %v1740
    %v1997 = vunpack.c.l.b16 %v1741
    %v1998 = vunpack.c.l.b16 %v1742
    %v1999 = vunpack.c.l.b16 %v1743
    %v2000 = vunpack.c.l.b16 %v1744
    %v2001 = vunpack.c.l.b16 %v1745
    %v2002 = vunpack.c.l.b16 %v1746
    %v2003 = vunpack.c.l.b16 %v1747
    %v2004 = vunpack.c.l.b16 %v1748
    %v2005 = vunpack.c.l.b16 %v1749
    %v2006 = vunpack.c.l.b16 %v1750
    %v2007 = vunpack.c.l.b16 %v1751
    %v2008 = vunpack.c.l.b16 %v1752
    %v2009 = vunpack.c.l.b16 %v1753
    %v2010 = vunpack.c.l.b16 %v1754
    %v2011 = vunpack.c.l.b16 %v1755
    %v2012 = vunpack.c.l.b16 %v1756
    %v2013 = vunpack.c.l.b16 %v1757
    %v2014 = vunpack.c.l.b16 %v1758
    %v2015 = vunpack.c.l.b16 %v1759
    %v2016 = vunpack.c.l.b16 %v1760
    %v2017 = vunpack.c.l.b16 %v1761
    %v2018 = vunpack.c.l.b16 %v1762
    %v2019 = vunpack.c.l.b16 %v1763
    %v2020 = vunpack.c.l.b16 %v1764
    %v2021 = vunpack.c.l.b16 %v1765
    %v2022 = vunpack.c.l.b16 %v1766
    %v2023 = vunpack.c.l.b16 %v1767
    %v2024 = vunpack.c.l.b16 %v1768
    %v2025 = vunpack.c.l.b16 %v1769
    %v2026 = vunpack.c.l.b16 %v1770
    %v2027 = vunpack.c.l.b16 %v1771
    %v2028 = vunpack.c.l.b16 %v1772
    %v2029 = vunpack.c.l.b16 %v1773
    %v2030 = vunpack.c.l.b16 %v1774
    %v2031 = vunpack.c.l.b16 %v1775
    %v2032 = vunpack.c.l.b16 %v1776
    %v2033 = vunpack.c.l.b16 %v1777
    %v2034 = vunpack.c.l.b16 %v1778
    %v2035 = vunpack.c.l.b16 %v1779
    %v2036 = vunpack.c.l.b16 %v1780
    %v2037 = vunpack.c.l.b16 %v1781
    %v2038 = vunpack.c.l.b16 %v1782
    %v2039 = vunpack.c.l.b16 %v1783
    %v2040 = vunpack.c.l.b16 %v1784
    %v2041 = vunpack.c.l.b16 %v1785
    %v2042 = vunpack.c.l.b16 %v1786
    %v2043 = vunpack.c.l.b16 %v1787
    %v2044 = vunpack.c.l.b16 %v1788
    %v2045 = vunpack.c.l.b16 %v1789
    %v2046 = vunpack.c.l.b16 %v1790
    %v2047 = vunpack.c.l.b16 %v1791
    %v2048 = vunpack.c.l.b16 %v1792
    %v2049 = vunpack.c.l.b16 %v1793
    %v2050 = vunpack.c.l.b16 %v1794
    %v2051 = vunpack.c.l.b16 %v1795
    %v2052 = vunpack.c.l.b16 %v1796
    %v2053 = vunpack.c.l.b16 %v1797
    %v2054 = vunpack.c.l.b16 %v1798
    %v2055 = vunpack.c.l.b16 %v1799
    %v2056 = vunpack.c.l.b16 %v1800
    %v2057 = vunpack.c.l.b16 %v1801
    %v2058 = vunpack.c.l.b16 %v1802
    %v2059 = vunpack.c.l.b16 %v1803
    %v2060 = vunpack.c.l.b16 %v1804
    %v2061 = vunpack.c.l.b16 %v1805
    %v2062 = vunpack.c.l.b16 %v1806
    %v2063 = vunpack.c.l.b16 %v1807
    %v2064 = vunpack.c.l.b16 %v1808
    %v2065 = vunpack.c.l.b16 %v1809
    %v2066 = vunpack.c.l.b16 %v1810
    %v2067 = vunpack.c.l.b16 %v1811
    %v2068 = vpack.c.b16 %v1940, %v1940
    %v2069 = vpack.c.b16 %v1941, %v1941
    %v2070 = vpack.c.b16 %v1942, %v1942
    %v2071 = vpack.c.b16 %v1943, %v1943
    %v2072 = vpack.c.b16 %v1944, %v1944
    %v2073 = vpack.c.b16 %v1945, %v1945
    %v2074 = vpack.c.b16 %v1946, %v1946
    %v2075 = vpack.c.b16 %v1947, %v1947
    %v2076 = vpack.c.b16 %v1948, %v1948
    %v2077 = vpack.c.b16 %v1949, %v1949
    %v2078 = vpack.c.b16 %v1950, %v1950
    %v2079 = vpack.c.b16 %v1951, %v1951
    %v2080 = vpack.c.b16 %v1952, %v1952
    %v2081 = vpack.c.b16 %v1953, %v1953
    %v2082 = vpack.c.b16 %v1954, %v1954
    %v2083 = vpack.c.b16 %v1955, %v1955
    %v2084 = vpack.c.b16 %v1956, %v1956
    %v2085 = vpack.c.b16 %v1957, %v1957
    %v2086 = vpack.c.b16 %v1958, %v1958
    %v2087 = vpack.c.b16 %v1959, %v1959
    %v2088 = vpack.c.b16 %v1960, %v1960
    %v2089 = vpack.c.b16 %v1961, %v1961
    %v2090 = vpack.c.b16 %v1962, %v1962
    %v2091 = vpack.c.b16 %v1963, %v1963
    %v2092 = vpack.c.b16 %v1964, %v1964
    %v2093 = vpack.c.b16 %v1965, %v1965
    %v2094 = vpack.c.b16 %v1966, %v1966
    %v2095 = vpack.c.b16 %v1967, %v1967
    %v2096 = vpack.c.b16 %v1968, %v1968
    %v2097 = vpack.c.b16 %v1969, %v1969
    %v2098 = vpack.c.b16 %v1970, %v1970
    %v2099 = vpack.c.b16 %v1971, %v1971
    %v2100 = vpack.c.b16 %v1972, %v1972
    %v2101 = vpack.c.b16 %v1973, %v1973
    %v2102 = vpack.c.b16 %v1974, %v1974
    %v2103 = vpack.c.b16 %v1975, %v1975
    %v2104 = vpack.c.b16 %v1976, %v1976
    %v2105 = vpack.c.b16 %v1977, %v1977
    %v2106 = vpack.c.b16 %v1978, %v1978
    %v2107 = vpack.c.b16 %v1979, %v1979
    %v2108 = vpack.c.b16 %v1980, %v1980
    %v2109 = vpack.c.b16 %v1981, %v1981
    %v2110 = vpack.c.b16 %v1982, %v1982
    %v2111 = vpack.c.b16 %v1983, %v1983
    %v2112 = vpack.c.b16 %v1984, %v1984
    %v2113 = vpack.c.b16 %v1985, %v1985
    %v2114 = vpack.c.b16 %v1986, %v1986
    %v2115 = vpack.c.b16 %v1987, %v1987
    %v2116 = vpack.c.b16 %v1988, %v1988
    %v2117 = vpack.c.b16 %v1989, %v1989
    %v2118 = vpack.c.b16 %v1990, %v1990
    %v2119 = vpack.c.b16 %v1991, %v1991
    %v2120 = vpack.c.b16 %v1992, %v1992
    %v2121 = vpack.c.b16 %v1993, %v1993
    %v2122 = vpack.c.b16 %v1994, %v1994
    %v2123 = vpack.c.b16 %v1995, %v1995
    %v2124 = vpack.c.b16 %v1996, %v1996
    %v2125 = vpack.c.b16 %v1997, %v1997
    %v2126 = vpack.c.b16 %v1998, %v1998
    %v2127 = vpack.c.b16 %v1999, %v1999
    %v2128 = vpack.c.b16 %v2000, %v2000
    %v2129 = vpack.c.b16 %v2001, %v2001
    %v2130 = vpack.c.b16 %v2002, %v2002
    %v2131 = vpack.c.b16 %v2003, %v2003
    %v2132 = vpack.c.b16 %v2004, %v2004
    %v2133 = vpack.c.b16 %v2005, %v2005
    %v2134 = vpack.c.b16 %v2006, %v2006
    %v2135 = vpack.c.b16 %v2007, %v2007
    %v2136 = vpack.c.b16 %v2008, %v2008
    %v2137 = vpack.c.b16 %v2009, %v2009
    %v2138 = vpack.c.b16 %v2010, %v2010
    %v2139 = vpack.c.b16 %v2011, %v2011
    %v2140 = vpack.c.b16 %v2012, %v2012
    %v2141 = vpack.c.b16 %v2013, %v2013
    %v2142 = vpack.c.b16 %v2014, %v2014
    %v2143 = vpack.c.b16 %v2015, %v2015
    %v2144 = vpack.c.b16 %v2016, %v2016
    %v2145 = vpack.c.b16 %v2017, %v2017
    %v2146 = vpack.c.b16 %v2018, %v2018
    %v2147 = vpack.c.b16 %v2019, %v2019
    %v2148 = vpack.c.b16 %v2020, %v2020
    %v2149 = vpack.c.b16 %v2021, %v2021
    %v2150 = vpack.c.b16 %v2022, %v2022
    %v2151 = vpack.c.b16 %v2023, %v2023
    %v2152 = vpack.c.b16 %v2024, %v2024
    %v2153 = vpack.c.b16 %v2025, %v2025
    %v2154 = vpack.c.b16 %v2026, %v2026
    %v2155 = vpack.c.b16 %v2027, %v2027
    %v2156 = vpack.c.b16 %v2028, %v2028
    %v2157 = vpack.c.b16 %v2029, %v2029
    %v2158 = vpack.c.b16 %v2030, %v2030
    %v2159 = vpack.c.b16 %v2031, %v2031
    %v2160 = vpack.c.b16 %v2032, %v2032
    %v2161 = vpack.c.b16 %v2033, %v2033
    %v2162 = vpack.c.b16 %v2034, %v2034
    %v2163 = vpack.c.b16 %v2035, %v2035
    %v2164 = vpack.c.b16 %v2036, %v2036
    %v2165 = vpack.c.b16 %v2037, %v2037
    %v2166 = vpack.c.b16 %v2038, %v2038
    %v2167 = vpack.c.b16 %v2039, %v2039
    %v2168 = vpack.c.b16 %v2040, %v2040
    %v2169 = vpack.c.b16 %v2041, %v2041
    %v2170 = vpack.c.b16 %v2042, %v2042
    %v2171 = vpack.c.b16 %v2043, %v2043
    %v2172 = vpack.c.b16 %v2044, %v2044
    %v2173 = vpack.c.b16 %v2045, %v2045
    %v2174 = vpack.c.b16 %v2046, %v2046
    %v2175 = vpack.c.b16 %v2047, %v2047
    %v2176 = vpack.c.b16 %v2048, %v2048
    %v2177 = vpack.c.b16 %v2049, %v2049
    %v2178 = vpack.c.b16 %v2050, %v2050
    %v2179 = vpack.c.b16 %v2051, %v2051
    %v2180 = vpack.c.b16 %v2052, %v2052
    %v2181 = vpack.c.b16 %v2053, %v2053
    %v2182 = vpack.c.b16 %v2054, %v2054
    %v2183 = vpack.c.b16 %v2055, %v2055
    %v2184 = vpack.c.b16 %v2056, %v2056
    %v2185 = vpack.c.b16 %v2057, %v2057
    %v2186 = vpack.c.b16 %v2058, %v2058
    %v2187 = vpack.c.b16 %v2059, %v2059
    %v2188 = vpack.c.b16 %v2060, %v2060
    %v2189 = vpack.c.b16 %v2061, %v2061
    %v2190 = vpack.c.b16 %v2062, %v2062
    %v2191 = vpack.c.b16 %v2063, %v2063
    %v2192 = vpack.c.b16 %v2064, %v2064
    %v2193 = vpack.c.b16 %v2065, %v2065
    %v2194 = vpack.c.b16 %v2066, %v2066
    %v2195 = vpack.c.b16 %v2067, %v2067
    %v2196 = vunpack.c.l.b16 %v2068
    %v2197 = vunpack.c.l.b16 %v2069
    %v2198 = vunpack.c.l.b16 %v2070
    %v2199 = vunpack.c.l.b16 %v2071
    %v2200 = vunpack.c.l.b16 %v2072
    %v2201 = vunpack.c.l.b16 %v2073
    %v2202 = vunpack.c.l.b16 %v2074
    %v2203 = vunpack.c.l.b16 %v2075
    %v2204 = vunpack.c.l.b16 %v2076
    %v2205 = vunpack.c.l.b16 %v2077
    %v2206 = vunpack.c.l.b16 %v2078
    %v2207 = vunpack.c.l.b16 %v2079
    %v2208 = vunpack.c.l.b16 %v2080
    %v2209 = vunpack.c.l.b16 %v2081
    %v2210 = vunpack.c.l.b16 %v2082
    %v2211 = vunpack.c.l.b16 %v2083
    %v2212 = vunpack.c.l.b16 %v2084
    %v2213 = vunpack.c.l.b16 %v2085
    %v2214 = vunpack.c.l.b16 %v2086
    %v2215 = vunpack.c.l.b16 %v2087
    %v2216 = vunpack.c.l.b16 %v2088
    %v2217 = vunpack.c.l.b16 %v2089
    %v2218 = vunpack.c.l.b16 %v2090
    %v2219 = vunpack.c.l.b16 %v2091
    %v2220 = vunpack.c.l.b16 %v2092
    %v2221 = vunpack.c.l.b16 %v2093
    %v2222 = vunpack.c.l.b16 %v2094
    %v2223 = vunpack.c.l.b16 %v2095
    %v2224 = vunpack.c.l.b16 %v2096
    %v2225 = vunpack.c.l.b16 %v2097
    %v2226 = vunpack.c.l.b16 %v2098
    %v2227 = vunpack.c.l.b16 %v2099
    %v2228 = vunpack.c.l.b16 %v2100
    %v2229 = vunpack.c.l.b16 %v2101
    %v2230 = vunpack.c.l.b16 %v2102
    %v2231 = vunpack.c.l.b16 %v2103
    %v2232 = vunpack.c.l.b16 %v2104
    %v2233 = vunpack.c.l.b16 %v2105
    %v2234 = vunpack.c.l.b16 %v2106
    %v2235 = vunpack.c.l.b16 %v2107
    %v2236 = vunpack.c.l.b16 %v2108
    %v2237 = vunpack.c.l.b16 %v2109
    %v2238 = vunpack.c.l.b16 %v2110
    %v2239 = vunpack.c.l.b16 %v2111
    %v2240 = vunpack.c.l.b16 %v2112
    %v2241 = vunpack.c.l.b16 %v2113
    %v2242 = vunpack.c.l.b16 %v2114
    %v2243 = vunpack.c.l.b16 %v2115
    %v2244 = vunpack.c.l.b16 %v2116
    %v2245 = vunpack.c.l.b16 %v2117
    %v2246 = vunpack.c.l.b16 %v2118
    %v2247 = vunpack.c.l.b16 %v2119
    %v2248 = vunpack.c.l.b16 %v2120
    %v2249 = vunpack.c.l.b16 %v2121
    %v2250 = vunpack.c.l.b16 %v2122
    %v2251 = vunpack.c.l.b16 %v2123
    %v2252 = vunpack.c.l.b16 %v2124
    %v2253 = vunpack.c.l.b16 %v2125
    %v2254 = vunpack.c.l.b16 %v2126
    %v2255 = vunpack.c.l.b16 %v2127
    %v2256 = vunpack.c.l.b16 %v2128
    %v2257 = vunpack.c.l.b16 %v2129
    %v2258 = vunpack.c.l.b16 %v2130
    %v2259 = vunpack.c.l.b16 %v2131
    %v2260 = vunpack.c.l.b16 %v2132
    %v2261 = vunpack.c.l.b16 %v2133
    %v2262 = vunpack.c.l.b16 %v2134
    %v2263 = vunpack.c.l.b16 %v2135
    %v2264 = vunpack.c.l.b16 %v2136
    %v2265 = vunpack.c.l.b16 %v2137
    %v2266 = vunpack.c.l.b16 %v2138
    %v2267 = vunpack.c.l.b16 %v2139
    %v2268 = vunpack.c.l.b16 %v2140
    %v2269 = vunpack.c.l.b16 %v2141
    %v2270 = vunpack.c.l.b16 %v2142
    %v2271 = vunpack.c.l.b16 %v2143
    %v2272 = vunpack.c.l.b16 %v2144
    %v2273 = vunpack.c.l.b16 %v2145
    %v2274 = vunpack.c.l.b16 %v2146
    %v2275 = vunpack.c.l.b16 %v2147
    %v2276 = vunpack.c.l.b16 %v2148
    %v2277 = vunpack.c.l.b16 %v2149
    %v2278 = vunpack.c.l.b16 %v2150
    %v2279 = vunpack.c.l.b16 %v2151
    %v2280 = vunpack.c.l.b16 %v2152
    %v2281 = vunpack.c.l.b16 %v2153
    %v2282 = vunpack.c.l.b16 %v2154
    %v2283 = vunpack.c.l.b16 %v2155
    %v2284 = vunpack.c.l.b16 %v2156
    %v2285 = vunpack.c.l.b16 %v2157
    %v2286 = vunpack.c.l.b16 %v2158
    %v2287 = vunpack.c.l.b16 %v2159
    %v2288 = vunpack.c.l.b16 %v2160
    %v2289 = vunpack.c.l.b16 %v2161
    %v2290 = vunpack.c.l.b16 %v2162
    %v2291 = vunpack.c.l.b16 %v2163
    %v2292 = vunpack.c.l.b16 %v2164
    %v2293 = vunpack.c.l.b16 %v2165
    %v2294 = vunpack.c.l.b16 %v2166
    %v2295 = vunpack.c.l.b16 %v2167
    %v2296 = vunpack.c.l.b16 %v2168
    %v2297 = vunpack.c.l.b16 %v2169
    %v2298 = vunpack.c.l.b16 %v2170
    %v2299 = vunpack.c.l.b16 %v2171
    %v2300 = vunpack.c.l.b16 %v2172
    %v2301 = vunpack.c.l.b16 %v2173
    %v2302 = vunpack.c.l.b16 %v2174
    %v2303 = vunpack.c.l.b16 %v2175
    %v2304 = vunpack.c.l.b16 %v2176
    %v2305 = vunpack.c.l.b16 %v2177
    %v2306 = vunpack.c.l.b16 %v2178
    %v2307 = vunpack.c.l.b16 %v2179
    %v2308 = vunpack.c.l.b16 %v2180
    %v2309 = vunpack.c.l.b16 %v2181
    %v2310 = vunpack.c.l.b16 %v2182
    %v2311 = vunpack.c.l.b16 %v2183
    %v2312 = vunpack.c.l.b16 %v2184
    %v2313 = vunpack.c.l.b16 %v2185
    %v2314 = vunpack.c.l.b16 %v2186
    %v2315 = vunpack.c.l.b16 %v2187
    %v2316 = vunpack.c.l.b16 %v2188
    %v2317 = vunpack.c.l.b16 %v2189
    %v2318 = vunpack.c.l.b16 %v2190
    %v2319 = vunpack.c.l.b16 %v2191
    %v2320 = vunpack.c.l.b16 %v2192
    %v2321 = vunpack.c.l.b16 %v2193
    %v2322 = vunpack.c.l.b16 %v2194
    %v2323 = vunpack.c.l.b16 %v2195
    %vm2324 = vcmask 1041409
    %v2325 = vsel %vm2324, %v2197, %v2196
    %vm2326 = vcmask 1042434
    %v2327 = vsel %vm2326, %v2198, %v2325
    %vm2328 = vcmask 1043459
    %v2329 = vsel %vm2328, %v2199, %v2327
    %vm2330 = vcmask 1044484
    %v2331 = vsel %vm2330, %v2200, %v2329
    %vm2332 = vcmask 1045509
    %v2333 = vsel %vm2332, %v2201, %v2331
    %vm2334 = vcmask 1046534
    %v2335 = vsel %vm2334, %v2202, %v2333
    %vm2336 = vcmask 1047559
    %v2337 = vsel %vm2336, %v2203, %v2335
    %v2338 = vsel %vm2324, %v2205, %v2204
    %v2339 = vsel %vm2326, %v2206, %v2338
    %v2340 = vsel %vm2328, %v2207, %v2339
    %v2341 = vsel %vm2330, %v2208, %v2340
    %v2342 = vsel %vm2332, %v2209, %v2341
    %v2343 = vsel %vm2334, %v2210, %v2342
    %v2344 = vsel %vm2336, %v2211, %v2343
    %v2345 = vsel %vm2324, %v2213, %v2212
    %v2346 = vsel %vm2326, %v2214, %v2345
    %v2347 = vsel %vm2328, %v2215, %v2346
    %v2348 = vsel %vm2330, %v2216, %v2347
    %v2349 = vsel %vm2332, %v2217, %v2348
    %v2350 = vsel %vm2334, %v2218, %v2349
    %v2351 = vsel %vm2336, %v2219, %v2350
    %v2352 = vsel %vm2324, %v2221, %v2220
    %v2353 = vsel %vm2326, %v2222, %v2352
    %v2354 = vsel %vm2328, %v2223, %v2353
    %v2355 = vsel %vm2330, %v2224, %v2354
    %v2356 = vsel %vm2332, %v2225, %v2355
    %v2357 = vsel %vm2334, %v2226, %v2356
    %v2358 = vsel %vm2336, %v2227, %v2357
    %v2359 = vsel %vm2324, %v2229, %v2228
    %v2360 = vsel %vm2326, %v2230, %v2359
    %v2361 = vsel %vm2328, %v2231, %v2360
    %v2362 = vsel %vm2330, %v2232, %v2361
    %v2363 = vsel %vm2332, %v2233, %v2362
    %v2364 = vsel %vm2334, %v2234, %v2363
    %v2365 = vsel %vm2336, %v2235, %v2364
    %v2366 = vsel %vm2324, %v2237, %v2236
    %v2367 = vsel %vm2326, %v2238, %v2366
    %v2368 = vsel %vm2328, %v2239, %v2367
    %v2369 = vsel %vm2330, %v2240, %v2368
    %v2370 = vsel %vm2332, %v2241, %v2369
    %v2371 = vsel %vm2334, %v2242, %v2370
    %v2372 = vsel %vm2336, %v2243, %v2371
    %v2373 = vsel %vm2324, %v2245, %v2244
    %v2374 = vsel %vm2326, %v2246, %v2373
    %v2375 = vsel %vm2328, %v2247, %v2374
    %v2376 = vsel %vm2330, %v2248, %v2375
    %v2377 = vsel %vm2332, %v2249, %v2376
    %v2378 = vsel %vm2334, %v2250, %v2377
    %v2379 = vsel %vm2336, %v2251, %v2378
    %v2380 = vsel %vm2324, %v2253, %v2252
    %v2381 = vsel %vm2326, %v2254, %v2380
    %v2382 = vsel %vm2328, %v2255, %v2381
    %v2383 = vsel %vm2330, %v2256, %v2382
    %v2384 = vsel %vm2332, %v2257, %v2383
    %v2385 = vsel %vm2334, %v2258, %v2384
    %v2386 = vsel %vm2336, %v2259, %v2385
    %v2387 = vsel %vm2324, %v2261, %v2260
    %v2388 = vsel %vm2326, %v2262, %v2387
    %v2389 = vsel %vm2328, %v2263, %v2388
    %v2390 = vsel %vm2330, %v2264, %v2389
    %v2391 = vsel %vm2332, %v2265, %v2390
    %v2392 = vsel %vm2334, %v2266, %v2391
    %v2393 = vsel %vm2336, %v2267, %v2392
    %v2394 = vsel %vm2324, %v2269, %v2268
    %v2395 = vsel %vm2326, %v2270, %v2394
    %v2396 = vsel %vm2328, %v2271, %v2395
    %v2397 = vsel %vm2330, %v2272, %v2396
    %v2398 = vsel %vm2332, %v2273, %v2397
    %v2399 = vsel %vm2334, %v2274, %v2398
    %v2400 = vsel %vm2336, %v2275, %v2399
    %v2401 = vsel %vm2324, %v2277, %v2276
    %v2402 = vsel %vm2326, %v2278, %v2401
    %v2403 = vsel %vm2328, %v2279, %v2402
    %v2404 = vsel %vm2330, %v2280, %v2403
    %v2405 = vsel %vm2332, %v2281, %v2404
    %v2406 = vsel %vm2334, %v2282, %v2405
    %v2407 = vsel %vm2336, %v2283, %v2406
    %v2408 = vsel %vm2324, %v2285, %v2284
    %v2409 = vsel %vm2326, %v2286, %v2408
    %v2410 = vsel %vm2328, %v2287, %v2409
    %v2411 = vsel %vm2330, %v2288, %v2410
    %v2412 = vsel %vm2332, %v2289, %v2411
    %v2413 = vsel %vm2334, %v2290, %v2412
    %v2414 = vsel %vm2336, %v2291, %v2413
    %v2415 = vsel %vm2324, %v2293, %v2292
    %v2416 = vsel %vm2326, %v2294, %v2415
    %v2417 = vsel %vm2328, %v2295, %v2416
    %v2418 = vsel %vm2330, %v2296, %v2417
    %v2419 = vsel %vm2332, %v2297, %v2418
    %v2420 = vsel %vm2334, %v2298, %v2419
    %v2421 = vsel %vm2336, %v2299, %v2420
    %v2422 = vsel %vm2324, %v2301, %v2300
    %v2423 = vsel %vm2326, %v2302, %v2422
    %v2424 = vsel %vm2328, %v2303, %v2423
    %v2425 = vsel %vm2330, %v2304, %v2424
    %v2426 = vsel %vm2332, %v2305, %v2425
    %v2427 = vsel %vm2334, %v2306, %v2426
    %v2428 = vsel %vm2336, %v2307, %v2427
    %v2429 = vsel %vm2324, %v2309, %v2308
    %v2430 = vsel %vm2326, %v2310, %v2429
    %v2431 = vsel %vm2328, %v2311, %v2430
    %v2432 = vsel %vm2330, %v2312, %v2431
    %v2433 = vsel %vm2332, %v2313, %v2432
    %v2434 = vsel %vm2334, %v2314, %v2433
    %v2435 = vsel %vm2336, %v2315, %v2434
    %v2436 = vsel %vm2324, %v2317, %v2316
    %v2437 = vsel %vm2326, %v2318, %v2436
    %v2438 = vsel %vm2328, %v2319, %v2437
    %v2439 = vsel %vm2330, %v2320, %v2438
    %v2440 = vsel %vm2332, %v2321, %v2439
    %v2441 = vsel %vm2334, %v2322, %v2440
    %v2442 = vsel %vm2336, %v2323, %v2441
    %v2443 = vpack.c.b16 %v2337, %v2337
    %v2444 = vpack.c.b16 %v2344, %v2344
    %v2445 = vpack.c.b16 %v2351, %v2351
    %v2446 = vpack.c.b16 %v2358, %v2358
    %v2447 = vpack.c.b16 %v2365, %v2365
    %v2448 = vpack.c.b16 %v2372, %v2372
    %v2449 = vpack.c.b16 %v2379, %v2379
    %v2450 = vpack.c.b16 %v2386, %v2386
    %v2451 = vpack.c.b16 %v2393, %v2393
    %v2452 = vpack.c.b16 %v2400, %v2400
    %v2453 = vpack.c.b16 %v2407, %v2407
    %v2454 = vpack.c.b16 %v2414, %v2414
    %v2455 = vpack.c.b16 %v2421, %v2421
    %v2456 = vpack.c.b16 %v2428, %v2428
    %v2457 = vpack.c.b16 %v2435, %v2435
    %v2458 = vpack.c.b16 %v2442, %v2442
    %vm2475 = vcmask 125952
    %2476 = vst.msk [vmem:[%s3] sm:$0xf] %vm2475, %v2443
    %2477 = vst.msk [vmem:[%s3 + $0x4] sm:$0xf] %vm2475, %v2444
    %2478 = vst.msk [vmem:[%s3 + $0x8] sm:$0xf] %vm2475, %v2445
    %2479 = vst.msk [vmem:[%s3 + $0xc] sm:$0xf] %vm2475, %v2446
    %2480 = vst.msk [vmem:[%s3 + $0x10] sm:$0xf] %vm2475, %v2447
    %2481 = vst.msk [vmem:[%s3 + $0x14] sm:$0xf] %vm2475, %v2448
    %2482 = vst.msk [vmem:[%s3 + $0x18] sm:$0xf] %vm2475, %v2449
    %2483 = vst.msk [vmem:[%s3 + $0x1c] sm:$0xf] %vm2475, %v2450
    %2484 = vst.msk [vmem:[%s3 + $0x20] sm:$0xf] %vm2475, %v2451
    %2485 = vst.msk [vmem:[%s3 + $0x24] sm:$0xf] %vm2475, %v2452
    %2486 = vst.msk [vmem:[%s3 + $0x28] sm:$0xf] %vm2475, %v2453
    %2487 = vst.msk [vmem:[%s3 + $0x2c] sm:$0xf] %vm2475, %v2454
    %2488 = vst.msk [vmem:[%s3 + $0x30] sm:$0xf] %vm2475, %v2455
    %2489 = vst.msk [vmem:[%s3 + $0x34] sm:$0xf] %vm2475, %v2456
    %2490 = vst.msk [vmem:[%s3 + $0x38] sm:$0xf] %vm2475, %v2457
    %2491 = vst.msk [vmem:[%s3 + $0x3c] sm:$0xf] %vm2475, %v2458
    %v2492 = vld [vmem:[%s1] sm:$0xf]
    %v2493 = vld [vmem:[%s1 + $0x4] sm:$0xf]
    %v2494 = vld [vmem:[%s2] sm:$0x1]
    %v2496 = vlaneseq
    %v2497 = vshrl.u32 %v2496, 7
    %v2498 = vsub.s32 0, %v2497
    %v2499 = vrot.slane %v2494, %v2498
    %v2501 = vsel %vm2324, %v1941, %v1940
    %v2502 = vsel %vm2326, %v1942, %v2501
    %v2503 = vsel %vm2328, %v1943, %v2502
    %v2504 = vsel %vm2330, %v1944, %v2503
    %v2505 = vsel %vm2332, %v1945, %v2504
    %v2506 = vsel %vm2334, %v1946, %v2505
    %v2507 = vsel %vm2336, %v1947, %v2506
    %v2508 = vsel %vm2324, %v1949, %v1948
    %v2509 = vsel %vm2326, %v1950, %v2508
    %v2510 = vsel %vm2328, %v1951, %v2509
    %v2511 = vsel %vm2330, %v1952, %v2510
    %v2512 = vsel %vm2332, %v1953, %v2511
    %v2513 = vsel %vm2334, %v1954, %v2512
    %v2514 = vsel %vm2336, %v1955, %v2513
    %v2515 = vsel %vm2324, %v1957, %v1956
    %v2516 = vsel %vm2326, %v1958, %v2515
    %v2517 = vsel %vm2328, %v1959, %v2516
    %v2518 = vsel %vm2330, %v1960, %v2517
    %v2519 = vsel %vm2332, %v1961, %v2518
    %v2520 = vsel %vm2334, %v1962, %v2519
    %v2521 = vsel %vm2336, %v1963, %v2520
    %v2522 = vsel %vm2324, %v1965, %v1964
    %v2523 = vsel %vm2326, %v1966, %v2522
    %v2524 = vsel %vm2328, %v1967, %v2523
    %v2525 = vsel %vm2330, %v1968, %v2524
    %v2526 = vsel %vm2332, %v1969, %v2525
    %v2527 = vsel %vm2334, %v1970, %v2526
    %v2528 = vsel %vm2336, %v1971, %v2527
    %v2529 = vsel %vm2324, %v1973, %v1972
    %v2530 = vsel %vm2326, %v1974, %v2529
    %v2531 = vsel %vm2328, %v1975, %v2530
    %v2532 = vsel %vm2330, %v1976, %v2531
    %v2533 = vsel %vm2332, %v1977, %v2532
    %v2534 = vsel %vm2334, %v1978, %v2533
    %v2535 = vsel %vm2336, %v1979, %v2534
    %v2536 = vsel %vm2324, %v1981, %v1980
    %v2537 = vsel %vm2326, %v1982, %v2536
    %v2538 = vsel %vm2328, %v1983, %v2537
    %v2539 = vsel %vm2330, %v1984, %v2538
    %v2540 = vsel %vm2332, %v1985, %v2539
    %v2541 = vsel %vm2334, %v1986, %v2540
    %v2542 = vsel %vm2336, %v1987, %v2541
    %v2543 = vsel %vm2324, %v1989, %v1988
    %v2544 = vsel %vm2326, %v1990, %v2543
    %v2545 = vsel %vm2328, %v1991, %v2544
    %v2546 = vsel %vm2330, %v1992, %v2545
    %v2547 = vsel %vm2332, %v1993, %v2546
    %v2548 = vsel %vm2334, %v1994, %v2547
    %v2549 = vsel %vm2336, %v1995, %v2548
    %v2550 = vsel %vm2324, %v1997, %v1996
    %v2551 = vsel %vm2326, %v1998, %v2550
    %v2552 = vsel %vm2328, %v1999, %v2551
    %v2553 = vsel %vm2330, %v2000, %v2552
    %v2554 = vsel %vm2332, %v2001, %v2553
    %v2555 = vsel %vm2334, %v2002, %v2554
    %v2556 = vsel %vm2336, %v2003, %v2555
    %v2557 = vsel %vm2324, %v2005, %v2004
    %v2558 = vsel %vm2326, %v2006, %v2557
    %v2559 = vsel %vm2328, %v2007, %v2558
    %v2560 = vsel %vm2330, %v2008, %v2559
    %v2561 = vsel %vm2332, %v2009, %v2560
    %v2562 = vsel %vm2334, %v2010, %v2561
    %v2563 = vsel %vm2336, %v2011, %v2562
    %v2564 = vsel %vm2324, %v2013, %v2012
    %v2565 = vsel %vm2326, %v2014, %v2564
    %v2566 = vsel %vm2328, %v2015, %v2565
    %v2567 = vsel %vm2330, %v2016, %v2566
    %v2568 = vsel %vm2332, %v2017, %v2567
    %v2569 = vsel %vm2334, %v2018, %v2568
    %v2570 = vsel %vm2336, %v2019, %v2569
    %v2571 = vsel %vm2324, %v2021, %v2020
    %v2572 = vsel %vm2326, %v2022, %v2571
    %v2573 = vsel %vm2328, %v2023, %v2572
    %v2574 = vsel %vm2330, %v2024, %v2573
    %v2575 = vsel %vm2332, %v2025, %v2574
    %v2576 = vsel %vm2334, %v2026, %v2575
    %v2577 = vsel %vm2336, %v2027, %v2576
    %v2578 = vsel %vm2324, %v2029, %v2028
    %v2579 = vsel %vm2326, %v2030, %v2578
    %v2580 = vsel %vm2328, %v2031, %v2579
    %v2581 = vsel %vm2330, %v2032, %v2580
    %v2582 = vsel %vm2332, %v2033, %v2581
    %v2583 = vsel %vm2334, %v2034, %v2582
    %v2584 = vsel %vm2336, %v2035, %v2583
    %v2585 = vsel %vm2324, %v2037, %v2036
    %v2586 = vsel %vm2326, %v2038, %v2585
    %v2587 = vsel %vm2328, %v2039, %v2586
    %v2588 = vsel %vm2330, %v2040, %v2587
    %v2589 = vsel %vm2332, %v2041, %v2588
    %v2590 = vsel %vm2334, %v2042, %v2589
    %v2591 = vsel %vm2336, %v2043, %v2590
    %v2592 = vsel %vm2324, %v2045, %v2044
    %v2593 = vsel %vm2326, %v2046, %v2592
    %v2594 = vsel %vm2328, %v2047, %v2593
    %v2595 = vsel %vm2330, %v2048, %v2594
    %v2596 = vsel %vm2332, %v2049, %v2595
    %v2597 = vsel %vm2334, %v2050, %v2596
    %v2598 = vsel %vm2336, %v2051, %v2597
    %v2599 = vsel %vm2324, %v2053, %v2052
    %v2600 = vsel %vm2326, %v2054, %v2599
    %v2601 = vsel %vm2328, %v2055, %v2600
    %v2602 = vsel %vm2330, %v2056, %v2601
    %v2603 = vsel %vm2332, %v2057, %v2602
    %v2604 = vsel %vm2334, %v2058, %v2603
    %v2605 = vsel %vm2336, %v2059, %v2604
    %v2606 = vsel %vm2324, %v2061, %v2060
    %v2607 = vsel %vm2326, %v2062, %v2606
    %v2608 = vsel %vm2328, %v2063, %v2607
    %v2609 = vsel %vm2330, %v2064, %v2608
    %v2610 = vsel %vm2332, %v2065, %v2609
    %v2611 = vsel %vm2334, %v2066, %v2610
    %v2612 = vsel %vm2336, %v2067, %v2611
    %v2613 = vpack.c.b16 %v2514, %v2507
    %v2614 = vpack.c.b16 %v2528, %v2521
    %v2615 = vpack.c.b16 %v2542, %v2535
    %v2616 = vpack.c.b16 %v2556, %v2549
    %v2617 = vpack.c.b16 %v2570, %v2563
    %v2618 = vpack.c.b16 %v2584, %v2577
    %v2619 = vpack.c.b16 %v2598, %v2591
    %v2620 = vpack.c.b16 %v2612, %v2605
    %v2623 = vunpack.c.l.b16 %v2492
    %v2624 = vunpack.c.l.b16 %v2493
    %v2625 = vpack.c.b16 %v2624, %v2623
    %v2628 = vsel %vm530, %v2613, 0
    %v2631 = vsel %vm530, %v2614, 0
    %v2634 = vsel %vm530, %v2615, 0
    %v2637 = vsel %vm530, %v2616, 0
    %v2640 = vsel %vm530, %v2617, 0
    %v2643 = vsel %vm530, %v2618, 0
    %v2646 = vsel %vm530, %v2619, 0
    %v2649 = vsel %vm530, %v2620, 0
    %2651 = vmatprep.subr.bf16.mxu0 0
    %2652 = vmatpush1.bf16.msra.mxu0 %v2625
    %2653 = vmatprep.subr.bf16.mxu0 0
    %2654 = vmatpush1.bf16.msra.mxu0 0
    %2655 = vmatprep.subr.bf16.mxu0 0
    %2656 = vmatpush1.bf16.msra.mxu0 0
    %2657 = vmatprep.subr.bf16.mxu0 0
    %2658 = vmatpush1.bf16.msra.mxu0 0
    %2659 = vmatprep.subr.bf16.mxu0 0
    %2660 = vmatpush1.bf16.msra.mxu0 0
    %2661 = vmatprep.subr.bf16.mxu0 0
    %2662 = vmatpush1.bf16.msra.mxu0 0
    %2663 = vmatprep.subr.bf16.mxu0 0
    %2664 = vmatpush1.bf16.msra.mxu0 0
    %2665 = vmatprep.subr.bf16.mxu0 0
    %2666 = vmatpush1.bf16.msra.mxu0 0
    %2667 = vmatprep.subr.bf16.mxu0 0
    %2668 = vmatpush1.bf16.msra.mxu0 0
    %2669 = vmatprep.subr.bf16.mxu0 0
    %2670 = vmatpush1.bf16.msra.mxu0 0
    %2671 = vmatprep.subr.bf16.mxu0 0
    %2672 = vmatpush1.bf16.msra.mxu0 0
    %2673 = vmatprep.subr.bf16.mxu0 0
    %2674 = vmatpush1.bf16.msra.mxu0 0
    %2675 = vmatprep.subr.bf16.mxu0 0
    %2676 = vmatpush1.bf16.msra.mxu0 0
    %2677 = vmatprep.subr.bf16.mxu0 0
    %2678 = vmatpush1.bf16.msra.mxu0 0
    %2679 = vmatprep.subr.bf16.mxu0 0
    %2680 = vmatpush1.bf16.msra.mxu0 0
    %2681 = vmatprep.subr.bf16.mxu0 0
    %2682 = vmatpush1.bf16.msra.mxu0 0
    %2683 = vmatprep.mubr.bf16.mxu0 0
    %2684 = vmatmul.mubr.bf16.gmra.mrb[0].mxu0 %v2628
    %v2685 = vpop.f32.mrb[0].mxu0
    %v2686 = vadd.f32 %v2499, %v2685
    %v2687 = vpop.f32.mrb[0].mxu0
    %v2688 = vpop.f32.mrb[0].mxu0
    %v2689 = vadd.f32 %v2499, %v2688
    %v2690 = vpop.f32.mrb[0].mxu0
    %2691 = vmatprep.mubr.bf16.mxu0 0
    %2692 = vmatmul.mubr.bf16.gmra.mrb[0].mxu0 %v2631
    %v2693 = vpop.f32.mrb[0].mxu0
    %v2694 = vadd.f32 %v2499, %v2693
    %v2695 = vpop.f32.mrb[0].mxu0
    %v2696 = vpop.f32.mrb[0].mxu0
    %v2697 = vadd.f32 %v2499, %v2696
    %v2698 = vpop.f32.mrb[0].mxu0
    %2699 = vmatprep.mubr.bf16.mxu0 0
    %2700 = vmatmul.mubr.bf16.gmra.mrb[0].mxu0 %v2634
    %v2701 = vpop.f32.mrb[0].mxu0
    %v2702 = vadd.f32 %v2499, %v2701
    %v2703 = vpop.f32.mrb[0].mxu0
    %v2704 = vpop.f32.mrb[0].mxu0
    %v2705 = vadd.f32 %v2499, %v2704
    %v2706 = vpop.f32.mrb[0].mxu0
    %2707 = vmatprep.mubr.bf16.mxu0 0
    %2708 = vmatmul.mubr.bf16.gmra.mrb[0].mxu0 %v2637
    %v2709 = vpop.f32.mrb[0].mxu0
    %v2710 = vadd.f32 %v2499, %v2709
    %v2711 = vpop.f32.mrb[0].mxu0
    %v2712 = vpop.f32.mrb[0].mxu0
    %v2713 = vadd.f32 %v2499, %v2712
    %v2714 = vpop.f32.mrb[0].mxu0
    %2715 = vmatprep.mubr.bf16.mxu0 0
    %2716 = vmatmul.mubr.bf16.gmra.mrb[0].mxu0 %v2640
    %v2717 = vpop.f32.mrb[0].mxu0
    %v2718 = vadd.f32 %v2499, %v2717
    %v2719 = vpop.f32.mrb[0].mxu0
    %v2720 = vpop.f32.mrb[0].mxu0
    %v2721 = vadd.f32 %v2499, %v2720
    %v2722 = vpop.f32.mrb[0].mxu0
    %2723 = vmatprep.mubr.bf16.mxu0 0
    %2724 = vmatmul.mubr.bf16.gmra.mrb[0].mxu0 %v2643
    %v2725 = vpop.f32.mrb[0].mxu0
    %v2726 = vadd.f32 %v2499, %v2725
    %v2727 = vpop.f32.mrb[0].mxu0
    %v2728 = vpop.f32.mrb[0].mxu0
    %v2729 = vadd.f32 %v2499, %v2728
    %v2730 = vpop.f32.mrb[0].mxu0
    %2731 = vmatprep.mubr.bf16.mxu0 0
    %2732 = vmatmul.mubr.bf16.gmra.mrb[0].mxu0 %v2646
    %v2733 = vpop.f32.mrb[0].mxu0
    %v2734 = vadd.f32 %v2499, %v2733
    %v2735 = vpop.f32.mrb[0].mxu0
    %v2736 = vpop.f32.mrb[0].mxu0
    %v2737 = vadd.f32 %v2499, %v2736
    %v2738 = vpop.f32.mrb[0].mxu0
    %2739 = vmatprep.mubr.bf16.mxu0 0
    %2740 = vmatmul.mubr.bf16.gmra.mrb[0].mxu0 %v2649
    %v2741 = vpop.f32.mrb[0].mxu0
    %v2742 = vadd.f32 %v2499, %v2741
    %v2743 = vpop.f32.mrb[0].mxu0
    %v2744 = vpop.f32.mrb[0].mxu0
    %v2745 = vadd.f32 %v2499, %v2744
    %v2746 = vpop.f32.mrb[0].mxu0
    %2747 = vdwg.mxu0
    %vm2748 = vcmask 261120
    %2749 = vst.msk [vmem:[#allocation2] sm:$0xff] %vm2748, %v2686
    %2750 = vst.msk [vmem:[#allocation2 + $0x8] sm:$0xff] %vm2748, %v2689
    %2751 = vst.msk [vmem:[#allocation2 + $0x10] sm:$0xff] %vm2748, %v2694
    %2752 = vst.msk [vmem:[#allocation2 + $0x18] sm:$0xff] %vm2748, %v2697
    %2753 = vst.msk [vmem:[#allocation2 + $0x20] sm:$0xff] %vm2748, %v2702
    %2754 = vst.msk [vmem:[#allocation2 + $0x28] sm:$0xff] %vm2748, %v2705
    %2755 = vst.msk [vmem:[#allocation2 + $0x30] sm:$0xff] %vm2748, %v2710
    %2756 = vst.msk [vmem:[#allocation2 + $0x38] sm:$0xff] %vm2748, %v2713
    %2757 = vst.msk [vmem:[#allocation2 + $0x40] sm:$0xff] %vm2748, %v2718
    %2758 = vst.msk [vmem:[#allocation2 + $0x48] sm:$0xff] %vm2748, %v2721
    %2759 = vst.msk [vmem:[#allocation2 + $0x50] sm:$0xff] %vm2748, %v2726
    %2760 = vst.msk [vmem:[#allocation2 + $0x58] sm:$0xff] %vm2748, %v2729
    %2761 = vst.msk [vmem:[#allocation2 + $0x60] sm:$0xff] %vm2748, %v2734
    %2762 = vst.msk [vmem:[#allocation2 + $0x68] sm:$0xff] %vm2748, %v2737
    %2763 = vst.msk [vmem:[#allocation2 + $0x70] sm:$0xff] %vm2748, %v2742
    %2764 = vst.msk [vmem:[#allocation2 + $0x78] sm:$0xff] %vm2748, %v2745
    // Predicated region
    $region14: #{spatial_prior_module_forward.19} parent=1 // pred_check
      _
    $region15: #{spatial_prior_module_forward.19} parent=1 // pred_check_branch
      %2766 = sbr.rel (0) target = $region17
    $region16: #{spatial_prior_module_forward.19} parent=1 // pred_region
      _
    $region17: #{spatial_prior_module_forward.19} parent=1 // pred_fallthru
      _
    // Predicated region
    $region18: #{spatial_prior_module_forward.19} parent=1 // pred_check
      _
    $region19: #{spatial_prior_module_forward.19} parent=1 // pred_check_branch
      %2768 = sbr.rel (0) target = $region21
    $region20: #{spatial_prior_module_forward.19} parent=1 // pred_region
      %s2770 = ssub.s32 2048, 2048
      %2771 = vsyncadd [#allocation3], %s2770
      %s2772 = sshll.u32 [#allocation2], 4
      %s2773 = int_to_ptr.vmem [resolvable:$true] %s2772
      %2778 = dma.vmem_to_hbm [thread:$0]  %s2773, 2048, %s4, [#allocation3], 128, 128, 8
    $region21: #{spatial_prior_module_forward.19} parent=1 // pred_fallthru
      _
    // Predicated region
    $region22: #{spatial_prior_module_forward.19} parent=1 // pred_check
      _
    $region23: #{spatial_prior_module_forward.19} parent=1 // pred_check_branch
      %2780 = sbr.rel (0) target = $region25
    $region24: #{spatial_prior_module_forward.19} parent=1 // pred_region
      _
    $region25: #{spatial_prior_module_forward.19} parent=1 // pred_fallthru
      _
    // Predicated region
    $region26: #{spatial_prior_module_forward.19} parent=1 // pred_check
      _
    $region27: #{spatial_prior_module_forward.19} parent=1 // pred_check_branch
      %2782 = sbr.rel (0) target = $region29
    $region28: #{spatial_prior_module_forward.19} parent=1 // pred_region
      %2783 = dma.done [#allocation3], 2048
    $region29: #{spatial_prior_module_forward.19} parent=1 // pred_fallthru
      _
    %2784 = vsyncpa [#allocation3], 1

// kernel: spatial_prior_module_forward.22
$region0: #{spatial_prior_module_forward.22}
  #allocation0 [shape = 'u32[]', space=smem, size = 0x4, offset = 0x4, fixed_abs, tag = 'smem constant byte address 0x4 - core index']
  #allocation1 [shape = 'u32[144,128]{1,0:T(1,128)}', space=vmem, size = 0x12000, scoped, tag = 'internal scratch']
  %s0 = inlined_call_operand.vmem [shape: bf16[8,288], index: 0, kind: input, shape index: {}]
  %s1 = inlined_call_operand.vmem [shape: bf16[288,64], index: 1, kind: input, shape index: {}]
  %s2 = inlined_call_operand.vmem [shape: bf16[8,64], index: 2, kind: output, shape index: {0}]
  %s3 = inlined_call_operand.vmem [shape: f32[1,1,64], index: 3, kind: output, shape index: {1}]
  %s4 = inlined_call_operand.vmem [shape: f32[1,1,64], index: 4, kind: output, shape index: {2}]
  %5 = xla_tuple %s2, %s3, %s4
  %s6 = sld [smem:[#allocation0]]
  $region34: #{spatial_prior_module_forward.22} parent=0
    _
  %s8 = ssub.s32 1, %s6
  %s9 = scalar_select 0, %s8, %s6
  // Predicated region
  $region2: #{spatial_prior_module_forward.22} parent=0 // pred_check
    _
  $region3: #{spatial_prior_module_forward.22} parent=0 // pred_check_branch
    %11 = sbr.rel (0) target = $region5
  $region4: #{spatial_prior_module_forward.22} parent=0 // pred_region
    _
  $region5: #{spatial_prior_module_forward.22} parent=0 // pred_fallthru
    _
  // Predicated region
  $region6: #{spatial_prior_module_forward.22} parent=0 // pred_check
    _
  $region7: #{spatial_prior_module_forward.22} parent=0 // pred_check_branch
    %13 = sbr.rel (0) target = $region9
  $region8: #{spatial_prior_module_forward.22} parent=0 // pred_region
    _
  $region9: #{spatial_prior_module_forward.22} parent=0 // pred_fallthru
    _
  %v15 = vld [vmem:[%s0] sm:$0xff]
  %v16 = vld [vmem:[%s0 + $0x8] sm:$0xf]
  %v17 = vld [vmem:[%s1] sm:$0xf]
  %v18 = vld [vmem:[%s1 + $0x4] sm:$0xf]
  %v19 = vld [vmem:[%s1 + $0x8] sm:$0xf]
  %v20 = vld [vmem:[%s1 + $0xc] sm:$0xf]
  %v21 = vld [vmem:[%s1 + $0x10] sm:$0xf]
  %v22 = vld [vmem:[%s1 + $0x14] sm:$0xf]
  %v23 = vld [vmem:[%s1 + $0x18] sm:$0xf]
  %v24 = vld [vmem:[%s1 + $0x1c] sm:$0xf]
  %v25 = vld [vmem:[%s1 + $0x20] sm:$0xf]
  %v26 = vld [vmem:[%s1 + $0x24] sm:$0xf]
  %v27 = vld [vmem:[%s1 + $0x28] sm:$0xf]
  %v28 = vld [vmem:[%s1 + $0x2c] sm:$0xf]
  %v29 = vld [vmem:[%s1 + $0x30] sm:$0xf]
  %v30 = vld [vmem:[%s1 + $0x34] sm:$0xf]
  %v31 = vld [vmem:[%s1 + $0x38] sm:$0xf]
  %v32 = vld [vmem:[%s1 + $0x3c] sm:$0xf]
  %v33 = vld [vmem:[%s1 + $0x40] sm:$0xf]
  %v34 = vld [vmem:[%s1 + $0x44] sm:$0xf]
  %v35 = vld [vmem:[%s1 + $0x48] sm:$0xf]
  %v36 = vld [vmem:[%s1 + $0x4c] sm:$0xf]
  %v37 = vld [vmem:[%s1 + $0x50] sm:$0xf]
  %v38 = vld [vmem:[%s1 + $0x54] sm:$0xf]
  %v39 = vld [vmem:[%s1 + $0x58] sm:$0xf]
  %v40 = vld [vmem:[%s1 + $0x5c] sm:$0xf]
  %v41 = vld [vmem:[%s1 + $0x60] sm:$0xf]
  %v42 = vld [vmem:[%s1 + $0x64] sm:$0xf]
  %v43 = vld [vmem:[%s1 + $0x68] sm:$0xf]
  %v44 = vld [vmem:[%s1 + $0x6c] sm:$0xf]
  %v45 = vld [vmem:[%s1 + $0x70] sm:$0xf]
  %v46 = vld [vmem:[%s1 + $0x74] sm:$0xf]
  %v47 = vld [vmem:[%s1 + $0x78] sm:$0xf]
  %v48 = vld [vmem:[%s1 + $0x7c] sm:$0xf]
  %v49 = vld [vmem:[%s1 + $0x80] sm:$0xf]
  %v50 = vld [vmem:[%s1 + $0x84] sm:$0xf]
  %v51 = vld [vmem:[%s1 + $0x88] sm:$0xf]
  %v52 = vld [vmem:[%s1 + $0x8c] sm:$0xf]
  %v55 = vunpack.c.l.b16 %v15
  %v56 = vunpack.c.h.b16 %v15
  %v57 = vunpack.c.l.b16 %v16
  %v58 = vpack.c.b16 %v55, %v55
  %v59 = vpack.c.b16 %v56, %v56
  %v60 = vpack.c.b16 %v57, %v57
  %v99 = vunpack.c.l.b16 %v17
  %v100 = vunpack.c.l.b16 %v18
  %v101 = vunpack.c.l.b16 %v19
  %v102 = vunpack.c.l.b16 %v20
  %v103 = vunpack.c.l.b16 %v21
  %v104 = vunpack.c.l.b16 %v22
  %v105 = vunpack.c.l.b16 %v23
  %v106 = vunpack.c.l.b16 %v24
  %v107 = vunpack.c.l.b16 %v25
  %v108 = vunpack.c.l.b16 %v26
  %v109 = vunpack.c.l.b16 %v27
  %v110 = vunpack.c.l.b16 %v28
  %v111 = vunpack.c.l.b16 %v29
  %v112 = vunpack.c.l.b16 %v30
  %v113 = vunpack.c.l.b16 %v31
  %v114 = vunpack.c.l.b16 %v32
  %v115 = vunpack.c.l.b16 %v33
  %v116 = vunpack.c.l.b16 %v34
  %v117 = vunpack.c.l.b16 %v35
  %v118 = vunpack.c.l.b16 %v36
  %v119 = vunpack.c.l.b16 %v37
  %v120 = vunpack.c.l.b16 %v38
  %v121 = vunpack.c.l.b16 %v39
  %v122 = vunpack.c.l.b16 %v40
  %v123 = vunpack.c.l.b16 %v41
  %v124 = vunpack.c.l.b16 %v42
  %v125 = vunpack.c.l.b16 %v43
  %v126 = vunpack.c.l.b16 %v44
  %v127 = vunpack.c.l.b16 %v45
  %v128 = vunpack.c.l.b16 %v46
  %v129 = vunpack.c.l.b16 %v47
  %v130 = vunpack.c.l.b16 %v48
  %v131 = vunpack.c.l.b16 %v49
  %v132 = vunpack.c.l.b16 %v50
  %v133 = vunpack.c.l.b16 %v51
  %v134 = vunpack.c.l.b16 %v52
  %v135 = vpack.c.b16 %v100, %v99
  %v136 = vpack.c.b16 %v102, %v101
  %v137 = vpack.c.b16 %v104, %v103
  %v138 = vpack.c.b16 %v106, %v105
  %v139 = vpack.c.b16 %v108, %v107
  %v140 = vpack.c.b16 %v110, %v109
  %v141 = vpack.c.b16 %v112, %v111
  %v142 = vpack.c.b16 %v114, %v113
  %v143 = vpack.c.b16 %v116, %v115
  %v144 = vpack.c.b16 %v118, %v117
  %v145 = vpack.c.b16 %v120, %v119
  %v146 = vpack.c.b16 %v122, %v121
  %v147 = vpack.c.b16 %v124, %v123
  %v148 = vpack.c.b16 %v126, %v125
  %v149 = vpack.c.b16 %v128, %v127
  %v150 = vpack.c.b16 %v130, %v129
  %v151 = vpack.c.b16 %v132, %v131
  %v152 = vpack.c.b16 %v134, %v133
  %vm171 = vcmask 261120
  %v173 = vsel %vm171, %v60, 0
  %175 = vmatprep.subr.bf16.mxu0 0
  %176 = vmatpush1.bf16.msra.mxu0 %v135
  %177 = vmatprep.subr.bf16.mxu0 0
  %178 = vmatpush1.bf16.msra.mxu0 %v136
  %179 = vmatprep.subr.bf16.mxu0 0
  %180 = vmatpush1.bf16.msra.mxu0 %v137
  %181 = vmatprep.subr.bf16.mxu0 0
  %182 = vmatpush1.bf16.msra.mxu0 %v138
  %183 = vmatprep.subr.bf16.mxu0 0
  %184 = vmatpush1.bf16.msra.mxu0 %v139
  %185 = vmatprep.subr.bf16.mxu0 0
  %186 = vmatpush1.bf16.msra.mxu0 %v140
  %187 = vmatprep.subr.bf16.mxu0 0
  %188 = vmatpush1.bf16.msra.mxu0 %v141
  %189 = vmatprep.subr.bf16.mxu0 0
  %190 = vmatpush1.bf16.msra.mxu0 %v142
  %191 = vmatprep.subr.bf16.mxu0 0
  %192 = vmatpush1.bf16.msra.mxu0 %v143
  %193 = vmatprep.subr.bf16.mxu0 0
  %194 = vmatpush1.bf16.msra.mxu0 %v144
  %195 = vmatprep.subr.bf16.mxu0 0
  %196 = vmatpush1.bf16.msra.mxu0 %v145
  %197 = vmatprep.subr.bf16.mxu0 0
  %198 = vmatpush1.bf16.msra.mxu0 %v146
  %199 = vmatprep.subr.bf16.mxu0 0
  %200 = vmatpush1.bf16.msra.mxu0 %v147
  %201 = vmatprep.subr.bf16.mxu0 0
  %202 = vmatpush1.bf16.msra.mxu0 %v148
  %203 = vmatprep.subr.bf16.mxu0 0
  %204 = vmatpush1.bf16.msra.mxu0 %v149
  %205 = vmatprep.subr.bf16.mxu0 0
  %206 = vmatpush1.bf16.msra.mxu0 %v150
  %207 = vmatprep.mubr.bf16.mxu0 %v59
  %208 = vmatmul.mubr.bf16.gmra.mrb[0].mxu0 %v58
  %v209 = vpop.f32.mrb[0].mxu0
  %v210 = vadd.f32 0.0, %v209
  %v211 = vpop.f32.mrb[0].mxu0
  %v212 = vpop.f32.mrb[0].mxu0
  %v213 = vpop.f32.mrb[0].mxu0
  %214 = vdwg.mxu0
  %215 = vmatprep.subr.bf16.mxu0 0
  %216 = vmatpush1.bf16.msra.mxu0 %v151
  %217 = vmatprep.subr.bf16.mxu0 0
  %218 = vmatpush1.bf16.msra.mxu0 %v152
  %219 = vmatprep.subr.bf16.mxu0 0
  %220 = vmatpush1.bf16.msra.mxu0 0
  %221 = vmatprep.subr.bf16.mxu0 0
  %222 = vmatpush1.bf16.msra.mxu0 0
  %223 = vmatprep.subr.bf16.mxu0 0
  %224 = vmatpush1.bf16.msra.mxu0 0
  %225 = vmatprep.subr.bf16.mxu0 0
  %226 = vmatpush1.bf16.msra.mxu0 0
  %227 = vmatprep.subr.bf16.mxu0 0
  %228 = vmatpush1.bf16.msra.mxu0 0
  %229 = vmatprep.subr.bf16.mxu0 0
  %230 = vmatpush1.bf16.msra.mxu0 0
  %231 = vmatprep.subr.bf16.mxu0 0
  %232 = vmatpush1.bf16.msra.mxu0 0
  %233 = vmatprep.subr.bf16.mxu0 0
  %234 = vmatpush1.bf16.msra.mxu0 0
  %235 = vmatprep.subr.bf16.mxu0 0
  %236 = vmatpush1.bf16.msra.mxu0 0
  %237 = vmatprep.subr.bf16.mxu0 0
  %238 = vmatpush1.bf16.msra.mxu0 0
  %239 = vmatprep.subr.bf16.mxu0 0
  %240 = vmatpush1.bf16.msra.mxu0 0
  %241 = vmatprep.subr.bf16.mxu0 0
  %242 = vmatpush1.bf16.msra.mxu0 0
  %243 = vmatprep.subr.bf16.mxu0 0
  %244 = vmatpush1.bf16.msra.mxu0 0
  %245 = vmatprep.subr.bf16.mxu0 0
  %246 = vmatpush1.bf16.msra.mxu0 0
  %247 = vmatprep.mubr.bf16.mxu0 0
  %248 = vmatmul.mubr.bf16.gmra.mrb[0].mxu0 %v173
  %v249 = vpop.f32.mrb[0].mxu0
  %v250 = vadd.f32 %v210, %v249
  %v251 = vpop.f32.mrb[0].mxu0
  %v252 = vpop.f32.mrb[0].mxu0
  %v253 = vpop.f32.mrb[0].mxu0
  %254 = vdwg.mxu0
  %v255 = vpack.c.bf16 %v250, %v250
  %vm256 = vcmask 519168
  %257 = vst.msk [vmem:[%s2] sm:$0xf] %vm256, %v255
  %vm258 = vcmask 523264
  %v259 = vsel %vm258, %v250, 0.0
  %v260 = vrot.slane %v259, 4
  %v261 = vadd.f32 %v259, %v260
  %v262 = vrot.slane %v261, 2
  %v263 = vadd.f32 %v261, %v262
  %v264 = vrot.slane %v263, 1
  %v265 = vadd.f32 %v263, %v264
  %vm266 = vcmask 516096
  %267 = vst.msk [vmem:[%s3] sm:$0x1] %vm266, %v265
  %v268 = vmul.f32 %v250, %v250
  %v269 = vsel %vm258, %v268, 0.0
  %v270 = vrot.slane %v269, 4
  %v271 = vadd.f32 %v269, %v270
  %v272 = vrot.slane %v271, 2
  %v273 = vadd.f32 %v271, %v272
  %v274 = vrot.slane %v273, 1
  %v275 = vadd.f32 %v273, %v274
  %276 = vst.msk [vmem:[%s4] sm:$0x1] %vm266, %v275
  // Predicated region
  $region10: #{spatial_prior_module_forward.22} parent=0 // pred_check
    _
  $region11: #{spatial_prior_module_forward.22} parent=0 // pred_check_branch
    %278 = sbr.rel (0) target = $region13
  $region12: #{spatial_prior_module_forward.22} parent=0 // pred_region
    _
  $region13: #{spatial_prior_module_forward.22} parent=0 // pred_fallthru
    _
  // Predicated region
  $region14: #{spatial_prior_module_forward.22} parent=0 // pred_check
    _
  $region15: #{spatial_prior_module_forward.22} parent=0 // pred_check_branch
    %280 = sbr.rel (0) target = $region17
  $region16: #{spatial_prior_module_forward.22} parent=0 // pred_region
    _
  $region17: #{spatial_prior_module_forward.22} parent=0 // pred_fallthru
    _
  // Predicated region
  $region18: #{spatial_prior_module_forward.22} parent=0 // pred_check
    _
  $region19: #{spatial_prior_module_forward.22} parent=0 // pred_check_branch
    %282 = sbr.rel (0) target = $region21
  $region20: #{spatial_prior_module_forward.22} parent=0 // pred_region
    _
  $region21: #{spatial_prior_module_forward.22} parent=0 // pred_fallthru
    _
  // Predicated region
  $region22: #{spatial_prior_module_forward.22} parent=0 // pred_check
    _
  $region23: #{spatial_prior_module_forward.22} parent=0 // pred_check_branch
    %284 = sbr.rel (0) target = $region25
  $region24: #{spatial_prior_module_forward.22} parent=0 // pred_region
    _
  $region25: #{spatial_prior_module_forward.22} parent=0 // pred_fallthru
    _
  // Predicated region
  $region26: #{spatial_prior_module_forward.22} parent=0 // pred_check
    _
  $region27: #{spatial_prior_module_forward.22} parent=0 // pred_check_branch
    %286 = sbr.rel (0) target = $region29
  $region28: #{spatial_prior_module_forward.22} parent=0 // pred_region
    _
  $region29: #{spatial_prior_module_forward.22} parent=0 // pred_fallthru
    _
  // Predicated region
  $region30: #{spatial_prior_module_forward.22} parent=0 // pred_check
    _
  $region31: #{spatial_prior_module_forward.22} parent=0 // pred_check_branch
    %288 = sbr.rel (0) target = $region33
  $region32: #{spatial_prior_module_forward.22} parent=0 // pred_region
    _
  $region33: #{spatial_prior_module_forward.22} parent=0 // pred_fallthru
    _

// kernel: spatial_prior_module_forward.23
$region0: #{spatial_prior_module_forward.23}
  #allocation0 [shape = 'u32[]', space=smem, size = 0x4, offset = 0x4, fixed_abs, tag = 'smem constant byte address 0x4 - core index']
  #allocation1 [shape = 'u32[144,128]{1,0:T(1,128)}', space=vmem, size = 0x12000, scoped, tag = 'internal scratch']
  %s0 = inlined_call_operand.vmem [shape: bf16[8,64], index: 0, kind: input, shape index: {}]
  %s1 = inlined_call_operand.vmem [shape: f32[1,64], index: 1, kind: input, shape index: {}]
  %s2 = inlined_call_operand.vmem [shape: f32[1,64], index: 2, kind: input, shape index: {}]
  %s3 = inlined_call_operand.vmem [shape: bf16[64,32], index: 3, kind: input, shape index: {}]
  %s4 = inlined_call_operand.vmem [shape: f32[1,32], index: 4, kind: input, shape index: {}]
  %s5 = inlined_call_operand.vmem [shape: bf16[8,64], index: 5, kind: output, shape index: {0}]
  %s6 = inlined_call_operand.hbm [shape: f32[8,32], index: 6, kind: output, shape index: {1}]
  %7 = xla_tuple %s5, %s6
  %s8 = sld [smem:[#allocation0]]
  $region38: #{spatial_prior_module_forward.23} parent=0
    _
  %s10 = ssub.s32 1, %s8
  %s11 = scalar_select 0, %s10, %s8
  $region1: #{spatial_prior_module_forward.23} parent=0
    #allocation2 [shape = 'u8[4096]{0}', space=vmem, size = 0x1000, scoped, tag = 'output window, operand 1, single buffered']
    #allocation3 [shape = 's32[1]{0}', space=sflag, size = 0x4, scoped, tag = 'scoped memory for spatial_prior_module_forward.23']
    %12 = vsyncpa [#allocation3], 0
    // Predicated region
    $region2: #{spatial_prior_module_forward.23} parent=1 // pred_check
      _
    $region3: #{spatial_prior_module_forward.23} parent=1 // pred_check_branch
      %14 = sbr.rel (0) target = $region5
    $region4: #{spatial_prior_module_forward.23} parent=1 // pred_region
      _
    $region5: #{spatial_prior_module_forward.23} parent=1 // pred_fallthru
      _
    // Predicated region
    $region6: #{spatial_prior_module_forward.23} parent=1 // pred_check
      _
    $region7: #{spatial_prior_module_forward.23} parent=1 // pred_check_branch
      %16 = sbr.rel (0) target = $region9
    $region8: #{spatial_prior_module_forward.23} parent=1 // pred_region
      _
    $region9: #{spatial_prior_module_forward.23} parent=1 // pred_fallthru
      _
    // Predicated region
    $region10: #{spatial_prior_module_forward.23} parent=1 // pred_check
      _
    $region11: #{spatial_prior_module_forward.23} parent=1 // pred_check_branch
      %18 = sbr.rel (0) target = $region13
    $region12: #{spatial_prior_module_forward.23} parent=1 // pred_region
      _
    $region13: #{spatial_prior_module_forward.23} parent=1 // pred_fallthru
      _
    // Predicated region
    $region14: #{spatial_prior_module_forward.23} parent=1 // pred_check
      _
    $region15: #{spatial_prior_module_forward.23} parent=1 // pred_check_branch
      %20 = sbr.rel (0) target = $region17
    $region16: #{spatial_prior_module_forward.23} parent=1 // pred_region
      _
    $region17: #{spatial_prior_module_forward.23} parent=1 // pred_fallthru
      _
    // Predicated region
    $region18: #{spatial_prior_module_forward.23} parent=1 // pred_check
      _
    $region19: #{spatial_prior_module_forward.23} parent=1 // pred_check_branch
      %22 = sbr.rel (0) target = $region21
    $region20: #{spatial_prior_module_forward.23} parent=1 // pred_region
      _
    $region21: #{spatial_prior_module_forward.23} parent=1 // pred_fallthru
      _
    %v24 = vld [vmem:[%s0] sm:$0xf]
    %v25 = vunpack.c.l.bf16 %v24
    %v26 = vld [vmem:[%s1] sm:$0x1]
    %v28 = vlaneseq
    %v29 = vshrl.u32 %v28, 7
    %v30 = vsub.s32 0, %v29
    %v31 = vrot.slane %v26, %v30
    %v33 = vmul.f32 %v25, %v31
    %v34 = vld [vmem:[%s2] sm:$0x1]
    %v36 = vlaneseq
    %v37 = vshrl.u32 %v36, 7
    %v38 = vsub.s32 0, %v37
    %v39 = vrot.slane %v34, %v38
    %v41 = vadd.f32 %v33, %v39
    %v42 = vmax.f32 %v41, 0.0
    %v43 = vpack.c.bf16 %v42, %v42
    %vm44 = vcmask 519168
    %45 = vst.msk [vmem:[%s5] sm:$0xf] %vm44, %v43
    %v46 = vld [vmem:[%s3] sm:$0xf]
    %v47 = vld [vmem:[%s3 + $0x4] sm:$0xf]
    %v48 = vld [vmem:[%s3 + $0x8] sm:$0xf]
    %v49 = vld [vmem:[%s3 + $0xc] sm:$0xf]
    %v50 = vld [vmem:[%s3 + $0x10] sm:$0xf]
    %v51 = vld [vmem:[%s3 + $0x14] sm:$0xf]
    %v52 = vld [vmem:[%s3 + $0x18] sm:$0xf]
    %v53 = vld [vmem:[%s3 + $0x1c] sm:$0xf]
    %v54 = vld [vmem:[%s4] sm:$0x1]
    %v56 = vlaneseq
    %v57 = vshrl.u32 %v56, 7
    %v58 = vsub.s32 0, %v57
    %v59 = vrot.slane %v54, %v58
    %v69 = vunpack.c.l.b16 %v46
    %v70 = vunpack.c.l.b16 %v47
    %v71 = vunpack.c.l.b16 %v48
    %v72 = vunpack.c.l.b16 %v49
    %v73 = vunpack.c.l.b16 %v50
    %v74 = vunpack.c.l.b16 %v51
    %v75 = vunpack.c.l.b16 %v52
    %v76 = vunpack.c.l.b16 %v53
    %v77 = vpack.c.b16 %v70, %v69
    %v78 = vpack.c.b16 %v72, %v71
    %v79 = vpack.c.b16 %v74, %v73
    %v80 = vpack.c.b16 %v76, %v75
    %vm85 = vcmask 523264
    %v87 = vsel %vm85, %v43, 0
    %89 = vmatprep.subr.bf16.mxu0 0
    %90 = vmatpush1.bf16.msra.mxu0 %v77
    %91 = vmatprep.subr.bf16.mxu0 0
    %92 = vmatpush1.bf16.msra.mxu0 %v78
    %93 = vmatprep.subr.bf16.mxu0 0
    %94 = vmatpush1.bf16.msra.mxu0 %v79
    %95 = vmatprep.subr.bf16.mxu0 0
    %96 = vmatpush1.bf16.msra.mxu0 %v80
    %97 = vmatprep.subr.bf16.mxu0 0
    %98 = vmatpush1.bf16.msra.mxu0 0
    %99 = vmatprep.subr.bf16.mxu0 0
    %100 = vmatpush1.bf16.msra.mxu0 0
    %101 = vmatprep.subr.bf16.mxu0 0
    %102 = vmatpush1.bf16.msra.mxu0 0
    %103 = vmatprep.subr.bf16.mxu0 0
    %104 = vmatpush1.bf16.msra.mxu0 0
    %105 = vmatprep.subr.bf16.mxu0 0
    %106 = vmatpush1.bf16.msra.mxu0 0
    %107 = vmatprep.subr.bf16.mxu0 0
    %108 = vmatpush1.bf16.msra.mxu0 0
    %109 = vmatprep.subr.bf16.mxu0 0
    %110 = vmatpush1.bf16.msra.mxu0 0
    %111 = vmatprep.subr.bf16.mxu0 0
    %112 = vmatpush1.bf16.msra.mxu0 0
    %113 = vmatprep.subr.bf16.mxu0 0
    %114 = vmatpush1.bf16.msra.mxu0 0
    %115 = vmatprep.subr.bf16.mxu0 0
    %116 = vmatpush1.bf16.msra.mxu0 0
    %117 = vmatprep.subr.bf16.mxu0 0
    %118 = vmatpush1.bf16.msra.mxu0 0
    %119 = vmatprep.subr.bf16.mxu0 0
    %120 = vmatpush1.bf16.msra.mxu0 0
    %121 = vmatprep.mubr.bf16.mxu0 0
    %122 = vmatmul.mubr.bf16.gmra.mrb[0].mxu0 %v87
    %v123 = vpop.f32.mrb[0].mxu0
    %v124 = vadd.f32 %v59, %v123
    %v125 = vpop.f32.mrb[0].mxu0
    %v126 = vpop.f32.mrb[0].mxu0
    %v127 = vpop.f32.mrb[0].mxu0
    %128 = vdwg.mxu0
    %vm129 = vcmask 261120
    %130 = vst.msk [vmem:[#allocation2] sm:$0xff] %vm129, %v124
    // Predicated region
    $region22: #{spatial_prior_module_forward.23} parent=1 // pred_check
      _
    $region23: #{spatial_prior_module_forward.23} parent=1 // pred_check_branch
      %132 = sbr.rel (0) target = $region25
    $region24: #{spatial_prior_module_forward.23} parent=1 // pred_region
      _
    $region25: #{spatial_prior_module_forward.23} parent=1 // pred_fallthru
      _
    // Predicated region
    $region26: #{spatial_prior_module_forward.23} parent=1 // pred_check
      _
    $region27: #{spatial_prior_module_forward.23} parent=1 // pred_check_branch
      %134 = sbr.rel (0) target = $region29
    $region28: #{spatial_prior_module_forward.23} parent=1 // pred_region
      %s136 = ssub.s32 128, 128
      %137 = vsyncadd [#allocation3], %s136
      %s139 = sshll.u32 [#allocation2], 4
      %s140 = int_to_ptr.vmem [resolvable:$true] %s139
      %142 = dma.vmem_to_hbm [thread:$0]  %s140, 128, %s6, [#allocation3]
    $region29: #{spatial_prior_module_forward.23} parent=1 // pred_fallthru
      _
    // Predicated region
    $region30: #{spatial_prior_module_forward.23} parent=1 // pred_check
      _
    $region31: #{spatial_prior_module_forward.23} parent=1 // pred_check_branch
      %144 = sbr.rel (0) target = $region33
    $region32: #{spatial_prior_module_forward.23} parent=1 // pred_region
      _
    $region33: #{spatial_prior_module_forward.23} parent=1 // pred_fallthru
      _
    // Predicated region
    $region34: #{spatial_prior_module_forward.23} parent=1 // pred_check
      _
    $region35: #{spatial_prior_module_forward.23} parent=1 // pred_check_branch
      %146 = sbr.rel (0) target = $region37
    $region36: #{spatial_prior_module_forward.23} parent=1 // pred_region
      %147 = dma.done [#allocation3], 128
    $region37: #{spatial_prior_module_forward.23} parent=1 // pred_fallthru
      _
    %148 = vsyncpa [#allocation3], 1

// kernel: spatial_prior_module_forward.25
$region0: #{spatial_prior_module_forward.25}
  #allocation0 [shape = 'u32[]', space=smem, size = 0x4, offset = 0x4, fixed_abs, tag = 'smem constant byte address 0x4 - core index']
  #allocation1 [shape = 'u32[144,128]{1,0:T(1,128)}', space=vmem, size = 0x12000, scoped, tag = 'internal scratch']
  %s0 = inlined_call_operand.vmem [shape: bf16[2,64], index: 0, kind: input, shape index: {}]
  %s1 = inlined_call_operand.vmem [shape: f32[1,64], index: 1, kind: input, shape index: {}]
  %s2 = inlined_call_operand.vmem [shape: f32[1,64], index: 2, kind: input, shape index: {}]
  %s3 = inlined_call_operand.vmem [shape: bf16[64,32], index: 3, kind: input, shape index: {}]
  %s4 = inlined_call_operand.vmem [shape: f32[1,32], index: 4, kind: input, shape index: {}]
  %s5 = inlined_call_operand.hbm [shape: bf16[2,64], index: 5, kind: output, shape index: {0}]
  %s6 = inlined_call_operand.hbm [shape: f32[2,32], index: 6, kind: output, shape index: {1}]
  %7 = xla_tuple %s5, %s6
  %s8 = sld [smem:[#allocation0]]
  $region38: #{spatial_prior_module_forward.25} parent=0
    _
  %s10 = ssub.s32 1, %s8
  %s11 = scalar_select 0, %s10, %s8
  $region1: #{spatial_prior_module_forward.25} parent=0
    #allocation2 [shape = 'u8[512]{0}', space=vmem, size = 0x400, scoped, tag = 'output window, operand 0, single buffered']
    #allocation3 [shape = 's32[1]{0}', space=sflag, size = 0x4, scoped, tag = 'scoped memory for spatial_prior_module_forward.25']
    #allocation4 [shape = 'u8[1024]{0}', space=vmem, size = 0x400, scoped, tag = 'output window, operand 1, single buffered']
    #allocation5 [shape = 's32[1]{0}', space=sflag, size = 0x4, scoped, tag = 'scoped memory for spatial_prior_module_forward.25']
    %12 = vsyncpa [#allocation3], 0
    %13 = vsyncpa [#allocation5], 0
    // Predicated region
    $region2: #{spatial_prior_module_forward.25} parent=1 // pred_check
      _
    $region3: #{spatial_prior_module_forward.25} parent=1 // pred_check_branch
      %15 = sbr.rel (0) target = $region5
    $region4: #{spatial_prior_module_forward.25} parent=1 // pred_region
      _
    $region5: #{spatial_prior_module_forward.25} parent=1 // pred_fallthru
      _
    // Predicated region
    $region6: #{spatial_prior_module_forward.25} parent=1 // pred_check
      _
    $region7: #{spatial_prior_module_forward.25} parent=1 // pred_check_branch
      %17 = sbr.rel (0) target = $region9
    $region8: #{spatial_prior_module_forward.25} parent=1 // pred_region
      _
    $region9: #{spatial_prior_module_forward.25} parent=1 // pred_fallthru
      _
    // Predicated region
    $region10: #{spatial_prior_module_forward.25} parent=1 // pred_check
      _
    $region11: #{spatial_prior_module_forward.25} parent=1 // pred_check_branch
      %19 = sbr.rel (0) target = $region13
    $region12: #{spatial_prior_module_forward.25} parent=1 // pred_region
      _
    $region13: #{spatial_prior_module_forward.25} parent=1 // pred_fallthru
      _
    // Predicated region
    $region14: #{spatial_prior_module_forward.25} parent=1 // pred_check
      _
    $region15: #{spatial_prior_module_forward.25} parent=1 // pred_check_branch
      %21 = sbr.rel (0) target = $region17
    $region16: #{spatial_prior_module_forward.25} parent=1 // pred_region
      _
    $region17: #{spatial_prior_module_forward.25} parent=1 // pred_fallthru
      _
    // Predicated region
    $region18: #{spatial_prior_module_forward.25} parent=1 // pred_check
      _
    $region19: #{spatial_prior_module_forward.25} parent=1 // pred_check_branch
      %23 = sbr.rel (0) target = $region21
    $region20: #{spatial_prior_module_forward.25} parent=1 // pred_region
      _
    $region21: #{spatial_prior_module_forward.25} parent=1 // pred_fallthru
      _
    %v25 = vld [vmem:[%s0] sm:$0x1]
    %v26 = vunpack.c.l.bf16 %v25
    %v27 = vld [vmem:[%s1] sm:$0x1]
    %v29 = vlaneseq
    %v30 = vshrl.u32 %v29, 7
    %v31 = vsub.s32 0, %v30
    %v32 = vrot.slane %v27, %v31
    %v34 = vmul.f32 %v26, %v32
    %v35 = vld [vmem:[%s2] sm:$0x1]
    %v37 = vlaneseq
    %v38 = vshrl.u32 %v37, 7
    %v39 = vsub.s32 0, %v38
    %v40 = vrot.slane %v35, %v39
    %v42 = vadd.f32 %v34, %v40
    %v43 = vmax.f32 %v42, 0.0
    %v44 = vpack.c.bf16 %v43, %v43
    %vm45 = vcmask 516096
    %46 = vst.msk [vmem:[#allocation2] sm:$0x1] %vm45, %v44
    %v47 = vld [vmem:[%s3] sm:$0xf]
    %v48 = vld [vmem:[%s3 + $0x4] sm:$0xf]
    %v49 = vld [vmem:[%s3 + $0x8] sm:$0xf]
    %v50 = vld [vmem:[%s3 + $0xc] sm:$0xf]
    %v51 = vld [vmem:[%s3 + $0x10] sm:$0xf]
    %v52 = vld [vmem:[%s3 + $0x14] sm:$0xf]
    %v53 = vld [vmem:[%s3 + $0x18] sm:$0xf]
    %v54 = vld [vmem:[%s3 + $0x1c] sm:$0xf]
    %v55 = vld [vmem:[%s4] sm:$0x1]
    %v57 = vlaneseq
    %v58 = vshrl.u32 %v57, 7
    %v59 = vsub.s32 0, %v58
    %v60 = vrot.slane %v55, %v59
    %v70 = vunpack.c.l.b16 %v47
    %v71 = vunpack.c.l.b16 %v48
    %v72 = vunpack.c.l.b16 %v49
    %v73 = vunpack.c.l.b16 %v50
    %v74 = vunpack.c.l.b16 %v51
    %v75 = vunpack.c.l.b16 %v52
    %v76 = vunpack.c.l.b16 %v53
    %v77 = vunpack.c.l.b16 %v54
    %v78 = vpack.c.b16 %v71, %v70
    %v79 = vpack.c.b16 %v73, %v72
    %v80 = vpack.c.b16 %v75, %v74
    %v81 = vpack.c.b16 %v77, %v76
    %vm86 = vcmask 523264
    %v88 = vsel %vm86, %v44, 0
    %90 = vmatprep.subr.bf16.mxu0 0
    %91 = vmatpush1.bf16.msra.mxu0 %v78
    %92 = vmatprep.subr.bf16.mxu0 0
    %93 = vmatpush1.bf16.msra.mxu0 %v79
    %94 = vmatprep.subr.bf16.mxu0 0
    %95 = vmatpush1.bf16.msra.mxu0 %v80
    %96 = vmatprep.subr.bf16.mxu0 0
    %97 = vmatpush1.bf16.msra.mxu0 %v81
    %98 = vmatprep.subr.bf16.mxu0 0
    %99 = vmatpush1.bf16.msra.mxu0 0
    %100 = vmatprep.subr.bf16.mxu0 0
    %101 = vmatpush1.bf16.msra.mxu0 0
    %102 = vmatprep.subr.bf16.mxu0 0
    %103 = vmatpush1.bf16.msra.mxu0 0
    %104 = vmatprep.subr.bf16.mxu0 0
    %105 = vmatpush1.bf16.msra.mxu0 0
    %106 = vmatprep.subr.bf16.mxu0 0
    %107 = vmatpush1.bf16.msra.mxu0 0
    %108 = vmatprep.subr.bf16.mxu0 0
    %109 = vmatpush1.bf16.msra.mxu0 0
    %110 = vmatprep.subr.bf16.mxu0 0
    %111 = vmatpush1.bf16.msra.mxu0 0
    %112 = vmatprep.subr.bf16.mxu0 0
    %113 = vmatpush1.bf16.msra.mxu0 0
    %114 = vmatprep.subr.bf16.mxu0 0
    %115 = vmatpush1.bf16.msra.mxu0 0
    %116 = vmatprep.subr.bf16.mxu0 0
    %117 = vmatpush1.bf16.msra.mxu0 0
    %118 = vmatprep.subr.bf16.mxu0 0
    %119 = vmatpush1.bf16.msra.mxu0 0
    %120 = vmatprep.subr.bf16.mxu0 0
    %121 = vmatpush1.bf16.msra.mxu0 0
    %122 = vmatprep.mubr.bf16.mxu0 0
    %123 = vmatmul.mubr.bf16.gmra.mrb[0].mxu0 %v88
    %v124 = vpop.f32.mrb[0].mxu0
    %v125 = vadd.f32 %v60, %v124
    %v126 = vpop.f32.mrb[0].mxu0
    %v127 = vpop.f32.mrb[0].mxu0
    %v128 = vpop.f32.mrb[0].mxu0
    %129 = vdwg.mxu0
    %vm130 = vcmask 254976
    %131 = vst.msk [vmem:[#allocation4] sm:$0x3] %vm130, %v125
    // Predicated region
    $region22: #{spatial_prior_module_forward.25} parent=1 // pred_check
      _
    $region23: #{spatial_prior_module_forward.25} parent=1 // pred_check_branch
      %133 = sbr.rel (0) target = $region25
    $region24: #{spatial_prior_module_forward.25} parent=1 // pred_region
      %s135 = ssub.s32 16, 16
      %136 = vsyncadd [#allocation3], %s135
      %s138 = sshll.u32 [#allocation2], 4
      %s139 = int_to_ptr.vmem [resolvable:$true] %s138
      %141 = dma.vmem_to_hbm [thread:$0]  %s139, 16, %s5, [#allocation3]
    $region25: #{spatial_prior_module_forward.25} parent=1 // pred_fallthru
      _
    // Predicated region
    $region26: #{spatial_prior_module_forward.25} parent=1 // pred_check
      _
    $region27: #{spatial_prior_module_forward.25} parent=1 // pred_check_branch
      %143 = sbr.rel (0) target = $region29
    $region28: #{spatial_prior_module_forward.25} parent=1 // pred_region
      %s145 = ssub.s32 32, 32
      %146 = vsyncadd [#allocation5], %s145
      %s148 = sshll.u32 [#allocation4], 4
      %s149 = int_to_ptr.vmem [resolvable:$true] %s148
      %151 = dma.vmem_to_hbm [thread:$0]  %s149, 32, %s6, [#allocation5]
    $region29: #{spatial_prior_module_forward.25} parent=1 // pred_fallthru
      _
    // Predicated region
    $region30: #{spatial_prior_module_forward.25} parent=1 // pred_check
      _
    $region31: #{spatial_prior_module_forward.25} parent=1 // pred_check_branch
      %153 = sbr.rel (0) target = $region33
    $region32: #{spatial_prior_module_forward.25} parent=1 // pred_region
      %154 = dma.done [#allocation3], 16
    $region33: #{spatial_prior_module_forward.25} parent=1 // pred_fallthru
      _
    // Predicated region
    $region34: #{spatial_prior_module_forward.25} parent=1 // pred_check
      _
    $region35: #{spatial_prior_module_forward.25} parent=1 // pred_check_branch
      %156 = sbr.rel (0) target = $region37
    $region36: #{spatial_prior_module_forward.25} parent=1 // pred_region
      %157 = dma.done [#allocation5], 32
    $region37: #{spatial_prior_module_forward.25} parent=1 // pred_fallthru
      _
    %158 = vsyncpa [#allocation3], 1
    %159 = vsyncpa [#allocation5], 1

// kernel: spatial_prior_module_forward.24
$region0: #{spatial_prior_module_forward.24}
  #allocation0 [shape = 'u32[]', space=smem, size = 0x4, offset = 0x4, fixed_abs, tag = 'smem constant byte address 0x4 - core index']
  #allocation1 [shape = 'u32[144,128]{1,0:T(1,128)}', space=vmem, size = 0x12000, scoped, tag = 'internal scratch']
  %s0 = inlined_call_operand.vmem [shape: bf16[2,576], index: 0, kind: input, shape index: {}]
  %s1 = inlined_call_operand.vmem [shape: bf16[576,64], index: 1, kind: input, shape index: {}]
  %s2 = inlined_call_operand.vmem [shape: bf16[2,64], index: 2, kind: output, shape index: {0}]
  %s3 = inlined_call_operand.vmem [shape: f32[1,1,64], index: 3, kind: output, shape index: {1}]
  %s4 = inlined_call_operand.vmem [shape: f32[1,1,64], index: 4, kind: output, shape index: {2}]
  %5 = xla_tuple %s2, %s3, %s4
  %s6 = sld [smem:[#allocation0]]
  $region34: #{spatial_prior_module_forward.24} parent=0
    _
  %s8 = ssub.s32 1, %s6
  %s9 = scalar_select 0, %s8, %s6
  // Predicated region
  $region2: #{spatial_prior_module_forward.24} parent=0 // pred_check
    _
  $region3: #{spatial_prior_module_forward.24} parent=0 // pred_check_branch
    %11 = sbr.rel (0) target = $region5
  $region4: #{spatial_prior_module_forward.24} parent=0 // pred_region
    _
  $region5: #{spatial_prior_module_forward.24} parent=0 // pred_fallthru
    _
  // Predicated region
  $region6: #{spatial_prior_module_forward.24} parent=0 // pred_check
    _
  $region7: #{spatial_prior_module_forward.24} parent=0 // pred_check_branch
    %13 = sbr.rel (0) target = $region9
  $region8: #{spatial_prior_module_forward.24} parent=0 // pred_region
    _
  $region9: #{spatial_prior_module_forward.24} parent=0 // pred_fallthru
    _
  %v15 = vld [vmem:[%s0] sm:$0x1f]
  %v16 = vld [vmem:[%s1] sm:$0xf]
  %v17 = vld [vmem:[%s1 + $0x4] sm:$0xf]
  %v18 = vld [vmem:[%s1 + $0x8] sm:$0xf]
  %v19 = vld [vmem:[%s1 + $0xc] sm:$0xf]
  %v20 = vld [vmem:[%s1 + $0x10] sm:$0xf]
  %v21 = vld [vmem:[%s1 + $0x14] sm:$0xf]
  %v22 = vld [vmem:[%s1 + $0x18] sm:$0xf]
  %v23 = vld [vmem:[%s1 + $0x1c] sm:$0xf]
  %v24 = vld [vmem:[%s1 + $0x20] sm:$0xf]
  %v25 = vld [vmem:[%s1 + $0x24] sm:$0xf]
  %v26 = vld [vmem:[%s1 + $0x28] sm:$0xf]
  %v27 = vld [vmem:[%s1 + $0x2c] sm:$0xf]
  %v28 = vld [vmem:[%s1 + $0x30] sm:$0xf]
  %v29 = vld [vmem:[%s1 + $0x34] sm:$0xf]
  %v30 = vld [vmem:[%s1 + $0x38] sm:$0xf]
  %v31 = vld [vmem:[%s1 + $0x3c] sm:$0xf]
  %v32 = vld [vmem:[%s1 + $0x40] sm:$0xf]
  %v33 = vld [vmem:[%s1 + $0x44] sm:$0xf]
  %v34 = vld [vmem:[%s1 + $0x48] sm:$0xf]
  %v35 = vld [vmem:[%s1 + $0x4c] sm:$0xf]
  %v36 = vld [vmem:[%s1 + $0x50] sm:$0xf]
  %v37 = vld [vmem:[%s1 + $0x54] sm:$0xf]
  %v38 = vld [vmem:[%s1 + $0x58] sm:$0xf]
  %v39 = vld [vmem:[%s1 + $0x5c] sm:$0xf]
  %v40 = vld [vmem:[%s1 + $0x60] sm:$0xf]
  %v41 = vld [vmem:[%s1 + $0x64] sm:$0xf]
  %v42 = vld [vmem:[%s1 + $0x68] sm:$0xf]
  %v43 = vld [vmem:[%s1 + $0x6c] sm:$0xf]
  %v44 = vld [vmem:[%s1 + $0x70] sm:$0xf]
  %v45 = vld [vmem:[%s1 + $0x74] sm:$0xf]
  %v46 = vld [vmem:[%s1 + $0x78] sm:$0xf]
  %v47 = vld [vmem:[%s1 + $0x7c] sm:$0xf]
  %v48 = vld [vmem:[%s1 + $0x80] sm:$0xf]
  %v49 = vld [vmem:[%s1 + $0x84] sm:$0xf]
  %v50 = vld [vmem:[%s1 + $0x88] sm:$0xf]
  %v51 = vld [vmem:[%s1 + $0x8c] sm:$0xf]
  %v52 = vld [vmem:[%s1 + $0x90] sm:$0xf]
  %v53 = vld [vmem:[%s1 + $0x94] sm:$0xf]
  %v54 = vld [vmem:[%s1 + $0x98] sm:$0xf]
  %v55 = vld [vmem:[%s1 + $0x9c] sm:$0xf]
  %v56 = vld [vmem:[%s1 + $0xa0] sm:$0xf]
  %v57 = vld [vmem:[%s1 + $0xa4] sm:$0xf]
  %v58 = vld [vmem:[%s1 + $0xa8] sm:$0xf]
  %v59 = vld [vmem:[%s1 + $0xac] sm:$0xf]
  %v60 = vld [vmem:[%s1 + $0xb0] sm:$0xf]
  %v61 = vld [vmem:[%s1 + $0xb4] sm:$0xf]
  %v62 = vld [vmem:[%s1 + $0xb8] sm:$0xf]
  %v63 = vld [vmem:[%s1 + $0xbc] sm:$0xf]
  %v64 = vld [vmem:[%s1 + $0xc0] sm:$0xf]
  %v65 = vld [vmem:[%s1 + $0xc4] sm:$0xf]
  %v66 = vld [vmem:[%s1 + $0xc8] sm:$0xf]
  %v67 = vld [vmem:[%s1 + $0xcc] sm:$0xf]
  %v68 = vld [vmem:[%s1 + $0xd0] sm:$0xf]
  %v69 = vld [vmem:[%s1 + $0xd4] sm:$0xf]
  %v70 = vld [vmem:[%s1 + $0xd8] sm:$0xf]
  %v71 = vld [vmem:[%s1 + $0xdc] sm:$0xf]
  %v72 = vld [vmem:[%s1 + $0xe0] sm:$0xf]
  %v73 = vld [vmem:[%s1 + $0xe4] sm:$0xf]
  %v74 = vld [vmem:[%s1 + $0xe8] sm:$0xf]
  %v75 = vld [vmem:[%s1 + $0xec] sm:$0xf]
  %v76 = vld [vmem:[%s1 + $0xf0] sm:$0xf]
  %v77 = vld [vmem:[%s1 + $0xf4] sm:$0xf]
  %v78 = vld [vmem:[%s1 + $0xf8] sm:$0xf]
  %v79 = vld [vmem:[%s1 + $0xfc] sm:$0xf]
  %v80 = vld [vmem:[%s1 + $0x100] sm:$0xf]
  %v81 = vld [vmem:[%s1 + $0x104] sm:$0xf]
  %v82 = vld [vmem:[%s1 + $0x108] sm:$0xf]
  %v83 = vld [vmem:[%s1 + $0x10c] sm:$0xf]
  %v84 = vld [vmem:[%s1 + $0x110] sm:$0xf]
  %v85 = vld [vmem:[%s1 + $0x114] sm:$0xf]
  %v86 = vld [vmem:[%s1 + $0x118] sm:$0xf]
  %v87 = vld [vmem:[%s1 + $0x11c] sm:$0xf]
  %v89 = vcombine.high %v15, %v15
  %v91 = vunpack.c.l.s4 1966171168
  %v92 = vunpack.c.0.s8 %v91
  %v93 = vlaneseq
  %v94 = vshrl.u32 %v93, 7
  %v95 = vsub.s32 %v92, %v94
  %v96 = vrot.slane %v15, %v95
  %v98 = vunpack.c.l.s4 1966171168
  %v99 = vunpack.c.0.s8 %v98
  %v100 = vlaneseq
  %v101 = vshrl.u32 %v100, 7
  %v102 = vsub.s32 %v99, %v101
  %v103 = vrot.slane %v89, %v102
  %v104 = vcombine.high %v96, %v96
  %v106 = vunpack.c.l.s4 1966171168
  %v107 = vunpack.c.0.s8 %v106
  %v108 = vlaneseq
  %v109 = vshrl.u32 %v108, 7
  %v110 = vsub.s32 %v107, %v109
  %v111 = vrot.slane %v96, %v110
  %v113 = vunpack.c.l.s4 1966171168
  %v114 = vunpack.c.0.s8 %v113
  %v115 = vlaneseq
  %v116 = vshrl.u32 %v115, 7
  %v117 = vsub.s32 %v114, %v116
  %v118 = vrot.slane %v103, %v117
  %v120 = vunpack.c.l.s4 1966171168
  %v121 = vunpack.c.0.s8 %v120
  %v122 = vlaneseq
  %v123 = vshrl.u32 %v122, 7
  %v124 = vsub.s32 %v121, %v123
  %v125 = vrot.slane %v104, %v124
  %v126 = vcombine.high %v111, %v111
  %v127 = vcombine.high %v125, %v125
  %v204 = vunpack.c.l.b16 %v16
  %v205 = vunpack.c.l.b16 %v17
  %v206 = vunpack.c.l.b16 %v18
  %v207 = vunpack.c.l.b16 %v19
  %v208 = vunpack.c.l.b16 %v20
  %v209 = vunpack.c.l.b16 %v21
  %v210 = vunpack.c.l.b16 %v22
  %v211 = vunpack.c.l.b16 %v23
  %v212 = vunpack.c.l.b16 %v24
  %v213 = vunpack.c.l.b16 %v25
  %v214 = vunpack.c.l.b16 %v26
  %v215 = vunpack.c.l.b16 %v27
  %v216 = vunpack.c.l.b16 %v28
  %v217 = vunpack.c.l.b16 %v29
  %v218 = vunpack.c.l.b16 %v30
  %v219 = vunpack.c.l.b16 %v31
  %v220 = vunpack.c.l.b16 %v32
  %v221 = vunpack.c.l.b16 %v33
  %v222 = vunpack.c.l.b16 %v34
  %v223 = vunpack.c.l.b16 %v35
  %v224 = vunpack.c.l.b16 %v36
  %v225 = vunpack.c.l.b16 %v37
  %v226 = vunpack.c.l.b16 %v38
  %v227 = vunpack.c.l.b16 %v39
  %v228 = vunpack.c.l.b16 %v40
  %v229 = vunpack.c.l.b16 %v41
  %v230 = vunpack.c.l.b16 %v42
  %v231 = vunpack.c.l.b16 %v43
  %v232 = vunpack.c.l.b16 %v44
  %v233 = vunpack.c.l.b16 %v45
  %v234 = vunpack.c.l.b16 %v46
  %v235 = vunpack.c.l.b16 %v47
  %v236 = vunpack.c.l.b16 %v48
  %v237 = vunpack.c.l.b16 %v49
  %v238 = vunpack.c.l.b16 %v50
  %v239 = vunpack.c.l.b16 %v51
  %v240 = vunpack.c.l.b16 %v52
  %v241 = vunpack.c.l.b16 %v53
  %v242 = vunpack.c.l.b16 %v54
  %v243 = vunpack.c.l.b16 %v55
  %v244 = vunpack.c.l.b16 %v56
  %v245 = vunpack.c.l.b16 %v57
  %v246 = vunpack.c.l.b16 %v58
  %v247 = vunpack.c.l.b16 %v59
  %v248 = vunpack.c.l.b16 %v60
  %v249 = vunpack.c.l.b16 %v61
  %v250 = vunpack.c.l.b16 %v62
  %v251 = vunpack.c.l.b16 %v63
  %v252 = vunpack.c.l.b16 %v64
  %v253 = vunpack.c.l.b16 %v65
  %v254 = vunpack.c.l.b16 %v66
  %v255 = vunpack.c.l.b16 %v67
  %v256 = vunpack.c.l.b16 %v68
  %v257 = vunpack.c.l.b16 %v69
  %v258 = vunpack.c.l.b16 %v70
  %v259 = vunpack.c.l.b16 %v71
  %v260 = vunpack.c.l.b16 %v72
  %v261 = vunpack.c.l.b16 %v73
  %v262 = vunpack.c.l.b16 %v74
  %v263 = vunpack.c.l.b16 %v75
  %v264 = vunpack.c.l.b16 %v76
  %v265 = vunpack.c.l.b16 %v77
  %v266 = vunpack.c.l.b16 %v78
  %v267 = vunpack.c.l.b16 %v79
  %v268 = vunpack.c.l.b16 %v80
  %v269 = vunpack.c.l.b16 %v81
  %v270 = vunpack.c.l.b16 %v82
  %v271 = vunpack.c.l.b16 %v83
  %v272 = vunpack.c.l.b16 %v84
  %v273 = vunpack.c.l.b16 %v85
  %v274 = vunpack.c.l.b16 %v86
  %v275 = vunpack.c.l.b16 %v87
  %v276 = vpack.c.b16 %v205, %v204
  %v277 = vpack.c.b16 %v207, %v206
  %v278 = vpack.c.b16 %v209, %v208
  %v279 = vpack.c.b16 %v211, %v210
  %v280 = vpack.c.b16 %v213, %v212
  %v281 = vpack.c.b16 %v215, %v214
  %v282 = vpack.c.b16 %v217, %v216
  %v283 = vpack.c.b16 %v219, %v218
  %v284 = vpack.c.b16 %v221, %v220
  %v285 = vpack.c.b16 %v223, %v222
  %v286 = vpack.c.b16 %v225, %v224
  %v287 = vpack.c.b16 %v227, %v226
  %v288 = vpack.c.b16 %v229, %v228
  %v289 = vpack.c.b16 %v231, %v230
  %v290 = vpack.c.b16 %v233, %v232
  %v291 = vpack.c.b16 %v235, %v234
  %v292 = vpack.c.b16 %v237, %v236
  %v293 = vpack.c.b16 %v239, %v238
  %v294 = vpack.c.b16 %v241, %v240
  %v295 = vpack.c.b16 %v243, %v242
  %v296 = vpack.c.b16 %v245, %v244
  %v297 = vpack.c.b16 %v247, %v246
  %v298 = vpack.c.b16 %v249, %v248
  %v299 = vpack.c.b16 %v251, %v250
  %v300 = vpack.c.b16 %v253, %v252
  %v301 = vpack.c.b16 %v255, %v254
  %v302 = vpack.c.b16 %v257, %v256
  %v303 = vpack.c.b16 %v259, %v258
  %v304 = vpack.c.b16 %v261, %v260
  %v305 = vpack.c.b16 %v263, %v262
  %v306 = vpack.c.b16 %v265, %v264
  %v307 = vpack.c.b16 %v267, %v266
  %v308 = vpack.c.b16 %v269, %v268
  %v309 = vpack.c.b16 %v271, %v270
  %v310 = vpack.c.b16 %v273, %v272
  %v311 = vpack.c.b16 %v275, %v274
  %vm348 = vcmask 523264
  %v350 = vsel %vm348, %v118, 0
  %352 = vmatprep.subr.bf16.mxu0 0
  %353 = vmatpush1.bf16.msra.mxu0 %v276
  %354 = vmatprep.subr.bf16.mxu0 0
  %355 = vmatpush1.bf16.msra.mxu0 %v277
  %356 = vmatprep.subr.bf16.mxu0 0
  %357 = vmatpush1.bf16.msra.mxu0 %v278
  %358 = vmatprep.subr.bf16.mxu0 0
  %359 = vmatpush1.bf16.msra.mxu0 %v279
  %360 = vmatprep.subr.bf16.mxu0 0
  %361 = vmatpush1.bf16.msra.mxu0 %v280
  %362 = vmatprep.subr.bf16.mxu0 0
  %363 = vmatpush1.bf16.msra.mxu0 %v281
  %364 = vmatprep.subr.bf16.mxu0 0
  %365 = vmatpush1.bf16.msra.mxu0 %v282
  %366 = vmatprep.subr.bf16.mxu0 0
  %367 = vmatpush1.bf16.msra.mxu0 %v283
  %368 = vmatprep.subr.bf16.mxu0 0
  %369 = vmatpush1.bf16.msra.mxu0 %v284
  %370 = vmatprep.subr.bf16.mxu0 0
  %371 = vmatpush1.bf16.msra.mxu0 %v285
  %372 = vmatprep.subr.bf16.mxu0 0
  %373 = vmatpush1.bf16.msra.mxu0 %v286
  %374 = vmatprep.subr.bf16.mxu0 0
  %375 = vmatpush1.bf16.msra.mxu0 %v287
  %376 = vmatprep.subr.bf16.mxu0 0
  %377 = vmatpush1.bf16.msra.mxu0 %v288
  %378 = vmatprep.subr.bf16.mxu0 0
  %379 = vmatpush1.bf16.msra.mxu0 %v289
  %380 = vmatprep.subr.bf16.mxu0 0
  %381 = vmatpush1.bf16.msra.mxu0 %v290
  %382 = vmatprep.subr.bf16.mxu0 0
  %383 = vmatpush1.bf16.msra.mxu0 %v291
  %384 = vmatprep.mubr.bf16.mxu0 %v125
  %385 = vmatmul.mubr.bf16.gmra.mrb[0].mxu0 %v111
  %v386 = vpop.f32.mrb[0].mxu0
  %v387 = vadd.f32 0.0, %v386
  %v388 = vpop.f32.mrb[0].mxu0
  %v389 = vpop.f32.mrb[0].mxu0
  %v390 = vpop.f32.mrb[0].mxu0
  %391 = vdwg.mxu0
  %392 = vmatprep.subr.bf16.mxu0 0
  %393 = vmatpush1.bf16.msra.mxu0 %v292
  %394 = vmatprep.subr.bf16.mxu0 0
  %395 = vmatpush1.bf16.msra.mxu0 %v293
  %396 = vmatprep.subr.bf16.mxu0 0
  %397 = vmatpush1.bf16.msra.mxu0 %v294
  %398 = vmatprep.subr.bf16.mxu0 0
  %399 = vmatpush1.bf16.msra.mxu0 %v295
  %400 = vmatprep.subr.bf16.mxu0 0
  %401 = vmatpush1.bf16.msra.mxu0 %v296
  %402 = vmatprep.subr.bf16.mxu0 0
  %403 = vmatpush1.bf16.msra.mxu0 %v297
  %404 = vmatprep.subr.bf16.mxu0 0
  %405 = vmatpush1.bf16.msra.mxu0 %v298
  %406 = vmatprep.subr.bf16.mxu0 0
  %407 = vmatpush1.bf16.msra.mxu0 %v299
  %408 = vmatprep.subr.bf16.mxu0 0
  %409 = vmatpush1.bf16.msra.mxu0 %v300
  %410 = vmatprep.subr.bf16.mxu0 0
  %411 = vmatpush1.bf16.msra.mxu0 %v301
  %412 = vmatprep.subr.bf16.mxu0 0
  %413 = vmatpush1.bf16.msra.mxu0 %v302
  %414 = vmatprep.subr.bf16.mxu0 0
  %415 = vmatpush1.bf16.msra.mxu0 %v303
  %416 = vmatprep.subr.bf16.mxu0 0
  %417 = vmatpush1.bf16.msra.mxu0 %v304
  %418 = vmatprep.subr.bf16.mxu0 0
  %419 = vmatpush1.bf16.msra.mxu0 %v305
  %420 = vmatprep.subr.bf16.mxu0 0
  %421 = vmatpush1.bf16.msra.mxu0 %v306
  %422 = vmatprep.subr.bf16.mxu0 0
  %423 = vmatpush1.bf16.msra.mxu0 %v307
  %424 = vmatprep.mubr.bf16.mxu0 %v127
  %425 = vmatmul.mubr.bf16.gmra.mrb[0].mxu0 %v126
  %v426 = vpop.f32.mrb[0].mxu0
  %v427 = vadd.f32 %v387, %v426
  %v428 = vpop.f32.mrb[0].mxu0
  %v429 = vpop.f32.mrb[0].mxu0
  %v430 = vpop.f32.mrb[0].mxu0
  %431 = vdwg.mxu0
  %432 = vmatprep.subr.bf16.mxu0 0
  %433 = vmatpush1.bf16.msra.mxu0 %v308
  %434 = vmatprep.subr.bf16.mxu0 0
  %435 = vmatpush1.bf16.msra.mxu0 %v309
  %436 = vmatprep.subr.bf16.mxu0 0
  %437 = vmatpush1.bf16.msra.mxu0 %v310
  %438 = vmatprep.subr.bf16.mxu0 0
  %439 = vmatpush1.bf16.msra.mxu0 %v311
  %440 = vmatprep.subr.bf16.mxu0 0
  %441 = vmatpush1.bf16.msra.mxu0 0
  %442 = vmatprep.subr.bf16.mxu0 0
  %443 = vmatpush1.bf16.msra.mxu0 0
  %444 = vmatprep.subr.bf16.mxu0 0
  %445 = vmatpush1.bf16.msra.mxu0 0
  %446 = vmatprep.subr.bf16.mxu0 0
  %447 = vmatpush1.bf16.msra.mxu0 0
  %448 = vmatprep.subr.bf16.mxu0 0
  %449 = vmatpush1.bf16.msra.mxu0 0
  %450 = vmatprep.subr.bf16.mxu0 0
  %451 = vmatpush1.bf16.msra.mxu0 0
  %452 = vmatprep.subr.bf16.mxu0 0
  %453 = vmatpush1.bf16.msra.mxu0 0
  %454 = vmatprep.subr.bf16.mxu0 0
  %455 = vmatpush1.bf16.msra.mxu0 0
  %456 = vmatprep.subr.bf16.mxu0 0
  %457 = vmatpush1.bf16.msra.mxu0 0
  %458 = vmatprep.subr.bf16.mxu0 0
  %459 = vmatpush1.bf16.msra.mxu0 0
  %460 = vmatprep.subr.bf16.mxu0 0
  %461 = vmatpush1.bf16.msra.mxu0 0
  %462 = vmatprep.subr.bf16.mxu0 0
  %463 = vmatpush1.bf16.msra.mxu0 0
  %464 = vmatprep.mubr.bf16.mxu0 0
  %465 = vmatmul.mubr.bf16.gmra.mrb[0].mxu0 %v350
  %v466 = vpop.f32.mrb[0].mxu0
  %v467 = vadd.f32 %v427, %v466
  %v468 = vpop.f32.mrb[0].mxu0
  %v469 = vpop.f32.mrb[0].mxu0
  %v470 = vpop.f32.mrb[0].mxu0
  %471 = vdwg.mxu0
  %v472 = vpack.c.bf16 %v467, %v467
  %vm473 = vcmask 516096
  %474 = vst.msk [vmem:[%s2] sm:$0x1] %vm473, %v472
  %vm475 = vcmask 517120
  %v476 = vsel %vm475, %v467, 0.0
  %v477 = vrot.slane %v476, 4
  %v478 = vadd.f32 %v476, %v477
  %v479 = vrot.slane %v478, 2
  %v480 = vadd.f32 %v478, %v479
  %v481 = vrot.slane %v480, 1
  %v482 = vadd.f32 %v480, %v481
  %483 = vst.msk [vmem:[%s3] sm:$0x1] %vm473, %v482
  %v484 = vmul.f32 %v467, %v467
  %v485 = vsel %vm475, %v484, 0.0
  %v486 = vrot.slane %v485, 4
  %v487 = vadd.f32 %v485, %v486
  %v488 = vrot.slane %v487, 2
  %v489 = vadd.f32 %v487, %v488
  %v490 = vrot.slane %v489, 1
  %v491 = vadd.f32 %v489, %v490
  %492 = vst.msk [vmem:[%s4] sm:$0x1] %vm473, %v491
  // Predicated region
  $region10: #{spatial_prior_module_forward.24} parent=0 // pred_check
    _
  $region11: #{spatial_prior_module_forward.24} parent=0 // pred_check_branch
    %494 = sbr.rel (0) target = $region13
  $region12: #{spatial_prior_module_forward.24} parent=0 // pred_region
    _
  $region13: #{spatial_prior_module_forward.24} parent=0 // pred_fallthru
    _
  // Predicated region
  $region14: #{spatial_prior_module_forward.24} parent=0 // pred_check
    _
  $region15: #{spatial_prior_module_forward.24} parent=0 // pred_check_branch
    %496 = sbr.rel (0) target = $region17
  $region16: #{spatial_prior_module_forward.24} parent=0 // pred_region
    _
  $region17: #{spatial_prior_module_forward.24} parent=0 // pred_fallthru
    _
  // Predicated region
  $region18: #{spatial_prior_module_forward.24} parent=0 // pred_check
    _
  $region19: #{spatial_prior_module_forward.24} parent=0 // pred_check_branch
    %498 = sbr.rel (0) target = $region21
  $region20: #{spatial_prior_module_forward.24} parent=0 // pred_region
    _
  $region21: #{spatial_prior_module_forward.24} parent=0 // pred_fallthru
    _
  // Predicated region
  $region22: #{spatial_prior_module_forward.24} parent=0 // pred_check
    _
  $region23: #{spatial_prior_module_forward.24} parent=0 // pred_check_branch
    %500 = sbr.rel (0) target = $region25
  $region24: #{spatial_prior_module_forward.24} parent=0 // pred_region
    _
  $region25: #{spatial_prior_module_forward.24} parent=0 // pred_fallthru
    _
  // Predicated region
  $region26: #{spatial_prior_module_forward.24} parent=0 // pred_check
    _
  $region27: #{spatial_prior_module_forward.24} parent=0 // pred_check_branch
    %502 = sbr.rel (0) target = $region29
  $region28: #{spatial_prior_module_forward.24} parent=0 // pred_region
    _
  $region29: #{spatial_prior_module_forward.24} parent=0 // pred_fallthru
    _
  // Predicated region
  $region30: #{spatial_prior_module_forward.24} parent=0 // pred_check
    _
  $region31: #{spatial_prior_module_forward.24} parent=0 // pred_check_branch
    %504 = sbr.rel (0) target = $region33
  $region32: #{spatial_prior_module_forward.24} parent=0 // pred_region
    _
  $region33: #{spatial_prior_module_forward.24} parent=0 // pred_fallthru
    _

</llo_original>
